<compile_context>
chip_gen: v5e
topology: v5e:2x2
jax: 0.10.0
libtpu: 0.0.40
codegen_flags: <defaults>
</compile_context>

<pallas_src>
import math

import jax
import jax.numpy as jnp
from jax.experimental import pallas as pl
from jax.experimental.pallas import tpu as pltpu


DILATIONS = (1, 2, 4, 8)
# Tap offsets used inside the fused kernel; order must match the weight slab
# layout produced by init_dcm().
OFFSETS = (0, -1, 1, -2, 2, -4, 4, -8, 8)
HALO = 8  # max |offset| -> zero halo rows on each side of every activation.


# ----------------------------------------------------------------------------
# Fused Pallas kernel (one grid step = one batch sample)
# ----------------------------------------------------------------------------
def _fused_kernel(x_ref, w1_ref, s1_ref, b1_ref,
                  w_d1, s_d1, b_d1,
                  w_d2, s_d2, b_d2,
                  w_d3, s_d3, b_d3,
                  w_d4, s_d4, b_d4,
                  fw1, fb1, fw2, fb2, fw3, fb3,
                  o_ref,
                  a1, a2, a3, a4, t1, t2, t3, t4):
    f32 = jnp.float32

    # Zero the halo rows.  Done every grid step (not gated on program_id==0):
    # scratch is per-core and the "parallel" axis iteration order/partitioning
    # is unspecified under megacore, so a one-time init would be unsafe.
    # Cost: 8 tiny stores per sample.
    for ref in (a1, a2, a3, a4):
        rows, cols = ref.shape
        z = jnp.zeros((HALO, cols), ref.dtype)
        ref[0:HALO, :] = z
        ref[rows - HALO:rows, :] = z

    # ---- conv1 (Cin=1, K=7, pad=3) + BN + ReLU + MaxPool(4) -----------------
    # In-kernel im2col: 8 lane-shifted slices of the (1, L+8) row -> (8, L),
    # transposed once to (L, 8), then a single (L,8)@(8,16) MXU matmul.
    L1 = a1.shape[0] - 2 * HALO
    L = 4 * L1
    xrow = x_ref[0].astype(f32)                                           # (1, L+8)
    taps = jnp.concatenate([xrow[:, k:k + L] for k in range(8)], axis=0)  # (8, L)
    c1 = jnp.dot(taps.T, w1_ref[...], preferred_element_type=f32)         # (L, 16)
    y1 = jnp.maximum(c1 * s1_ref[...] + b1_ref[...], 0.0)
    a1[HALO:HALO + L1, :] = jnp.max(y1.reshape(L1, 4, 16), axis=1).astype(a1.dtype)

    def dcm(in_ref, out_ref, slab, w_ref, s_ref, b_ref, pool):
        """DilatedCovModule (4 dilated convs + folded BN + ReLU, channel
        concat) fused with the following MaxPool1d(pool).

        The 9 shifted tap windows of the halo'd input are staged into ONE
        (L_in, 9*Cin) bf16 slab (relayout paid once), then a single deep-K
        bf16 matmul against the (9*Cin, Cout) weight slab produces all four
        branches at once.  Side-tap weight rows are zero outside their
        branch's output columns, so the result is numerically exact.
        in_ref/out_ref carry an 8-row zero halo; out_ref=None returns the
        pooled value instead of storing it."""
        L_in = in_ref.shape[0] - 2 * HALO
        Cin = in_ref.shape[1]
        Cout = w_ref.shape[1]
        Lo = L_in // pool
        for t, off in enumerate(OFFSETS):
            slab[:, t * Cin:(t + 1) * Cin] = (
                in_ref[HALO + off:HALO + off + L_in, :].astype(slab.dtype))
        acc = jnp.dot(slab[...], w_ref[...], preferred_element_type=f32)  # (L_in, Cout)
        y = jnp.maximum(acc * s_ref[...] + b_ref[...], 0.0)
        p = jnp.max(y.reshape(Lo, pool, Cout), axis=1)                    # (Lo, Cout)
        if out_ref is None:
            return p
        out_ref[HALO:HALO + Lo, :] = p.astype(out_ref.dtype)
        return None

    dcm(a1, a2, t1, w_d1, s_d1, b_d1, pool=4)
    dcm(a2, a3, t2, w_d2, s_d2, b_d2, pool=4)
    dcm(a3, a4, t3, w_d3, s_d3, b_d3, pool=4)
    L4 = a4.shape[0] - 2 * HALO
    feat = dcm(a4, None, t4, w_d4, s_d4, b_d4, pool=L4)                   # (1, 128)

    # ---- MLP head (fc1 + ReLU + fc2 + ReLU + out) fused in the epilogue ----
    h = jnp.maximum(
        jnp.dot(feat, fw1[...], preferred_element_type=f32) + fb1[...], 0.0)
    h = jnp.maximum(
        jnp.dot(h, fw2[...], preferred_element_type=f32) + fb2[...], 0.0)
    o_ref[0] = jnp.dot(h, fw3[...], preferred_element_type=f32) + fb3[...]


# ----------------------------------------------------------------------------
# Forward-pass wrapper
# ----------------------------------------------------------------------------
def dilated_net_forward(x_ncl, params):
    N, cin, L = x_ncl.shape
    assert cin == 1
    # pools 4*4*4*4 then a global pool -> length 1 (fc1 expects 128 features);
    # also guarantees every MaxPool divides its input length exactly.
    assert L % 256 == 0 and L >= 256, "sequence length must be a multiple of 256"
    L1, L2, L3, L4 = L // 4, L // 16, L // 64, L // 256

    # Lane-dense input: (N, 1, L+8) bf16.  3 zeros on the left (conv padding)
    # and 5 on the right (3 conv padding + 2 so the dummy 8th tap slice stays
    # in range; its weight row is zero).  ~16x less HBM traffic than the old
    # (N, L, 8) f32 host-side im2col.
    xp = jnp.pad(x_ncl[:, 0, :], ((0, 0), (3, 5))).astype(jnp.bfloat16)
    xp = xp[:, None, :]                                                   # (N, 1, L+8)

    args = [xp, params["conv1_w"], params["bn1_scale"], params["bn1_shift"]]
    for name in ("dcm1", "dcm2", "dcm3", "dcm4"):
        args.extend(params[name])
    for name in ("fc1", "fc2", "out"):
        args.extend(params[name])

    in_specs = [pl.BlockSpec((1, 1, L + 8), lambda n: (n, 0, 0))]
    for a in args[1:]:
        in_specs.append(pl.BlockSpec(a.shape, lambda n, _nd=a.ndim: (0,) * _nd))

    bf16, f32 = jnp.bfloat16, jnp.float32
    out = pl.pallas_call(
        _fused_kernel,
        out_shape=jax.ShapeDtypeStruct((N, 1, 2), f32),
        grid=(N,),
        in_specs=in_specs,
        out_specs=pl.BlockSpec((1, 1, 2), lambda n: (n, 0, 0)),
        scratch_shapes=[
            pltpu.VMEM((L1 + 2 * HALO, 16), f32),    # conv1 out (+halo)
            pltpu.VMEM((L2 + 2 * HALO, 32), f32),    # DCM1 out  (+halo)
            pltpu.VMEM((L3 + 2 * HALO, 64), f32),    # DCM2 out  (+halo)
            pltpu.VMEM((L4 + 2 * HALO, 128), f32),   # DCM3 out  (+halo)
            pltpu.VMEM((L1, 9 * 16), bf16),          # DCM1 K-concat tap slab
            pltpu.VMEM((L2, 9 * 32), bf16),          # DCM2 K-concat tap slab
            pltpu.VMEM((L3, 9 * 64), bf16),          # DCM3 K-concat tap slab
            pltpu.VMEM((L4, 9 * 128), bf16),         # DCM4 K-concat tap slab
        ],
        compiler_params=pltpu.CompilerParams(
            dimension_semantics=("parallel",),
            vmem_limit_bytes=32 * 1024 * 1024),
    )(*args)
    return out.reshape(N, 2)


# ----------------------------------------------------------------------------
# Deterministic parameter init (shapes from the PyTorch module's __init__)
# ----------------------------------------------------------------------------
def init_conv_weight(key, c_out, c_in, k):
    bound = 1.0 / math.sqrt(c_in * k)
    w = jax.random.uniform(key, (c_out, c_in, k), jnp.float32, -bound, bound)
    return jnp.transpose(w, (2, 1, 0))                                    # (K, C_in, C_out)


def init_bn(key, c, eps=1e-5):
    k1, k2, k3, k4 = jax.random.split(key, 4)
    gamma = jax.random.uniform(k1, (c,), jnp.float32, 0.5, 1.5)
    beta = jax.random.uniform(k2, (c,), jnp.float32, -0.1, 0.1)
    mean = 0.1 * jax.random.normal(k3, (c,), jnp.float32)
    var = jax.random.uniform(k4, (c,), jnp.float32, 0.5, 1.5)
    scale = gamma * jax.lax.rsqrt(var + eps)
    shift = beta - mean * scale
    return scale, shift


def init_dcm(key, c_in, c_out):
    """Returns (w, scale, shift) for one DilatedCovModule.

    w:     (9*c_in, c_out) bf16 — the K-concatenated weight slab.  Row block t
           corresponds to tap offset OFFSETS[t]; block 0 (offset 0) merges the
           center taps of all 4 branches, each +-d block is zero outside that
           branch's output channels (so one deep-K matmul is exact).
    scale: (1, c_out)  shift: (1, c_out) — folded eval-mode BatchNorm (f32).
    """
    c4 = c_out // 4
    keys = jax.random.split(key, 8)
    taps, scales, shifts = [], [], []
    for i in range(4):
        taps.append(init_conv_weight(keys[i], c4, c_in, 3))               # (3, c_in, c4)
        s, b = init_bn(keys[4 + i], c4)
        scales.append(s)
        shifts.append(b)
    w_list = [jnp.concatenate([taps[i][1] for i in range(4)], axis=-1)]   # offset 0
    for di in range(4):
        for k in (0, 2):                                                  # -d then +d
            wz = jnp.zeros((c_in, c_out), jnp.float32)
            wz = wz.at[:, di * c4:(di + 1) * c4].set(taps[di][k])
            w_list.append(wz)
    w = jnp.stack(w_list, axis=0).reshape(9 * c_in, c_out).astype(jnp.bfloat16)
    scale = jnp.concatenate(scales).reshape(1, c_out)
    shift = jnp.concatenate(shifts).reshape(1, c_out)
    return w, scale, shift


def init_linear(key, out_f, in_f):
    k1, k2 = jax.random.split(key)
    bound = 1.0 / math.sqrt(in_f)
    w = jax.random.uniform(k1, (out_f, in_f), jnp.float32, -bound, bound)
    b = jax.random.uniform(k2, (1, out_f), jnp.float32, -bound, bound)
    return jnp.transpose(w), b                                            # (in_f, out_f), (1, out_f)


def init_params(key):
    ks = jax.random.split(key, 9)
    params = {}
    w1 = init_conv_weight(ks[0], 16, 1, 7)[:, 0, :]                       # (7, 16)
    params["conv1_w"] = jnp.concatenate(
        [w1, jnp.zeros((1, 16), jnp.float32)], axis=0)                    # (8, 16), row 7 dummy
    s, b = init_bn(ks[1], 16)
    params["bn1_scale"] = s.reshape(1, 16)
    params["bn1_shift"] = b.reshape(1, 16)
    params["dcm1"] = init_dcm(ks[2], 16, 32)
    params["dcm2"] = init_dcm(ks[3], 32, 64)
    params["dcm3"] = init_dcm(ks[4], 64, 128)
    params["dcm4"] = init_dcm(ks[5], 128, 128)
    params["fc1"] = init_linear(ks[6], 64, 128)
    params["fc2"] = init_linear(ks[7], 32, 64)
    params["out"] = init_linear(ks[8], 2, 32)
    return params


if __name__ == "__main__":
    key = jax.random.PRNGKey(0)
    k_params, k_x = jax.random.split(key)
    params = init_params(k_params)

    # Small input consistent with the module: L must be a multiple of 256 so
    # the final (global) pool reduces the sequence to 1 (fc1 expects 128
    # features), matching max_pool1d(375) in the L=96000 reference case.
    N, L = 2, 1024
    x = jax.random.normal(k_x, (N, 1, L), jnp.float32)                    # NCL like PyTorch

    fwd = jax.jit(dilated_net_forward)
    out = jax.block_until_ready(fwd(x, params))
    assert out.shape == (N, 2), out.shape
    assert bool(jnp.all(jnp.isfinite(out)))
    print("KERNEL_OK")
</pallas_src>

<mosaic_0001>
module attributes {stable_mosaic.version = 11 : i64} {
  func.func @_fused_kernel(%arg0: i32, %arg1: memref<1x1x1032xbf16, #tpu.memory_space<vmem>>, %arg2: memref<8x16xf32, #tpu.memory_space<vmem>>, %arg3: memref<1x16xf32, #tpu.memory_space<vmem>>, %arg4: memref<1x16xf32, #tpu.memory_space<vmem>>, %arg5: memref<144x32xbf16, #tpu.memory_space<vmem>>, %arg6: memref<1x32xf32, #tpu.memory_space<vmem>>, %arg7: memref<1x32xf32, #tpu.memory_space<vmem>>, %arg8: memref<288x64xbf16, #tpu.memory_space<vmem>>, %arg9: memref<1x64xf32, #tpu.memory_space<vmem>>, %arg10: memref<1x64xf32, #tpu.memory_space<vmem>>, %arg11: memref<576x128xbf16, #tpu.memory_space<vmem>>, %arg12: memref<1x128xf32, #tpu.memory_space<vmem>>, %arg13: memref<1x128xf32, #tpu.memory_space<vmem>>, %arg14: memref<1152x128xbf16, #tpu.memory_space<vmem>>, %arg15: memref<1x128xf32, #tpu.memory_space<vmem>>, %arg16: memref<1x128xf32, #tpu.memory_space<vmem>>, %arg17: memref<128x64xf32, #tpu.memory_space<vmem>>, %arg18: memref<1x64xf32, #tpu.memory_space<vmem>>, %arg19: memref<64x32xf32, #tpu.memory_space<vmem>>, %arg20: memref<1x32xf32, #tpu.memory_space<vmem>>, %arg21: memref<32x2xf32, #tpu.memory_space<vmem>>, %arg22: memref<1x2xf32, #tpu.memory_space<vmem>>, %arg23: memref<1x1x2xf32, #tpu.memory_space<vmem>>, %arg24: memref<272x16xf32, #tpu.memory_space<vmem>>, %arg25: memref<80x32xf32, #tpu.memory_space<vmem>>, %arg26: memref<32x64xf32, #tpu.memory_space<vmem>>, %arg27: memref<20x128xf32, #tpu.memory_space<vmem>>, %arg28: memref<256x144xbf16, #tpu.memory_space<vmem>>, %arg29: memref<64x288xbf16, #tpu.memory_space<vmem>>, %arg30: memref<16x576xbf16, #tpu.memory_space<vmem>>, %arg31: memref<4x1152xbf16, #tpu.memory_space<vmem>>) attributes {dimension_semantics = [#tpu.dimension_semantics<parallel>], iteration_bounds = array<i64: 2>, scalar_prefetch = 0 : i64, scratch_operands = 8 : i64, tpu.core_type = #tpu.core_type<tc>, window_params = [{transform_indices = @transform_0, window_bounds = array<i64: 1, 1, 1032>}, {pipeline_mode = #tpu.pipeline_mode<synchronous>, transform_indices = @transform_1, window_bounds = array<i64: 8, 16>}, {pipeline_mode = #tpu.pipeline_mode<synchronous>, transform_indices = @transform_2, window_bounds = array<i64: 1, 16>}, {pipeline_mode = #tpu.pipeline_mode<synchronous>, transform_indices = @transform_3, window_bounds = array<i64: 1, 16>}, {pipeline_mode = #tpu.pipeline_mode<synchronous>, transform_indices = @transform_4, window_bounds = array<i64: 144, 32>}, {pipeline_mode = #tpu.pipeline_mode<synchronous>, transform_indices = @transform_5, window_bounds = array<i64: 1, 32>}, {pipeline_mode = #tpu.pipeline_mode<synchronous>, transform_indices = @transform_6, window_bounds = array<i64: 1, 32>}, {pipeline_mode = #tpu.pipeline_mode<synchronous>, transform_indices = @transform_7, window_bounds = array<i64: 288, 64>}, {pipeline_mode = #tpu.pipeline_mode<synchronous>, transform_indices = @transform_8, window_bounds = array<i64: 1, 64>}, {pipeline_mode = #tpu.pipeline_mode<synchronous>, transform_indices = @transform_9, window_bounds = array<i64: 1, 64>}, {pipeline_mode = #tpu.pipeline_mode<synchronous>, transform_indices = @transform_10, window_bounds = array<i64: 576, 128>}, {pipeline_mode = #tpu.pipeline_mode<synchronous>, transform_indices = @transform_11, window_bounds = array<i64: 1, 128>}, {pipeline_mode = #tpu.pipeline_mode<synchronous>, transform_indices = @transform_12, window_bounds = array<i64: 1, 128>}, {pipeline_mode = #tpu.pipeline_mode<synchronous>, transform_indices = @transform_13, window_bounds = array<i64: 1152, 128>}, {pipeline_mode = #tpu.pipeline_mode<synchronous>, transform_indices = @transform_14, window_bounds = array<i64: 1, 128>}, {pipeline_mode = #tpu.pipeline_mode<synchronous>, transform_indices = @transform_15, window_bounds = array<i64: 1, 128>}, {pipeline_mode = #tpu.pipeline_mode<synchronous>, transform_indices = @transform_16, window_bounds = array<i64: 128, 64>}, {pipeline_mode = #tpu.pipeline_mode<synchronous>, transform_indices = @transform_17, window_bounds = array<i64: 1, 64>}, {pipeline_mode = #tpu.pipeline_mode<synchronous>, transform_indices = @transform_18, window_bounds = array<i64: 64, 32>}, {pipeline_mode = #tpu.pipeline_mode<synchronous>, transform_indices = @transform_19, window_bounds = array<i64: 1, 32>}, {pipeline_mode = #tpu.pipeline_mode<synchronous>, transform_indices = @transform_20, window_bounds = array<i64: 32, 2>}, {pipeline_mode = #tpu.pipeline_mode<synchronous>, transform_indices = @transform_21, window_bounds = array<i64: 1, 2>}, {transform_indices = @transform_22, window_bounds = array<i64: 1, 1, 2>}]} {
    %cst = arith.constant 0.000000e+00 : f32
    %0 = vector.broadcast %cst : f32 to vector<8x16xf32>
    %c0 = arith.constant 0 : index
    %c0_0 = arith.constant 0 : index
    %1 = vector.load %arg24[%c0, %c0_0] : memref<272x16xf32, #tpu.memory_space<vmem>>, vector<8x16xf32>
    tpu.vector_store %arg24[%c0, %c0_0], %0 {strides = array<i32>} : memref<272x16xf32, #tpu.memory_space<vmem>>, vector<8x16xf32>,
    %c264 = arith.constant 264 : index
    %c0_1 = arith.constant 0 : index
    %2 = vector.load %arg24[%c264, %c0_1] : memref<272x16xf32, #tpu.memory_space<vmem>>, vector<8x16xf32>
    tpu.vector_store %arg24[%c264, %c0_1], %0 {strides = array<i32>} : memref<272x16xf32, #tpu.memory_space<vmem>>, vector<8x16xf32>,
    %cst_2 = arith.constant 0.000000e+00 : f32
    %3 = vector.broadcast %cst_2 : f32 to vector<8x32xf32>
    %c0_3 = arith.constant 0 : index
    %c0_4 = arith.constant 0 : index
    %4 = vector.load %arg25[%c0_3, %c0_4] : memref<80x32xf32, #tpu.memory_space<vmem>>, vector<8x32xf32>
    tpu.vector_store %arg25[%c0_3, %c0_4], %3 {strides = array<i32>} : memref<80x32xf32, #tpu.memory_space<vmem>>, vector<8x32xf32>,
    %c72 = arith.constant 72 : index
    %c0_5 = arith.constant 0 : index
    %5 = vector.load %arg25[%c72, %c0_5] : memref<80x32xf32, #tpu.memory_space<vmem>>, vector<8x32xf32>
    tpu.vector_store %arg25[%c72, %c0_5], %3 {strides = array<i32>} : memref<80x32xf32, #tpu.memory_space<vmem>>, vector<8x32xf32>,
    %cst_6 = arith.constant 0.000000e+00 : f32
    %6 = vector.broadcast %cst_6 : f32 to vector<8x64xf32>
    %c0_7 = arith.constant 0 : index
    %c0_8 = arith.constant 0 : index
    %7 = vector.load %arg26[%c0_7, %c0_8] : memref<32x64xf32, #tpu.memory_space<vmem>>, vector<8x64xf32>
    tpu.vector_store %arg26[%c0_7, %c0_8], %6 {strides = array<i32>} : memref<32x64xf32, #tpu.memory_space<vmem>>, vector<8x64xf32>,
    %c24 = arith.constant 24 : index
    %c0_9 = arith.constant 0 : index
    %8 = vector.load %arg26[%c24, %c0_9] : memref<32x64xf32, #tpu.memory_space<vmem>>, vector<8x64xf32>
    tpu.vector_store %arg26[%c24, %c0_9], %6 {strides = array<i32>} : memref<32x64xf32, #tpu.memory_space<vmem>>, vector<8x64xf32>,
    %cst_10 = arith.constant 0.000000e+00 : f32
    %9 = vector.broadcast %cst_10 : f32 to vector<8x128xf32>
    %c0_11 = arith.constant 0 : index
    %c0_12 = arith.constant 0 : index
    %10 = vector.load %arg27[%c0_11, %c0_12] : memref<20x128xf32, #tpu.memory_space<vmem>>, vector<8x128xf32>
    tpu.vector_store %arg27[%c0_11, %c0_12], %9 {strides = array<i32>} : memref<20x128xf32, #tpu.memory_space<vmem>>, vector<8x128xf32>,
    %c12 = arith.constant 12 : index
    %c0_13 = arith.constant 0 : index
    %11 = vector.load %arg27[%c12, %c0_13] : memref<20x128xf32, #tpu.memory_space<vmem>>, vector<8x128xf32>
    tpu.vector_store %arg27[%c12, %c0_13], %9 {strides = array<i32>} : memref<20x128xf32, #tpu.memory_space<vmem>>, vector<8x128xf32>,
    %c0_14 = arith.constant 0 : index
    %c0_15 = arith.constant 0 : index
    %c0_16 = arith.constant 0 : index
    %12 = vector.load %arg1[%c0_14, %c0_15, %c0_16] : memref<1x1x1032xbf16, #tpu.memory_space<vmem>>, vector<1x1x1032xbf16>
    %13 = vector.shape_cast %12 : vector<1x1x1032xbf16> to vector<1x1032xbf16>
    %14 = arith.extf %13 : vector<1x1032xbf16> to vector<1x1032xf32>
    %15 = vector.extract_strided_slice %14 {offsets = [0, 0], sizes = [1, 1024], strides = [1, 1]} : vector<1x1032xf32> to vector<1x1024xf32>
    %16 = vector.extract_strided_slice %14 {offsets = [0, 1], sizes = [1, 1024], strides = [1, 1]} : vector<1x1032xf32> to vector<1x1024xf32>
    %17 = vector.extract_strided_slice %14 {offsets = [0, 2], sizes = [1, 1024], strides = [1, 1]} : vector<1x1032xf32> to vector<1x1024xf32>
    %18 = vector.extract_strided_slice %14 {offsets = [0, 3], sizes = [1, 1024], strides = [1, 1]} : vector<1x1032xf32> to vector<1x1024xf32>
    %19 = vector.extract_strided_slice %14 {offsets = [0, 4], sizes = [1, 1024], strides = [1, 1]} : vector<1x1032xf32> to vector<1x1024xf32>
    %20 = vector.extract_strided_slice %14 {offsets = [0, 5], sizes = [1, 1024], strides = [1, 1]} : vector<1x1032xf32> to vector<1x1024xf32>
    %21 = vector.extract_strided_slice %14 {offsets = [0, 6], sizes = [1, 1024], strides = [1, 1]} : vector<1x1032xf32> to vector<1x1024xf32>
    %22 = vector.extract_strided_slice %14 {offsets = [0, 7], sizes = [1, 1024], strides = [1, 1]} : vector<1x1032xf32> to vector<1x1024xf32>
    %23 = tpu.concatenate %15, %16, %17, %18, %19, %20, %21, %22 in 0 : vector<1x1024xf32>, vector<1x1024xf32>, vector<1x1024xf32>, vector<1x1024xf32>, vector<1x1024xf32>, vector<1x1024xf32>, vector<1x1024xf32>, vector<1x1024xf32> -> vector<8x1024xf32>
    %24 = tpu.transpose %23, [1, 0] : vector<8x1024xf32> -> vector<1024x8xf32>
    %c0_17 = arith.constant 0 : index
    %c0_18 = arith.constant 0 : index
    %25 = vector.load %arg2[%c0_17, %c0_18] : memref<8x16xf32, #tpu.memory_space<vmem>>, vector<8x16xf32>
    %cst_19 = arith.constant dense<0.000000e+00> : vector<1024x16xf32>
    %26 = tpu.matmul %24, %25, %cst_19 {dimension_numbers = #tpu.dot_dimension_numbers<[1], [0], [0], [1], [0, 0, 1, 1], [], []>} : vector<1024x8xf32>, vector<8x16xf32>, vector<1024x16xf32> -> vector<1024x16xf32>
    %c0_20 = arith.constant 0 : index
    %c0_21 = arith.constant 0 : index
    %27 = vector.load %arg3[%c0_20, %c0_21] : memref<1x16xf32, #tpu.memory_space<vmem>>, vector<1x16xf32>
    %28 = vector.broadcast %27 : vector<1x16xf32> to vector<1024x16xf32>
    %29 = arith.mulf %26, %28 : vector<1024x16xf32>
    %c0_22 = arith.constant 0 : index
    %c0_23 = arith.constant 0 : index
    %30 = vector.load %arg4[%c0_22, %c0_23] : memref<1x16xf32, #tpu.memory_space<vmem>>, vector<1x16xf32>
    %31 = vector.broadcast %30 : vector<1x16xf32> to vector<1024x16xf32>
    %32 = arith.addf %29, %31 : vector<1024x16xf32>
    %cst_24 = arith.constant 0.000000e+00 : f32
    %33 = vector.broadcast %cst_24 : f32 to vector<1024x16xf32>
    %34 = arith.maximumf %32, %33 : vector<1024x16xf32>
    %35 = vector.shape_cast %34 : vector<1024x16xf32> to vector<256x4x16xf32>
    %cst_25 = arith.constant dense<0xFF800000> : vector<256x16xf32>
    %36 = vector.multi_reduction <maximumf>, %35, %cst_25 [1] : vector<256x4x16xf32> to vector<256x16xf32>
    %c8 = arith.constant 8 : index
    %c0_26 = arith.constant 0 : index
    %37 = vector.load %arg24[%c8, %c0_26] : memref<272x16xf32, #tpu.memory_space<vmem>>, vector<256x16xf32>
    tpu.vector_store %arg24[%c8, %c0_26], %36 {strides = array<i32>} : memref<272x16xf32, #tpu.memory_space<vmem>>, vector<256x16xf32>,
    %c8_27 = arith.constant 8 : index
    %c0_28 = arith.constant 0 : index
    %38 = vector.load %arg24[%c8_27, %c0_28] : memref<272x16xf32, #tpu.memory_space<vmem>>, vector<256x16xf32>
    %39 = arith.truncf %38 : vector<256x16xf32> to vector<256x16xbf16>
    %c0_29 = arith.constant 0 : index
    %c0_30 = arith.constant 0 : index
    %40 = vector.load %arg28[%c0_29, %c0_30] : memref<256x144xbf16, #tpu.memory_space<vmem>>, vector<256x16xbf16>
    tpu.vector_store %arg28[%c0_29, %c0_30], %39 {strides = array<i32>} : memref<256x144xbf16, #tpu.memory_space<vmem>>, vector<256x16xbf16>,
    %c7 = arith.constant 7 : index
    %c0_31 = arith.constant 0 : index
    %41 = vector.load %arg24[%c7, %c0_31] : memref<272x16xf32, #tpu.memory_space<vmem>>, vector<256x16xf32>
    %42 = arith.truncf %41 : vector<256x16xf32> to vector<256x16xbf16>
    %c0_32 = arith.constant 0 : index
    %c16 = arith.constant 16 : index
    %43 = vector.load %arg28[%c0_32, %c16] : memref<256x144xbf16, #tpu.memory_space<vmem>>, vector<256x16xbf16>
    tpu.vector_store %arg28[%c0_32, %c16], %42 {strides = array<i32>} : memref<256x144xbf16, #tpu.memory_space<vmem>>, vector<256x16xbf16>,
    %c9 = arith.constant 9 : index
    %c0_33 = arith.constant 0 : index
    %44 = vector.load %arg24[%c9, %c0_33] : memref<272x16xf32, #tpu.memory_space<vmem>>, vector<256x16xf32>
    %45 = arith.truncf %44 : vector<256x16xf32> to vector<256x16xbf16>
    %c0_34 = arith.constant 0 : index
    %c32 = arith.constant 32 : index
    %46 = vector.load %arg28[%c0_34, %c32] : memref<256x144xbf16, #tpu.memory_space<vmem>>, vector<256x16xbf16>
    tpu.vector_store %arg28[%c0_34, %c32], %45 {strides = array<i32>} : memref<256x144xbf16, #tpu.memory_space<vmem>>, vector<256x16xbf16>,
    %c6 = arith.constant 6 : index
    %c0_35 = arith.constant 0 : index
    %47 = vector.load %arg24[%c6, %c0_35] : memref<272x16xf32, #tpu.memory_space<vmem>>, vector<256x16xf32>
    %48 = arith.truncf %47 : vector<256x16xf32> to vector<256x16xbf16>
    %c0_36 = arith.constant 0 : index
    %c48 = arith.constant 48 : index
    %49 = vector.load %arg28[%c0_36, %c48] : memref<256x144xbf16, #tpu.memory_space<vmem>>, vector<256x16xbf16>
    tpu.vector_store %arg28[%c0_36, %c48], %48 {strides = array<i32>} : memref<256x144xbf16, #tpu.memory_space<vmem>>, vector<256x16xbf16>,
    %c10 = arith.constant 10 : index
    %c0_37 = arith.constant 0 : index
    %50 = vector.load %arg24[%c10, %c0_37] : memref<272x16xf32, #tpu.memory_space<vmem>>, vector<256x16xf32>
    %51 = arith.truncf %50 : vector<256x16xf32> to vector<256x16xbf16>
    %c0_38 = arith.constant 0 : index
    %c64 = arith.constant 64 : index
    %52 = vector.load %arg28[%c0_38, %c64] : memref<256x144xbf16, #tpu.memory_space<vmem>>, vector<256x16xbf16>
    tpu.vector_store %arg28[%c0_38, %c64], %51 {strides = array<i32>} : memref<256x144xbf16, #tpu.memory_space<vmem>>, vector<256x16xbf16>,
    %c4 = arith.constant 4 : index
    %c0_39 = arith.constant 0 : index
    %53 = vector.load %arg24[%c4, %c0_39] : memref<272x16xf32, #tpu.memory_space<vmem>>, vector<256x16xf32>
    %54 = arith.truncf %53 : vector<256x16xf32> to vector<256x16xbf16>
    %c0_40 = arith.constant 0 : index
    %c80 = arith.constant 80 : index
    %55 = vector.load %arg28[%c0_40, %c80] : memref<256x144xbf16, #tpu.memory_space<vmem>>, vector<256x16xbf16>
    tpu.vector_store %arg28[%c0_40, %c80], %54 {strides = array<i32>} : memref<256x144xbf16, #tpu.memory_space<vmem>>, vector<256x16xbf16>,
    %c12_41 = arith.constant 12 : index
    %c0_42 = arith.constant 0 : index
    %56 = vector.load %arg24[%c12_41, %c0_42] : memref<272x16xf32, #tpu.memory_space<vmem>>, vector<256x16xf32>
    %57 = arith.truncf %56 : vector<256x16xf32> to vector<256x16xbf16>
    %c0_43 = arith.constant 0 : index
    %c96 = arith.constant 96 : index
    %58 = vector.load %arg28[%c0_43, %c96] : memref<256x144xbf16, #tpu.memory_space<vmem>>, vector<256x16xbf16>
    tpu.vector_store %arg28[%c0_43, %c96], %57 {strides = array<i32>} : memref<256x144xbf16, #tpu.memory_space<vmem>>, vector<256x16xbf16>,
    %c0_44 = arith.constant 0 : index
    %c0_45 = arith.constant 0 : index
    %59 = vector.load %arg24[%c0_44, %c0_45] : memref<272x16xf32, #tpu.memory_space<vmem>>, vector<256x16xf32>
    %60 = arith.truncf %59 : vector<256x16xf32> to vector<256x16xbf16>
    %c0_46 = arith.constant 0 : index
    %c112 = arith.constant 112 : index
    %61 = vector.load %arg28[%c0_46, %c112] : memref<256x144xbf16, #tpu.memory_space<vmem>>, vector<256x16xbf16>
    tpu.vector_store %arg28[%c0_46, %c112], %60 {strides = array<i32>} : memref<256x144xbf16, #tpu.memory_space<vmem>>, vector<256x16xbf16>,
    %c16_47 = arith.constant 16 : index
    %c0_48 = arith.constant 0 : index
    %62 = vector.load %arg24[%c16_47, %c0_48] : memref<272x16xf32, #tpu.memory_space<vmem>>, vector<256x16xf32>
    %63 = arith.truncf %62 : vector<256x16xf32> to vector<256x16xbf16>
    %c0_49 = arith.constant 0 : index
    %c128 = arith.constant 128 : index
    %64 = vector.load %arg28[%c0_49, %c128] : memref<256x144xbf16, #tpu.memory_space<vmem>>, vector<256x16xbf16>
    tpu.vector_store %arg28[%c0_49, %c128], %63 {strides = array<i32>} : memref<256x144xbf16, #tpu.memory_space<vmem>>, vector<256x16xbf16>,
    %c0_50 = arith.constant 0 : index
    %c0_51 = arith.constant 0 : index
    %65 = vector.load %arg28[%c0_50, %c0_51] : memref<256x144xbf16, #tpu.memory_space<vmem>>, vector<256x144xbf16>
    %c0_52 = arith.constant 0 : index
    %c0_53 = arith.constant 0 : index
    %66 = vector.load %arg5[%c0_52, %c0_53] : memref<144x32xbf16, #tpu.memory_space<vmem>>, vector<144x32xbf16>
    %cst_54 = arith.constant dense<0.000000e+00> : vector<256x32xf32>
    %67 = tpu.matmul %65, %66, %cst_54 {dimension_numbers = #tpu.dot_dimension_numbers<[1], [0], [0], [1], [0, 0, 1, 1], [], []>} : vector<256x144xbf16>, vector<144x32xbf16>, vector<256x32xf32> -> vector<256x32xf32>
    %c0_55 = arith.constant 0 : index
    %c0_56 = arith.constant 0 : index
    %68 = vector.load %arg6[%c0_55, %c0_56] : memref<1x32xf32, #tpu.memory_space<vmem>>, vector<1x32xf32>
    %69 = vector.broadcast %68 : vector<1x32xf32> to vector<256x32xf32>
    %70 = arith.mulf %67, %69 : vector<256x32xf32>
    %c0_57 = arith.constant 0 : index
    %c0_58 = arith.constant 0 : index
    %71 = vector.load %arg7[%c0_57, %c0_58] : memref<1x32xf32, #tpu.memory_space<vmem>>, vector<1x32xf32>
    %72 = vector.broadcast %71 : vector<1x32xf32> to vector<256x32xf32>
    %73 = arith.addf %70, %72 : vector<256x32xf32>
    %cst_59 = arith.constant 0.000000e+00 : f32
    %74 = vector.broadcast %cst_59 : f32 to vector<256x32xf32>
    %75 = arith.maximumf %73, %74 : vector<256x32xf32>
    %76 = vector.shape_cast %75 : vector<256x32xf32> to vector<64x4x32xf32>
    %cst_60 = arith.constant dense<0xFF800000> : vector<64x32xf32>
    %77 = vector.multi_reduction <maximumf>, %76, %cst_60 [1] : vector<64x4x32xf32> to vector<64x32xf32>
    %c8_61 = arith.constant 8 : index
    %c0_62 = arith.constant 0 : index
    %78 = vector.load %arg25[%c8_61, %c0_62] : memref<80x32xf32, #tpu.memory_space<vmem>>, vector<64x32xf32>
    tpu.vector_store %arg25[%c8_61, %c0_62], %77 {strides = array<i32>} : memref<80x32xf32, #tpu.memory_space<vmem>>, vector<64x32xf32>,
    %c8_63 = arith.constant 8 : index
    %c0_64 = arith.constant 0 : index
    %79 = vector.load %arg25[%c8_63, %c0_64] : memref<80x32xf32, #tpu.memory_space<vmem>>, vector<64x32xf32>
    %80 = arith.truncf %79 : vector<64x32xf32> to vector<64x32xbf16>
    %c0_65 = arith.constant 0 : index
    %c0_66 = arith.constant 0 : index
    %81 = vector.load %arg29[%c0_65, %c0_66] : memref<64x288xbf16, #tpu.memory_space<vmem>>, vector<64x32xbf16>
    tpu.vector_store %arg29[%c0_65, %c0_66], %80 {strides = array<i32>} : memref<64x288xbf16, #tpu.memory_space<vmem>>, vector<64x32xbf16>,
    %c7_67 = arith.constant 7 : index
    %c0_68 = arith.constant 0 : index
    %82 = vector.load %arg25[%c7_67, %c0_68] : memref<80x32xf32, #tpu.memory_space<vmem>>, vector<64x32xf32>
    %83 = arith.truncf %82 : vector<64x32xf32> to vector<64x32xbf16>
    %c0_69 = arith.constant 0 : index
    %c32_70 = arith.constant 32 : index
    %84 = vector.load %arg29[%c0_69, %c32_70] : memref<64x288xbf16, #tpu.memory_space<vmem>>, vector<64x32xbf16>
    tpu.vector_store %arg29[%c0_69, %c32_70], %83 {strides = array<i32>} : memref<64x288xbf16, #tpu.memory_space<vmem>>, vector<64x32xbf16>,
    %c9_71 = arith.constant 9 : index
    %c0_72 = arith.constant 0 : index
    %85 = vector.load %arg25[%c9_71, %c0_72] : memref<80x32xf32, #tpu.memory_space<vmem>>, vector<64x32xf32>
    %86 = arith.truncf %85 : vector<64x32xf32> to vector<64x32xbf16>
    %c0_73 = arith.constant 0 : index
    %c64_74 = arith.constant 64 : index
    %87 = vector.load %arg29[%c0_73, %c64_74] : memref<64x288xbf16, #tpu.memory_space<vmem>>, vector<64x32xbf16>
    tpu.vector_store %arg29[%c0_73, %c64_74], %86 {strides = array<i32>} : memref<64x288xbf16, #tpu.memory_space<vmem>>, vector<64x32xbf16>,
    %c6_75 = arith.constant 6 : index
    %c0_76 = arith.constant 0 : index
    %88 = vector.load %arg25[%c6_75, %c0_76] : memref<80x32xf32, #tpu.memory_space<vmem>>, vector<64x32xf32>
    %89 = arith.truncf %88 : vector<64x32xf32> to vector<64x32xbf16>
    %c0_77 = arith.constant 0 : index
    %c96_78 = arith.constant 96 : index
    %90 = vector.load %arg29[%c0_77, %c96_78] : memref<64x288xbf16, #tpu.memory_space<vmem>>, vector<64x32xbf16>
    tpu.vector_store %arg29[%c0_77, %c96_78], %89 {strides = array<i32>} : memref<64x288xbf16, #tpu.memory_space<vmem>>, vector<64x32xbf16>,
    %c10_79 = arith.constant 10 : index
    %c0_80 = arith.constant 0 : index
    %91 = vector.load %arg25[%c10_79, %c0_80] : memref<80x32xf32, #tpu.memory_space<vmem>>, vector<64x32xf32>
    %92 = arith.truncf %91 : vector<64x32xf32> to vector<64x32xbf16>
    %c0_81 = arith.constant 0 : index
    %c128_82 = arith.constant 128 : index
    %93 = vector.load %arg29[%c0_81, %c128_82] : memref<64x288xbf16, #tpu.memory_space<vmem>>, vector<64x32xbf16>
    tpu.vector_store %arg29[%c0_81, %c128_82], %92 {strides = array<i32>} : memref<64x288xbf16, #tpu.memory_space<vmem>>, vector<64x32xbf16>,
    %c4_83 = arith.constant 4 : index
    %c0_84 = arith.constant 0 : index
    %94 = vector.load %arg25[%c4_83, %c0_84] : memref<80x32xf32, #tpu.memory_space<vmem>>, vector<64x32xf32>
    %95 = arith.truncf %94 : vector<64x32xf32> to vector<64x32xbf16>
    %c0_85 = arith.constant 0 : index
    %c160 = arith.constant 160 : index
    %96 = vector.load %arg29[%c0_85, %c160] : memref<64x288xbf16, #tpu.memory_space<vmem>>, vector<64x32xbf16>
    tpu.vector_store %arg29[%c0_85, %c160], %95 {strides = array<i32>} : memref<64x288xbf16, #tpu.memory_space<vmem>>, vector<64x32xbf16>,
    %c12_86 = arith.constant 12 : index
    %c0_87 = arith.constant 0 : index
    %97 = vector.load %arg25[%c12_86, %c0_87] : memref<80x32xf32, #tpu.memory_space<vmem>>, vector<64x32xf32>
    %98 = arith.truncf %97 : vector<64x32xf32> to vector<64x32xbf16>
    %c0_88 = arith.constant 0 : index
    %c192 = arith.constant 192 : index
    %99 = vector.load %arg29[%c0_88, %c192] : memref<64x288xbf16, #tpu.memory_space<vmem>>, vector<64x32xbf16>
    tpu.vector_store %arg29[%c0_88, %c192], %98 {strides = array<i32>} : memref<64x288xbf16, #tpu.memory_space<vmem>>, vector<64x32xbf16>,
    %c0_89 = arith.constant 0 : index
    %c0_90 = arith.constant 0 : index
    %100 = vector.load %arg25[%c0_89, %c0_90] : memref<80x32xf32, #tpu.memory_space<vmem>>, vector<64x32xf32>
    %101 = arith.truncf %100 : vector<64x32xf32> to vector<64x32xbf16>
    %c0_91 = arith.constant 0 : index
    %c224 = arith.constant 224 : index
    %102 = vector.load %arg29[%c0_91, %c224] : memref<64x288xbf16, #tpu.memory_space<vmem>>, vector<64x32xbf16>
    tpu.vector_store %arg29[%c0_91, %c224], %101 {strides = array<i32>} : memref<64x288xbf16, #tpu.memory_space<vmem>>, vector<64x32xbf16>,
    %c16_92 = arith.constant 16 : index
    %c0_93 = arith.constant 0 : index
    %103 = vector.load %arg25[%c16_92, %c0_93] : memref<80x32xf32, #tpu.memory_space<vmem>>, vector<64x32xf32>
    %104 = arith.truncf %103 : vector<64x32xf32> to vector<64x32xbf16>
    %c0_94 = arith.constant 0 : index
    %c256 = arith.constant 256 : index
    %105 = vector.load %arg29[%c0_94, %c256] : memref<64x288xbf16, #tpu.memory_space<vmem>>, vector<64x32xbf16>
    tpu.vector_store %arg29[%c0_94, %c256], %104 {strides = array<i32>} : memref<64x288xbf16, #tpu.memory_space<vmem>>, vector<64x32xbf16>,
    %c0_95 = arith.constant 0 : index
    %c0_96 = arith.constant 0 : index
    %106 = vector.load %arg29[%c0_95, %c0_96] : memref<64x288xbf16, #tpu.memory_space<vmem>>, vector<64x288xbf16>
    %c0_97 = arith.constant 0 : index
    %c0_98 = arith.constant 0 : index
    %107 = vector.load %arg8[%c0_97, %c0_98] : memref<288x64xbf16, #tpu.memory_space<vmem>>, vector<288x64xbf16>
    %cst_99 = arith.constant dense<0.000000e+00> : vector<64x64xf32>
    %108 = tpu.matmul %106, %107, %cst_99 {dimension_numbers = #tpu.dot_dimension_numbers<[1], [0], [0], [1], [0, 0, 1, 1], [], []>} : vector<64x288xbf16>, vector<288x64xbf16>, vector<64x64xf32> -> vector<64x64xf32>
    %c0_100 = arith.constant 0 : index
    %c0_101 = arith.constant 0 : index
    %109 = vector.load %arg9[%c0_100, %c0_101] : memref<1x64xf32, #tpu.memory_space<vmem>>, vector<1x64xf32>
    %110 = vector.broadcast %109 : vector<1x64xf32> to vector<64x64xf32>
    %111 = arith.mulf %108, %110 : vector<64x64xf32>
    %c0_102 = arith.constant 0 : index
    %c0_103 = arith.constant 0 : index
    %112 = vector.load %arg10[%c0_102, %c0_103] : memref<1x64xf32, #tpu.memory_space<vmem>>, vector<1x64xf32>
    %113 = vector.broadcast %112 : vector<1x64xf32> to vector<64x64xf32>
    %114 = arith.addf %111, %113 : vector<64x64xf32>
    %cst_104 = arith.constant 0.000000e+00 : f32
    %115 = vector.broadcast %cst_104 : f32 to vector<64x64xf32>
    %116 = arith.maximumf %114, %115 : vector<64x64xf32>
    %117 = vector.shape_cast %116 : vector<64x64xf32> to vector<16x4x64xf32>
    %cst_105 = arith.constant dense<0xFF800000> : vector<16x64xf32>
    %118 = vector.multi_reduction <maximumf>, %117, %cst_105 [1] : vector<16x4x64xf32> to vector<16x64xf32>
    %c8_106 = arith.constant 8 : index
    %c0_107 = arith.constant 0 : index
    %119 = vector.load %arg26[%c8_106, %c0_107] : memref<32x64xf32, #tpu.memory_space<vmem>>, vector<16x64xf32>
    tpu.vector_store %arg26[%c8_106, %c0_107], %118 {strides = array<i32>} : memref<32x64xf32, #tpu.memory_space<vmem>>, vector<16x64xf32>,
    %c8_108 = arith.constant 8 : index
    %c0_109 = arith.constant 0 : index
    %120 = vector.load %arg26[%c8_108, %c0_109] : memref<32x64xf32, #tpu.memory_space<vmem>>, vector<16x64xf32>
    %121 = arith.truncf %120 : vector<16x64xf32> to vector<16x64xbf16>
    %c0_110 = arith.constant 0 : index
    %c0_111 = arith.constant 0 : index
    %122 = vector.load %arg30[%c0_110, %c0_111] : memref<16x576xbf16, #tpu.memory_space<vmem>>, vector<16x64xbf16>
    tpu.vector_store %arg30[%c0_110, %c0_111], %121 {strides = array<i32>} : memref<16x576xbf16, #tpu.memory_space<vmem>>, vector<16x64xbf16>,
    %c7_112 = arith.constant 7 : index
    %c0_113 = arith.constant 0 : index
    %123 = vector.load %arg26[%c7_112, %c0_113] : memref<32x64xf32, #tpu.memory_space<vmem>>, vector<16x64xf32>
    %124 = arith.truncf %123 : vector<16x64xf32> to vector<16x64xbf16>
    %c0_114 = arith.constant 0 : index
    %c64_115 = arith.constant 64 : index
    %125 = vector.load %arg30[%c0_114, %c64_115] : memref<16x576xbf16, #tpu.memory_space<vmem>>, vector<16x64xbf16>
    tpu.vector_store %arg30[%c0_114, %c64_115], %124 {strides = array<i32>} : memref<16x576xbf16, #tpu.memory_space<vmem>>, vector<16x64xbf16>,
    %c9_116 = arith.constant 9 : index
    %c0_117 = arith.constant 0 : index
    %126 = vector.load %arg26[%c9_116, %c0_117] : memref<32x64xf32, #tpu.memory_space<vmem>>, vector<16x64xf32>
    %127 = arith.truncf %126 : vector<16x64xf32> to vector<16x64xbf16>
    %c0_118 = arith.constant 0 : index
    %c128_119 = arith.constant 128 : index
    %128 = vector.load %arg30[%c0_118, %c128_119] : memref<16x576xbf16, #tpu.memory_space<vmem>>, vector<16x64xbf16>
    tpu.vector_store %arg30[%c0_118, %c128_119], %127 {strides = array<i32>} : memref<16x576xbf16, #tpu.memory_space<vmem>>, vector<16x64xbf16>,
    %c6_120 = arith.constant 6 : index
    %c0_121 = arith.constant 0 : index
    %129 = vector.load %arg26[%c6_120, %c0_121] : memref<32x64xf32, #tpu.memory_space<vmem>>, vector<16x64xf32>
    %130 = arith.truncf %129 : vector<16x64xf32> to vector<16x64xbf16>
    %c0_122 = arith.constant 0 : index
    %c192_123 = arith.constant 192 : index
    %131 = vector.load %arg30[%c0_122, %c192_123] : memref<16x576xbf16, #tpu.memory_space<vmem>>, vector<16x64xbf16>
    tpu.vector_store %arg30[%c0_122, %c192_123], %130 {strides = array<i32>} : memref<16x576xbf16, #tpu.memory_space<vmem>>, vector<16x64xbf16>,
    %c10_124 = arith.constant 10 : index
    %c0_125 = arith.constant 0 : index
    %132 = vector.load %arg26[%c10_124, %c0_125] : memref<32x64xf32, #tpu.memory_space<vmem>>, vector<16x64xf32>
    %133 = arith.truncf %132 : vector<16x64xf32> to vector<16x64xbf16>
    %c0_126 = arith.constant 0 : index
    %c256_127 = arith.constant 256 : index
    %134 = vector.load %arg30[%c0_126, %c256_127] : memref<16x576xbf16, #tpu.memory_space<vmem>>, vector<16x64xbf16>
    tpu.vector_store %arg30[%c0_126, %c256_127], %133 {strides = array<i32>} : memref<16x576xbf16, #tpu.memory_space<vmem>>, vector<16x64xbf16>,
    %c4_128 = arith.constant 4 : index
    %c0_129 = arith.constant 0 : index
    %135 = vector.load %arg26[%c4_128, %c0_129] : memref<32x64xf32, #tpu.memory_space<vmem>>, vector<16x64xf32>
    %136 = arith.truncf %135 : vector<16x64xf32> to vector<16x64xbf16>
    %c0_130 = arith.constant 0 : index
    %c320 = arith.constant 320 : index
    %137 = vector.load %arg30[%c0_130, %c320] : memref<16x576xbf16, #tpu.memory_space<vmem>>, vector<16x64xbf16>
    tpu.vector_store %arg30[%c0_130, %c320], %136 {strides = array<i32>} : memref<16x576xbf16, #tpu.memory_space<vmem>>, vector<16x64xbf16>,
    %c12_131 = arith.constant 12 : index
    %c0_132 = arith.constant 0 : index
    %138 = vector.load %arg26[%c12_131, %c0_132] : memref<32x64xf32, #tpu.memory_space<vmem>>, vector<16x64xf32>
    %139 = arith.truncf %138 : vector<16x64xf32> to vector<16x64xbf16>
    %c0_133 = arith.constant 0 : index
    %c384 = arith.constant 384 : index
    %140 = vector.load %arg30[%c0_133, %c384] : memref<16x576xbf16, #tpu.memory_space<vmem>>, vector<16x64xbf16>
    tpu.vector_store %arg30[%c0_133, %c384], %139 {strides = array<i32>} : memref<16x576xbf16, #tpu.memory_space<vmem>>, vector<16x64xbf16>,
    %c0_134 = arith.constant 0 : index
    %c0_135 = arith.constant 0 : index
    %141 = vector.load %arg26[%c0_134, %c0_135] : memref<32x64xf32, #tpu.memory_space<vmem>>, vector<16x64xf32>
    %142 = arith.truncf %141 : vector<16x64xf32> to vector<16x64xbf16>
    %c0_136 = arith.constant 0 : index
    %c448 = arith.constant 448 : index
    %143 = vector.load %arg30[%c0_136, %c448] : memref<16x576xbf16, #tpu.memory_space<vmem>>, vector<16x64xbf16>
    tpu.vector_store %arg30[%c0_136, %c448], %142 {strides = array<i32>} : memref<16x576xbf16, #tpu.memory_space<vmem>>, vector<16x64xbf16>,
    %c16_137 = arith.constant 16 : index
    %c0_138 = arith.constant 0 : index
    %144 = vector.load %arg26[%c16_137, %c0_138] : memref<32x64xf32, #tpu.memory_space<vmem>>, vector<16x64xf32>
    %145 = arith.truncf %144 : vector<16x64xf32> to vector<16x64xbf16>
    %c0_139 = arith.constant 0 : index
    %c512 = arith.constant 512 : index
    %146 = vector.load %arg30[%c0_139, %c512] : memref<16x576xbf16, #tpu.memory_space<vmem>>, vector<16x64xbf16>
    tpu.vector_store %arg30[%c0_139, %c512], %145 {strides = array<i32>} : memref<16x576xbf16, #tpu.memory_space<vmem>>, vector<16x64xbf16>,
    %c0_140 = arith.constant 0 : index
    %c0_141 = arith.constant 0 : index
    %147 = vector.load %arg30[%c0_140, %c0_141] : memref<16x576xbf16, #tpu.memory_space<vmem>>, vector<16x576xbf16>
    %c0_142 = arith.constant 0 : index
    %c0_143 = arith.constant 0 : index
    %148 = vector.load %arg11[%c0_142, %c0_143] : memref<576x128xbf16, #tpu.memory_space<vmem>>, vector<576x128xbf16>
    %cst_144 = arith.constant dense<0.000000e+00> : vector<16x128xf32>
    %149 = tpu.matmul %147, %148, %cst_144 {dimension_numbers = #tpu.dot_dimension_numbers<[1], [0], [0], [1], [0, 0, 1, 1], [], []>} : vector<16x576xbf16>, vector<576x128xbf16>, vector<16x128xf32> -> vector<16x128xf32>
    %c0_145 = arith.constant 0 : index
    %c0_146 = arith.constant 0 : index
    %150 = vector.load %arg12[%c0_145, %c0_146] : memref<1x128xf32, #tpu.memory_space<vmem>>, vector<1x128xf32>
    %151 = vector.broadcast %150 : vector<1x128xf32> to vector<16x128xf32>
    %152 = arith.mulf %149, %151 : vector<16x128xf32>
    %c0_147 = arith.constant 0 : index
    %c0_148 = arith.constant 0 : index
    %153 = vector.load %arg13[%c0_147, %c0_148] : memref<1x128xf32, #tpu.memory_space<vmem>>, vector<1x128xf32>
    %154 = vector.broadcast %153 : vector<1x128xf32> to vector<16x128xf32>
    %155 = arith.addf %152, %154 : vector<16x128xf32>
    %cst_149 = arith.constant 0.000000e+00 : f32
    %156 = vector.broadcast %cst_149 : f32 to vector<16x128xf32>
    %157 = arith.maximumf %155, %156 : vector<16x128xf32>
    %158 = vector.shape_cast %157 : vector<16x128xf32> to vector<4x4x128xf32>
    %cst_150 = arith.constant dense<0xFF800000> : vector<4x128xf32>
    %159 = vector.multi_reduction <maximumf>, %158, %cst_150 [1] : vector<4x4x128xf32> to vector<4x128xf32>
    %c8_151 = arith.constant 8 : index
    %c0_152 = arith.constant 0 : index
    %160 = vector.load %arg27[%c8_151, %c0_152] : memref<20x128xf32, #tpu.memory_space<vmem>>, vector<4x128xf32>
    tpu.vector_store %arg27[%c8_151, %c0_152], %159 {strides = array<i32>} : memref<20x128xf32, #tpu.memory_space<vmem>>, vector<4x128xf32>,
    %c8_153 = arith.constant 8 : index
    %c0_154 = arith.constant 0 : index
    %161 = vector.load %arg27[%c8_153, %c0_154] : memref<20x128xf32, #tpu.memory_space<vmem>>, vector<4x128xf32>
    %162 = arith.truncf %161 : vector<4x128xf32> to vector<4x128xbf16>
    %c0_155 = arith.constant 0 : index
    %c0_156 = arith.constant 0 : index
    %163 = vector.load %arg31[%c0_155, %c0_156] : memref<4x1152xbf16, #tpu.memory_space<vmem>>, vector<4x128xbf16>
    tpu.vector_store %arg31[%c0_155, %c0_156], %162 {strides = array<i32>} : memref<4x1152xbf16, #tpu.memory_space<vmem>>, vector<4x128xbf16>,
    %c7_157 = arith.constant 7 : index
    %c0_158 = arith.constant 0 : index
    %164 = vector.load %arg27[%c7_157, %c0_158] : memref<20x128xf32, #tpu.memory_space<vmem>>, vector<4x128xf32>
    %165 = arith.truncf %164 : vector<4x128xf32> to vector<4x128xbf16>
    %c0_159 = arith.constant 0 : index
    %c128_160 = arith.constant 128 : index
    %166 = vector.load %arg31[%c0_159, %c128_160] : memref<4x1152xbf16, #tpu.memory_space<vmem>>, vector<4x128xbf16>
    tpu.vector_store %arg31[%c0_159, %c128_160], %165 {strides = array<i32>} : memref<4x1152xbf16, #tpu.memory_space<vmem>>, vector<4x128xbf16>,
    %c9_161 = arith.constant 9 : index
    %c0_162 = arith.constant 0 : index
    %167 = vector.load %arg27[%c9_161, %c0_162] : memref<20x128xf32, #tpu.memory_space<vmem>>, vector<4x128xf32>
    %168 = arith.truncf %167 : vector<4x128xf32> to vector<4x128xbf16>
    %c0_163 = arith.constant 0 : index
    %c256_164 = arith.constant 256 : index
    %169 = vector.load %arg31[%c0_163, %c256_164] : memref<4x1152xbf16, #tpu.memory_space<vmem>>, vector<4x128xbf16>
    tpu.vector_store %arg31[%c0_163, %c256_164], %168 {strides = array<i32>} : memref<4x1152xbf16, #tpu.memory_space<vmem>>, vector<4x128xbf16>,
    %c6_165 = arith.constant 6 : index
    %c0_166 = arith.constant 0 : index
    %170 = vector.load %arg27[%c6_165, %c0_166] : memref<20x128xf32, #tpu.memory_space<vmem>>, vector<4x128xf32>
    %171 = arith.truncf %170 : vector<4x128xf32> to vector<4x128xbf16>
    %c0_167 = arith.constant 0 : index
    %c384_168 = arith.constant 384 : index
    %172 = vector.load %arg31[%c0_167, %c384_168] : memref<4x1152xbf16, #tpu.memory_space<vmem>>, vector<4x128xbf16>
    tpu.vector_store %arg31[%c0_167, %c384_168], %171 {strides = array<i32>} : memref<4x1152xbf16, #tpu.memory_space<vmem>>, vector<4x128xbf16>,
    %c10_169 = arith.constant 10 : index
    %c0_170 = arith.constant 0 : index
    %173 = vector.load %arg27[%c10_169, %c0_170] : memref<20x128xf32, #tpu.memory_space<vmem>>, vector<4x128xf32>
    %174 = arith.truncf %173 : vector<4x128xf32> to vector<4x128xbf16>
    %c0_171 = arith.constant 0 : index
    %c512_172 = arith.constant 512 : index
    %175 = vector.load %arg31[%c0_171, %c512_172] : memref<4x1152xbf16, #tpu.memory_space<vmem>>, vector<4x128xbf16>
    tpu.vector_store %arg31[%c0_171, %c512_172], %174 {strides = array<i32>} : memref<4x1152xbf16, #tpu.memory_space<vmem>>, vector<4x128xbf16>,
    %c4_173 = arith.constant 4 : index
    %c0_174 = arith.constant 0 : index
    %176 = vector.load %arg27[%c4_173, %c0_174] : memref<20x128xf32, #tpu.memory_space<vmem>>, vector<4x128xf32>
    %177 = arith.truncf %176 : vector<4x128xf32> to vector<4x128xbf16>
    %c0_175 = arith.constant 0 : index
    %c640 = arith.constant 640 : index
    %178 = vector.load %arg31[%c0_175, %c640] : memref<4x1152xbf16, #tpu.memory_space<vmem>>, vector<4x128xbf16>
    tpu.vector_store %arg31[%c0_175, %c640], %177 {strides = array<i32>} : memref<4x1152xbf16, #tpu.memory_space<vmem>>, vector<4x128xbf16>,
    %c12_176 = arith.constant 12 : index
    %c0_177 = arith.constant 0 : index
    %179 = vector.load %arg27[%c12_176, %c0_177] : memref<20x128xf32, #tpu.memory_space<vmem>>, vector<4x128xf32>
    %180 = arith.truncf %179 : vector<4x128xf32> to vector<4x128xbf16>
    %c0_178 = arith.constant 0 : index
    %c768 = arith.constant 768 : index
    %181 = vector.load %arg31[%c0_178, %c768] : memref<4x1152xbf16, #tpu.memory_space<vmem>>, vector<4x128xbf16>
    tpu.vector_store %arg31[%c0_178, %c768], %180 {strides = array<i32>} : memref<4x1152xbf16, #tpu.memory_space<vmem>>, vector<4x128xbf16>,
    %c0_179 = arith.constant 0 : index
    %c0_180 = arith.constant 0 : index
    %182 = vector.load %arg27[%c0_179, %c0_180] : memref<20x128xf32, #tpu.memory_space<vmem>>, vector<4x128xf32>
    %183 = arith.truncf %182 : vector<4x128xf32> to vector<4x128xbf16>
    %c0_181 = arith.constant 0 : index
    %c896 = arith.constant 896 : index
    %184 = vector.load %arg31[%c0_181, %c896] : memref<4x1152xbf16, #tpu.memory_space<vmem>>, vector<4x128xbf16>
    tpu.vector_store %arg31[%c0_181, %c896], %183 {strides = array<i32>} : memref<4x1152xbf16, #tpu.memory_space<vmem>>, vector<4x128xbf16>,
    %c16_182 = arith.constant 16 : index
    %c0_183 = arith.constant 0 : index
    %185 = vector.load %arg27[%c16_182, %c0_183] : memref<20x128xf32, #tpu.memory_space<vmem>>, vector<4x128xf32>
    %186 = arith.truncf %185 : vector<4x128xf32> to vector<4x128xbf16>
    %c0_184 = arith.constant 0 : index
    %c1024 = arith.constant 1024 : index
    %187 = vector.load %arg31[%c0_184, %c1024] : memref<4x1152xbf16, #tpu.memory_space<vmem>>, vector<4x128xbf16>
    tpu.vector_store %arg31[%c0_184, %c1024], %186 {strides = array<i32>} : memref<4x1152xbf16, #tpu.memory_space<vmem>>, vector<4x128xbf16>,
    %c0_185 = arith.constant 0 : index
    %c0_186 = arith.constant 0 : index
    %188 = vector.load %arg31[%c0_185, %c0_186] : memref<4x1152xbf16, #tpu.memory_space<vmem>>, vector<4x1152xbf16>
    %c0_187 = arith.constant 0 : index
    %c0_188 = arith.constant 0 : index
    %189 = vector.load %arg14[%c0_187, %c0_188] : memref<1152x128xbf16, #tpu.memory_space<vmem>>, vector<1152x128xbf16>
    %cst_189 = arith.constant dense<0.000000e+00> : vector<4x128xf32>
    %190 = tpu.matmul %188, %189, %cst_189 {dimension_numbers = #tpu.dot_dimension_numbers<[1], [0], [0], [1], [0, 0, 1, 1], [], []>} : vector<4x1152xbf16>, vector<1152x128xbf16>, vector<4x128xf32> -> vector<4x128xf32>
    %c0_190 = arith.constant 0 : index
    %c0_191 = arith.constant 0 : index
    %191 = vector.load %arg15[%c0_190, %c0_191] : memref<1x128xf32, #tpu.memory_space<vmem>>, vector<1x128xf32>
    %192 = vector.broadcast %191 : vector<1x128xf32> to vector<4x128xf32>
    %193 = arith.mulf %190, %192 : vector<4x128xf32>
    %c0_192 = arith.constant 0 : index
    %c0_193 = arith.constant 0 : index
    %194 = vector.load %arg16[%c0_192, %c0_193] : memref<1x128xf32, #tpu.memory_space<vmem>>, vector<1x128xf32>
    %195 = vector.broadcast %194 : vector<1x128xf32> to vector<4x128xf32>
    %196 = arith.addf %193, %195 : vector<4x128xf32>
    %cst_194 = arith.constant 0.000000e+00 : f32
    %197 = vector.broadcast %cst_194 : f32 to vector<4x128xf32>
    %198 = arith.maximumf %196, %197 : vector<4x128xf32>
    %199 = vector.shape_cast %198 : vector<4x128xf32> to vector<1x4x128xf32>
    %cst_195 = arith.constant dense<0xFF800000> : vector<1x128xf32>
    %200 = vector.multi_reduction <maximumf>, %199, %cst_195 [1] : vector<1x4x128xf32> to vector<1x128xf32>
    %c0_196 = arith.constant 0 : index
    %c0_197 = arith.constant 0 : index
    %201 = vector.load %arg17[%c0_196, %c0_197] : memref<128x64xf32, #tpu.memory_space<vmem>>, vector<128x64xf32>
    %cst_198 = arith.constant dense<0.000000e+00> : vector<1x64xf32>
    %202 = tpu.matmul %200, %201, %cst_198 {dimension_numbers = #tpu.dot_dimension_numbers<[1], [0], [0], [1], [0, 0, 1, 1], [], []>} : vector<1x128xf32>, vector<128x64xf32>, vector<1x64xf32> -> vector<1x64xf32>
    %c0_199 = arith.constant 0 : index
    %c0_200 = arith.constant 0 : index
    %203 = vector.load %arg18[%c0_199, %c0_200] : memref<1x64xf32, #tpu.memory_space<vmem>>, vector<1x64xf32>
    %204 = arith.addf %202, %203 : vector<1x64xf32>
    %cst_201 = arith.constant 0.000000e+00 : f32
    %205 = vector.broadcast %cst_201 : f32 to vector<1x64xf32>
    %206 = arith.maximumf %204, %205 : vector<1x64xf32>
    %c0_202 = arith.constant 0 : index
    %c0_203 = arith.constant 0 : index
    %207 = vector.load %arg19[%c0_202, %c0_203] : memref<64x32xf32, #tpu.memory_space<vmem>>, vector<64x32xf32>
    %cst_204 = arith.constant dense<0.000000e+00> : vector<1x32xf32>
    %208 = tpu.matmul %206, %207, %cst_204 {dimension_numbers = #tpu.dot_dimension_numbers<[1], [0], [0], [1], [0, 0, 1, 1], [], []>} : vector<1x64xf32>, vector<64x32xf32>, vector<1x32xf32> -> vector<1x32xf32>
    %c0_205 = arith.constant 0 : index
    %c0_206 = arith.constant 0 : index
    %209 = vector.load %arg20[%c0_205, %c0_206] : memref<1x32xf32, #tpu.memory_space<vmem>>, vector<1x32xf32>
    %210 = arith.addf %208, %209 : vector<1x32xf32>
    %cst_207 = arith.constant 0.000000e+00 : f32
    %211 = vector.broadcast %cst_207 : f32 to vector<1x32xf32>
    %212 = arith.maximumf %210, %211 : vector<1x32xf32>
    %c0_208 = arith.constant 0 : index
    %c0_209 = arith.constant 0 : index
    %213 = vector.load %arg21[%c0_208, %c0_209] : memref<32x2xf32, #tpu.memory_space<vmem>>, vector<32x2xf32>
    %cst_210 = arith.constant dense<0.000000e+00> : vector<1x2xf32>
    %214 = tpu.matmul %212, %213, %cst_210 {dimension_numbers = #tpu.dot_dimension_numbers<[1], [0], [0], [1], [0, 0, 1, 1], [], []>} : vector<1x32xf32>, vector<32x2xf32>, vector<1x2xf32> -> vector<1x2xf32>
    %c0_211 = arith.constant 0 : index
    %c0_212 = arith.constant 0 : index
    %215 = vector.load %arg22[%c0_211, %c0_212] : memref<1x2xf32, #tpu.memory_space<vmem>>, vector<1x2xf32>
    %216 = arith.addf %214, %215 : vector<1x2xf32>
    %c0_213 = arith.constant 0 : index
    %c0_214 = arith.constant 0 : index
    %c0_215 = arith.constant 0 : index
    %217 = vector.load %arg23[%c0_213, %c0_214, %c0_215] : memref<1x1x2xf32, #tpu.memory_space<vmem>>, vector<1x1x2xf32>
    %218 = vector.shape_cast %217 : vector<1x1x2xf32> to vector<1x2xf32>
    %219 = vector.shape_cast %216 : vector<1x2xf32> to vector<1x1x2xf32>
    tpu.vector_store %arg23[%c0_213, %c0_214, %c0_215], %219 {strides = array<i32>} : memref<1x1x2xf32, #tpu.memory_space<vmem>>, vector<1x1x2xf32>,
    return
  }
  func.func @transform_0(%arg0: i32) -> (i32, i32, i32) {
    %c0_i32 = arith.constant 0 : i32
    %c0_i32_0 = arith.constant 0 : i32
    %c0_i32_1 = arith.constant 0 : i32
    return %arg0, %c0_i32, %c0_i32_0 : i32, i32, i32
  }
  func.func @transform_1(%arg0: i32) -> (i32, i32) {
    %c0_i32 = arith.constant 0 : i32
    %c0_i32_0 = arith.constant 0 : i32
    %c0_i32_1 = arith.constant 0 : i32
    return %c0_i32, %c0_i32_0 : i32, i32
  }
  func.func @transform_2(%arg0: i32) -> (i32, i32) {
    %c0_i32 = arith.constant 0 : i32
    %c0_i32_0 = arith.constant 0 : i32
    %c0_i32_1 = arith.constant 0 : i32
    return %c0_i32, %c0_i32_0 : i32, i32
  }
  func.func @transform_3(%arg0: i32) -> (i32, i32) {
    %c0_i32 = arith.constant 0 : i32
    %c0_i32_0 = arith.constant 0 : i32
    %c0_i32_1 = arith.constant 0 : i32
    return %c0_i32, %c0_i32_0 : i32, i32
  }
  func.func @transform_4(%arg0: i32) -> (i32, i32) {
    %c0_i32 = arith.constant 0 : i32
    %c0_i32_0 = arith.constant 0 : i32
    %c0_i32_1 = arith.constant 0 : i32
    return %c0_i32, %c0_i32_0 : i32, i32
  }
  func.func @transform_5(%arg0: i32) -> (i32, i32) {
    %c0_i32 = arith.constant 0 : i32
    %c0_i32_0 = arith.constant 0 : i32
    %c0_i32_1 = arith.constant 0 : i32
    return %c0_i32, %c0_i32_0 : i32, i32
  }
  func.func @transform_6(%arg0: i32) -> (i32, i32) {
    %c0_i32 = arith.constant 0 : i32
    %c0_i32_0 = arith.constant 0 : i32
    %c0_i32_1 = arith.constant 0 : i32
    return %c0_i32, %c0_i32_0 : i32, i32
  }
  func.func @transform_7(%arg0: i32) -> (i32, i32) {
    %c0_i32 = arith.constant 0 : i32
    %c0_i32_0 = arith.constant 0 : i32
    %c0_i32_1 = arith.constant 0 : i32
    return %c0_i32, %c0_i32_0 : i32, i32
  }
  func.func @transform_8(%arg0: i32) -> (i32, i32) {
    %c0_i32 = arith.constant 0 : i32
    %c0_i32_0 = arith.constant 0 : i32
    %c0_i32_1 = arith.constant 0 : i32
    return %c0_i32, %c0_i32_0 : i32, i32
  }
  func.func @transform_9(%arg0: i32) -> (i32, i32) {
    %c0_i32 = arith.constant 0 : i32
    %c0_i32_0 = arith.constant 0 : i32
    %c0_i32_1 = arith.constant 0 : i32
    return %c0_i32, %c0_i32_0 : i32, i32
  }
  func.func @transform_10(%arg0: i32) -> (i32, i32) {
    %c0_i32 = arith.constant 0 : i32
    %c0_i32_0 = arith.constant 0 : i32
    %c0_i32_1 = arith.constant 0 : i32
    return %c0_i32, %c0_i32_0 : i32, i32
  }
  func.func @transform_11(%arg0: i32) -> (i32, i32) {
    %c0_i32 = arith.constant 0 : i32
    %c0_i32_0 = arith.constant 0 : i32
    %c0_i32_1 = arith.constant 0 : i32
    return %c0_i32, %c0_i32_0 : i32, i32
  }
  func.func @transform_12(%arg0: i32) -> (i32, i32) {
    %c0_i32 = arith.constant 0 : i32
    %c0_i32_0 = arith.constant 0 : i32
    %c0_i32_1 = arith.constant 0 : i32
    return %c0_i32, %c0_i32_0 : i32, i32
  }
  func.func @transform_13(%arg0: i32) -> (i32, i32) {
    %c0_i32 = arith.constant 0 : i32
    %c0_i32_0 = arith.constant 0 : i32
    %c0_i32_1 = arith.constant 0 : i32
    return %c0_i32, %c0_i32_0 : i32, i32
  }
  func.func @transform_14(%arg0: i32) -> (i32, i32) {
    %c0_i32 = arith.constant 0 : i32
    %c0_i32_0 = arith.constant 0 : i32
    %c0_i32_1 = arith.constant 0 : i32
    return %c0_i32, %c0_i32_0 : i32, i32
  }
  func.func @transform_15(%arg0: i32) -> (i32, i32) {
    %c0_i32 = arith.constant 0 : i32
    %c0_i32_0 = arith.constant 0 : i32
    %c0_i32_1 = arith.constant 0 : i32
    return %c0_i32, %c0_i32_0 : i32, i32
  }
  func.func @transform_16(%arg0: i32) -> (i32, i32) {
    %c0_i32 = arith.constant 0 : i32
    %c0_i32_0 = arith.constant 0 : i32
    %c0_i32_1 = arith.constant 0 : i32
    return %c0_i32, %c0_i32_0 : i32, i32
  }
  func.func @transform_17(%arg0: i32) -> (i32, i32) {
    %c0_i32 = arith.constant 0 : i32
    %c0_i32_0 = arith.constant 0 : i32
    %c0_i32_1 = arith.constant 0 : i32
    return %c0_i32, %c0_i32_0 : i32, i32
  }
  func.func @transform_18(%arg0: i32) -> (i32, i32) {
    %c0_i32 = arith.constant 0 : i32
    %c0_i32_0 = arith.constant 0 : i32
    %c0_i32_1 = arith.constant 0 : i32
    return %c0_i32, %c0_i32_0 : i32, i32
  }
  func.func @transform_19(%arg0: i32) -> (i32, i32) {
    %c0_i32 = arith.constant 0 : i32
    %c0_i32_0 = arith.constant 0 : i32
    %c0_i32_1 = arith.constant 0 : i32
    return %c0_i32, %c0_i32_0 : i32, i32
  }
  func.func @transform_20(%arg0: i32) -> (i32, i32) {
    %c0_i32 = arith.constant 0 : i32
    %c0_i32_0 = arith.constant 0 : i32
    %c0_i32_1 = arith.constant 0 : i32
    return %c0_i32, %c0_i32_0 : i32, i32
  }
  func.func @transform_21(%arg0: i32) -> (i32, i32) {
    %c0_i32 = arith.constant 0 : i32
    %c0_i32_0 = arith.constant 0 : i32
    %c0_i32_1 = arith.constant 0 : i32
    return %c0_i32, %c0_i32_0 : i32, i32
  }
  func.func @transform_22(%arg0: i32) -> (i32, i32, i32) {
    %c0_i32 = arith.constant 0 : i32
    %c0_i32_0 = arith.constant 0 : i32
    %c0_i32_1 = arith.constant 0 : i32
    return %arg0, %c0_i32, %c0_i32_0 : i32, i32, i32
  }
}

</mosaic_0001>

<llo_original>
// kernel: dilated_net_forward.1
$region0: #{dilated_net_forward.1}
  #allocation0 [shape = 'u32[]', space=smem, size = 0x4, offset = 0x4, fixed_abs, tag = 'smem constant byte address 0x4 - core index']
  #allocation1 [shape = 'u32[72,128]{1,0:T(1,128)}', space=vmem, size = 0x9000, scoped, tag = 'internal scratch']
  #allocation2 [shape = 'f32[272,16]{1,0:T(8,128)}', space=vmem, size = 0x22000, scoped, tag = 'scratch operand']
  #allocation3 [shape = 'f32[80,32]{1,0:T(8,128)}', space=vmem, size = 0xa000, scoped, tag = 'scratch operand']
  #allocation4 [shape = 'f32[32,64]{1,0:T(8,128)}', space=vmem, size = 0x4000, scoped, tag = 'scratch operand']
  #allocation5 [shape = 'f32[20,128]{1,0:T(8,128)}', space=vmem, size = 0x3000, scoped, tag = 'scratch operand']
  #allocation6 [shape = 'bf16[256,144]{1,0:T(8,128)(2,1)}', space=vmem, size = 0x20000, scoped, tag = 'scratch operand']
  #allocation7 [shape = 'bf16[64,288]{1,0:T(8,128)(2,1)}', space=vmem, size = 0xc000, scoped, tag = 'scratch operand']
  #allocation8 [shape = 'bf16[16,576]{1,0:T(8,128)(2,1)}', space=vmem, size = 0x5000, scoped, tag = 'scratch operand']
  #allocation9 [shape = 'bf16[4,1152]{1,0:T(4,128)(2,1)}', space=vmem, size = 0x2400, scoped, tag = 'scratch operand']
  %s0 = inlined_call_operand.vmem [shape: bf16[2,1,1032], index: 0, kind: input, shape index: {}]
  %s1 = inlined_call_operand.vmem [shape: f32[8,16], index: 1, kind: input, shape index: {}]
  %s2 = inlined_call_operand.vmem [shape: f32[1,16], index: 2, kind: input, shape index: {}]
  %s3 = inlined_call_operand.vmem [shape: f32[1,16], index: 3, kind: input, shape index: {}]
  %s4 = inlined_call_operand.vmem [shape: bf16[144,32], index: 4, kind: input, shape index: {}]
  %s5 = inlined_call_operand.vmem [shape: f32[1,32], index: 5, kind: input, shape index: {}]
  %s6 = inlined_call_operand.vmem [shape: f32[1,32], index: 6, kind: input, shape index: {}]
  %s7 = inlined_call_operand.vmem [shape: bf16[288,64], index: 7, kind: input, shape index: {}]
  %s8 = inlined_call_operand.vmem [shape: f32[1,64], index: 8, kind: input, shape index: {}]
  %s9 = inlined_call_operand.vmem [shape: f32[1,64], index: 9, kind: input, shape index: {}]
  %s10 = inlined_call_operand.vmem [shape: bf16[576,128], index: 10, kind: input, shape index: {}]
  %s11 = inlined_call_operand.vmem [shape: f32[1,128], index: 11, kind: input, shape index: {}]
  %s12 = inlined_call_operand.vmem [shape: f32[1,128], index: 12, kind: input, shape index: {}]
  %s13 = inlined_call_operand.hbm [shape: bf16[1152,128], index: 13, kind: input, shape index: {}]
  %s14 = inlined_call_operand.vmem [shape: f32[1,128], index: 14, kind: input, shape index: {}]
  %s15 = inlined_call_operand.vmem [shape: f32[1,128], index: 15, kind: input, shape index: {}]
  %s16 = inlined_call_operand.vmem [shape: f32[128,64], index: 16, kind: input, shape index: {}]
  %s17 = inlined_call_operand.vmem [shape: f32[1,64], index: 17, kind: input, shape index: {}]
  %s18 = inlined_call_operand.vmem [shape: f32[64,32], index: 18, kind: input, shape index: {}]
  %s19 = inlined_call_operand.vmem [shape: f32[1,32], index: 19, kind: input, shape index: {}]
  %s20 = inlined_call_operand.vmem [shape: f32[32,2], index: 20, kind: input, shape index: {}]
  %s21 = inlined_call_operand.vmem [shape: f32[1,2], index: 21, kind: input, shape index: {}]
  %s22 = inlined_call_operand.hbm [shape: f32[2,1,2], index: 22, kind: output, shape index: {}]
  %s23 = sld [smem:[#allocation0]]
  $region125: #{dilated_net_forward.1} parent=0
    _
  %s25 = ssub.s32 1, %s23
  %s26 = scalar_select 0, %s25, %s23
  $region1: #{dilated_net_forward.1} parent=0
    #allocation10 [shape = 'u8[294912]{0}', space=vmem, size = 0x48000, scoped, tag = 'input window, operand 13, single buffered']
    #allocation11 [shape = 's32[2]{0}', space=sflag, size = 0x8, scoped, tag = 'scoped memory for dilated_net_forward.1']
    #allocation12 [shape = 's32[2]{0}', space=sflag, size = 0x8, scoped, tag = 'scoped memory for dilated_net_forward.1']
    #allocation13 [shape = 'u8[1024]{0}', space=vmem, size = 0x400, scoped, tag = 'output window, operand 0']
    %27 = vsyncpa [#allocation11], 0
    %28 = vsyncpa [#allocation12], 0
    %s29 = scalar_lea.sflag [#allocation12], 1
    %30 = vsyncpa %s29, 0
    loop: start=0, step=1, limit=4
    $region2: #{dilated_net_forward.1} parent=1 // loop_pre_header
      _
    $region3: #{dilated_net_forward.1} parent=1 // loop_header
      %s32 = sphi 0, %s36
      %p33 = scmp.ge.s32.totalorder %s32, 4
      %s42 = sphi 0, %s44
      %s45 = sphi 0, %s42
      %s46 = sphi 0, %s45
      %s62 = sphi 0, %s46
      %s66 = sphi 0, %s66
      %s68 = sphi 0, %s66
      %s69 = sphi 0, %s68
      %s83 = sphi 0, %s69
      %s87 = sphi 0, %s87
      %s89 = sphi 0, %s87
      %s90 = sphi 0, %s89
      %s104 = sphi 0, %s90
      %s108 = sphi 0, %s108
      %s110 = sphi 0, %s108
      %s111 = sphi 0, %s110
      %s125 = sphi 0, %s111
      %s129 = sphi 0, %s129
      %s131 = sphi 0, %s129
      %s132 = sphi 0, %s131
      %s146 = sphi 0, %s132
      %s150 = sphi 0, %s150
      %s152 = sphi 0, %s150
      %s153 = sphi 0, %s152
      %s167 = sphi 0, %s153
      %s171 = sphi 0, %s171
      %s173 = sphi 0, %s171
      %s174 = sphi 0, %s173
      %s188 = sphi 0, %s174
      %s192 = sphi 0, %s192
      %s194 = sphi 0, %s192
      %s195 = sphi 0, %s194
      %s209 = sphi 0, %s195
      %s213 = sphi 0, %s213
      %s215 = sphi 0, %s213
      %s216 = sphi 0, %s215
      %s230 = sphi 0, %s216
      %s234 = sphi 0, %s234
      %s236 = sphi 0, %s234
      %s237 = sphi 0, %s236
      %s251 = sphi 0, %s237
      %s255 = sphi 0, %s255
      %s257 = sphi 0, %s255
      %s258 = sphi 0, %s257
      %s272 = sphi 0, %s258
      %s276 = sphi 0, %s276
      %s278 = sphi 0, %s276
      %s279 = sphi 0, %s278
      %s293 = sphi 0, %s279
      %s297 = sphi 0, %s297
      %s299 = sphi 0, %s297
      %s300 = sphi 0, %s299
      %s314 = sphi 0, %s300
      %s318 = sphi 0, %s318
      %s320 = sphi 0, %s318
      %s321 = sphi 0, %s320
      %s335 = sphi 0, %s321
      %s339 = sphi 0, %s339
      %s341 = sphi 0, %s339
      %s342 = sphi 0, %s341
      %s356 = sphi 0, %s342
      %s360 = sphi 0, %s360
      %s362 = sphi 0, %s360
      %s363 = sphi 0, %s362
      %s377 = sphi 0, %s363
      %s381 = sphi 0, %s381
      %s383 = sphi 0, %s381
      %s384 = sphi 0, %s383
      %s398 = sphi 0, %s384
      %s402 = sphi 0, %s402
      %s404 = sphi 0, %s402
      %s405 = sphi 0, %s404
      %s419 = sphi 0, %s405
      %s423 = sphi 0, %s423
      %s425 = sphi 0, %s423
      %s426 = sphi 0, %s425
      %s440 = sphi 0, %s426
      %s444 = sphi 0, %s444
      %s446 = sphi 0, %s444
      %s447 = sphi 0, %s446
      %s461 = sphi 0, %s447
      %s465 = sphi 0, %s465
      %s467 = sphi 0, %s465
      %s468 = sphi 0, %s467
      %s482 = sphi 0, %s468
      %s486 = sphi 0, %s486
      %s488 = sphi 0, %s486
      %s489 = sphi 0, %s488
      %s503 = sphi 0, %s489
      %s509 = sphi 0, %s511
      %s512 = sphi 0, %s509
      %s513 = sphi 0, %s512
      %s529 = sphi 0, %s513
    $region4: #{dilated_net_forward.1} parent=1 // loop_header_branch
      %35 = sbr.rel (%p33) target = $region8
    $region5: #{dilated_net_forward.1} parent=1 // loop_body
      %s37 = ssub.s32 %s32, 1
      %s38 = ssub.s32 %s32, 2
      %s39 = sadd.s32 %s32, 1
      %s40 = ssub.s32 %s32, %s39
      %p41 = scmp.eq.s32.totalorder %s40, 0
      %s43 = sadd.s32 %s42, 1
      %s44 = scalar_select %p41, %s42, %s43
      %p47 = pneg %p41
      %p48 = scmp.eq.s32.totalorder %s32, 1
      %p49 = por %p47, %p48
      %p50 = scmp.ne.s32.totalorder %s42, %s45
      %p51 = scmp.eq.s32.totalorder %s32, 0
      %p52 = por %p50, %p51
      %p53 = scmp.ne.s32.totalorder %s42, %s45
      %p54 = scmp.eq.s32.totalorder %s37, 1
      %p55 = por %p53, %p54
      %p56 = scmp.ne.s32.totalorder %s45, %s46
      %p57 = scmp.eq.s32.totalorder %s37, 0
      %p58 = por %p56, %p57
      %p59 = scmp.ne.s32.totalorder %s45, %s46
      %p60 = scmp.eq.s32.totalorder %s38, 1
      %p61 = por %p59, %p60
      %p63 = scmp.ne.s32.totalorder %s46, %s62
      %p64 = scmp.eq.s32.totalorder %s38, 0
      %p65 = por %p63, %p64
      %s67 = sadd.s32 %s66, 1
      %p70 = scmp.eq.s32.totalorder %s32, 1
      %p71 = scmp.ne.s32.totalorder %s66, %s68
      %p72 = scmp.eq.s32.totalorder %s32, 0
      %p73 = por %p71, %p72
      %p74 = scmp.ne.s32.totalorder %s66, %s68
      %p75 = scmp.eq.s32.totalorder %s37, 1
      %p76 = por %p74, %p75
      %p77 = scmp.ne.s32.totalorder %s68, %s69
      %p78 = scmp.eq.s32.totalorder %s37, 0
      %p79 = por %p77, %p78
      %p80 = scmp.ne.s32.totalorder %s68, %s69
      %p81 = scmp.eq.s32.totalorder %s38, 1
      %p82 = por %p80, %p81
      %p84 = scmp.ne.s32.totalorder %s69, %s83
      %p85 = scmp.eq.s32.totalorder %s38, 0
      %p86 = por %p84, %p85
      %s88 = sadd.s32 %s87, 1
      %p91 = scmp.eq.s32.totalorder %s32, 1
      %p92 = scmp.ne.s32.totalorder %s87, %s89
      %p93 = scmp.eq.s32.totalorder %s32, 0
      %p94 = por %p92, %p93
      %p95 = scmp.ne.s32.totalorder %s87, %s89
      %p96 = scmp.eq.s32.totalorder %s37, 1
      %p97 = por %p95, %p96
      %p98 = scmp.ne.s32.totalorder %s89, %s90
      %p99 = scmp.eq.s32.totalorder %s37, 0
      %p100 = por %p98, %p99
      %p101 = scmp.ne.s32.totalorder %s89, %s90
      %p102 = scmp.eq.s32.totalorder %s38, 1
      %p103 = por %p101, %p102
      %p105 = scmp.ne.s32.totalorder %s90, %s104
      %p106 = scmp.eq.s32.totalorder %s38, 0
      %p107 = por %p105, %p106
      %s109 = sadd.s32 %s108, 1
      %p112 = scmp.eq.s32.totalorder %s32, 1
      %p113 = scmp.ne.s32.totalorder %s108, %s110
      %p114 = scmp.eq.s32.totalorder %s32, 0
      %p115 = por %p113, %p114
      %p116 = scmp.ne.s32.totalorder %s108, %s110
      %p117 = scmp.eq.s32.totalorder %s37, 1
      %p118 = por %p116, %p117
      %p119 = scmp.ne.s32.totalorder %s110, %s111
      %p120 = scmp.eq.s32.totalorder %s37, 0
      %p121 = por %p119, %p120
      %p122 = scmp.ne.s32.totalorder %s110, %s111
      %p123 = scmp.eq.s32.totalorder %s38, 1
      %p124 = por %p122, %p123
      %p126 = scmp.ne.s32.totalorder %s111, %s125
      %p127 = scmp.eq.s32.totalorder %s38, 0
      %p128 = por %p126, %p127
      %s130 = sadd.s32 %s129, 1
      %p133 = scmp.eq.s32.totalorder %s32, 1
      %p134 = scmp.ne.s32.totalorder %s129, %s131
      %p135 = scmp.eq.s32.totalorder %s32, 0
      %p136 = por %p134, %p135
      %p137 = scmp.ne.s32.totalorder %s129, %s131
      %p138 = scmp.eq.s32.totalorder %s37, 1
      %p139 = por %p137, %p138
      %p140 = scmp.ne.s32.totalorder %s131, %s132
      %p141 = scmp.eq.s32.totalorder %s37, 0
      %p142 = por %p140, %p141
      %p143 = scmp.ne.s32.totalorder %s131, %s132
      %p144 = scmp.eq.s32.totalorder %s38, 1
      %p145 = por %p143, %p144
      %p147 = scmp.ne.s32.totalorder %s132, %s146
      %p148 = scmp.eq.s32.totalorder %s38, 0
      %p149 = por %p147, %p148
      %s151 = sadd.s32 %s150, 1
      %p154 = scmp.eq.s32.totalorder %s32, 1
      %p155 = scmp.ne.s32.totalorder %s150, %s152
      %p156 = scmp.eq.s32.totalorder %s32, 0
      %p157 = por %p155, %p156
      %p158 = scmp.ne.s32.totalorder %s150, %s152
      %p159 = scmp.eq.s32.totalorder %s37, 1
      %p160 = por %p158, %p159
      %p161 = scmp.ne.s32.totalorder %s152, %s153
      %p162 = scmp.eq.s32.totalorder %s37, 0
      %p163 = por %p161, %p162
      %p164 = scmp.ne.s32.totalorder %s152, %s153
      %p165 = scmp.eq.s32.totalorder %s38, 1
      %p166 = por %p164, %p165
      %p168 = scmp.ne.s32.totalorder %s153, %s167
      %p169 = scmp.eq.s32.totalorder %s38, 0
      %p170 = por %p168, %p169
      %s172 = sadd.s32 %s171, 1
      %p175 = scmp.eq.s32.totalorder %s32, 1
      %p176 = scmp.ne.s32.totalorder %s171, %s173
      %p177 = scmp.eq.s32.totalorder %s32, 0
      %p178 = por %p176, %p177
      %p179 = scmp.ne.s32.totalorder %s171, %s173
      %p180 = scmp.eq.s32.totalorder %s37, 1
      %p181 = por %p179, %p180
      %p182 = scmp.ne.s32.totalorder %s173, %s174
      %p183 = scmp.eq.s32.totalorder %s37, 0
      %p184 = por %p182, %p183
      %p185 = scmp.ne.s32.totalorder %s173, %s174
      %p186 = scmp.eq.s32.totalorder %s38, 1
      %p187 = por %p185, %p186
      %p189 = scmp.ne.s32.totalorder %s174, %s188
      %p190 = scmp.eq.s32.totalorder %s38, 0
      %p191 = por %p189, %p190
      %s193 = sadd.s32 %s192, 1
      %p196 = scmp.eq.s32.totalorder %s32, 1
      %p197 = scmp.ne.s32.totalorder %s192, %s194
      %p198 = scmp.eq.s32.totalorder %s32, 0
      %p199 = por %p197, %p198
      %p200 = scmp.ne.s32.totalorder %s192, %s194
      %p201 = scmp.eq.s32.totalorder %s37, 1
      %p202 = por %p200, %p201
      %p203 = scmp.ne.s32.totalorder %s194, %s195
      %p204 = scmp.eq.s32.totalorder %s37, 0
      %p205 = por %p203, %p204
      %p206 = scmp.ne.s32.totalorder %s194, %s195
      %p207 = scmp.eq.s32.totalorder %s38, 1
      %p208 = por %p206, %p207
      %p210 = scmp.ne.s32.totalorder %s195, %s209
      %p211 = scmp.eq.s32.totalorder %s38, 0
      %p212 = por %p210, %p211
      %s214 = sadd.s32 %s213, 1
      %p217 = scmp.eq.s32.totalorder %s32, 1
      %p218 = scmp.ne.s32.totalorder %s213, %s215
      %p219 = scmp.eq.s32.totalorder %s32, 0
      %p220 = por %p218, %p219
      %p221 = scmp.ne.s32.totalorder %s213, %s215
      %p222 = scmp.eq.s32.totalorder %s37, 1
      %p223 = por %p221, %p222
      %p224 = scmp.ne.s32.totalorder %s215, %s216
      %p225 = scmp.eq.s32.totalorder %s37, 0
      %p226 = por %p224, %p225
      %p227 = scmp.ne.s32.totalorder %s215, %s216
      %p228 = scmp.eq.s32.totalorder %s38, 1
      %p229 = por %p227, %p228
      %p231 = scmp.ne.s32.totalorder %s216, %s230
      %p232 = scmp.eq.s32.totalorder %s38, 0
      %p233 = por %p231, %p232
      %s235 = sadd.s32 %s234, 1
      %p238 = scmp.eq.s32.totalorder %s32, 1
      %p239 = scmp.ne.s32.totalorder %s234, %s236
      %p240 = scmp.eq.s32.totalorder %s32, 0
      %p241 = por %p239, %p240
      %p242 = scmp.ne.s32.totalorder %s234, %s236
      %p243 = scmp.eq.s32.totalorder %s37, 1
      %p244 = por %p242, %p243
      %p245 = scmp.ne.s32.totalorder %s236, %s237
      %p246 = scmp.eq.s32.totalorder %s37, 0
      %p247 = por %p245, %p246
      %p248 = scmp.ne.s32.totalorder %s236, %s237
      %p249 = scmp.eq.s32.totalorder %s38, 1
      %p250 = por %p248, %p249
      %p252 = scmp.ne.s32.totalorder %s237, %s251
      %p253 = scmp.eq.s32.totalorder %s38, 0
      %p254 = por %p252, %p253
      %s256 = sadd.s32 %s255, 1
      %p259 = scmp.eq.s32.totalorder %s32, 1
      %p260 = scmp.ne.s32.totalorder %s255, %s257
      %p261 = scmp.eq.s32.totalorder %s32, 0
      %p262 = por %p260, %p261
      %p263 = scmp.ne.s32.totalorder %s255, %s257
      %p264 = scmp.eq.s32.totalorder %s37, 1
      %p265 = por %p263, %p264
      %p266 = scmp.ne.s32.totalorder %s257, %s258
      %p267 = scmp.eq.s32.totalorder %s37, 0
      %p268 = por %p266, %p267
      %p269 = scmp.ne.s32.totalorder %s257, %s258
      %p270 = scmp.eq.s32.totalorder %s38, 1
      %p271 = por %p269, %p270
      %p273 = scmp.ne.s32.totalorder %s258, %s272
      %p274 = scmp.eq.s32.totalorder %s38, 0
      %p275 = por %p273, %p274
      %s277 = sadd.s32 %s276, 1
      %p280 = scmp.eq.s32.totalorder %s32, 1
      %p281 = scmp.ne.s32.totalorder %s276, %s278
      %p282 = scmp.eq.s32.totalorder %s32, 0
      %p283 = por %p281, %p282
      %p284 = scmp.ne.s32.totalorder %s276, %s278
      %p285 = scmp.eq.s32.totalorder %s37, 1
      %p286 = por %p284, %p285
      %p287 = scmp.ne.s32.totalorder %s278, %s279
      %p288 = scmp.eq.s32.totalorder %s37, 0
      %p289 = por %p287, %p288
      %p290 = scmp.ne.s32.totalorder %s278, %s279
      %p291 = scmp.eq.s32.totalorder %s38, 1
      %p292 = por %p290, %p291
      %p294 = scmp.ne.s32.totalorder %s279, %s293
      %p295 = scmp.eq.s32.totalorder %s38, 0
      %p296 = por %p294, %p295
      %s298 = sadd.s32 %s297, 1
      %p301 = scmp.eq.s32.totalorder %s32, 1
      %p302 = scmp.ne.s32.totalorder %s297, %s299
      %p303 = scmp.eq.s32.totalorder %s32, 0
      %p304 = por %p302, %p303
      %p305 = scmp.ne.s32.totalorder %s297, %s299
      %p306 = scmp.eq.s32.totalorder %s37, 1
      %p307 = por %p305, %p306
      %p308 = scmp.ne.s32.totalorder %s299, %s300
      %p309 = scmp.eq.s32.totalorder %s37, 0
      %p310 = por %p308, %p309
      %p311 = scmp.ne.s32.totalorder %s299, %s300
      %p312 = scmp.eq.s32.totalorder %s38, 1
      %p313 = por %p311, %p312
      %p315 = scmp.ne.s32.totalorder %s300, %s314
      %p316 = scmp.eq.s32.totalorder %s38, 0
      %p317 = por %p315, %p316
      %s319 = sadd.s32 %s318, 1
      %p322 = scmp.eq.s32.totalorder %s32, 1
      %p323 = scmp.ne.s32.totalorder %s318, %s320
      %p324 = scmp.eq.s32.totalorder %s32, 0
      %p325 = por %p323, %p324
      %p326 = scmp.ne.s32.totalorder %s318, %s320
      %p327 = scmp.eq.s32.totalorder %s37, 1
      %p328 = por %p326, %p327
      %p329 = scmp.ne.s32.totalorder %s320, %s321
      %p330 = scmp.eq.s32.totalorder %s37, 0
      %p331 = por %p329, %p330
      %p332 = scmp.ne.s32.totalorder %s320, %s321
      %p333 = scmp.eq.s32.totalorder %s38, 1
      %p334 = por %p332, %p333
      %p336 = scmp.ne.s32.totalorder %s321, %s335
      %p337 = scmp.eq.s32.totalorder %s38, 0
      %p338 = por %p336, %p337
      %s340 = sadd.s32 %s339, 1
      %p343 = scmp.eq.s32.totalorder %s32, 1
      %p344 = scmp.ne.s32.totalorder %s339, %s341
      %p345 = scmp.eq.s32.totalorder %s32, 0
      %p346 = por %p344, %p345
      %p347 = scmp.ne.s32.totalorder %s339, %s341
      %p348 = scmp.eq.s32.totalorder %s37, 1
      %p349 = por %p347, %p348
      %p350 = scmp.ne.s32.totalorder %s341, %s342
      %p351 = scmp.eq.s32.totalorder %s37, 0
      %p352 = por %p350, %p351
      %p353 = scmp.ne.s32.totalorder %s341, %s342
      %p354 = scmp.eq.s32.totalorder %s38, 1
      %p355 = por %p353, %p354
      %p357 = scmp.ne.s32.totalorder %s342, %s356
      %p358 = scmp.eq.s32.totalorder %s38, 0
      %p359 = por %p357, %p358
      %s361 = sadd.s32 %s360, 1
      %p364 = scmp.eq.s32.totalorder %s32, 1
      %p365 = scmp.ne.s32.totalorder %s360, %s362
      %p366 = scmp.eq.s32.totalorder %s32, 0
      %p367 = por %p365, %p366
      %p368 = scmp.ne.s32.totalorder %s360, %s362
      %p369 = scmp.eq.s32.totalorder %s37, 1
      %p370 = por %p368, %p369
      %p371 = scmp.ne.s32.totalorder %s362, %s363
      %p372 = scmp.eq.s32.totalorder %s37, 0
      %p373 = por %p371, %p372
      %p374 = scmp.ne.s32.totalorder %s362, %s363
      %p375 = scmp.eq.s32.totalorder %s38, 1
      %p376 = por %p374, %p375
      %p378 = scmp.ne.s32.totalorder %s363, %s377
      %p379 = scmp.eq.s32.totalorder %s38, 0
      %p380 = por %p378, %p379
      %s382 = sadd.s32 %s381, 1
      %p385 = scmp.eq.s32.totalorder %s32, 1
      %p386 = scmp.ne.s32.totalorder %s381, %s383
      %p387 = scmp.eq.s32.totalorder %s32, 0
      %p388 = por %p386, %p387
      %p389 = scmp.ne.s32.totalorder %s381, %s383
      %p390 = scmp.eq.s32.totalorder %s37, 1
      %p391 = por %p389, %p390
      %p392 = scmp.ne.s32.totalorder %s383, %s384
      %p393 = scmp.eq.s32.totalorder %s37, 0
      %p394 = por %p392, %p393
      %p395 = scmp.ne.s32.totalorder %s383, %s384
      %p396 = scmp.eq.s32.totalorder %s38, 1
      %p397 = por %p395, %p396
      %p399 = scmp.ne.s32.totalorder %s384, %s398
      %p400 = scmp.eq.s32.totalorder %s38, 0
      %p401 = por %p399, %p400
      %s403 = sadd.s32 %s402, 1
      %p406 = scmp.eq.s32.totalorder %s32, 1
      %p407 = scmp.ne.s32.totalorder %s402, %s404
      %p408 = scmp.eq.s32.totalorder %s32, 0
      %p409 = por %p407, %p408
      %p410 = scmp.ne.s32.totalorder %s402, %s404
      %p411 = scmp.eq.s32.totalorder %s37, 1
      %p412 = por %p410, %p411
      %p413 = scmp.ne.s32.totalorder %s404, %s405
      %p414 = scmp.eq.s32.totalorder %s37, 0
      %p415 = por %p413, %p414
      %p416 = scmp.ne.s32.totalorder %s404, %s405
      %p417 = scmp.eq.s32.totalorder %s38, 1
      %p418 = por %p416, %p417
      %p420 = scmp.ne.s32.totalorder %s405, %s419
      %p421 = scmp.eq.s32.totalorder %s38, 0
      %p422 = por %p420, %p421
      %s424 = sadd.s32 %s423, 1
      %p427 = scmp.eq.s32.totalorder %s32, 1
      %p428 = scmp.ne.s32.totalorder %s423, %s425
      %p429 = scmp.eq.s32.totalorder %s32, 0
      %p430 = por %p428, %p429
      %p431 = scmp.ne.s32.totalorder %s423, %s425
      %p432 = scmp.eq.s32.totalorder %s37, 1
      %p433 = por %p431, %p432
      %p434 = scmp.ne.s32.totalorder %s425, %s426
      %p435 = scmp.eq.s32.totalorder %s37, 0
      %p436 = por %p434, %p435
      %p437 = scmp.ne.s32.totalorder %s425, %s426
      %p438 = scmp.eq.s32.totalorder %s38, 1
      %p439 = por %p437, %p438
      %p441 = scmp.ne.s32.totalorder %s426, %s440
      %p442 = scmp.eq.s32.totalorder %s38, 0
      %p443 = por %p441, %p442
      %s445 = sadd.s32 %s444, 1
      %p448 = scmp.eq.s32.totalorder %s32, 1
      %p449 = scmp.ne.s32.totalorder %s444, %s446
      %p450 = scmp.eq.s32.totalorder %s32, 0
      %p451 = por %p449, %p450
      %p452 = scmp.ne.s32.totalorder %s444, %s446
      %p453 = scmp.eq.s32.totalorder %s37, 1
      %p454 = por %p452, %p453
      %p455 = scmp.ne.s32.totalorder %s446, %s447
      %p456 = scmp.eq.s32.totalorder %s37, 0
      %p457 = por %p455, %p456
      %p458 = scmp.ne.s32.totalorder %s446, %s447
      %p459 = scmp.eq.s32.totalorder %s38, 1
      %p460 = por %p458, %p459
      %p462 = scmp.ne.s32.totalorder %s447, %s461
      %p463 = scmp.eq.s32.totalorder %s38, 0
      %p464 = por %p462, %p463
      %s466 = sadd.s32 %s465, 1
      %p469 = scmp.eq.s32.totalorder %s32, 1
      %p470 = scmp.ne.s32.totalorder %s465, %s467
      %p471 = scmp.eq.s32.totalorder %s32, 0
      %p472 = por %p470, %p471
      %p473 = scmp.ne.s32.totalorder %s465, %s467
      %p474 = scmp.eq.s32.totalorder %s37, 1
      %p475 = por %p473, %p474
      %p476 = scmp.ne.s32.totalorder %s467, %s468
      %p477 = scmp.eq.s32.totalorder %s37, 0
      %p478 = por %p476, %p477
      %p479 = scmp.ne.s32.totalorder %s467, %s468
      %p480 = scmp.eq.s32.totalorder %s38, 1
      %p481 = por %p479, %p480
      %p483 = scmp.ne.s32.totalorder %s468, %s482
      %p484 = scmp.eq.s32.totalorder %s38, 0
      %p485 = por %p483, %p484
      %s487 = sadd.s32 %s486, 1
      %p490 = scmp.eq.s32.totalorder %s32, 1
      %p491 = scmp.ne.s32.totalorder %s486, %s488
      %p492 = scmp.eq.s32.totalorder %s32, 0
      %p493 = por %p491, %p492
      %p494 = scmp.ne.s32.totalorder %s486, %s488
      %p495 = scmp.eq.s32.totalorder %s37, 1
      %p496 = por %p494, %p495
      %p497 = scmp.ne.s32.totalorder %s488, %s489
      %p498 = scmp.eq.s32.totalorder %s37, 0
      %p499 = por %p497, %p498
      %p500 = scmp.ne.s32.totalorder %s488, %s489
      %p501 = scmp.eq.s32.totalorder %s38, 1
      %p502 = por %p500, %p501
      %p504 = scmp.ne.s32.totalorder %s489, %s503
      %p505 = scmp.eq.s32.totalorder %s38, 0
      %p506 = por %p504, %p505
      %s507 = ssub.s32 %s32, %s39
      %p508 = scmp.eq.s32.totalorder %s507, 0
      %s510 = sadd.s32 %s509, 1
      %s511 = scalar_select %p508, %s509, %s510
      %p514 = pneg %p508
      %p515 = scmp.eq.s32.totalorder %s32, 1
      %p516 = por %p514, %p515
      %p517 = scmp.ne.s32.totalorder %s509, %s512
      %p518 = scmp.eq.s32.totalorder %s32, 0
      %p519 = por %p517, %p518
      %p520 = scmp.ne.s32.totalorder %s509, %s512
      %p521 = scmp.eq.s32.totalorder %s37, 1
      %p522 = por %p520, %p521
      %p523 = scmp.ne.s32.totalorder %s512, %s513
      %p524 = scmp.eq.s32.totalorder %s37, 0
      %p525 = por %p523, %p524
      %p526 = scmp.ne.s32.totalorder %s512, %s513
      %p527 = scmp.eq.s32.totalorder %s38, 1
      %p528 = por %p526, %p527
      %p530 = scmp.ne.s32.totalorder %s513, %s529
      %p531 = scmp.eq.s32.totalorder %s38, 0
      %p532 = por %p530, %p531
      %p533 = scmp.le.s32.totalorder 1, %s32
      %p534 = scmp.lt.s32.totalorder %s32, 3
      %p535 = pnand %p533, %p534
      %p536 = pneg %p535
      // Predicated region
      $region9: #{dilated_net_forward.1} parent=5 // pred_check
        _
      $region10: #{dilated_net_forward.1} parent=5 // pred_check_branch
        %538 = sbr.rel (%p535) target = $region12
      $region11: #{dilated_net_forward.1} parent=5 // pred_region
        %s539 = ssub.s32 %s32, 1
        // Predicated region
        $region13: #{dilated_net_forward.1} parent=11 // pred_check
          %p540 = pneg %p79
        $region14: #{dilated_net_forward.1} parent=11 // pred_check_branch
          %542 = sbr.rel (%p540) target = $region16
        $region15: #{dilated_net_forward.1} parent=11 // pred_region
          _
        $region16: #{dilated_net_forward.1} parent=11 // pred_fallthru
          _
        // Predicated region
        $region17: #{dilated_net_forward.1} parent=11 // pred_check
          %p543 = pneg %p100
        $region18: #{dilated_net_forward.1} parent=11 // pred_check_branch
          %545 = sbr.rel (%p543) target = $region20
        $region19: #{dilated_net_forward.1} parent=11 // pred_region
          _
        $region20: #{dilated_net_forward.1} parent=11 // pred_fallthru
          _
        // Predicated region
        $region21: #{dilated_net_forward.1} parent=11 // pred_check
          %p546 = pneg %p121
        $region22: #{dilated_net_forward.1} parent=11 // pred_check_branch
          %548 = sbr.rel (%p546) target = $region24
        $region23: #{dilated_net_forward.1} parent=11 // pred_region
          _
        $region24: #{dilated_net_forward.1} parent=11 // pred_fallthru
          _
        // Predicated region
        $region25: #{dilated_net_forward.1} parent=11 // pred_check
          %p549 = pneg %p142
        $region26: #{dilated_net_forward.1} parent=11 // pred_check_branch
          %551 = sbr.rel (%p549) target = $region28
        $region27: #{dilated_net_forward.1} parent=11 // pred_region
          _
        $region28: #{dilated_net_forward.1} parent=11 // pred_fallthru
          _
        // Predicated region
        $region29: #{dilated_net_forward.1} parent=11 // pred_check
          %p552 = pneg %p163
        $region30: #{dilated_net_forward.1} parent=11 // pred_check_branch
          %554 = sbr.rel (%p552) target = $region32
        $region31: #{dilated_net_forward.1} parent=11 // pred_region
          _
        $region32: #{dilated_net_forward.1} parent=11 // pred_fallthru
          _
        // Predicated region
        $region33: #{dilated_net_forward.1} parent=11 // pred_check
          %p555 = pneg %p184
        $region34: #{dilated_net_forward.1} parent=11 // pred_check_branch
          %557 = sbr.rel (%p555) target = $region36
        $region35: #{dilated_net_forward.1} parent=11 // pred_region
          _
        $region36: #{dilated_net_forward.1} parent=11 // pred_fallthru
          _
        // Predicated region
        $region37: #{dilated_net_forward.1} parent=11 // pred_check
          %p558 = pneg %p205
        $region38: #{dilated_net_forward.1} parent=11 // pred_check_branch
          %560 = sbr.rel (%p558) target = $region40
        $region39: #{dilated_net_forward.1} parent=11 // pred_region
          _
        $region40: #{dilated_net_forward.1} parent=11 // pred_fallthru
          _
        // Predicated region
        $region41: #{dilated_net_forward.1} parent=11 // pred_check
          %p561 = pneg %p226
        $region42: #{dilated_net_forward.1} parent=11 // pred_check_branch
          %563 = sbr.rel (%p561) target = $region44
        $region43: #{dilated_net_forward.1} parent=11 // pred_region
          _
        $region44: #{dilated_net_forward.1} parent=11 // pred_fallthru
          _
        // Predicated region
        $region45: #{dilated_net_forward.1} parent=11 // pred_check
          %p564 = pneg %p247
        $region46: #{dilated_net_forward.1} parent=11 // pred_check_branch
          %566 = sbr.rel (%p564) target = $region48
        $region47: #{dilated_net_forward.1} parent=11 // pred_region
          _
        $region48: #{dilated_net_forward.1} parent=11 // pred_fallthru
          _
        // Predicated region
        $region49: #{dilated_net_forward.1} parent=11 // pred_check
          %p567 = pneg %p268
        $region50: #{dilated_net_forward.1} parent=11 // pred_check_branch
          %569 = sbr.rel (%p567) target = $region52
        $region51: #{dilated_net_forward.1} parent=11 // pred_region
          _
        $region52: #{dilated_net_forward.1} parent=11 // pred_fallthru
          _
        // Predicated region
        $region53: #{dilated_net_forward.1} parent=11 // pred_check
          %p570 = pneg %p289
        $region54: #{dilated_net_forward.1} parent=11 // pred_check_branch
          %572 = sbr.rel (%p570) target = $region56
        $region55: #{dilated_net_forward.1} parent=11 // pred_region
          _
        $region56: #{dilated_net_forward.1} parent=11 // pred_fallthru
          _
        // Predicated region
        $region57: #{dilated_net_forward.1} parent=11 // pred_check
          %p573 = pneg %p310
        $region58: #{dilated_net_forward.1} parent=11 // pred_check_branch
          %575 = sbr.rel (%p573) target = $region60
        $region59: #{dilated_net_forward.1} parent=11 // pred_region
          _
        $region60: #{dilated_net_forward.1} parent=11 // pred_fallthru
          _
        // Predicated region
        $region61: #{dilated_net_forward.1} parent=11 // pred_check
          %p576 = pneg %p331
        $region62: #{dilated_net_forward.1} parent=11 // pred_check_branch
          %578 = sbr.rel (%p576) target = $region64
        $region63: #{dilated_net_forward.1} parent=11 // pred_region
          %580 = vsyncadd [#allocation11], 0
          %s581 = sshll.u32 %s13, 4
          %s582 = int_to_ptr.hbm [resolvable:$true] %s581
          %s583 = sshll.u32 [#allocation10], 4
          %s584 = int_to_ptr.vmem [resolvable:$true] %s583
          %589 = dma.hbm_to_vmem [thread:$0]  %s582, 9216, %s584, [#allocation11], 64, 64, 4
        $region64: #{dilated_net_forward.1} parent=11 // pred_fallthru
          _
        // Predicated region
        $region65: #{dilated_net_forward.1} parent=11 // pred_check
          %p590 = pneg %p352
        $region66: #{dilated_net_forward.1} parent=11 // pred_check_branch
          %592 = sbr.rel (%p590) target = $region68
        $region67: #{dilated_net_forward.1} parent=11 // pred_region
          _
        $region68: #{dilated_net_forward.1} parent=11 // pred_fallthru
          _
        // Predicated region
        $region69: #{dilated_net_forward.1} parent=11 // pred_check
          %p593 = pneg %p373
        $region70: #{dilated_net_forward.1} parent=11 // pred_check_branch
          %595 = sbr.rel (%p593) target = $region72
        $region71: #{dilated_net_forward.1} parent=11 // pred_region
          _
        $region72: #{dilated_net_forward.1} parent=11 // pred_fallthru
          _
        // Predicated region
        $region73: #{dilated_net_forward.1} parent=11 // pred_check
          %p596 = pneg %p394
        $region74: #{dilated_net_forward.1} parent=11 // pred_check_branch
          %598 = sbr.rel (%p596) target = $region76
        $region75: #{dilated_net_forward.1} parent=11 // pred_region
          _
        $region76: #{dilated_net_forward.1} parent=11 // pred_fallthru
          _
        // Predicated region
        $region77: #{dilated_net_forward.1} parent=11 // pred_check
          %p599 = pneg %p415
        $region78: #{dilated_net_forward.1} parent=11 // pred_check_branch
          %601 = sbr.rel (%p599) target = $region80
        $region79: #{dilated_net_forward.1} parent=11 // pred_region
          _
        $region80: #{dilated_net_forward.1} parent=11 // pred_fallthru
          _
        // Predicated region
        $region81: #{dilated_net_forward.1} parent=11 // pred_check
          %p602 = pneg %p436
        $region82: #{dilated_net_forward.1} parent=11 // pred_check_branch
          %604 = sbr.rel (%p602) target = $region84
        $region83: #{dilated_net_forward.1} parent=11 // pred_region
          _
        $region84: #{dilated_net_forward.1} parent=11 // pred_fallthru
          _
        // Predicated region
        $region85: #{dilated_net_forward.1} parent=11 // pred_check
          %p605 = pneg %p457
        $region86: #{dilated_net_forward.1} parent=11 // pred_check_branch
          %607 = sbr.rel (%p605) target = $region88
        $region87: #{dilated_net_forward.1} parent=11 // pred_region
          _
        $region88: #{dilated_net_forward.1} parent=11 // pred_fallthru
          _
        // Predicated region
        $region89: #{dilated_net_forward.1} parent=11 // pred_check
          %p608 = pneg %p478
        $region90: #{dilated_net_forward.1} parent=11 // pred_check_branch
          %610 = sbr.rel (%p608) target = $region92
        $region91: #{dilated_net_forward.1} parent=11 // pred_region
          _
        $region92: #{dilated_net_forward.1} parent=11 // pred_fallthru
          _
        // Predicated region
        $region93: #{dilated_net_forward.1} parent=11 // pred_check
          %p611 = pneg %p499
        $region94: #{dilated_net_forward.1} parent=11 // pred_check_branch
          %613 = sbr.rel (%p611) target = $region96
        $region95: #{dilated_net_forward.1} parent=11 // pred_region
          _
        $region96: #{dilated_net_forward.1} parent=11 // pred_fallthru
          _
      $region12: #{dilated_net_forward.1} parent=5 // pred_fallthru
        _
      %p614 = scmp.lt.s32.totalorder %s32, 2
      // Predicated region
      $region97: #{dilated_net_forward.1} parent=5 // pred_check
        %p615 = pneg %p614
      $region98: #{dilated_net_forward.1} parent=5 // pred_check_branch
        %617 = sbr.rel (%p615) target = $region100
      $region99: #{dilated_net_forward.1} parent=5 // pred_region
        // Predicated region
        $region101: #{dilated_net_forward.1} parent=99 // pred_check
          %p618 = pneg %p52
        $region102: #{dilated_net_forward.1} parent=99 // pred_check_branch
          %620 = sbr.rel (%p618) target = $region104
        $region103: #{dilated_net_forward.1} parent=99 // pred_region
          %p621 = scmp.lt.s32.totalorder %s32, 1
          %s622 = scalar_select %p621, %s32, 1
          %s623 = smul.addr %s622, 9
          %s624 = scalar_lea.vmem %s0, %s623
        $region104: #{dilated_net_forward.1} parent=99 // pred_fallthru
          _
      $region100: #{dilated_net_forward.1} parent=5 // pred_fallthru
        _
      %p625 = scmp.le.s32.totalorder 1, %s32
      %p626 = scmp.lt.s32.totalorder %s32, 3
      %p627 = pnand %p625, %p626
      %p628 = pneg %p627
      // Predicated region
      $region105: #{dilated_net_forward.1} parent=5 // pred_check
        _
      $region106: #{dilated_net_forward.1} parent=5 // pred_check_branch
        %630 = sbr.rel (%p627) target = $region108
      $region107: #{dilated_net_forward.1} parent=5 // pred_region
        %s631 = ssub.s32 %s32, 1
        // Predicated region
        $region109: #{dilated_net_forward.1} parent=107 // pred_check
          %p632 = pneg %p331
        $region110: #{dilated_net_forward.1} parent=107 // pred_check_branch
          %634 = sbr.rel (%p632) target = $region112
        $region111: #{dilated_net_forward.1} parent=107 // pred_region
          %636 = dma.done [#allocation11], 9216
        $region112: #{dilated_net_forward.1} parent=107 // pred_fallthru
          _
        %p637 = scmp.lt.s32.totalorder %s37, 1
        %s638 = scalar_select %p637, %s37, 1
        %s639 = smul.addr %s638, 9
        %s640 = scalar_lea.vmem %s0, %s639
        %p641 = pneg %p58
        %p642 = pneg %p55
        %p643 = pneg %p79
        %p644 = pneg %p76
        %p645 = pneg %p100
        %p646 = pneg %p97
        %p647 = pneg %p121
        %p648 = pneg %p118
        %p649 = pneg %p142
        %p650 = pneg %p139
        %p651 = pneg %p163
        %p652 = pneg %p160
        %p653 = pneg %p184
        %p654 = pneg %p181
        %p655 = pneg %p205
        %p656 = pneg %p202
        %p657 = pneg %p226
        %p658 = pneg %p223
        %p659 = pneg %p247
        %p660 = pneg %p244
        %p661 = pneg %p268
        %p662 = pneg %p265
        %p663 = pneg %p289
        %p664 = pneg %p286
        %p665 = pneg %p310
        %p666 = pneg %p307
        %p667 = pneg %p331
        %p668 = pneg %p328
        %p669 = pneg %p352
        %p670 = pneg %p349
        %p671 = pneg %p373
        %p672 = pneg %p370
        %p673 = pneg %p394
        %p674 = pneg %p391
        %p675 = pneg %p415
        %p676 = pneg %p412
        %p677 = pneg %p436
        %p678 = pneg %p433
        %p679 = pneg %p457
        %p680 = pneg %p454
        %p681 = pneg %p478
        %p682 = pneg %p475
        %p683 = pneg %p499
        %p684 = pneg %p496
        %p685 = pneg %p525
        %p686 = pneg %p522
        %s687 = sand.u32 %s512, 1
        %s688 = scalar_lea.sflag [#allocation12], %s687
        %s689 = sand.u32 %s512, 1
        %s690 = scalar_lea.vmem [#allocation13], %s689
        %p691 = scmp.lt.s32.totalorder %s37, 1
        %s692 = scalar_select %p691, %s37, 1
        %s693 = smul.addr %s692, 9
        %s694 = scalar_lea.vmem %s0, %s693
        %vm696 = vcmask 130048
        %697 = vst.msk [vmem:[#allocation2] sm:$0xff] %vm696, 0.0
        %698 = vst.msk [vmem:[#allocation2 + $0x108] sm:$0xff] %vm696, 0.0
        %vm699 = vcmask 261120
        %700 = vst.msk [vmem:[#allocation3] sm:$0xff] %vm699, 0.0
        %701 = vst.msk [vmem:[#allocation3 + $0x48] sm:$0xff] %vm699, 0.0
        %vm702 = vcmask 523264
        %703 = vst.msk [vmem:[#allocation4] sm:$0xff] %vm702, 0.0
        %704 = vst.msk [vmem:[#allocation4 + $0x18] sm:$0xff] %vm702, 0.0
        %705 = vst [vmem:[#allocation5] sm:$0xff] 0.0
        %706 = vst [vmem:[#allocation5 + $0xc] sm:$0xff] 0.0
        %v707 = vld [vmem:[%s694] sm:$0xff]
        %v708 = vld [vmem:[%s694 + $0x8] sm:$0x1]
        %v709 = vunpack.c.l.bf16 %v707
        %v710 = vunpack.c.h.bf16 %v707
        %v711 = vunpack.c.l.bf16 %v708
        %v714 = vperm.slane %v709, 0
        %v715 = vperm.slane %v709, 2
        %v716 = vperm.slane %v709, 4
        %v717 = vperm.slane %v709, 6
        %v718 = vperm.slane %v710, 0
        %v719 = vperm.slane %v710, 2
        %v720 = vperm.slane %v710, 4
        %v721 = vperm.slane %v710, 6
        %v731 = vperm.slane %v711, 0
        %732 = vrot.lane.b32.xlu0 %v714, 127
        %v733 = vpop.permute.xlu0 %732
        %734 = vrot.lane.b32.xlu0 %v715, 127
        %v735 = vpop.permute.xlu0 %734
        %736 = vrot.lane.b32.xlu0 %v716, 127
        %v737 = vpop.permute.xlu0 %736
        %738 = vrot.lane.b32.xlu0 %v717, 127
        %v739 = vpop.permute.xlu0 %738
        %740 = vrot.lane.b32.xlu0 %v718, 127
        %v741 = vpop.permute.xlu0 %740
        %742 = vrot.lane.b32.xlu0 %v719, 127
        %v743 = vpop.permute.xlu0 %742
        %744 = vrot.lane.b32.xlu0 %v720, 127
        %v745 = vpop.permute.xlu0 %744
        %746 = vrot.lane.b32.xlu0 %v721, 127
        %v747 = vpop.permute.xlu0 %746
        %748 = vrot.lane.b32.xlu0 %v731, 127
        %v749 = vpop.permute.xlu0 %748
        %vm750 = vcmask 1039360
        %v751 = vsel %vm750, %v733, %v735
        %v752 = vsel %vm750, %v735, %v737
        %v753 = vsel %vm750, %v737, %v739
        %v754 = vsel %vm750, %v739, %v741
        %v755 = vsel %vm750, %v741, %v743
        %v756 = vsel %vm750, %v743, %v745
        %v757 = vsel %vm750, %v745, %v747
        %v758 = vsel %vm750, %v747, %v749
        %767 = vrot.lane.b32.xlu0 %v714, 126
        %v768 = vpop.permute.xlu0 %767
        %769 = vrot.lane.b32.xlu0 %v715, 126
        %v770 = vpop.permute.xlu0 %769
        %771 = vrot.lane.b32.xlu0 %v716, 126
        %v772 = vpop.permute.xlu0 %771
        %773 = vrot.lane.b32.xlu0 %v717, 126
        %v774 = vpop.permute.xlu0 %773
        %775 = vrot.lane.b32.xlu0 %v718, 126
        %v776 = vpop.permute.xlu0 %775
        %777 = vrot.lane.b32.xlu0 %v719, 126
        %v778 = vpop.permute.xlu0 %777
        %779 = vrot.lane.b32.xlu0 %v720, 126
        %v780 = vpop.permute.xlu0 %779
        %781 = vrot.lane.b32.xlu0 %v721, 126
        %v782 = vpop.permute.xlu0 %781
        %783 = vrot.lane.b32.xlu0 %v731, 126
        %v784 = vpop.permute.xlu0 %783
        %vm785 = vcmask 1031168
        %v786 = vsel %vm785, %v768, %v770
        %v787 = vsel %vm785, %v770, %v772
        %v788 = vsel %vm785, %v772, %v774
        %v789 = vsel %vm785, %v774, %v776
        %v790 = vsel %vm785, %v776, %v778
        %v791 = vsel %vm785, %v778, %v780
        %v792 = vsel %vm785, %v780, %v782
        %v793 = vsel %vm785, %v782, %v784
        %802 = vrot.lane.b32.xlu0 %v714, 125
        %v803 = vpop.permute.xlu0 %802
        %804 = vrot.lane.b32.xlu0 %v715, 125
        %v805 = vpop.permute.xlu0 %804
        %806 = vrot.lane.b32.xlu0 %v716, 125
        %v807 = vpop.permute.xlu0 %806
        %808 = vrot.lane.b32.xlu0 %v717, 125
        %v809 = vpop.permute.xlu0 %808
        %810 = vrot.lane.b32.xlu0 %v718, 125
        %v811 = vpop.permute.xlu0 %810
        %812 = vrot.lane.b32.xlu0 %v719, 125
        %v813 = vpop.permute.xlu0 %812
        %814 = vrot.lane.b32.xlu0 %v720, 125
        %v815 = vpop.permute.xlu0 %814
        %816 = vrot.lane.b32.xlu0 %v721, 125
        %v817 = vpop.permute.xlu0 %816
        %818 = vrot.lane.b32.xlu0 %v731, 125
        %v819 = vpop.permute.xlu0 %818
        %vm820 = vcmask 1022976
        %v821 = vsel %vm820, %v803, %v805
        %v822 = vsel %vm820, %v805, %v807
        %v823 = vsel %vm820, %v807, %v809
        %v824 = vsel %vm820, %v809, %v811
        %v825 = vsel %vm820, %v811, %v813
        %v826 = vsel %vm820, %v813, %v815
        %v827 = vsel %vm820, %v815, %v817
        %v828 = vsel %vm820, %v817, %v819
        %837 = vrot.lane.b32.xlu0 %v714, 124
        %v838 = vpop.permute.xlu0 %837
        %839 = vrot.lane.b32.xlu0 %v715, 124
        %v840 = vpop.permute.xlu0 %839
        %841 = vrot.lane.b32.xlu0 %v716, 124
        %v842 = vpop.permute.xlu0 %841
        %843 = vrot.lane.b32.xlu0 %v717, 124
        %v844 = vpop.permute.xlu0 %843
        %845 = vrot.lane.b32.xlu0 %v718, 124
        %v846 = vpop.permute.xlu0 %845
        %847 = vrot.lane.b32.xlu0 %v719, 124
        %v848 = vpop.permute.xlu0 %847
        %849 = vrot.lane.b32.xlu0 %v720, 124
        %v850 = vpop.permute.xlu0 %849
        %851 = vrot.lane.b32.xlu0 %v721, 124
        %v852 = vpop.permute.xlu0 %851
        %853 = vrot.lane.b32.xlu0 %v731, 124
        %v854 = vpop.permute.xlu0 %853
        %vm855 = vcmask 1014784
        %v856 = vsel %vm855, %v838, %v840
        %v857 = vsel %vm855, %v840, %v842
        %v858 = vsel %vm855, %v842, %v844
        %v859 = vsel %vm855, %v844, %v846
        %v860 = vsel %vm855, %v846, %v848
        %v861 = vsel %vm855, %v848, %v850
        %v862 = vsel %vm855, %v850, %v852
        %v863 = vsel %vm855, %v852, %v854
        %872 = vrot.lane.b32.xlu0 %v714, 123
        %v873 = vpop.permute.xlu0 %872
        %874 = vrot.lane.b32.xlu0 %v715, 123
        %v875 = vpop.permute.xlu0 %874
        %876 = vrot.lane.b32.xlu0 %v716, 123
        %v877 = vpop.permute.xlu0 %876
        %878 = vrot.lane.b32.xlu0 %v717, 123
        %v879 = vpop.permute.xlu0 %878
        %880 = vrot.lane.b32.xlu0 %v718, 123
        %v881 = vpop.permute.xlu0 %880
        %882 = vrot.lane.b32.xlu0 %v719, 123
        %v883 = vpop.permute.xlu0 %882
        %884 = vrot.lane.b32.xlu0 %v720, 123
        %v885 = vpop.permute.xlu0 %884
        %886 = vrot.lane.b32.xlu0 %v721, 123
        %v887 = vpop.permute.xlu0 %886
        %888 = vrot.lane.b32.xlu0 %v731, 123
        %v889 = vpop.permute.xlu0 %888
        %vm890 = vcmask 1006592
        %v891 = vsel %vm890, %v873, %v875
        %v892 = vsel %vm890, %v875, %v877
        %v893 = vsel %vm890, %v877, %v879
        %v894 = vsel %vm890, %v879, %v881
        %v895 = vsel %vm890, %v881, %v883
        %v896 = vsel %vm890, %v883, %v885
        %v897 = vsel %vm890, %v885, %v887
        %v898 = vsel %vm890, %v887, %v889
        %907 = vrot.lane.b32.xlu0 %v714, 122
        %v908 = vpop.permute.xlu0 %907
        %909 = vrot.lane.b32.xlu0 %v715, 122
        %v910 = vpop.permute.xlu0 %909
        %911 = vrot.lane.b32.xlu0 %v716, 122
        %v912 = vpop.permute.xlu0 %911
        %913 = vrot.lane.b32.xlu0 %v717, 122
        %v914 = vpop.permute.xlu0 %913
        %915 = vrot.lane.b32.xlu0 %v718, 122
        %v916 = vpop.permute.xlu0 %915
        %917 = vrot.lane.b32.xlu0 %v719, 122
        %v918 = vpop.permute.xlu0 %917
        %919 = vrot.lane.b32.xlu0 %v720, 122
        %v920 = vpop.permute.xlu0 %919
        %921 = vrot.lane.b32.xlu0 %v721, 122
        %v922 = vpop.permute.xlu0 %921
        %923 = vrot.lane.b32.xlu0 %v731, 122
        %v924 = vpop.permute.xlu0 %923
        %vm925 = vcmask 998400
        %v926 = vsel %vm925, %v908, %v910
        %v927 = vsel %vm925, %v910, %v912
        %v928 = vsel %vm925, %v912, %v914
        %v929 = vsel %vm925, %v914, %v916
        %v930 = vsel %vm925, %v916, %v918
        %v931 = vsel %vm925, %v918, %v920
        %v932 = vsel %vm925, %v920, %v922
        %v933 = vsel %vm925, %v922, %v924
        %942 = vrot.lane.b32.xlu0 %v714, 121
        %v943 = vpop.permute.xlu0 %942
        %944 = vrot.lane.b32.xlu0 %v715, 121
        %v945 = vpop.permute.xlu0 %944
        %946 = vrot.lane.b32.xlu0 %v716, 121
        %v947 = vpop.permute.xlu0 %946
        %948 = vrot.lane.b32.xlu0 %v717, 121
        %v949 = vpop.permute.xlu0 %948
        %950 = vrot.lane.b32.xlu0 %v718, 121
        %v951 = vpop.permute.xlu0 %950
        %952 = vrot.lane.b32.xlu0 %v719, 121
        %v953 = vpop.permute.xlu0 %952
        %954 = vrot.lane.b32.xlu0 %v720, 121
        %v955 = vpop.permute.xlu0 %954
        %956 = vrot.lane.b32.xlu0 %v721, 121
        %v957 = vpop.permute.xlu0 %956
        %958 = vrot.lane.b32.xlu0 %v731, 121
        %v959 = vpop.permute.xlu0 %958
        %vm960 = vcmask 990208
        %v961 = vsel %vm960, %v943, %v945
        %v962 = vsel %vm960, %v945, %v947
        %v963 = vsel %vm960, %v947, %v949
        %v964 = vsel %vm960, %v949, %v951
        %v965 = vsel %vm960, %v951, %v953
        %v966 = vsel %vm960, %v953, %v955
        %v967 = vsel %vm960, %v955, %v957
        %v968 = vsel %vm960, %v957, %v959
        %vm977 = vcmask 1040384
        %v978 = vsel %vm977, %v714, %v751
        %v979 = vsel %vm977, %v715, %v752
        %v980 = vsel %vm977, %v716, %v753
        %v981 = vsel %vm977, %v717, %v754
        %v982 = vsel %vm977, %v718, %v755
        %v983 = vsel %vm977, %v719, %v756
        %v984 = vsel %vm977, %v720, %v757
        %v985 = vsel %vm977, %v721, %v758
        %vm986 = vcmask 1041408
        %v987 = vsel %vm986, %v978, %v786
        %v988 = vsel %vm986, %v979, %v787
        %v989 = vsel %vm986, %v980, %v788
        %v990 = vsel %vm986, %v981, %v789
        %v991 = vsel %vm986, %v982, %v790
        %v992 = vsel %vm986, %v983, %v791
        %v993 = vsel %vm986, %v984, %v792
        %v994 = vsel %vm986, %v985, %v793
        %vm995 = vcmask 1042432
        %v996 = vsel %vm995, %v987, %v821
        %v997 = vsel %vm995, %v988, %v822
        %v998 = vsel %vm995, %v989, %v823
        %v999 = vsel %vm995, %v990, %v824
        %v1000 = vsel %vm995, %v991, %v825
        %v1001 = vsel %vm995, %v992, %v826
        %v1002 = vsel %vm995, %v993, %v827
        %v1003 = vsel %vm995, %v994, %v828
        %vm1004 = vcmask 1043456
        %v1005 = vsel %vm1004, %v996, %v856
        %v1006 = vsel %vm1004, %v997, %v857
        %v1007 = vsel %vm1004, %v998, %v858
        %v1008 = vsel %vm1004, %v999, %v859
        %v1009 = vsel %vm1004, %v1000, %v860
        %v1010 = vsel %vm1004, %v1001, %v861
        %v1011 = vsel %vm1004, %v1002, %v862
        %v1012 = vsel %vm1004, %v1003, %v863
        %vm1013 = vcmask 1044480
        %v1014 = vsel %vm1013, %v1005, %v891
        %v1015 = vsel %vm1013, %v1006, %v892
        %v1016 = vsel %vm1013, %v1007, %v893
        %v1017 = vsel %vm1013, %v1008, %v894
        %v1018 = vsel %vm1013, %v1009, %v895
        %v1019 = vsel %vm1013, %v1010, %v896
        %v1020 = vsel %vm1013, %v1011, %v897
        %v1021 = vsel %vm1013, %v1012, %v898
        %vm1022 = vcmask 1045504
        %v1023 = vsel %vm1022, %v1014, %v926
        %v1024 = vsel %vm1022, %v1015, %v927
        %v1025 = vsel %vm1022, %v1016, %v928
        %v1026 = vsel %vm1022, %v1017, %v929
        %v1027 = vsel %vm1022, %v1018, %v930
        %v1028 = vsel %vm1022, %v1019, %v931
        %v1029 = vsel %vm1022, %v1020, %v932
        %v1030 = vsel %vm1022, %v1021, %v933
        %vm1031 = vcmask 1046528
        %v1032 = vsel %vm1031, %v1023, %v961
        %v1033 = vsel %vm1031, %v1024, %v962
        %v1034 = vsel %vm1031, %v1025, %v963
        %v1035 = vsel %vm1031, %v1026, %v964
        %v1036 = vsel %vm1031, %v1027, %v965
        %v1037 = vsel %vm1031, %v1028, %v966
        %v1038 = vsel %vm1031, %v1029, %v967
        %v1039 = vsel %vm1031, %v1030, %v968
        %1040 = vxpose.xlu0.b32.start [1/16] %v1032, 128
        %1041 = vxpose.xlu0.b32.cont [2/16] 0.0, 128
        %1042 = vxpose.xlu0.b32.cont [3/16] 0.0, 128
        %1043 = vxpose.xlu0.b32.cont [4/16] 0.0, 128
        %1044 = vxpose.xlu0.b32.cont [5/16] 0.0, 128
        %1045 = vxpose.xlu0.b32.cont [6/16] 0.0, 128
        %1046 = vxpose.xlu0.b32.cont [7/16] 0.0, 128
        %1047 = vxpose.xlu0.b32.cont [8/16] 0.0, 128
        %1048 = vxpose.xlu0.b32.cont [9/16] 0.0, 128
        %1049 = vxpose.xlu0.b32.cont [10/16] 0.0, 128
        %1050 = vxpose.xlu0.b32.cont [11/16] 0.0, 128
        %1051 = vxpose.xlu0.b32.cont [12/16] 0.0, 128
        %1052 = vxpose.xlu0.b32.cont [13/16] 0.0, 128
        %1053 = vxpose.xlu0.b32.cont [14/16] 0.0, 128
        %1054 = vxpose.xlu0.b32.cont [15/16] 0.0, 128
        %1055 = vxpose.xlu0.b32.end [16/16] 0.0, 128
        %v1056 = vpop.trf.xlu0
        %v1057 = vpop.trf.xlu0
        %v1058 = vpop.trf.xlu0
        %v1059 = vpop.trf.xlu0
        %v1060 = vpop.trf.xlu0
        %v1061 = vpop.trf.xlu0
        %v1062 = vpop.trf.xlu0
        %v1063 = vpop.trf.xlu0
        %v1064 = vpop.trf.xlu0
        %v1065 = vpop.trf.xlu0
        %v1066 = vpop.trf.xlu0
        %v1067 = vpop.trf.xlu0
        %v1068 = vpop.trf.xlu0
        %v1069 = vpop.trf.xlu0
        %v1070 = vpop.trf.xlu0
        %v1071 = vpop.trf.xlu0
        %1072 = vxpose.xlu0.b32.start [1/16] %v1033, 128
        %1073 = vxpose.xlu0.b32.cont [2/16] 0.0, 128
        %1074 = vxpose.xlu0.b32.cont [3/16] 0.0, 128
        %1075 = vxpose.xlu0.b32.cont [4/16] 0.0, 128
        %1076 = vxpose.xlu0.b32.cont [5/16] 0.0, 128
        %1077 = vxpose.xlu0.b32.cont [6/16] 0.0, 128
        %1078 = vxpose.xlu0.b32.cont [7/16] 0.0, 128
        %1079 = vxpose.xlu0.b32.cont [8/16] 0.0, 128
        %1080 = vxpose.xlu0.b32.cont [9/16] 0.0, 128
        %1081 = vxpose.xlu0.b32.cont [10/16] 0.0, 128
        %1082 = vxpose.xlu0.b32.cont [11/16] 0.0, 128
        %1083 = vxpose.xlu0.b32.cont [12/16] 0.0, 128
        %1084 = vxpose.xlu0.b32.cont [13/16] 0.0, 128
        %1085 = vxpose.xlu0.b32.cont [14/16] 0.0, 128
        %1086 = vxpose.xlu0.b32.cont [15/16] 0.0, 128
        %1087 = vxpose.xlu0.b32.end [16/16] 0.0, 128
        %v1088 = vpop.trf.xlu0
        %v1089 = vpop.trf.xlu0
        %v1090 = vpop.trf.xlu0
        %v1091 = vpop.trf.xlu0
        %v1092 = vpop.trf.xlu0
        %v1093 = vpop.trf.xlu0
        %v1094 = vpop.trf.xlu0
        %v1095 = vpop.trf.xlu0
        %v1096 = vpop.trf.xlu0
        %v1097 = vpop.trf.xlu0
        %v1098 = vpop.trf.xlu0
        %v1099 = vpop.trf.xlu0
        %v1100 = vpop.trf.xlu0
        %v1101 = vpop.trf.xlu0
        %v1102 = vpop.trf.xlu0
        %v1103 = vpop.trf.xlu0
        %1104 = vxpose.xlu0.b32.start [1/16] %v1034, 128
        %1105 = vxpose.xlu0.b32.cont [2/16] 0.0, 128
        %1106 = vxpose.xlu0.b32.cont [3/16] 0.0, 128
        %1107 = vxpose.xlu0.b32.cont [4/16] 0.0, 128
        %1108 = vxpose.xlu0.b32.cont [5/16] 0.0, 128
        %1109 = vxpose.xlu0.b32.cont [6/16] 0.0, 128
        %1110 = vxpose.xlu0.b32.cont [7/16] 0.0, 128
        %1111 = vxpose.xlu0.b32.cont [8/16] 0.0, 128
        %1112 = vxpose.xlu0.b32.cont [9/16] 0.0, 128
        %1113 = vxpose.xlu0.b32.cont [10/16] 0.0, 128
        %1114 = vxpose.xlu0.b32.cont [11/16] 0.0, 128
        %1115 = vxpose.xlu0.b32.cont [12/16] 0.0, 128
        %1116 = vxpose.xlu0.b32.cont [13/16] 0.0, 128
        %1117 = vxpose.xlu0.b32.cont [14/16] 0.0, 128
        %1118 = vxpose.xlu0.b32.cont [15/16] 0.0, 128
        %1119 = vxpose.xlu0.b32.end [16/16] 0.0, 128
        %v1120 = vpop.trf.xlu0
        %v1121 = vpop.trf.xlu0
        %v1122 = vpop.trf.xlu0
        %v1123 = vpop.trf.xlu0
        %v1124 = vpop.trf.xlu0
        %v1125 = vpop.trf.xlu0
        %v1126 = vpop.trf.xlu0
        %v1127 = vpop.trf.xlu0
        %v1128 = vpop.trf.xlu0
        %v1129 = vpop.trf.xlu0
        %v1130 = vpop.trf.xlu0
        %v1131 = vpop.trf.xlu0
        %v1132 = vpop.trf.xlu0
        %v1133 = vpop.trf.xlu0
        %v1134 = vpop.trf.xlu0
        %v1135 = vpop.trf.xlu0
        %1136 = vxpose.xlu0.b32.start [1/16] %v1035, 128
        %1137 = vxpose.xlu0.b32.cont [2/16] 0.0, 128
        %1138 = vxpose.xlu0.b32.cont [3/16] 0.0, 128
        %1139 = vxpose.xlu0.b32.cont [4/16] 0.0, 128
        %1140 = vxpose.xlu0.b32.cont [5/16] 0.0, 128
        %1141 = vxpose.xlu0.b32.cont [6/16] 0.0, 128
        %1142 = vxpose.xlu0.b32.cont [7/16] 0.0, 128
        %1143 = vxpose.xlu0.b32.cont [8/16] 0.0, 128
        %1144 = vxpose.xlu0.b32.cont [9/16] 0.0, 128
        %1145 = vxpose.xlu0.b32.cont [10/16] 0.0, 128
        %1146 = vxpose.xlu0.b32.cont [11/16] 0.0, 128
        %1147 = vxpose.xlu0.b32.cont [12/16] 0.0, 128
        %1148 = vxpose.xlu0.b32.cont [13/16] 0.0, 128
        %1149 = vxpose.xlu0.b32.cont [14/16] 0.0, 128
        %1150 = vxpose.xlu0.b32.cont [15/16] 0.0, 128
        %1151 = vxpose.xlu0.b32.end [16/16] 0.0, 128
        %v1152 = vpop.trf.xlu0
        %v1153 = vpop.trf.xlu0
        %v1154 = vpop.trf.xlu0
        %v1155 = vpop.trf.xlu0
        %v1156 = vpop.trf.xlu0
        %v1157 = vpop.trf.xlu0
        %v1158 = vpop.trf.xlu0
        %v1159 = vpop.trf.xlu0
        %v1160 = vpop.trf.xlu0
        %v1161 = vpop.trf.xlu0
        %v1162 = vpop.trf.xlu0
        %v1163 = vpop.trf.xlu0
        %v1164 = vpop.trf.xlu0
        %v1165 = vpop.trf.xlu0
        %v1166 = vpop.trf.xlu0
        %v1167 = vpop.trf.xlu0
        %1168 = vxpose.xlu0.b32.start [1/16] %v1036, 128
        %1169 = vxpose.xlu0.b32.cont [2/16] 0.0, 128
        %1170 = vxpose.xlu0.b32.cont [3/16] 0.0, 128
        %1171 = vxpose.xlu0.b32.cont [4/16] 0.0, 128
        %1172 = vxpose.xlu0.b32.cont [5/16] 0.0, 128
        %1173 = vxpose.xlu0.b32.cont [6/16] 0.0, 128
        %1174 = vxpose.xlu0.b32.cont [7/16] 0.0, 128
        %1175 = vxpose.xlu0.b32.cont [8/16] 0.0, 128
        %1176 = vxpose.xlu0.b32.cont [9/16] 0.0, 128
        %1177 = vxpose.xlu0.b32.cont [10/16] 0.0, 128
        %1178 = vxpose.xlu0.b32.cont [11/16] 0.0, 128
        %1179 = vxpose.xlu0.b32.cont [12/16] 0.0, 128
        %1180 = vxpose.xlu0.b32.cont [13/16] 0.0, 128
        %1181 = vxpose.xlu0.b32.cont [14/16] 0.0, 128
        %1182 = vxpose.xlu0.b32.cont [15/16] 0.0, 128
        %1183 = vxpose.xlu0.b32.end [16/16] 0.0, 128
        %v1184 = vpop.trf.xlu0
        %v1185 = vpop.trf.xlu0
        %v1186 = vpop.trf.xlu0
        %v1187 = vpop.trf.xlu0
        %v1188 = vpop.trf.xlu0
        %v1189 = vpop.trf.xlu0
        %v1190 = vpop.trf.xlu0
        %v1191 = vpop.trf.xlu0
        %v1192 = vpop.trf.xlu0
        %v1193 = vpop.trf.xlu0
        %v1194 = vpop.trf.xlu0
        %v1195 = vpop.trf.xlu0
        %v1196 = vpop.trf.xlu0
        %v1197 = vpop.trf.xlu0
        %v1198 = vpop.trf.xlu0
        %v1199 = vpop.trf.xlu0
        %1200 = vxpose.xlu0.b32.start [1/16] %v1037, 128
        %1201 = vxpose.xlu0.b32.cont [2/16] 0.0, 128
        %1202 = vxpose.xlu0.b32.cont [3/16] 0.0, 128
        %1203 = vxpose.xlu0.b32.cont [4/16] 0.0, 128
        %1204 = vxpose.xlu0.b32.cont [5/16] 0.0, 128
        %1205 = vxpose.xlu0.b32.cont [6/16] 0.0, 128
        %1206 = vxpose.xlu0.b32.cont [7/16] 0.0, 128
        %1207 = vxpose.xlu0.b32.cont [8/16] 0.0, 128
        %1208 = vxpose.xlu0.b32.cont [9/16] 0.0, 128
        %1209 = vxpose.xlu0.b32.cont [10/16] 0.0, 128
        %1210 = vxpose.xlu0.b32.cont [11/16] 0.0, 128
        %1211 = vxpose.xlu0.b32.cont [12/16] 0.0, 128
        %1212 = vxpose.xlu0.b32.cont [13/16] 0.0, 128
        %1213 = vxpose.xlu0.b32.cont [14/16] 0.0, 128
        %1214 = vxpose.xlu0.b32.cont [15/16] 0.0, 128
        %1215 = vxpose.xlu0.b32.end [16/16] 0.0, 128
        %v1216 = vpop.trf.xlu0
        %v1217 = vpop.trf.xlu0
        %v1218 = vpop.trf.xlu0
        %v1219 = vpop.trf.xlu0
        %v1220 = vpop.trf.xlu0
        %v1221 = vpop.trf.xlu0
        %v1222 = vpop.trf.xlu0
        %v1223 = vpop.trf.xlu0
        %v1224 = vpop.trf.xlu0
        %v1225 = vpop.trf.xlu0
        %v1226 = vpop.trf.xlu0
        %v1227 = vpop.trf.xlu0
        %v1228 = vpop.trf.xlu0
        %v1229 = vpop.trf.xlu0
        %v1230 = vpop.trf.xlu0
        %v1231 = vpop.trf.xlu0
        %1232 = vxpose.xlu0.b32.start [1/16] %v1038, 128
        %1233 = vxpose.xlu0.b32.cont [2/16] 0.0, 128
        %1234 = vxpose.xlu0.b32.cont [3/16] 0.0, 128
        %1235 = vxpose.xlu0.b32.cont [4/16] 0.0, 128
        %1236 = vxpose.xlu0.b32.cont [5/16] 0.0, 128
        %1237 = vxpose.xlu0.b32.cont [6/16] 0.0, 128
        %1238 = vxpose.xlu0.b32.cont [7/16] 0.0, 128
        %1239 = vxpose.xlu0.b32.cont [8/16] 0.0, 128
        %1240 = vxpose.xlu0.b32.cont [9/16] 0.0, 128
        %1241 = vxpose.xlu0.b32.cont [10/16] 0.0, 128
        %1242 = vxpose.xlu0.b32.cont [11/16] 0.0, 128
        %1243 = vxpose.xlu0.b32.cont [12/16] 0.0, 128
        %1244 = vxpose.xlu0.b32.cont [13/16] 0.0, 128
        %1245 = vxpose.xlu0.b32.cont [14/16] 0.0, 128
        %1246 = vxpose.xlu0.b32.cont [15/16] 0.0, 128
        %1247 = vxpose.xlu0.b32.end [16/16] 0.0, 128
        %v1248 = vpop.trf.xlu0
        %v1249 = vpop.trf.xlu0
        %v1250 = vpop.trf.xlu0
        %v1251 = vpop.trf.xlu0
        %v1252 = vpop.trf.xlu0
        %v1253 = vpop.trf.xlu0
        %v1254 = vpop.trf.xlu0
        %v1255 = vpop.trf.xlu0
        %v1256 = vpop.trf.xlu0
        %v1257 = vpop.trf.xlu0
        %v1258 = vpop.trf.xlu0
        %v1259 = vpop.trf.xlu0
        %v1260 = vpop.trf.xlu0
        %v1261 = vpop.trf.xlu0
        %v1262 = vpop.trf.xlu0
        %v1263 = vpop.trf.xlu0
        %1264 = vxpose.xlu0.b32.start [1/16] %v1039, 128
        %1265 = vxpose.xlu0.b32.cont [2/16] 0.0, 128
        %1266 = vxpose.xlu0.b32.cont [3/16] 0.0, 128
        %1267 = vxpose.xlu0.b32.cont [4/16] 0.0, 128
        %1268 = vxpose.xlu0.b32.cont [5/16] 0.0, 128
        %1269 = vxpose.xlu0.b32.cont [6/16] 0.0, 128
        %1270 = vxpose.xlu0.b32.cont [7/16] 0.0, 128
        %1271 = vxpose.xlu0.b32.cont [8/16] 0.0, 128
        %1272 = vxpose.xlu0.b32.cont [9/16] 0.0, 128
        %1273 = vxpose.xlu0.b32.cont [10/16] 0.0, 128
        %1274 = vxpose.xlu0.b32.cont [11/16] 0.0, 128
        %1275 = vxpose.xlu0.b32.cont [12/16] 0.0, 128
        %1276 = vxpose.xlu0.b32.cont [13/16] 0.0, 128
        %1277 = vxpose.xlu0.b32.cont [14/16] 0.0, 128
        %1278 = vxpose.xlu0.b32.cont [15/16] 0.0, 128
        %1279 = vxpose.xlu0.b32.end [16/16] 0.0, 128
        %v1280 = vpop.trf.xlu0
        %v1281 = vpop.trf.xlu0
        %v1282 = vpop.trf.xlu0
        %v1283 = vpop.trf.xlu0
        %v1284 = vpop.trf.xlu0
        %v1285 = vpop.trf.xlu0
        %v1286 = vpop.trf.xlu0
        %v1287 = vpop.trf.xlu0
        %v1288 = vpop.trf.xlu0
        %v1289 = vpop.trf.xlu0
        %v1290 = vpop.trf.xlu0
        %v1291 = vpop.trf.xlu0
        %v1292 = vpop.trf.xlu0
        %v1293 = vpop.trf.xlu0
        %v1294 = vpop.trf.xlu0
        %v1295 = vpop.trf.xlu0
        %v1296 = vld [vmem:[%s1] sm:$0xff]
        %vm1297 = vcmask 64512
        %v1299 = vsel %vm1297, %v1056, 0
        %v1302 = vsel %vm1297, %v1057, 0
        %v1305 = vsel %vm1297, %v1058, 0
        %v1308 = vsel %vm1297, %v1059, 0
        %v1311 = vsel %vm1297, %v1060, 0
        %v1314 = vsel %vm1297, %v1061, 0
        %v1317 = vsel %vm1297, %v1062, 0
        %v1320 = vsel %vm1297, %v1063, 0
        %v1323 = vsel %vm1297, %v1064, 0
        %v1326 = vsel %vm1297, %v1065, 0
        %v1329 = vsel %vm1297, %v1066, 0
        %v1332 = vsel %vm1297, %v1067, 0
        %v1335 = vsel %vm1297, %v1068, 0
        %v1338 = vsel %vm1297, %v1069, 0
        %v1341 = vsel %vm1297, %v1070, 0
        %v1344 = vsel %vm1297, %v1071, 0
        %v1347 = vsel %vm1297, %v1088, 0
        %v1350 = vsel %vm1297, %v1089, 0
        %v1353 = vsel %vm1297, %v1090, 0
        %v1356 = vsel %vm1297, %v1091, 0
        %v1359 = vsel %vm1297, %v1092, 0
        %v1362 = vsel %vm1297, %v1093, 0
        %v1365 = vsel %vm1297, %v1094, 0
        %v1368 = vsel %vm1297, %v1095, 0
        %v1371 = vsel %vm1297, %v1096, 0
        %v1374 = vsel %vm1297, %v1097, 0
        %v1377 = vsel %vm1297, %v1098, 0
        %v1380 = vsel %vm1297, %v1099, 0
        %v1383 = vsel %vm1297, %v1100, 0
        %v1386 = vsel %vm1297, %v1101, 0
        %v1389 = vsel %vm1297, %v1102, 0
        %v1392 = vsel %vm1297, %v1103, 0
        %v1395 = vsel %vm1297, %v1120, 0
        %v1398 = vsel %vm1297, %v1121, 0
        %v1401 = vsel %vm1297, %v1122, 0
        %v1404 = vsel %vm1297, %v1123, 0
        %v1407 = vsel %vm1297, %v1124, 0
        %v1410 = vsel %vm1297, %v1125, 0
        %v1413 = vsel %vm1297, %v1126, 0
        %v1416 = vsel %vm1297, %v1127, 0
        %v1419 = vsel %vm1297, %v1128, 0
        %v1422 = vsel %vm1297, %v1129, 0
        %v1425 = vsel %vm1297, %v1130, 0
        %v1428 = vsel %vm1297, %v1131, 0
        %v1431 = vsel %vm1297, %v1132, 0
        %v1434 = vsel %vm1297, %v1133, 0
        %v1437 = vsel %vm1297, %v1134, 0
        %v1440 = vsel %vm1297, %v1135, 0
        %v1443 = vsel %vm1297, %v1152, 0
        %v1446 = vsel %vm1297, %v1153, 0
        %v1449 = vsel %vm1297, %v1154, 0
        %v1452 = vsel %vm1297, %v1155, 0
        %v1455 = vsel %vm1297, %v1156, 0
        %v1458 = vsel %vm1297, %v1157, 0
        %v1461 = vsel %vm1297, %v1158, 0
        %v1464 = vsel %vm1297, %v1159, 0
        %v1467 = vsel %vm1297, %v1160, 0
        %v1470 = vsel %vm1297, %v1161, 0
        %v1473 = vsel %vm1297, %v1162, 0
        %v1476 = vsel %vm1297, %v1163, 0
        %v1479 = vsel %vm1297, %v1164, 0
        %v1482 = vsel %vm1297, %v1165, 0
        %v1485 = vsel %vm1297, %v1166, 0
        %v1488 = vsel %vm1297, %v1167, 0
        %v1491 = vsel %vm1297, %v1184, 0
        %v1494 = vsel %vm1297, %v1185, 0
        %v1497 = vsel %vm1297, %v1186, 0
        %v1500 = vsel %vm1297, %v1187, 0
        %v1503 = vsel %vm1297, %v1188, 0
        %v1506 = vsel %vm1297, %v1189, 0
        %v1509 = vsel %vm1297, %v1190, 0
        %v1512 = vsel %vm1297, %v1191, 0
        %v1515 = vsel %vm1297, %v1192, 0
        %v1518 = vsel %vm1297, %v1193, 0
        %v1521 = vsel %vm1297, %v1194, 0
        %v1524 = vsel %vm1297, %v1195, 0
        %v1527 = vsel %vm1297, %v1196, 0
        %v1530 = vsel %vm1297, %v1197, 0
        %v1533 = vsel %vm1297, %v1198, 0
        %v1536 = vsel %vm1297, %v1199, 0
        %v1539 = vsel %vm1297, %v1216, 0
        %v1542 = vsel %vm1297, %v1217, 0
        %v1545 = vsel %vm1297, %v1218, 0
        %v1548 = vsel %vm1297, %v1219, 0
        %v1551 = vsel %vm1297, %v1220, 0
        %v1554 = vsel %vm1297, %v1221, 0
        %v1557 = vsel %vm1297, %v1222, 0
        %v1560 = vsel %vm1297, %v1223, 0
        %v1563 = vsel %vm1297, %v1224, 0
        %v1566 = vsel %vm1297, %v1225, 0
        %v1569 = vsel %vm1297, %v1226, 0
        %v1572 = vsel %vm1297, %v1227, 0
        %v1575 = vsel %vm1297, %v1228, 0
        %v1578 = vsel %vm1297, %v1229, 0
        %v1581 = vsel %vm1297, %v1230, 0
        %v1584 = vsel %vm1297, %v1231, 0
        %v1587 = vsel %vm1297, %v1248, 0
        %v1590 = vsel %vm1297, %v1249, 0
        %v1593 = vsel %vm1297, %v1250, 0
        %v1596 = vsel %vm1297, %v1251, 0
        %v1599 = vsel %vm1297, %v1252, 0
        %v1602 = vsel %vm1297, %v1253, 0
        %v1605 = vsel %vm1297, %v1254, 0
        %v1608 = vsel %vm1297, %v1255, 0
        %v1611 = vsel %vm1297, %v1256, 0
        %v1614 = vsel %vm1297, %v1257, 0
        %v1617 = vsel %vm1297, %v1258, 0
        %v1620 = vsel %vm1297, %v1259, 0
        %v1623 = vsel %vm1297, %v1260, 0
        %v1626 = vsel %vm1297, %v1261, 0
        %v1629 = vsel %vm1297, %v1262, 0
        %v1632 = vsel %vm1297, %v1263, 0
        %v1635 = vsel %vm1297, %v1280, 0
        %v1638 = vsel %vm1297, %v1281, 0
        %v1641 = vsel %vm1297, %v1282, 0
        %v1644 = vsel %vm1297, %v1283, 0
        %v1647 = vsel %vm1297, %v1284, 0
        %v1650 = vsel %vm1297, %v1285, 0
        %v1653 = vsel %vm1297, %v1286, 0
        %v1656 = vsel %vm1297, %v1287, 0
        %v1659 = vsel %vm1297, %v1288, 0
        %v1662 = vsel %vm1297, %v1289, 0
        %v1665 = vsel %vm1297, %v1290, 0
        %v1668 = vsel %vm1297, %v1291, 0
        %v1671 = vsel %vm1297, %v1292, 0
        %v1674 = vsel %vm1297, %v1293, 0
        %v1677 = vsel %vm1297, %v1294, 0
        %v1680 = vsel %vm1297, %v1295, 0
        %1682 = vmatpush.msra.mxu0 0.0
        %1683 = vmatpush.msra.mxu0 0.0
        %1684 = vmatpush.msra.mxu0 0.0
        %1685 = vmatpush.msra.mxu0 0.0
        %1686 = vmatpush.msra.mxu0 0.0
        %1687 = vmatpush.msra.mxu0 0.0
        %1688 = vmatpush.msra.mxu0 0.0
        %1689 = vmatpush.msra.mxu0 0.0
        %1690 = vmatpush.msra.mxu0 0.0
        %1691 = vmatpush.msra.mxu0 0.0
        %1692 = vmatpush.msra.mxu0 0.0
        %1693 = vmatpush.msra.mxu0 0.0
        %1694 = vmatpush.msra.mxu0 0.0
        %1695 = vmatpush.msra.mxu0 0.0
        %1696 = vmatpush.msra.mxu0 0.0
        %1697 = vmatpush.msra.mxu0 %v1296
        %1698 = vmatmul.f32.gmra.mxu0 %v1299
        %v1699 = vpop.f32.mrf.mxu0
        %v1700 = vadd.f32 0.0, %v1699
        %1701 = vmatmul.f32.gmra.mxu0 %v1302
        %v1702 = vpop.f32.mrf.mxu0
        %v1703 = vadd.f32 0.0, %v1702
        %1704 = vmatmul.f32.gmra.mxu0 %v1305
        %v1705 = vpop.f32.mrf.mxu0
        %v1706 = vadd.f32 0.0, %v1705
        %1707 = vmatmul.f32.gmra.mxu0 %v1308
        %v1708 = vpop.f32.mrf.mxu0
        %v1709 = vadd.f32 0.0, %v1708
        %1710 = vmatmul.f32.gmra.mxu0 %v1311
        %v1711 = vpop.f32.mrf.mxu0
        %v1712 = vadd.f32 0.0, %v1711
        %1713 = vmatmul.f32.gmra.mxu0 %v1314
        %v1714 = vpop.f32.mrf.mxu0
        %v1715 = vadd.f32 0.0, %v1714
        %1716 = vmatmul.f32.gmra.mxu0 %v1317
        %v1717 = vpop.f32.mrf.mxu0
        %v1718 = vadd.f32 0.0, %v1717
        %1719 = vmatmul.f32.gmra.mxu0 %v1320
        %v1720 = vpop.f32.mrf.mxu0
        %v1721 = vadd.f32 0.0, %v1720
        %1722 = vmatmul.f32.gmra.mxu0 %v1323
        %v1723 = vpop.f32.mrf.mxu0
        %v1724 = vadd.f32 0.0, %v1723
        %1725 = vmatmul.f32.gmra.mxu0 %v1326
        %v1726 = vpop.f32.mrf.mxu0
        %v1727 = vadd.f32 0.0, %v1726
        %1728 = vmatmul.f32.gmra.mxu0 %v1329
        %v1729 = vpop.f32.mrf.mxu0
        %v1730 = vadd.f32 0.0, %v1729
        %1731 = vmatmul.f32.gmra.mxu0 %v1332
        %v1732 = vpop.f32.mrf.mxu0
        %v1733 = vadd.f32 0.0, %v1732
        %1734 = vmatmul.f32.gmra.mxu0 %v1335
        %v1735 = vpop.f32.mrf.mxu0
        %v1736 = vadd.f32 0.0, %v1735
        %1737 = vmatmul.f32.gmra.mxu0 %v1338
        %v1738 = vpop.f32.mrf.mxu0
        %v1739 = vadd.f32 0.0, %v1738
        %1740 = vmatmul.f32.gmra.mxu0 %v1341
        %v1741 = vpop.f32.mrf.mxu0
        %v1742 = vadd.f32 0.0, %v1741
        %1743 = vmatmul.f32.gmra.mxu0 %v1344
        %v1744 = vpop.f32.mrf.mxu0
        %v1745 = vadd.f32 0.0, %v1744
        %1746 = vmatmul.f32.gmra.mxu0 %v1347
        %v1747 = vpop.f32.mrf.mxu0
        %v1748 = vadd.f32 0.0, %v1747
        %1749 = vmatmul.f32.gmra.mxu0 %v1350
        %v1750 = vpop.f32.mrf.mxu0
        %v1751 = vadd.f32 0.0, %v1750
        %1752 = vmatmul.f32.gmra.mxu0 %v1353
        %v1753 = vpop.f32.mrf.mxu0
        %v1754 = vadd.f32 0.0, %v1753
        %1755 = vmatmul.f32.gmra.mxu0 %v1356
        %v1756 = vpop.f32.mrf.mxu0
        %v1757 = vadd.f32 0.0, %v1756
        %1758 = vmatmul.f32.gmra.mxu0 %v1359
        %v1759 = vpop.f32.mrf.mxu0
        %v1760 = vadd.f32 0.0, %v1759
        %1761 = vmatmul.f32.gmra.mxu0 %v1362
        %v1762 = vpop.f32.mrf.mxu0
        %v1763 = vadd.f32 0.0, %v1762
        %1764 = vmatmul.f32.gmra.mxu0 %v1365
        %v1765 = vpop.f32.mrf.mxu0
        %v1766 = vadd.f32 0.0, %v1765
        %1767 = vmatmul.f32.gmra.mxu0 %v1368
        %v1768 = vpop.f32.mrf.mxu0
        %v1769 = vadd.f32 0.0, %v1768
        %1770 = vmatmul.f32.gmra.mxu0 %v1371
        %v1771 = vpop.f32.mrf.mxu0
        %v1772 = vadd.f32 0.0, %v1771
        %1773 = vmatmul.f32.gmra.mxu0 %v1374
        %v1774 = vpop.f32.mrf.mxu0
        %v1775 = vadd.f32 0.0, %v1774
        %1776 = vmatmul.f32.gmra.mxu0 %v1377
        %v1777 = vpop.f32.mrf.mxu0
        %v1778 = vadd.f32 0.0, %v1777
        %1779 = vmatmul.f32.gmra.mxu0 %v1380
        %v1780 = vpop.f32.mrf.mxu0
        %v1781 = vadd.f32 0.0, %v1780
        %1782 = vmatmul.f32.gmra.mxu0 %v1383
        %v1783 = vpop.f32.mrf.mxu0
        %v1784 = vadd.f32 0.0, %v1783
        %1785 = vmatmul.f32.gmra.mxu0 %v1386
        %v1786 = vpop.f32.mrf.mxu0
        %v1787 = vadd.f32 0.0, %v1786
        %1788 = vmatmul.f32.gmra.mxu0 %v1389
        %v1789 = vpop.f32.mrf.mxu0
        %v1790 = vadd.f32 0.0, %v1789
        %1791 = vmatmul.f32.gmra.mxu0 %v1392
        %v1792 = vpop.f32.mrf.mxu0
        %v1793 = vadd.f32 0.0, %v1792
        %1794 = vmatmul.f32.gmra.mxu0 %v1395
        %v1795 = vpop.f32.mrf.mxu0
        %v1796 = vadd.f32 0.0, %v1795
        %1797 = vmatmul.f32.gmra.mxu0 %v1398
        %v1798 = vpop.f32.mrf.mxu0
        %v1799 = vadd.f32 0.0, %v1798
        %1800 = vmatmul.f32.gmra.mxu0 %v1401
        %v1801 = vpop.f32.mrf.mxu0
        %v1802 = vadd.f32 0.0, %v1801
        %1803 = vmatmul.f32.gmra.mxu0 %v1404
        %v1804 = vpop.f32.mrf.mxu0
        %v1805 = vadd.f32 0.0, %v1804
        %1806 = vmatmul.f32.gmra.mxu0 %v1407
        %v1807 = vpop.f32.mrf.mxu0
        %v1808 = vadd.f32 0.0, %v1807
        %1809 = vmatmul.f32.gmra.mxu0 %v1410
        %v1810 = vpop.f32.mrf.mxu0
        %v1811 = vadd.f32 0.0, %v1810
        %1812 = vmatmul.f32.gmra.mxu0 %v1413
        %v1813 = vpop.f32.mrf.mxu0
        %v1814 = vadd.f32 0.0, %v1813
        %1815 = vmatmul.f32.gmra.mxu0 %v1416
        %v1816 = vpop.f32.mrf.mxu0
        %v1817 = vadd.f32 0.0, %v1816
        %1818 = vmatmul.f32.gmra.mxu0 %v1419
        %v1819 = vpop.f32.mrf.mxu0
        %v1820 = vadd.f32 0.0, %v1819
        %1821 = vmatmul.f32.gmra.mxu0 %v1422
        %v1822 = vpop.f32.mrf.mxu0
        %v1823 = vadd.f32 0.0, %v1822
        %1824 = vmatmul.f32.gmra.mxu0 %v1425
        %v1825 = vpop.f32.mrf.mxu0
        %v1826 = vadd.f32 0.0, %v1825
        %1827 = vmatmul.f32.gmra.mxu0 %v1428
        %v1828 = vpop.f32.mrf.mxu0
        %v1829 = vadd.f32 0.0, %v1828
        %1830 = vmatmul.f32.gmra.mxu0 %v1431
        %v1831 = vpop.f32.mrf.mxu0
        %v1832 = vadd.f32 0.0, %v1831
        %1833 = vmatmul.f32.gmra.mxu0 %v1434
        %v1834 = vpop.f32.mrf.mxu0
        %v1835 = vadd.f32 0.0, %v1834
        %1836 = vmatmul.f32.gmra.mxu0 %v1437
        %v1837 = vpop.f32.mrf.mxu0
        %v1838 = vadd.f32 0.0, %v1837
        %1839 = vmatmul.f32.gmra.mxu0 %v1440
        %v1840 = vpop.f32.mrf.mxu0
        %v1841 = vadd.f32 0.0, %v1840
        %1842 = vmatmul.f32.gmra.mxu0 %v1443
        %v1843 = vpop.f32.mrf.mxu0
        %v1844 = vadd.f32 0.0, %v1843
        %1845 = vmatmul.f32.gmra.mxu0 %v1446
        %v1846 = vpop.f32.mrf.mxu0
        %v1847 = vadd.f32 0.0, %v1846
        %1848 = vmatmul.f32.gmra.mxu0 %v1449
        %v1849 = vpop.f32.mrf.mxu0
        %v1850 = vadd.f32 0.0, %v1849
        %1851 = vmatmul.f32.gmra.mxu0 %v1452
        %v1852 = vpop.f32.mrf.mxu0
        %v1853 = vadd.f32 0.0, %v1852
        %1854 = vmatmul.f32.gmra.mxu0 %v1455
        %v1855 = vpop.f32.mrf.mxu0
        %v1856 = vadd.f32 0.0, %v1855
        %1857 = vmatmul.f32.gmra.mxu0 %v1458
        %v1858 = vpop.f32.mrf.mxu0
        %v1859 = vadd.f32 0.0, %v1858
        %1860 = vmatmul.f32.gmra.mxu0 %v1461
        %v1861 = vpop.f32.mrf.mxu0
        %v1862 = vadd.f32 0.0, %v1861
        %1863 = vmatmul.f32.gmra.mxu0 %v1464
        %v1864 = vpop.f32.mrf.mxu0
        %v1865 = vadd.f32 0.0, %v1864
        %1866 = vmatmul.f32.gmra.mxu0 %v1467
        %v1867 = vpop.f32.mrf.mxu0
        %v1868 = vadd.f32 0.0, %v1867
        %1869 = vmatmul.f32.gmra.mxu0 %v1470
        %v1870 = vpop.f32.mrf.mxu0
        %v1871 = vadd.f32 0.0, %v1870
        %1872 = vmatmul.f32.gmra.mxu0 %v1473
        %v1873 = vpop.f32.mrf.mxu0
        %v1874 = vadd.f32 0.0, %v1873
        %1875 = vmatmul.f32.gmra.mxu0 %v1476
        %v1876 = vpop.f32.mrf.mxu0
        %v1877 = vadd.f32 0.0, %v1876
        %1878 = vmatmul.f32.gmra.mxu0 %v1479
        %v1879 = vpop.f32.mrf.mxu0
        %v1880 = vadd.f32 0.0, %v1879
        %1881 = vmatmul.f32.gmra.mxu0 %v1482
        %v1882 = vpop.f32.mrf.mxu0
        %v1883 = vadd.f32 0.0, %v1882
        %1884 = vmatmul.f32.gmra.mxu0 %v1485
        %v1885 = vpop.f32.mrf.mxu0
        %v1886 = vadd.f32 0.0, %v1885
        %1887 = vmatmul.f32.gmra.mxu0 %v1488
        %v1888 = vpop.f32.mrf.mxu0
        %v1889 = vadd.f32 0.0, %v1888
        %1890 = vmatmul.f32.gmra.mxu0 %v1491
        %v1891 = vpop.f32.mrf.mxu0
        %v1892 = vadd.f32 0.0, %v1891
        %1893 = vmatmul.f32.gmra.mxu0 %v1494
        %v1894 = vpop.f32.mrf.mxu0
        %v1895 = vadd.f32 0.0, %v1894
        %1896 = vmatmul.f32.gmra.mxu0 %v1497
        %v1897 = vpop.f32.mrf.mxu0
        %v1898 = vadd.f32 0.0, %v1897
        %1899 = vmatmul.f32.gmra.mxu0 %v1500
        %v1900 = vpop.f32.mrf.mxu0
        %v1901 = vadd.f32 0.0, %v1900
        %1902 = vmatmul.f32.gmra.mxu0 %v1503
        %v1903 = vpop.f32.mrf.mxu0
        %v1904 = vadd.f32 0.0, %v1903
        %1905 = vmatmul.f32.gmra.mxu0 %v1506
        %v1906 = vpop.f32.mrf.mxu0
        %v1907 = vadd.f32 0.0, %v1906
        %1908 = vmatmul.f32.gmra.mxu0 %v1509
        %v1909 = vpop.f32.mrf.mxu0
        %v1910 = vadd.f32 0.0, %v1909
        %1911 = vmatmul.f32.gmra.mxu0 %v1512
        %v1912 = vpop.f32.mrf.mxu0
        %v1913 = vadd.f32 0.0, %v1912
        %1914 = vmatmul.f32.gmra.mxu0 %v1515
        %v1915 = vpop.f32.mrf.mxu0
        %v1916 = vadd.f32 0.0, %v1915
        %1917 = vmatmul.f32.gmra.mxu0 %v1518
        %v1918 = vpop.f32.mrf.mxu0
        %v1919 = vadd.f32 0.0, %v1918
        %1920 = vmatmul.f32.gmra.mxu0 %v1521
        %v1921 = vpop.f32.mrf.mxu0
        %v1922 = vadd.f32 0.0, %v1921
        %1923 = vmatmul.f32.gmra.mxu0 %v1524
        %v1924 = vpop.f32.mrf.mxu0
        %v1925 = vadd.f32 0.0, %v1924
        %1926 = vmatmul.f32.gmra.mxu0 %v1527
        %v1927 = vpop.f32.mrf.mxu0
        %v1928 = vadd.f32 0.0, %v1927
        %1929 = vmatmul.f32.gmra.mxu0 %v1530
        %v1930 = vpop.f32.mrf.mxu0
        %v1931 = vadd.f32 0.0, %v1930
        %1932 = vmatmul.f32.gmra.mxu0 %v1533
        %v1933 = vpop.f32.mrf.mxu0
        %v1934 = vadd.f32 0.0, %v1933
        %1935 = vmatmul.f32.gmra.mxu0 %v1536
        %v1936 = vpop.f32.mrf.mxu0
        %v1937 = vadd.f32 0.0, %v1936
        %1938 = vmatmul.f32.gmra.mxu0 %v1539
        %v1939 = vpop.f32.mrf.mxu0
        %v1940 = vadd.f32 0.0, %v1939
        %1941 = vmatmul.f32.gmra.mxu0 %v1542
        %v1942 = vpop.f32.mrf.mxu0
        %v1943 = vadd.f32 0.0, %v1942
        %1944 = vmatmul.f32.gmra.mxu0 %v1545
        %v1945 = vpop.f32.mrf.mxu0
        %v1946 = vadd.f32 0.0, %v1945
        %1947 = vmatmul.f32.gmra.mxu0 %v1548
        %v1948 = vpop.f32.mrf.mxu0
        %v1949 = vadd.f32 0.0, %v1948
        %1950 = vmatmul.f32.gmra.mxu0 %v1551
        %v1951 = vpop.f32.mrf.mxu0
        %v1952 = vadd.f32 0.0, %v1951
        %1953 = vmatmul.f32.gmra.mxu0 %v1554
        %v1954 = vpop.f32.mrf.mxu0
        %v1955 = vadd.f32 0.0, %v1954
        %1956 = vmatmul.f32.gmra.mxu0 %v1557
        %v1957 = vpop.f32.mrf.mxu0
        %v1958 = vadd.f32 0.0, %v1957
        %1959 = vmatmul.f32.gmra.mxu0 %v1560
        %v1960 = vpop.f32.mrf.mxu0
        %v1961 = vadd.f32 0.0, %v1960
        %1962 = vmatmul.f32.gmra.mxu0 %v1563
        %v1963 = vpop.f32.mrf.mxu0
        %v1964 = vadd.f32 0.0, %v1963
        %1965 = vmatmul.f32.gmra.mxu0 %v1566
        %v1966 = vpop.f32.mrf.mxu0
        %v1967 = vadd.f32 0.0, %v1966
        %1968 = vmatmul.f32.gmra.mxu0 %v1569
        %v1969 = vpop.f32.mrf.mxu0
        %v1970 = vadd.f32 0.0, %v1969
        %1971 = vmatmul.f32.gmra.mxu0 %v1572
        %v1972 = vpop.f32.mrf.mxu0
        %v1973 = vadd.f32 0.0, %v1972
        %1974 = vmatmul.f32.gmra.mxu0 %v1575
        %v1975 = vpop.f32.mrf.mxu0
        %v1976 = vadd.f32 0.0, %v1975
        %1977 = vmatmul.f32.gmra.mxu0 %v1578
        %v1978 = vpop.f32.mrf.mxu0
        %v1979 = vadd.f32 0.0, %v1978
        %1980 = vmatmul.f32.gmra.mxu0 %v1581
        %v1981 = vpop.f32.mrf.mxu0
        %v1982 = vadd.f32 0.0, %v1981
        %1983 = vmatmul.f32.gmra.mxu0 %v1584
        %v1984 = vpop.f32.mrf.mxu0
        %v1985 = vadd.f32 0.0, %v1984
        %1986 = vmatmul.f32.gmra.mxu0 %v1587
        %v1987 = vpop.f32.mrf.mxu0
        %v1988 = vadd.f32 0.0, %v1987
        %1989 = vmatmul.f32.gmra.mxu0 %v1590
        %v1990 = vpop.f32.mrf.mxu0
        %v1991 = vadd.f32 0.0, %v1990
        %1992 = vmatmul.f32.gmra.mxu0 %v1593
        %v1993 = vpop.f32.mrf.mxu0
        %v1994 = vadd.f32 0.0, %v1993
        %1995 = vmatmul.f32.gmra.mxu0 %v1596
        %v1996 = vpop.f32.mrf.mxu0
        %v1997 = vadd.f32 0.0, %v1996
        %1998 = vmatmul.f32.gmra.mxu0 %v1599
        %v1999 = vpop.f32.mrf.mxu0
        %v2000 = vadd.f32 0.0, %v1999
        %2001 = vmatmul.f32.gmra.mxu0 %v1602
        %v2002 = vpop.f32.mrf.mxu0
        %v2003 = vadd.f32 0.0, %v2002
        %2004 = vmatmul.f32.gmra.mxu0 %v1605
        %v2005 = vpop.f32.mrf.mxu0
        %v2006 = vadd.f32 0.0, %v2005
        %2007 = vmatmul.f32.gmra.mxu0 %v1608
        %v2008 = vpop.f32.mrf.mxu0
        %v2009 = vadd.f32 0.0, %v2008
        %2010 = vmatmul.f32.gmra.mxu0 %v1611
        %v2011 = vpop.f32.mrf.mxu0
        %v2012 = vadd.f32 0.0, %v2011
        %2013 = vmatmul.f32.gmra.mxu0 %v1614
        %v2014 = vpop.f32.mrf.mxu0
        %v2015 = vadd.f32 0.0, %v2014
        %2016 = vmatmul.f32.gmra.mxu0 %v1617
        %v2017 = vpop.f32.mrf.mxu0
        %v2018 = vadd.f32 0.0, %v2017
        %2019 = vmatmul.f32.gmra.mxu0 %v1620
        %v2020 = vpop.f32.mrf.mxu0
        %v2021 = vadd.f32 0.0, %v2020
        %2022 = vmatmul.f32.gmra.mxu0 %v1623
        %v2023 = vpop.f32.mrf.mxu0
        %v2024 = vadd.f32 0.0, %v2023
        %2025 = vmatmul.f32.gmra.mxu0 %v1626
        %v2026 = vpop.f32.mrf.mxu0
        %v2027 = vadd.f32 0.0, %v2026
        %2028 = vmatmul.f32.gmra.mxu0 %v1629
        %v2029 = vpop.f32.mrf.mxu0
        %v2030 = vadd.f32 0.0, %v2029
        %2031 = vmatmul.f32.gmra.mxu0 %v1632
        %v2032 = vpop.f32.mrf.mxu0
        %v2033 = vadd.f32 0.0, %v2032
        %2034 = vmatmul.f32.gmra.mxu0 %v1635
        %v2035 = vpop.f32.mrf.mxu0
        %v2036 = vadd.f32 0.0, %v2035
        %2037 = vmatmul.f32.gmra.mxu0 %v1638
        %v2038 = vpop.f32.mrf.mxu0
        %v2039 = vadd.f32 0.0, %v2038
        %2040 = vmatmul.f32.gmra.mxu0 %v1641
        %v2041 = vpop.f32.mrf.mxu0
        %v2042 = vadd.f32 0.0, %v2041
        %2043 = vmatmul.f32.gmra.mxu0 %v1644
        %v2044 = vpop.f32.mrf.mxu0
        %v2045 = vadd.f32 0.0, %v2044
        %2046 = vmatmul.f32.gmra.mxu0 %v1647
        %v2047 = vpop.f32.mrf.mxu0
        %v2048 = vadd.f32 0.0, %v2047
        %2049 = vmatmul.f32.gmra.mxu0 %v1650
        %v2050 = vpop.f32.mrf.mxu0
        %v2051 = vadd.f32 0.0, %v2050
        %2052 = vmatmul.f32.gmra.mxu0 %v1653
        %v2053 = vpop.f32.mrf.mxu0
        %v2054 = vadd.f32 0.0, %v2053
        %2055 = vmatmul.f32.gmra.mxu0 %v1656
        %v2056 = vpop.f32.mrf.mxu0
        %v2057 = vadd.f32 0.0, %v2056
        %2058 = vmatmul.f32.gmra.mxu0 %v1659
        %v2059 = vpop.f32.mrf.mxu0
        %v2060 = vadd.f32 0.0, %v2059
        %2061 = vmatmul.f32.gmra.mxu0 %v1662
        %v2062 = vpop.f32.mrf.mxu0
        %v2063 = vadd.f32 0.0, %v2062
        %2064 = vmatmul.f32.gmra.mxu0 %v1665
        %v2065 = vpop.f32.mrf.mxu0
        %v2066 = vadd.f32 0.0, %v2065
        %2067 = vmatmul.f32.gmra.mxu0 %v1668
        %v2068 = vpop.f32.mrf.mxu0
        %v2069 = vadd.f32 0.0, %v2068
        %2070 = vmatmul.f32.gmra.mxu0 %v1671
        %v2071 = vpop.f32.mrf.mxu0
        %v2072 = vadd.f32 0.0, %v2071
        %2073 = vmatmul.f32.gmra.mxu0 %v1674
        %v2074 = vpop.f32.mrf.mxu0
        %v2075 = vadd.f32 0.0, %v2074
        %2076 = vmatmul.f32.gmra.mxu0 %v1677
        %v2077 = vpop.f32.mrf.mxu0
        %v2078 = vadd.f32 0.0, %v2077
        %2079 = vmatmul.f32.gmra.mxu0 %v1680
        %v2080 = vpop.f32.mrf.mxu0
        %v2081 = vadd.f32 0.0, %v2080
        %2082 = vdwg.mxu0
        %v2083 = vld [vmem:[%s2] sm:$0x1]
        %v2085 = vperm.slane %v2083, 0
        %v2087 = vmul.f32 %v1700, %v2085
        %v2088 = vmul.f32 %v1703, %v2085
        %v2089 = vmul.f32 %v1706, %v2085
        %v2090 = vmul.f32 %v1709, %v2085
        %v2091 = vmul.f32 %v1712, %v2085
        %v2092 = vmul.f32 %v1715, %v2085
        %v2093 = vmul.f32 %v1718, %v2085
        %v2094 = vmul.f32 %v1721, %v2085
        %v2095 = vmul.f32 %v1724, %v2085
        %v2096 = vmul.f32 %v1727, %v2085
        %v2097 = vmul.f32 %v1730, %v2085
        %v2098 = vmul.f32 %v1733, %v2085
        %v2099 = vmul.f32 %v1736, %v2085
        %v2100 = vmul.f32 %v1739, %v2085
        %v2101 = vmul.f32 %v1742, %v2085
        %v2102 = vmul.f32 %v1745, %v2085
        %v2103 = vmul.f32 %v1748, %v2085
        %v2104 = vmul.f32 %v1751, %v2085
        %v2105 = vmul.f32 %v1754, %v2085
        %v2106 = vmul.f32 %v1757, %v2085
        %v2107 = vmul.f32 %v1760, %v2085
        %v2108 = vmul.f32 %v1763, %v2085
        %v2109 = vmul.f32 %v1766, %v2085
        %v2110 = vmul.f32 %v1769, %v2085
        %v2111 = vmul.f32 %v1772, %v2085
        %v2112 = vmul.f32 %v1775, %v2085
        %v2113 = vmul.f32 %v1778, %v2085
        %v2114 = vmul.f32 %v1781, %v2085
        %v2115 = vmul.f32 %v1784, %v2085
        %v2116 = vmul.f32 %v1787, %v2085
        %v2117 = vmul.f32 %v1790, %v2085
        %v2118 = vmul.f32 %v1793, %v2085
        %v2119 = vmul.f32 %v1796, %v2085
        %v2120 = vmul.f32 %v1799, %v2085
        %v2121 = vmul.f32 %v1802, %v2085
        %v2122 = vmul.f32 %v1805, %v2085
        %v2123 = vmul.f32 %v1808, %v2085
        %v2124 = vmul.f32 %v1811, %v2085
        %v2125 = vmul.f32 %v1814, %v2085
        %v2126 = vmul.f32 %v1817, %v2085
        %v2127 = vmul.f32 %v1820, %v2085
        %v2128 = vmul.f32 %v1823, %v2085
        %v2129 = vmul.f32 %v1826, %v2085
        %v2130 = vmul.f32 %v1829, %v2085
        %v2131 = vmul.f32 %v1832, %v2085
        %v2132 = vmul.f32 %v1835, %v2085
        %v2133 = vmul.f32 %v1838, %v2085
        %v2134 = vmul.f32 %v1841, %v2085
        %v2135 = vmul.f32 %v1844, %v2085
        %v2136 = vmul.f32 %v1847, %v2085
        %v2137 = vmul.f32 %v1850, %v2085
        %v2138 = vmul.f32 %v1853, %v2085
        %v2139 = vmul.f32 %v1856, %v2085
        %v2140 = vmul.f32 %v1859, %v2085
        %v2141 = vmul.f32 %v1862, %v2085
        %v2142 = vmul.f32 %v1865, %v2085
        %v2143 = vmul.f32 %v1868, %v2085
        %v2144 = vmul.f32 %v1871, %v2085
        %v2145 = vmul.f32 %v1874, %v2085
        %v2146 = vmul.f32 %v1877, %v2085
        %v2147 = vmul.f32 %v1880, %v2085
        %v2148 = vmul.f32 %v1883, %v2085
        %v2149 = vmul.f32 %v1886, %v2085
        %v2150 = vmul.f32 %v1889, %v2085
        %v2151 = vmul.f32 %v1892, %v2085
        %v2152 = vmul.f32 %v1895, %v2085
        %v2153 = vmul.f32 %v1898, %v2085
        %v2154 = vmul.f32 %v1901, %v2085
        %v2155 = vmul.f32 %v1904, %v2085
        %v2156 = vmul.f32 %v1907, %v2085
        %v2157 = vmul.f32 %v1910, %v2085
        %v2158 = vmul.f32 %v1913, %v2085
        %v2159 = vmul.f32 %v1916, %v2085
        %v2160 = vmul.f32 %v1919, %v2085
        %v2161 = vmul.f32 %v1922, %v2085
        %v2162 = vmul.f32 %v1925, %v2085
        %v2163 = vmul.f32 %v1928, %v2085
        %v2164 = vmul.f32 %v1931, %v2085
        %v2165 = vmul.f32 %v1934, %v2085
        %v2166 = vmul.f32 %v1937, %v2085
        %v2167 = vmul.f32 %v1940, %v2085
        %v2168 = vmul.f32 %v1943, %v2085
        %v2169 = vmul.f32 %v1946, %v2085
        %v2170 = vmul.f32 %v1949, %v2085
        %v2171 = vmul.f32 %v1952, %v2085
        %v2172 = vmul.f32 %v1955, %v2085
        %v2173 = vmul.f32 %v1958, %v2085
        %v2174 = vmul.f32 %v1961, %v2085
        %v2175 = vmul.f32 %v1964, %v2085
        %v2176 = vmul.f32 %v1967, %v2085
        %v2177 = vmul.f32 %v1970, %v2085
        %v2178 = vmul.f32 %v1973, %v2085
        %v2179 = vmul.f32 %v1976, %v2085
        %v2180 = vmul.f32 %v1979, %v2085
        %v2181 = vmul.f32 %v1982, %v2085
        %v2182 = vmul.f32 %v1985, %v2085
        %v2183 = vmul.f32 %v1988, %v2085
        %v2184 = vmul.f32 %v1991, %v2085
        %v2185 = vmul.f32 %v1994, %v2085
        %v2186 = vmul.f32 %v1997, %v2085
        %v2187 = vmul.f32 %v2000, %v2085
        %v2188 = vmul.f32 %v2003, %v2085
        %v2189 = vmul.f32 %v2006, %v2085
        %v2190 = vmul.f32 %v2009, %v2085
        %v2191 = vmul.f32 %v2012, %v2085
        %v2192 = vmul.f32 %v2015, %v2085
        %v2193 = vmul.f32 %v2018, %v2085
        %v2194 = vmul.f32 %v2021, %v2085
        %v2195 = vmul.f32 %v2024, %v2085
        %v2196 = vmul.f32 %v2027, %v2085
        %v2197 = vmul.f32 %v2030, %v2085
        %v2198 = vmul.f32 %v2033, %v2085
        %v2199 = vmul.f32 %v2036, %v2085
        %v2200 = vmul.f32 %v2039, %v2085
        %v2201 = vmul.f32 %v2042, %v2085
        %v2202 = vmul.f32 %v2045, %v2085
        %v2203 = vmul.f32 %v2048, %v2085
        %v2204 = vmul.f32 %v2051, %v2085
        %v2205 = vmul.f32 %v2054, %v2085
        %v2206 = vmul.f32 %v2057, %v2085
        %v2207 = vmul.f32 %v2060, %v2085
        %v2208 = vmul.f32 %v2063, %v2085
        %v2209 = vmul.f32 %v2066, %v2085
        %v2210 = vmul.f32 %v2069, %v2085
        %v2211 = vmul.f32 %v2072, %v2085
        %v2212 = vmul.f32 %v2075, %v2085
        %v2213 = vmul.f32 %v2078, %v2085
        %v2214 = vmul.f32 %v2081, %v2085
        %v2215 = vld [vmem:[%s3] sm:$0x1]
        %v2217 = vperm.slane %v2215, 0
        %v2219 = vadd.f32 %v2087, %v2217
        %v2220 = vadd.f32 %v2088, %v2217
        %v2221 = vadd.f32 %v2089, %v2217
        %v2222 = vadd.f32 %v2090, %v2217
        %v2223 = vadd.f32 %v2091, %v2217
        %v2224 = vadd.f32 %v2092, %v2217
        %v2225 = vadd.f32 %v2093, %v2217
        %v2226 = vadd.f32 %v2094, %v2217
        %v2227 = vadd.f32 %v2095, %v2217
        %v2228 = vadd.f32 %v2096, %v2217
        %v2229 = vadd.f32 %v2097, %v2217
        %v2230 = vadd.f32 %v2098, %v2217
        %v2231 = vadd.f32 %v2099, %v2217
        %v2232 = vadd.f32 %v2100, %v2217
        %v2233 = vadd.f32 %v2101, %v2217
        %v2234 = vadd.f32 %v2102, %v2217
        %v2235 = vadd.f32 %v2103, %v2217
        %v2236 = vadd.f32 %v2104, %v2217
        %v2237 = vadd.f32 %v2105, %v2217
        %v2238 = vadd.f32 %v2106, %v2217
        %v2239 = vadd.f32 %v2107, %v2217
        %v2240 = vadd.f32 %v2108, %v2217
        %v2241 = vadd.f32 %v2109, %v2217
        %v2242 = vadd.f32 %v2110, %v2217
        %v2243 = vadd.f32 %v2111, %v2217
        %v2244 = vadd.f32 %v2112, %v2217
        %v2245 = vadd.f32 %v2113, %v2217
        %v2246 = vadd.f32 %v2114, %v2217
        %v2247 = vadd.f32 %v2115, %v2217
        %v2248 = vadd.f32 %v2116, %v2217
        %v2249 = vadd.f32 %v2117, %v2217
        %v2250 = vadd.f32 %v2118, %v2217
        %v2251 = vadd.f32 %v2119, %v2217
        %v2252 = vadd.f32 %v2120, %v2217
        %v2253 = vadd.f32 %v2121, %v2217
        %v2254 = vadd.f32 %v2122, %v2217
        %v2255 = vadd.f32 %v2123, %v2217
        %v2256 = vadd.f32 %v2124, %v2217
        %v2257 = vadd.f32 %v2125, %v2217
        %v2258 = vadd.f32 %v2126, %v2217
        %v2259 = vadd.f32 %v2127, %v2217
        %v2260 = vadd.f32 %v2128, %v2217
        %v2261 = vadd.f32 %v2129, %v2217
        %v2262 = vadd.f32 %v2130, %v2217
        %v2263 = vadd.f32 %v2131, %v2217
        %v2264 = vadd.f32 %v2132, %v2217
        %v2265 = vadd.f32 %v2133, %v2217
        %v2266 = vadd.f32 %v2134, %v2217
        %v2267 = vadd.f32 %v2135, %v2217
        %v2268 = vadd.f32 %v2136, %v2217
        %v2269 = vadd.f32 %v2137, %v2217
        %v2270 = vadd.f32 %v2138, %v2217
        %v2271 = vadd.f32 %v2139, %v2217
        %v2272 = vadd.f32 %v2140, %v2217
        %v2273 = vadd.f32 %v2141, %v2217
        %v2274 = vadd.f32 %v2142, %v2217
        %v2275 = vadd.f32 %v2143, %v2217
        %v2276 = vadd.f32 %v2144, %v2217
        %v2277 = vadd.f32 %v2145, %v2217
        %v2278 = vadd.f32 %v2146, %v2217
        %v2279 = vadd.f32 %v2147, %v2217
        %v2280 = vadd.f32 %v2148, %v2217
        %v2281 = vadd.f32 %v2149, %v2217
        %v2282 = vadd.f32 %v2150, %v2217
        %v2283 = vadd.f32 %v2151, %v2217
        %v2284 = vadd.f32 %v2152, %v2217
        %v2285 = vadd.f32 %v2153, %v2217
        %v2286 = vadd.f32 %v2154, %v2217
        %v2287 = vadd.f32 %v2155, %v2217
        %v2288 = vadd.f32 %v2156, %v2217
        %v2289 = vadd.f32 %v2157, %v2217
        %v2290 = vadd.f32 %v2158, %v2217
        %v2291 = vadd.f32 %v2159, %v2217
        %v2292 = vadd.f32 %v2160, %v2217
        %v2293 = vadd.f32 %v2161, %v2217
        %v2294 = vadd.f32 %v2162, %v2217
        %v2295 = vadd.f32 %v2163, %v2217
        %v2296 = vadd.f32 %v2164, %v2217
        %v2297 = vadd.f32 %v2165, %v2217
        %v2298 = vadd.f32 %v2166, %v2217
        %v2299 = vadd.f32 %v2167, %v2217
        %v2300 = vadd.f32 %v2168, %v2217
        %v2301 = vadd.f32 %v2169, %v2217
        %v2302 = vadd.f32 %v2170, %v2217
        %v2303 = vadd.f32 %v2171, %v2217
        %v2304 = vadd.f32 %v2172, %v2217
        %v2305 = vadd.f32 %v2173, %v2217
        %v2306 = vadd.f32 %v2174, %v2217
        %v2307 = vadd.f32 %v2175, %v2217
        %v2308 = vadd.f32 %v2176, %v2217
        %v2309 = vadd.f32 %v2177, %v2217
        %v2310 = vadd.f32 %v2178, %v2217
        %v2311 = vadd.f32 %v2179, %v2217
        %v2312 = vadd.f32 %v2180, %v2217
        %v2313 = vadd.f32 %v2181, %v2217
        %v2314 = vadd.f32 %v2182, %v2217
        %v2315 = vadd.f32 %v2183, %v2217
        %v2316 = vadd.f32 %v2184, %v2217
        %v2317 = vadd.f32 %v2185, %v2217
        %v2318 = vadd.f32 %v2186, %v2217
        %v2319 = vadd.f32 %v2187, %v2217
        %v2320 = vadd.f32 %v2188, %v2217
        %v2321 = vadd.f32 %v2189, %v2217
        %v2322 = vadd.f32 %v2190, %v2217
        %v2323 = vadd.f32 %v2191, %v2217
        %v2324 = vadd.f32 %v2192, %v2217
        %v2325 = vadd.f32 %v2193, %v2217
        %v2326 = vadd.f32 %v2194, %v2217
        %v2327 = vadd.f32 %v2195, %v2217
        %v2328 = vadd.f32 %v2196, %v2217
        %v2329 = vadd.f32 %v2197, %v2217
        %v2330 = vadd.f32 %v2198, %v2217
        %v2331 = vadd.f32 %v2199, %v2217
        %v2332 = vadd.f32 %v2200, %v2217
        %v2333 = vadd.f32 %v2201, %v2217
        %v2334 = vadd.f32 %v2202, %v2217
        %v2335 = vadd.f32 %v2203, %v2217
        %v2336 = vadd.f32 %v2204, %v2217
        %v2337 = vadd.f32 %v2205, %v2217
        %v2338 = vadd.f32 %v2206, %v2217
        %v2339 = vadd.f32 %v2207, %v2217
        %v2340 = vadd.f32 %v2208, %v2217
        %v2341 = vadd.f32 %v2209, %v2217
        %v2342 = vadd.f32 %v2210, %v2217
        %v2343 = vadd.f32 %v2211, %v2217
        %v2344 = vadd.f32 %v2212, %v2217
        %v2345 = vadd.f32 %v2213, %v2217
        %v2346 = vadd.f32 %v2214, %v2217
        %v2347 = vmax.f32 %v2219, 0.0
        %v2348 = vmax.f32 %v2220, 0.0
        %v2349 = vmax.f32 %v2221, 0.0
        %v2350 = vmax.f32 %v2222, 0.0
        %v2351 = vmax.f32 %v2223, 0.0
        %v2352 = vmax.f32 %v2224, 0.0
        %v2353 = vmax.f32 %v2225, 0.0
        %v2354 = vmax.f32 %v2226, 0.0
        %v2355 = vmax.f32 %v2227, 0.0
        %v2356 = vmax.f32 %v2228, 0.0
        %v2357 = vmax.f32 %v2229, 0.0
        %v2358 = vmax.f32 %v2230, 0.0
        %v2359 = vmax.f32 %v2231, 0.0
        %v2360 = vmax.f32 %v2232, 0.0
        %v2361 = vmax.f32 %v2233, 0.0
        %v2362 = vmax.f32 %v2234, 0.0
        %v2363 = vmax.f32 %v2235, 0.0
        %v2364 = vmax.f32 %v2236, 0.0
        %v2365 = vmax.f32 %v2237, 0.0
        %v2366 = vmax.f32 %v2238, 0.0
        %v2367 = vmax.f32 %v2239, 0.0
        %v2368 = vmax.f32 %v2240, 0.0
        %v2369 = vmax.f32 %v2241, 0.0
        %v2370 = vmax.f32 %v2242, 0.0
        %v2371 = vmax.f32 %v2243, 0.0
        %v2372 = vmax.f32 %v2244, 0.0
        %v2373 = vmax.f32 %v2245, 0.0
        %v2374 = vmax.f32 %v2246, 0.0
        %v2375 = vmax.f32 %v2247, 0.0
        %v2376 = vmax.f32 %v2248, 0.0
        %v2377 = vmax.f32 %v2249, 0.0
        %v2378 = vmax.f32 %v2250, 0.0
        %v2379 = vmax.f32 %v2251, 0.0
        %v2380 = vmax.f32 %v2252, 0.0
        %v2381 = vmax.f32 %v2253, 0.0
        %v2382 = vmax.f32 %v2254, 0.0
        %v2383 = vmax.f32 %v2255, 0.0
        %v2384 = vmax.f32 %v2256, 0.0
        %v2385 = vmax.f32 %v2257, 0.0
        %v2386 = vmax.f32 %v2258, 0.0
        %v2387 = vmax.f32 %v2259, 0.0
        %v2388 = vmax.f32 %v2260, 0.0
        %v2389 = vmax.f32 %v2261, 0.0
        %v2390 = vmax.f32 %v2262, 0.0
        %v2391 = vmax.f32 %v2263, 0.0
        %v2392 = vmax.f32 %v2264, 0.0
        %v2393 = vmax.f32 %v2265, 0.0
        %v2394 = vmax.f32 %v2266, 0.0
        %v2395 = vmax.f32 %v2267, 0.0
        %v2396 = vmax.f32 %v2268, 0.0
        %v2397 = vmax.f32 %v2269, 0.0
        %v2398 = vmax.f32 %v2270, 0.0
        %v2399 = vmax.f32 %v2271, 0.0
        %v2400 = vmax.f32 %v2272, 0.0
        %v2401 = vmax.f32 %v2273, 0.0
        %v2402 = vmax.f32 %v2274, 0.0
        %v2403 = vmax.f32 %v2275, 0.0
        %v2404 = vmax.f32 %v2276, 0.0
        %v2405 = vmax.f32 %v2277, 0.0
        %v2406 = vmax.f32 %v2278, 0.0
        %v2407 = vmax.f32 %v2279, 0.0
        %v2408 = vmax.f32 %v2280, 0.0
        %v2409 = vmax.f32 %v2281, 0.0
        %v2410 = vmax.f32 %v2282, 0.0
        %v2411 = vmax.f32 %v2283, 0.0
        %v2412 = vmax.f32 %v2284, 0.0
        %v2413 = vmax.f32 %v2285, 0.0
        %v2414 = vmax.f32 %v2286, 0.0
        %v2415 = vmax.f32 %v2287, 0.0
        %v2416 = vmax.f32 %v2288, 0.0
        %v2417 = vmax.f32 %v2289, 0.0
        %v2418 = vmax.f32 %v2290, 0.0
        %v2419 = vmax.f32 %v2291, 0.0
        %v2420 = vmax.f32 %v2292, 0.0
        %v2421 = vmax.f32 %v2293, 0.0
        %v2422 = vmax.f32 %v2294, 0.0
        %v2423 = vmax.f32 %v2295, 0.0
        %v2424 = vmax.f32 %v2296, 0.0
        %v2425 = vmax.f32 %v2297, 0.0
        %v2426 = vmax.f32 %v2298, 0.0
        %v2427 = vmax.f32 %v2299, 0.0
        %v2428 = vmax.f32 %v2300, 0.0
        %v2429 = vmax.f32 %v2301, 0.0
        %v2430 = vmax.f32 %v2302, 0.0
        %v2431 = vmax.f32 %v2303, 0.0
        %v2432 = vmax.f32 %v2304, 0.0
        %v2433 = vmax.f32 %v2305, 0.0
        %v2434 = vmax.f32 %v2306, 0.0
        %v2435 = vmax.f32 %v2307, 0.0
        %v2436 = vmax.f32 %v2308, 0.0
        %v2437 = vmax.f32 %v2309, 0.0
        %v2438 = vmax.f32 %v2310, 0.0
        %v2439 = vmax.f32 %v2311, 0.0
        %v2440 = vmax.f32 %v2312, 0.0
        %v2441 = vmax.f32 %v2313, 0.0
        %v2442 = vmax.f32 %v2314, 0.0
        %v2443 = vmax.f32 %v2315, 0.0
        %v2444 = vmax.f32 %v2316, 0.0
        %v2445 = vmax.f32 %v2317, 0.0
        %v2446 = vmax.f32 %v2318, 0.0
        %v2447 = vmax.f32 %v2319, 0.0
        %v2448 = vmax.f32 %v2320, 0.0
        %v2449 = vmax.f32 %v2321, 0.0
        %v2450 = vmax.f32 %v2322, 0.0
        %v2451 = vmax.f32 %v2323, 0.0
        %v2452 = vmax.f32 %v2324, 0.0
        %v2453 = vmax.f32 %v2325, 0.0
        %v2454 = vmax.f32 %v2326, 0.0
        %v2455 = vmax.f32 %v2327, 0.0
        %v2456 = vmax.f32 %v2328, 0.0
        %v2457 = vmax.f32 %v2329, 0.0
        %v2458 = vmax.f32 %v2330, 0.0
        %v2459 = vmax.f32 %v2331, 0.0
        %v2460 = vmax.f32 %v2332, 0.0
        %v2461 = vmax.f32 %v2333, 0.0
        %v2462 = vmax.f32 %v2334, 0.0
        %v2463 = vmax.f32 %v2335, 0.0
        %v2464 = vmax.f32 %v2336, 0.0
        %v2465 = vmax.f32 %v2337, 0.0
        %v2466 = vmax.f32 %v2338, 0.0
        %v2467 = vmax.f32 %v2339, 0.0
        %v2468 = vmax.f32 %v2340, 0.0
        %v2469 = vmax.f32 %v2341, 0.0
        %v2470 = vmax.f32 %v2342, 0.0
        %v2471 = vmax.f32 %v2343, 0.0
        %v2472 = vmax.f32 %v2344, 0.0
        %v2473 = vmax.f32 %v2345, 0.0
        %v2474 = vmax.f32 %v2346, 0.0
        %v2603 = vrot.slane %v2347, 4
        %v2604 = vrot.slane %v2348, 4
        %v2605 = vrot.slane %v2349, 4
        %v2606 = vrot.slane %v2350, 4
        %v2607 = vrot.slane %v2351, 4
        %v2608 = vrot.slane %v2352, 4
        %v2609 = vrot.slane %v2353, 4
        %v2610 = vrot.slane %v2354, 4
        %v2611 = vrot.slane %v2355, 4
        %v2612 = vrot.slane %v2356, 4
        %v2613 = vrot.slane %v2357, 4
        %v2614 = vrot.slane %v2358, 4
        %v2615 = vrot.slane %v2359, 4
        %v2616 = vrot.slane %v2360, 4
        %v2617 = vrot.slane %v2361, 4
        %v2618 = vrot.slane %v2362, 4
        %v2619 = vrot.slane %v2363, 4
        %v2620 = vrot.slane %v2364, 4
        %v2621 = vrot.slane %v2365, 4
        %v2622 = vrot.slane %v2366, 4
        %v2623 = vrot.slane %v2367, 4
        %v2624 = vrot.slane %v2368, 4
        %v2625 = vrot.slane %v2369, 4
        %v2626 = vrot.slane %v2370, 4
        %v2627 = vrot.slane %v2371, 4
        %v2628 = vrot.slane %v2372, 4
        %v2629 = vrot.slane %v2373, 4
        %v2630 = vrot.slane %v2374, 4
        %v2631 = vrot.slane %v2375, 4
        %v2632 = vrot.slane %v2376, 4
        %v2633 = vrot.slane %v2377, 4
        %v2634 = vrot.slane %v2378, 4
        %v2635 = vrot.slane %v2379, 4
        %v2636 = vrot.slane %v2380, 4
        %v2637 = vrot.slane %v2381, 4
        %v2638 = vrot.slane %v2382, 4
        %v2639 = vrot.slane %v2383, 4
        %v2640 = vrot.slane %v2384, 4
        %v2641 = vrot.slane %v2385, 4
        %v2642 = vrot.slane %v2386, 4
        %v2643 = vrot.slane %v2387, 4
        %v2644 = vrot.slane %v2388, 4
        %v2645 = vrot.slane %v2389, 4
        %v2646 = vrot.slane %v2390, 4
        %v2647 = vrot.slane %v2391, 4
        %v2648 = vrot.slane %v2392, 4
        %v2649 = vrot.slane %v2393, 4
        %v2650 = vrot.slane %v2394, 4
        %v2651 = vrot.slane %v2395, 4
        %v2652 = vrot.slane %v2396, 4
        %v2653 = vrot.slane %v2397, 4
        %v2654 = vrot.slane %v2398, 4
        %v2655 = vrot.slane %v2399, 4
        %v2656 = vrot.slane %v2400, 4
        %v2657 = vrot.slane %v2401, 4
        %v2658 = vrot.slane %v2402, 4
        %v2659 = vrot.slane %v2403, 4
        %v2660 = vrot.slane %v2404, 4
        %v2661 = vrot.slane %v2405, 4
        %v2662 = vrot.slane %v2406, 4
        %v2663 = vrot.slane %v2407, 4
        %v2664 = vrot.slane %v2408, 4
        %v2665 = vrot.slane %v2409, 4
        %v2666 = vrot.slane %v2410, 4
        %v2667 = vrot.slane %v2411, 4
        %v2668 = vrot.slane %v2412, 4
        %v2669 = vrot.slane %v2413, 4
        %v2670 = vrot.slane %v2414, 4
        %v2671 = vrot.slane %v2415, 4
        %v2672 = vrot.slane %v2416, 4
        %v2673 = vrot.slane %v2417, 4
        %v2674 = vrot.slane %v2418, 4
        %v2675 = vrot.slane %v2419, 4
        %v2676 = vrot.slane %v2420, 4
        %v2677 = vrot.slane %v2421, 4
        %v2678 = vrot.slane %v2422, 4
        %v2679 = vrot.slane %v2423, 4
        %v2680 = vrot.slane %v2424, 4
        %v2681 = vrot.slane %v2425, 4
        %v2682 = vrot.slane %v2426, 4
        %v2683 = vrot.slane %v2427, 4
        %v2684 = vrot.slane %v2428, 4
        %v2685 = vrot.slane %v2429, 4
        %v2686 = vrot.slane %v2430, 4
        %v2687 = vrot.slane %v2431, 4
        %v2688 = vrot.slane %v2432, 4
        %v2689 = vrot.slane %v2433, 4
        %v2690 = vrot.slane %v2434, 4
        %v2691 = vrot.slane %v2435, 4
        %v2692 = vrot.slane %v2436, 4
        %v2693 = vrot.slane %v2437, 4
        %v2694 = vrot.slane %v2438, 4
        %v2695 = vrot.slane %v2439, 4
        %v2696 = vrot.slane %v2440, 4
        %v2697 = vrot.slane %v2441, 4
        %v2698 = vrot.slane %v2442, 4
        %v2699 = vrot.slane %v2443, 4
        %v2700 = vrot.slane %v2444, 4
        %v2701 = vrot.slane %v2445, 4
        %v2702 = vrot.slane %v2446, 4
        %v2703 = vrot.slane %v2447, 4
        %v2704 = vrot.slane %v2448, 4
        %v2705 = vrot.slane %v2449, 4
        %v2706 = vrot.slane %v2450, 4
        %v2707 = vrot.slane %v2451, 4
        %v2708 = vrot.slane %v2452, 4
        %v2709 = vrot.slane %v2453, 4
        %v2710 = vrot.slane %v2454, 4
        %v2711 = vrot.slane %v2455, 4
        %v2712 = vrot.slane %v2456, 4
        %v2713 = vrot.slane %v2457, 4
        %v2714 = vrot.slane %v2458, 4
        %v2715 = vrot.slane %v2459, 4
        %v2716 = vrot.slane %v2460, 4
        %v2717 = vrot.slane %v2461, 4
        %v2718 = vrot.slane %v2462, 4
        %v2719 = vrot.slane %v2463, 4
        %v2720 = vrot.slane %v2464, 4
        %v2721 = vrot.slane %v2465, 4
        %v2722 = vrot.slane %v2466, 4
        %v2723 = vrot.slane %v2467, 4
        %v2724 = vrot.slane %v2468, 4
        %v2725 = vrot.slane %v2469, 4
        %v2726 = vrot.slane %v2470, 4
        %v2727 = vrot.slane %v2471, 4
        %v2728 = vrot.slane %v2472, 4
        %v2729 = vrot.slane %v2473, 4
        %v2730 = vrot.slane %v2474, 4
        %vm2859 = vcmask 125952
        %v2860 = vsel %vm2859, %v2347, -inf
        %v2861 = vrot.slane %v2860, 4
        %v2862 = vmax.f32 %v2860, %v2861
        %v2863 = vrot.slane %v2862, 2
        %v2864 = vmax.f32 %v2862, %v2863
        %v2865 = vrot.slane %v2864, 1
        %v2866 = vmax.f32 %v2864, %v2865
        %v2867 = vsel %vm2859, %v2603, -inf
        %v2868 = vrot.slane %v2867, 4
        %v2869 = vmax.f32 %v2867, %v2868
        %v2870 = vrot.slane %v2869, 2
        %v2871 = vmax.f32 %v2869, %v2870
        %v2872 = vrot.slane %v2871, 1
        %v2873 = vmax.f32 %v2871, %v2872
        %v2874 = vsel %vm2859, %v2348, -inf
        %v2875 = vrot.slane %v2874, 4
        %v2876 = vmax.f32 %v2874, %v2875
        %v2877 = vrot.slane %v2876, 2
        %v2878 = vmax.f32 %v2876, %v2877
        %v2879 = vrot.slane %v2878, 1
        %v2880 = vmax.f32 %v2878, %v2879
        %v2881 = vsel %vm2859, %v2604, -inf
        %v2882 = vrot.slane %v2881, 4
        %v2883 = vmax.f32 %v2881, %v2882
        %v2884 = vrot.slane %v2883, 2
        %v2885 = vmax.f32 %v2883, %v2884
        %v2886 = vrot.slane %v2885, 1
        %v2887 = vmax.f32 %v2885, %v2886
        %v2888 = vsel %vm2859, %v2349, -inf
        %v2889 = vrot.slane %v2888, 4
        %v2890 = vmax.f32 %v2888, %v2889
        %v2891 = vrot.slane %v2890, 2
        %v2892 = vmax.f32 %v2890, %v2891
        %v2893 = vrot.slane %v2892, 1
        %v2894 = vmax.f32 %v2892, %v2893
        %v2895 = vsel %vm2859, %v2605, -inf
        %v2896 = vrot.slane %v2895, 4
        %v2897 = vmax.f32 %v2895, %v2896
        %v2898 = vrot.slane %v2897, 2
        %v2899 = vmax.f32 %v2897, %v2898
        %v2900 = vrot.slane %v2899, 1
        %v2901 = vmax.f32 %v2899, %v2900
        %v2902 = vsel %vm2859, %v2350, -inf
        %v2903 = vrot.slane %v2902, 4
        %v2904 = vmax.f32 %v2902, %v2903
        %v2905 = vrot.slane %v2904, 2
        %v2906 = vmax.f32 %v2904, %v2905
        %v2907 = vrot.slane %v2906, 1
        %v2908 = vmax.f32 %v2906, %v2907
        %v2909 = vsel %vm2859, %v2606, -inf
        %v2910 = vrot.slane %v2909, 4
        %v2911 = vmax.f32 %v2909, %v2910
        %v2912 = vrot.slane %v2911, 2
        %v2913 = vmax.f32 %v2911, %v2912
        %v2914 = vrot.slane %v2913, 1
        %v2915 = vmax.f32 %v2913, %v2914
        %v2916 = vsel %vm2859, %v2351, -inf
        %v2917 = vrot.slane %v2916, 4
        %v2918 = vmax.f32 %v2916, %v2917
        %v2919 = vrot.slane %v2918, 2
        %v2920 = vmax.f32 %v2918, %v2919
        %v2921 = vrot.slane %v2920, 1
        %v2922 = vmax.f32 %v2920, %v2921
        %v2923 = vsel %vm2859, %v2607, -inf
        %v2924 = vrot.slane %v2923, 4
        %v2925 = vmax.f32 %v2923, %v2924
        %v2926 = vrot.slane %v2925, 2
        %v2927 = vmax.f32 %v2925, %v2926
        %v2928 = vrot.slane %v2927, 1
        %v2929 = vmax.f32 %v2927, %v2928
        %v2930 = vsel %vm2859, %v2352, -inf
        %v2931 = vrot.slane %v2930, 4
        %v2932 = vmax.f32 %v2930, %v2931
        %v2933 = vrot.slane %v2932, 2
        %v2934 = vmax.f32 %v2932, %v2933
        %v2935 = vrot.slane %v2934, 1
        %v2936 = vmax.f32 %v2934, %v2935
        %v2937 = vsel %vm2859, %v2608, -inf
        %v2938 = vrot.slane %v2937, 4
        %v2939 = vmax.f32 %v2937, %v2938
        %v2940 = vrot.slane %v2939, 2
        %v2941 = vmax.f32 %v2939, %v2940
        %v2942 = vrot.slane %v2941, 1
        %v2943 = vmax.f32 %v2941, %v2942
        %v2944 = vsel %vm2859, %v2353, -inf
        %v2945 = vrot.slane %v2944, 4
        %v2946 = vmax.f32 %v2944, %v2945
        %v2947 = vrot.slane %v2946, 2
        %v2948 = vmax.f32 %v2946, %v2947
        %v2949 = vrot.slane %v2948, 1
        %v2950 = vmax.f32 %v2948, %v2949
        %v2951 = vsel %vm2859, %v2609, -inf
        %v2952 = vrot.slane %v2951, 4
        %v2953 = vmax.f32 %v2951, %v2952
        %v2954 = vrot.slane %v2953, 2
        %v2955 = vmax.f32 %v2953, %v2954
        %v2956 = vrot.slane %v2955, 1
        %v2957 = vmax.f32 %v2955, %v2956
        %v2958 = vsel %vm2859, %v2354, -inf
        %v2959 = vrot.slane %v2958, 4
        %v2960 = vmax.f32 %v2958, %v2959
        %v2961 = vrot.slane %v2960, 2
        %v2962 = vmax.f32 %v2960, %v2961
        %v2963 = vrot.slane %v2962, 1
        %v2964 = vmax.f32 %v2962, %v2963
        %v2965 = vsel %vm2859, %v2610, -inf
        %v2966 = vrot.slane %v2965, 4
        %v2967 = vmax.f32 %v2965, %v2966
        %v2968 = vrot.slane %v2967, 2
        %v2969 = vmax.f32 %v2967, %v2968
        %v2970 = vrot.slane %v2969, 1
        %v2971 = vmax.f32 %v2969, %v2970
        %v2972 = vsel %vm2859, %v2355, -inf
        %v2973 = vrot.slane %v2972, 4
        %v2974 = vmax.f32 %v2972, %v2973
        %v2975 = vrot.slane %v2974, 2
        %v2976 = vmax.f32 %v2974, %v2975
        %v2977 = vrot.slane %v2976, 1
        %v2978 = vmax.f32 %v2976, %v2977
        %v2979 = vsel %vm2859, %v2611, -inf
        %v2980 = vrot.slane %v2979, 4
        %v2981 = vmax.f32 %v2979, %v2980
        %v2982 = vrot.slane %v2981, 2
        %v2983 = vmax.f32 %v2981, %v2982
        %v2984 = vrot.slane %v2983, 1
        %v2985 = vmax.f32 %v2983, %v2984
        %v2986 = vsel %vm2859, %v2356, -inf
        %v2987 = vrot.slane %v2986, 4
        %v2988 = vmax.f32 %v2986, %v2987
        %v2989 = vrot.slane %v2988, 2
        %v2990 = vmax.f32 %v2988, %v2989
        %v2991 = vrot.slane %v2990, 1
        %v2992 = vmax.f32 %v2990, %v2991
        %v2993 = vsel %vm2859, %v2612, -inf
        %v2994 = vrot.slane %v2993, 4
        %v2995 = vmax.f32 %v2993, %v2994
        %v2996 = vrot.slane %v2995, 2
        %v2997 = vmax.f32 %v2995, %v2996
        %v2998 = vrot.slane %v2997, 1
        %v2999 = vmax.f32 %v2997, %v2998
        %v3000 = vsel %vm2859, %v2357, -inf
        %v3001 = vrot.slane %v3000, 4
        %v3002 = vmax.f32 %v3000, %v3001
        %v3003 = vrot.slane %v3002, 2
        %v3004 = vmax.f32 %v3002, %v3003
        %v3005 = vrot.slane %v3004, 1
        %v3006 = vmax.f32 %v3004, %v3005
        %v3007 = vsel %vm2859, %v2613, -inf
        %v3008 = vrot.slane %v3007, 4
        %v3009 = vmax.f32 %v3007, %v3008
        %v3010 = vrot.slane %v3009, 2
        %v3011 = vmax.f32 %v3009, %v3010
        %v3012 = vrot.slane %v3011, 1
        %v3013 = vmax.f32 %v3011, %v3012
        %v3014 = vsel %vm2859, %v2358, -inf
        %v3015 = vrot.slane %v3014, 4
        %v3016 = vmax.f32 %v3014, %v3015
        %v3017 = vrot.slane %v3016, 2
        %v3018 = vmax.f32 %v3016, %v3017
        %v3019 = vrot.slane %v3018, 1
        %v3020 = vmax.f32 %v3018, %v3019
        %v3021 = vsel %vm2859, %v2614, -inf
        %v3022 = vrot.slane %v3021, 4
        %v3023 = vmax.f32 %v3021, %v3022
        %v3024 = vrot.slane %v3023, 2
        %v3025 = vmax.f32 %v3023, %v3024
        %v3026 = vrot.slane %v3025, 1
        %v3027 = vmax.f32 %v3025, %v3026
        %v3028 = vsel %vm2859, %v2359, -inf
        %v3029 = vrot.slane %v3028, 4
        %v3030 = vmax.f32 %v3028, %v3029
        %v3031 = vrot.slane %v3030, 2
        %v3032 = vmax.f32 %v3030, %v3031
        %v3033 = vrot.slane %v3032, 1
        %v3034 = vmax.f32 %v3032, %v3033
        %v3035 = vsel %vm2859, %v2615, -inf
        %v3036 = vrot.slane %v3035, 4
        %v3037 = vmax.f32 %v3035, %v3036
        %v3038 = vrot.slane %v3037, 2
        %v3039 = vmax.f32 %v3037, %v3038
        %v3040 = vrot.slane %v3039, 1
        %v3041 = vmax.f32 %v3039, %v3040
        %v3042 = vsel %vm2859, %v2360, -inf
        %v3043 = vrot.slane %v3042, 4
        %v3044 = vmax.f32 %v3042, %v3043
        %v3045 = vrot.slane %v3044, 2
        %v3046 = vmax.f32 %v3044, %v3045
        %v3047 = vrot.slane %v3046, 1
        %v3048 = vmax.f32 %v3046, %v3047
        %v3049 = vsel %vm2859, %v2616, -inf
        %v3050 = vrot.slane %v3049, 4
        %v3051 = vmax.f32 %v3049, %v3050
        %v3052 = vrot.slane %v3051, 2
        %v3053 = vmax.f32 %v3051, %v3052
        %v3054 = vrot.slane %v3053, 1
        %v3055 = vmax.f32 %v3053, %v3054
        %v3056 = vsel %vm2859, %v2361, -inf
        %v3057 = vrot.slane %v3056, 4
        %v3058 = vmax.f32 %v3056, %v3057
        %v3059 = vrot.slane %v3058, 2
        %v3060 = vmax.f32 %v3058, %v3059
        %v3061 = vrot.slane %v3060, 1
        %v3062 = vmax.f32 %v3060, %v3061
        %v3063 = vsel %vm2859, %v2617, -inf
        %v3064 = vrot.slane %v3063, 4
        %v3065 = vmax.f32 %v3063, %v3064
        %v3066 = vrot.slane %v3065, 2
        %v3067 = vmax.f32 %v3065, %v3066
        %v3068 = vrot.slane %v3067, 1
        %v3069 = vmax.f32 %v3067, %v3068
        %v3070 = vsel %vm2859, %v2362, -inf
        %v3071 = vrot.slane %v3070, 4
        %v3072 = vmax.f32 %v3070, %v3071
        %v3073 = vrot.slane %v3072, 2
        %v3074 = vmax.f32 %v3072, %v3073
        %v3075 = vrot.slane %v3074, 1
        %v3076 = vmax.f32 %v3074, %v3075
        %v3077 = vsel %vm2859, %v2618, -inf
        %v3078 = vrot.slane %v3077, 4
        %v3079 = vmax.f32 %v3077, %v3078
        %v3080 = vrot.slane %v3079, 2
        %v3081 = vmax.f32 %v3079, %v3080
        %v3082 = vrot.slane %v3081, 1
        %v3083 = vmax.f32 %v3081, %v3082
        %v3084 = vsel %vm2859, %v2363, -inf
        %v3085 = vrot.slane %v3084, 4
        %v3086 = vmax.f32 %v3084, %v3085
        %v3087 = vrot.slane %v3086, 2
        %v3088 = vmax.f32 %v3086, %v3087
        %v3089 = vrot.slane %v3088, 1
        %v3090 = vmax.f32 %v3088, %v3089
        %v3091 = vsel %vm2859, %v2619, -inf
        %v3092 = vrot.slane %v3091, 4
        %v3093 = vmax.f32 %v3091, %v3092
        %v3094 = vrot.slane %v3093, 2
        %v3095 = vmax.f32 %v3093, %v3094
        %v3096 = vrot.slane %v3095, 1
        %v3097 = vmax.f32 %v3095, %v3096
        %v3098 = vsel %vm2859, %v2364, -inf
        %v3099 = vrot.slane %v3098, 4
        %v3100 = vmax.f32 %v3098, %v3099
        %v3101 = vrot.slane %v3100, 2
        %v3102 = vmax.f32 %v3100, %v3101
        %v3103 = vrot.slane %v3102, 1
        %v3104 = vmax.f32 %v3102, %v3103
        %v3105 = vsel %vm2859, %v2620, -inf
        %v3106 = vrot.slane %v3105, 4
        %v3107 = vmax.f32 %v3105, %v3106
        %v3108 = vrot.slane %v3107, 2
        %v3109 = vmax.f32 %v3107, %v3108
        %v3110 = vrot.slane %v3109, 1
        %v3111 = vmax.f32 %v3109, %v3110
        %v3112 = vsel %vm2859, %v2365, -inf
        %v3113 = vrot.slane %v3112, 4
        %v3114 = vmax.f32 %v3112, %v3113
        %v3115 = vrot.slane %v3114, 2
        %v3116 = vmax.f32 %v3114, %v3115
        %v3117 = vrot.slane %v3116, 1
        %v3118 = vmax.f32 %v3116, %v3117
        %v3119 = vsel %vm2859, %v2621, -inf
        %v3120 = vrot.slane %v3119, 4
        %v3121 = vmax.f32 %v3119, %v3120
        %v3122 = vrot.slane %v3121, 2
        %v3123 = vmax.f32 %v3121, %v3122
        %v3124 = vrot.slane %v3123, 1
        %v3125 = vmax.f32 %v3123, %v3124
        %v3126 = vsel %vm2859, %v2366, -inf
        %v3127 = vrot.slane %v3126, 4
        %v3128 = vmax.f32 %v3126, %v3127
        %v3129 = vrot.slane %v3128, 2
        %v3130 = vmax.f32 %v3128, %v3129
        %v3131 = vrot.slane %v3130, 1
        %v3132 = vmax.f32 %v3130, %v3131
        %v3133 = vsel %vm2859, %v2622, -inf
        %v3134 = vrot.slane %v3133, 4
        %v3135 = vmax.f32 %v3133, %v3134
        %v3136 = vrot.slane %v3135, 2
        %v3137 = vmax.f32 %v3135, %v3136
        %v3138 = vrot.slane %v3137, 1
        %v3139 = vmax.f32 %v3137, %v3138
        %v3140 = vsel %vm2859, %v2367, -inf
        %v3141 = vrot.slane %v3140, 4
        %v3142 = vmax.f32 %v3140, %v3141
        %v3143 = vrot.slane %v3142, 2
        %v3144 = vmax.f32 %v3142, %v3143
        %v3145 = vrot.slane %v3144, 1
        %v3146 = vmax.f32 %v3144, %v3145
        %v3147 = vsel %vm2859, %v2623, -inf
        %v3148 = vrot.slane %v3147, 4
        %v3149 = vmax.f32 %v3147, %v3148
        %v3150 = vrot.slane %v3149, 2
        %v3151 = vmax.f32 %v3149, %v3150
        %v3152 = vrot.slane %v3151, 1
        %v3153 = vmax.f32 %v3151, %v3152
        %v3154 = vsel %vm2859, %v2368, -inf
        %v3155 = vrot.slane %v3154, 4
        %v3156 = vmax.f32 %v3154, %v3155
        %v3157 = vrot.slane %v3156, 2
        %v3158 = vmax.f32 %v3156, %v3157
        %v3159 = vrot.slane %v3158, 1
        %v3160 = vmax.f32 %v3158, %v3159
        %v3161 = vsel %vm2859, %v2624, -inf
        %v3162 = vrot.slane %v3161, 4
        %v3163 = vmax.f32 %v3161, %v3162
        %v3164 = vrot.slane %v3163, 2
        %v3165 = vmax.f32 %v3163, %v3164
        %v3166 = vrot.slane %v3165, 1
        %v3167 = vmax.f32 %v3165, %v3166
        %v3168 = vsel %vm2859, %v2369, -inf
        %v3169 = vrot.slane %v3168, 4
        %v3170 = vmax.f32 %v3168, %v3169
        %v3171 = vrot.slane %v3170, 2
        %v3172 = vmax.f32 %v3170, %v3171
        %v3173 = vrot.slane %v3172, 1
        %v3174 = vmax.f32 %v3172, %v3173
        %v3175 = vsel %vm2859, %v2625, -inf
        %v3176 = vrot.slane %v3175, 4
        %v3177 = vmax.f32 %v3175, %v3176
        %v3178 = vrot.slane %v3177, 2
        %v3179 = vmax.f32 %v3177, %v3178
        %v3180 = vrot.slane %v3179, 1
        %v3181 = vmax.f32 %v3179, %v3180
        %v3182 = vsel %vm2859, %v2370, -inf
        %v3183 = vrot.slane %v3182, 4
        %v3184 = vmax.f32 %v3182, %v3183
        %v3185 = vrot.slane %v3184, 2
        %v3186 = vmax.f32 %v3184, %v3185
        %v3187 = vrot.slane %v3186, 1
        %v3188 = vmax.f32 %v3186, %v3187
        %v3189 = vsel %vm2859, %v2626, -inf
        %v3190 = vrot.slane %v3189, 4
        %v3191 = vmax.f32 %v3189, %v3190
        %v3192 = vrot.slane %v3191, 2
        %v3193 = vmax.f32 %v3191, %v3192
        %v3194 = vrot.slane %v3193, 1
        %v3195 = vmax.f32 %v3193, %v3194
        %v3196 = vsel %vm2859, %v2371, -inf
        %v3197 = vrot.slane %v3196, 4
        %v3198 = vmax.f32 %v3196, %v3197
        %v3199 = vrot.slane %v3198, 2
        %v3200 = vmax.f32 %v3198, %v3199
        %v3201 = vrot.slane %v3200, 1
        %v3202 = vmax.f32 %v3200, %v3201
        %v3203 = vsel %vm2859, %v2627, -inf
        %v3204 = vrot.slane %v3203, 4
        %v3205 = vmax.f32 %v3203, %v3204
        %v3206 = vrot.slane %v3205, 2
        %v3207 = vmax.f32 %v3205, %v3206
        %v3208 = vrot.slane %v3207, 1
        %v3209 = vmax.f32 %v3207, %v3208
        %v3210 = vsel %vm2859, %v2372, -inf
        %v3211 = vrot.slane %v3210, 4
        %v3212 = vmax.f32 %v3210, %v3211
        %v3213 = vrot.slane %v3212, 2
        %v3214 = vmax.f32 %v3212, %v3213
        %v3215 = vrot.slane %v3214, 1
        %v3216 = vmax.f32 %v3214, %v3215
        %v3217 = vsel %vm2859, %v2628, -inf
        %v3218 = vrot.slane %v3217, 4
        %v3219 = vmax.f32 %v3217, %v3218
        %v3220 = vrot.slane %v3219, 2
        %v3221 = vmax.f32 %v3219, %v3220
        %v3222 = vrot.slane %v3221, 1
        %v3223 = vmax.f32 %v3221, %v3222
        %v3224 = vsel %vm2859, %v2373, -inf
        %v3225 = vrot.slane %v3224, 4
        %v3226 = vmax.f32 %v3224, %v3225
        %v3227 = vrot.slane %v3226, 2
        %v3228 = vmax.f32 %v3226, %v3227
        %v3229 = vrot.slane %v3228, 1
        %v3230 = vmax.f32 %v3228, %v3229
        %v3231 = vsel %vm2859, %v2629, -inf
        %v3232 = vrot.slane %v3231, 4
        %v3233 = vmax.f32 %v3231, %v3232
        %v3234 = vrot.slane %v3233, 2
        %v3235 = vmax.f32 %v3233, %v3234
        %v3236 = vrot.slane %v3235, 1
        %v3237 = vmax.f32 %v3235, %v3236
        %v3238 = vsel %vm2859, %v2374, -inf
        %v3239 = vrot.slane %v3238, 4
        %v3240 = vmax.f32 %v3238, %v3239
        %v3241 = vrot.slane %v3240, 2
        %v3242 = vmax.f32 %v3240, %v3241
        %v3243 = vrot.slane %v3242, 1
        %v3244 = vmax.f32 %v3242, %v3243
        %v3245 = vsel %vm2859, %v2630, -inf
        %v3246 = vrot.slane %v3245, 4
        %v3247 = vmax.f32 %v3245, %v3246
        %v3248 = vrot.slane %v3247, 2
        %v3249 = vmax.f32 %v3247, %v3248
        %v3250 = vrot.slane %v3249, 1
        %v3251 = vmax.f32 %v3249, %v3250
        %v3252 = vsel %vm2859, %v2375, -inf
        %v3253 = vrot.slane %v3252, 4
        %v3254 = vmax.f32 %v3252, %v3253
        %v3255 = vrot.slane %v3254, 2
        %v3256 = vmax.f32 %v3254, %v3255
        %v3257 = vrot.slane %v3256, 1
        %v3258 = vmax.f32 %v3256, %v3257
        %v3259 = vsel %vm2859, %v2631, -inf
        %v3260 = vrot.slane %v3259, 4
        %v3261 = vmax.f32 %v3259, %v3260
        %v3262 = vrot.slane %v3261, 2
        %v3263 = vmax.f32 %v3261, %v3262
        %v3264 = vrot.slane %v3263, 1
        %v3265 = vmax.f32 %v3263, %v3264
        %v3266 = vsel %vm2859, %v2376, -inf
        %v3267 = vrot.slane %v3266, 4
        %v3268 = vmax.f32 %v3266, %v3267
        %v3269 = vrot.slane %v3268, 2
        %v3270 = vmax.f32 %v3268, %v3269
        %v3271 = vrot.slane %v3270, 1
        %v3272 = vmax.f32 %v3270, %v3271
        %v3273 = vsel %vm2859, %v2632, -inf
        %v3274 = vrot.slane %v3273, 4
        %v3275 = vmax.f32 %v3273, %v3274
        %v3276 = vrot.slane %v3275, 2
        %v3277 = vmax.f32 %v3275, %v3276
        %v3278 = vrot.slane %v3277, 1
        %v3279 = vmax.f32 %v3277, %v3278
        %v3280 = vsel %vm2859, %v2377, -inf
        %v3281 = vrot.slane %v3280, 4
        %v3282 = vmax.f32 %v3280, %v3281
        %v3283 = vrot.slane %v3282, 2
        %v3284 = vmax.f32 %v3282, %v3283
        %v3285 = vrot.slane %v3284, 1
        %v3286 = vmax.f32 %v3284, %v3285
        %v3287 = vsel %vm2859, %v2633, -inf
        %v3288 = vrot.slane %v3287, 4
        %v3289 = vmax.f32 %v3287, %v3288
        %v3290 = vrot.slane %v3289, 2
        %v3291 = vmax.f32 %v3289, %v3290
        %v3292 = vrot.slane %v3291, 1
        %v3293 = vmax.f32 %v3291, %v3292
        %v3294 = vsel %vm2859, %v2378, -inf
        %v3295 = vrot.slane %v3294, 4
        %v3296 = vmax.f32 %v3294, %v3295
        %v3297 = vrot.slane %v3296, 2
        %v3298 = vmax.f32 %v3296, %v3297
        %v3299 = vrot.slane %v3298, 1
        %v3300 = vmax.f32 %v3298, %v3299
        %v3301 = vsel %vm2859, %v2634, -inf
        %v3302 = vrot.slane %v3301, 4
        %v3303 = vmax.f32 %v3301, %v3302
        %v3304 = vrot.slane %v3303, 2
        %v3305 = vmax.f32 %v3303, %v3304
        %v3306 = vrot.slane %v3305, 1
        %v3307 = vmax.f32 %v3305, %v3306
        %v3308 = vsel %vm2859, %v2379, -inf
        %v3309 = vrot.slane %v3308, 4
        %v3310 = vmax.f32 %v3308, %v3309
        %v3311 = vrot.slane %v3310, 2
        %v3312 = vmax.f32 %v3310, %v3311
        %v3313 = vrot.slane %v3312, 1
        %v3314 = vmax.f32 %v3312, %v3313
        %v3315 = vsel %vm2859, %v2635, -inf
        %v3316 = vrot.slane %v3315, 4
        %v3317 = vmax.f32 %v3315, %v3316
        %v3318 = vrot.slane %v3317, 2
        %v3319 = vmax.f32 %v3317, %v3318
        %v3320 = vrot.slane %v3319, 1
        %v3321 = vmax.f32 %v3319, %v3320
        %v3322 = vsel %vm2859, %v2380, -inf
        %v3323 = vrot.slane %v3322, 4
        %v3324 = vmax.f32 %v3322, %v3323
        %v3325 = vrot.slane %v3324, 2
        %v3326 = vmax.f32 %v3324, %v3325
        %v3327 = vrot.slane %v3326, 1
        %v3328 = vmax.f32 %v3326, %v3327
        %v3329 = vsel %vm2859, %v2636, -inf
        %v3330 = vrot.slane %v3329, 4
        %v3331 = vmax.f32 %v3329, %v3330
        %v3332 = vrot.slane %v3331, 2
        %v3333 = vmax.f32 %v3331, %v3332
        %v3334 = vrot.slane %v3333, 1
        %v3335 = vmax.f32 %v3333, %v3334
        %v3336 = vsel %vm2859, %v2381, -inf
        %v3337 = vrot.slane %v3336, 4
        %v3338 = vmax.f32 %v3336, %v3337
        %v3339 = vrot.slane %v3338, 2
        %v3340 = vmax.f32 %v3338, %v3339
        %v3341 = vrot.slane %v3340, 1
        %v3342 = vmax.f32 %v3340, %v3341
        %v3343 = vsel %vm2859, %v2637, -inf
        %v3344 = vrot.slane %v3343, 4
        %v3345 = vmax.f32 %v3343, %v3344
        %v3346 = vrot.slane %v3345, 2
        %v3347 = vmax.f32 %v3345, %v3346
        %v3348 = vrot.slane %v3347, 1
        %v3349 = vmax.f32 %v3347, %v3348
        %v3350 = vsel %vm2859, %v2382, -inf
        %v3351 = vrot.slane %v3350, 4
        %v3352 = vmax.f32 %v3350, %v3351
        %v3353 = vrot.slane %v3352, 2
        %v3354 = vmax.f32 %v3352, %v3353
        %v3355 = vrot.slane %v3354, 1
        %v3356 = vmax.f32 %v3354, %v3355
        %v3357 = vsel %vm2859, %v2638, -inf
        %v3358 = vrot.slane %v3357, 4
        %v3359 = vmax.f32 %v3357, %v3358
        %v3360 = vrot.slane %v3359, 2
        %v3361 = vmax.f32 %v3359, %v3360
        %v3362 = vrot.slane %v3361, 1
        %v3363 = vmax.f32 %v3361, %v3362
        %v3364 = vsel %vm2859, %v2383, -inf
        %v3365 = vrot.slane %v3364, 4
        %v3366 = vmax.f32 %v3364, %v3365
        %v3367 = vrot.slane %v3366, 2
        %v3368 = vmax.f32 %v3366, %v3367
        %v3369 = vrot.slane %v3368, 1
        %v3370 = vmax.f32 %v3368, %v3369
        %v3371 = vsel %vm2859, %v2639, -inf
        %v3372 = vrot.slane %v3371, 4
        %v3373 = vmax.f32 %v3371, %v3372
        %v3374 = vrot.slane %v3373, 2
        %v3375 = vmax.f32 %v3373, %v3374
        %v3376 = vrot.slane %v3375, 1
        %v3377 = vmax.f32 %v3375, %v3376
        %v3378 = vsel %vm2859, %v2384, -inf
        %v3379 = vrot.slane %v3378, 4
        %v3380 = vmax.f32 %v3378, %v3379
        %v3381 = vrot.slane %v3380, 2
        %v3382 = vmax.f32 %v3380, %v3381
        %v3383 = vrot.slane %v3382, 1
        %v3384 = vmax.f32 %v3382, %v3383
        %v3385 = vsel %vm2859, %v2640, -inf
        %v3386 = vrot.slane %v3385, 4
        %v3387 = vmax.f32 %v3385, %v3386
        %v3388 = vrot.slane %v3387, 2
        %v3389 = vmax.f32 %v3387, %v3388
        %v3390 = vrot.slane %v3389, 1
        %v3391 = vmax.f32 %v3389, %v3390
        %v3392 = vsel %vm2859, %v2385, -inf
        %v3393 = vrot.slane %v3392, 4
        %v3394 = vmax.f32 %v3392, %v3393
        %v3395 = vrot.slane %v3394, 2
        %v3396 = vmax.f32 %v3394, %v3395
        %v3397 = vrot.slane %v3396, 1
        %v3398 = vmax.f32 %v3396, %v3397
        %v3399 = vsel %vm2859, %v2641, -inf
        %v3400 = vrot.slane %v3399, 4
        %v3401 = vmax.f32 %v3399, %v3400
        %v3402 = vrot.slane %v3401, 2
        %v3403 = vmax.f32 %v3401, %v3402
        %v3404 = vrot.slane %v3403, 1
        %v3405 = vmax.f32 %v3403, %v3404
        %v3406 = vsel %vm2859, %v2386, -inf
        %v3407 = vrot.slane %v3406, 4
        %v3408 = vmax.f32 %v3406, %v3407
        %v3409 = vrot.slane %v3408, 2
        %v3410 = vmax.f32 %v3408, %v3409
        %v3411 = vrot.slane %v3410, 1
        %v3412 = vmax.f32 %v3410, %v3411
        %v3413 = vsel %vm2859, %v2642, -inf
        %v3414 = vrot.slane %v3413, 4
        %v3415 = vmax.f32 %v3413, %v3414
        %v3416 = vrot.slane %v3415, 2
        %v3417 = vmax.f32 %v3415, %v3416
        %v3418 = vrot.slane %v3417, 1
        %v3419 = vmax.f32 %v3417, %v3418
        %v3420 = vsel %vm2859, %v2387, -inf
        %v3421 = vrot.slane %v3420, 4
        %v3422 = vmax.f32 %v3420, %v3421
        %v3423 = vrot.slane %v3422, 2
        %v3424 = vmax.f32 %v3422, %v3423
        %v3425 = vrot.slane %v3424, 1
        %v3426 = vmax.f32 %v3424, %v3425
        %v3427 = vsel %vm2859, %v2643, -inf
        %v3428 = vrot.slane %v3427, 4
        %v3429 = vmax.f32 %v3427, %v3428
        %v3430 = vrot.slane %v3429, 2
        %v3431 = vmax.f32 %v3429, %v3430
        %v3432 = vrot.slane %v3431, 1
        %v3433 = vmax.f32 %v3431, %v3432
        %v3434 = vsel %vm2859, %v2388, -inf
        %v3435 = vrot.slane %v3434, 4
        %v3436 = vmax.f32 %v3434, %v3435
        %v3437 = vrot.slane %v3436, 2
        %v3438 = vmax.f32 %v3436, %v3437
        %v3439 = vrot.slane %v3438, 1
        %v3440 = vmax.f32 %v3438, %v3439
        %v3441 = vsel %vm2859, %v2644, -inf
        %v3442 = vrot.slane %v3441, 4
        %v3443 = vmax.f32 %v3441, %v3442
        %v3444 = vrot.slane %v3443, 2
        %v3445 = vmax.f32 %v3443, %v3444
        %v3446 = vrot.slane %v3445, 1
        %v3447 = vmax.f32 %v3445, %v3446
        %v3448 = vsel %vm2859, %v2389, -inf
        %v3449 = vrot.slane %v3448, 4
        %v3450 = vmax.f32 %v3448, %v3449
        %v3451 = vrot.slane %v3450, 2
        %v3452 = vmax.f32 %v3450, %v3451
        %v3453 = vrot.slane %v3452, 1
        %v3454 = vmax.f32 %v3452, %v3453
        %v3455 = vsel %vm2859, %v2645, -inf
        %v3456 = vrot.slane %v3455, 4
        %v3457 = vmax.f32 %v3455, %v3456
        %v3458 = vrot.slane %v3457, 2
        %v3459 = vmax.f32 %v3457, %v3458
        %v3460 = vrot.slane %v3459, 1
        %v3461 = vmax.f32 %v3459, %v3460
        %v3462 = vsel %vm2859, %v2390, -inf
        %v3463 = vrot.slane %v3462, 4
        %v3464 = vmax.f32 %v3462, %v3463
        %v3465 = vrot.slane %v3464, 2
        %v3466 = vmax.f32 %v3464, %v3465
        %v3467 = vrot.slane %v3466, 1
        %v3468 = vmax.f32 %v3466, %v3467
        %v3469 = vsel %vm2859, %v2646, -inf
        %v3470 = vrot.slane %v3469, 4
        %v3471 = vmax.f32 %v3469, %v3470
        %v3472 = vrot.slane %v3471, 2
        %v3473 = vmax.f32 %v3471, %v3472
        %v3474 = vrot.slane %v3473, 1
        %v3475 = vmax.f32 %v3473, %v3474
        %v3476 = vsel %vm2859, %v2391, -inf
        %v3477 = vrot.slane %v3476, 4
        %v3478 = vmax.f32 %v3476, %v3477
        %v3479 = vrot.slane %v3478, 2
        %v3480 = vmax.f32 %v3478, %v3479
        %v3481 = vrot.slane %v3480, 1
        %v3482 = vmax.f32 %v3480, %v3481
        %v3483 = vsel %vm2859, %v2647, -inf
        %v3484 = vrot.slane %v3483, 4
        %v3485 = vmax.f32 %v3483, %v3484
        %v3486 = vrot.slane %v3485, 2
        %v3487 = vmax.f32 %v3485, %v3486
        %v3488 = vrot.slane %v3487, 1
        %v3489 = vmax.f32 %v3487, %v3488
        %v3490 = vsel %vm2859, %v2392, -inf
        %v3491 = vrot.slane %v3490, 4
        %v3492 = vmax.f32 %v3490, %v3491
        %v3493 = vrot.slane %v3492, 2
        %v3494 = vmax.f32 %v3492, %v3493
        %v3495 = vrot.slane %v3494, 1
        %v3496 = vmax.f32 %v3494, %v3495
        %v3497 = vsel %vm2859, %v2648, -inf
        %v3498 = vrot.slane %v3497, 4
        %v3499 = vmax.f32 %v3497, %v3498
        %v3500 = vrot.slane %v3499, 2
        %v3501 = vmax.f32 %v3499, %v3500
        %v3502 = vrot.slane %v3501, 1
        %v3503 = vmax.f32 %v3501, %v3502
        %v3504 = vsel %vm2859, %v2393, -inf
        %v3505 = vrot.slane %v3504, 4
        %v3506 = vmax.f32 %v3504, %v3505
        %v3507 = vrot.slane %v3506, 2
        %v3508 = vmax.f32 %v3506, %v3507
        %v3509 = vrot.slane %v3508, 1
        %v3510 = vmax.f32 %v3508, %v3509
        %v3511 = vsel %vm2859, %v2649, -inf
        %v3512 = vrot.slane %v3511, 4
        %v3513 = vmax.f32 %v3511, %v3512
        %v3514 = vrot.slane %v3513, 2
        %v3515 = vmax.f32 %v3513, %v3514
        %v3516 = vrot.slane %v3515, 1
        %v3517 = vmax.f32 %v3515, %v3516
        %v3518 = vsel %vm2859, %v2394, -inf
        %v3519 = vrot.slane %v3518, 4
        %v3520 = vmax.f32 %v3518, %v3519
        %v3521 = vrot.slane %v3520, 2
        %v3522 = vmax.f32 %v3520, %v3521
        %v3523 = vrot.slane %v3522, 1
        %v3524 = vmax.f32 %v3522, %v3523
        %v3525 = vsel %vm2859, %v2650, -inf
        %v3526 = vrot.slane %v3525, 4
        %v3527 = vmax.f32 %v3525, %v3526
        %v3528 = vrot.slane %v3527, 2
        %v3529 = vmax.f32 %v3527, %v3528
        %v3530 = vrot.slane %v3529, 1
        %v3531 = vmax.f32 %v3529, %v3530
        %v3532 = vsel %vm2859, %v2395, -inf
        %v3533 = vrot.slane %v3532, 4
        %v3534 = vmax.f32 %v3532, %v3533
        %v3535 = vrot.slane %v3534, 2
        %v3536 = vmax.f32 %v3534, %v3535
        %v3537 = vrot.slane %v3536, 1
        %v3538 = vmax.f32 %v3536, %v3537
        %v3539 = vsel %vm2859, %v2651, -inf
        %v3540 = vrot.slane %v3539, 4
        %v3541 = vmax.f32 %v3539, %v3540
        %v3542 = vrot.slane %v3541, 2
        %v3543 = vmax.f32 %v3541, %v3542
        %v3544 = vrot.slane %v3543, 1
        %v3545 = vmax.f32 %v3543, %v3544
        %v3546 = vsel %vm2859, %v2396, -inf
        %v3547 = vrot.slane %v3546, 4
        %v3548 = vmax.f32 %v3546, %v3547
        %v3549 = vrot.slane %v3548, 2
        %v3550 = vmax.f32 %v3548, %v3549
        %v3551 = vrot.slane %v3550, 1
        %v3552 = vmax.f32 %v3550, %v3551
        %v3553 = vsel %vm2859, %v2652, -inf
        %v3554 = vrot.slane %v3553, 4
        %v3555 = vmax.f32 %v3553, %v3554
        %v3556 = vrot.slane %v3555, 2
        %v3557 = vmax.f32 %v3555, %v3556
        %v3558 = vrot.slane %v3557, 1
        %v3559 = vmax.f32 %v3557, %v3558
        %v3560 = vsel %vm2859, %v2397, -inf
        %v3561 = vrot.slane %v3560, 4
        %v3562 = vmax.f32 %v3560, %v3561
        %v3563 = vrot.slane %v3562, 2
        %v3564 = vmax.f32 %v3562, %v3563
        %v3565 = vrot.slane %v3564, 1
        %v3566 = vmax.f32 %v3564, %v3565
        %v3567 = vsel %vm2859, %v2653, -inf
        %v3568 = vrot.slane %v3567, 4
        %v3569 = vmax.f32 %v3567, %v3568
        %v3570 = vrot.slane %v3569, 2
        %v3571 = vmax.f32 %v3569, %v3570
        %v3572 = vrot.slane %v3571, 1
        %v3573 = vmax.f32 %v3571, %v3572
        %v3574 = vsel %vm2859, %v2398, -inf
        %v3575 = vrot.slane %v3574, 4
        %v3576 = vmax.f32 %v3574, %v3575
        %v3577 = vrot.slane %v3576, 2
        %v3578 = vmax.f32 %v3576, %v3577
        %v3579 = vrot.slane %v3578, 1
        %v3580 = vmax.f32 %v3578, %v3579
        %v3581 = vsel %vm2859, %v2654, -inf
        %v3582 = vrot.slane %v3581, 4
        %v3583 = vmax.f32 %v3581, %v3582
        %v3584 = vrot.slane %v3583, 2
        %v3585 = vmax.f32 %v3583, %v3584
        %v3586 = vrot.slane %v3585, 1
        %v3587 = vmax.f32 %v3585, %v3586
        %v3588 = vsel %vm2859, %v2399, -inf
        %v3589 = vrot.slane %v3588, 4
        %v3590 = vmax.f32 %v3588, %v3589
        %v3591 = vrot.slane %v3590, 2
        %v3592 = vmax.f32 %v3590, %v3591
        %v3593 = vrot.slane %v3592, 1
        %v3594 = vmax.f32 %v3592, %v3593
        %v3595 = vsel %vm2859, %v2655, -inf
        %v3596 = vrot.slane %v3595, 4
        %v3597 = vmax.f32 %v3595, %v3596
        %v3598 = vrot.slane %v3597, 2
        %v3599 = vmax.f32 %v3597, %v3598
        %v3600 = vrot.slane %v3599, 1
        %v3601 = vmax.f32 %v3599, %v3600
        %v3602 = vsel %vm2859, %v2400, -inf
        %v3603 = vrot.slane %v3602, 4
        %v3604 = vmax.f32 %v3602, %v3603
        %v3605 = vrot.slane %v3604, 2
        %v3606 = vmax.f32 %v3604, %v3605
        %v3607 = vrot.slane %v3606, 1
        %v3608 = vmax.f32 %v3606, %v3607
        %v3609 = vsel %vm2859, %v2656, -inf
        %v3610 = vrot.slane %v3609, 4
        %v3611 = vmax.f32 %v3609, %v3610
        %v3612 = vrot.slane %v3611, 2
        %v3613 = vmax.f32 %v3611, %v3612
        %v3614 = vrot.slane %v3613, 1
        %v3615 = vmax.f32 %v3613, %v3614
        %v3616 = vsel %vm2859, %v2401, -inf
        %v3617 = vrot.slane %v3616, 4
        %v3618 = vmax.f32 %v3616, %v3617
        %v3619 = vrot.slane %v3618, 2
        %v3620 = vmax.f32 %v3618, %v3619
        %v3621 = vrot.slane %v3620, 1
        %v3622 = vmax.f32 %v3620, %v3621
        %v3623 = vsel %vm2859, %v2657, -inf
        %v3624 = vrot.slane %v3623, 4
        %v3625 = vmax.f32 %v3623, %v3624
        %v3626 = vrot.slane %v3625, 2
        %v3627 = vmax.f32 %v3625, %v3626
        %v3628 = vrot.slane %v3627, 1
        %v3629 = vmax.f32 %v3627, %v3628
        %v3630 = vsel %vm2859, %v2402, -inf
        %v3631 = vrot.slane %v3630, 4
        %v3632 = vmax.f32 %v3630, %v3631
        %v3633 = vrot.slane %v3632, 2
        %v3634 = vmax.f32 %v3632, %v3633
        %v3635 = vrot.slane %v3634, 1
        %v3636 = vmax.f32 %v3634, %v3635
        %v3637 = vsel %vm2859, %v2658, -inf
        %v3638 = vrot.slane %v3637, 4
        %v3639 = vmax.f32 %v3637, %v3638
        %v3640 = vrot.slane %v3639, 2
        %v3641 = vmax.f32 %v3639, %v3640
        %v3642 = vrot.slane %v3641, 1
        %v3643 = vmax.f32 %v3641, %v3642
        %v3644 = vsel %vm2859, %v2403, -inf
        %v3645 = vrot.slane %v3644, 4
        %v3646 = vmax.f32 %v3644, %v3645
        %v3647 = vrot.slane %v3646, 2
        %v3648 = vmax.f32 %v3646, %v3647
        %v3649 = vrot.slane %v3648, 1
        %v3650 = vmax.f32 %v3648, %v3649
        %v3651 = vsel %vm2859, %v2659, -inf
        %v3652 = vrot.slane %v3651, 4
        %v3653 = vmax.f32 %v3651, %v3652
        %v3654 = vrot.slane %v3653, 2
        %v3655 = vmax.f32 %v3653, %v3654
        %v3656 = vrot.slane %v3655, 1
        %v3657 = vmax.f32 %v3655, %v3656
        %v3658 = vsel %vm2859, %v2404, -inf
        %v3659 = vrot.slane %v3658, 4
        %v3660 = vmax.f32 %v3658, %v3659
        %v3661 = vrot.slane %v3660, 2
        %v3662 = vmax.f32 %v3660, %v3661
        %v3663 = vrot.slane %v3662, 1
        %v3664 = vmax.f32 %v3662, %v3663
        %v3665 = vsel %vm2859, %v2660, -inf
        %v3666 = vrot.slane %v3665, 4
        %v3667 = vmax.f32 %v3665, %v3666
        %v3668 = vrot.slane %v3667, 2
        %v3669 = vmax.f32 %v3667, %v3668
        %v3670 = vrot.slane %v3669, 1
        %v3671 = vmax.f32 %v3669, %v3670
        %v3672 = vsel %vm2859, %v2405, -inf
        %v3673 = vrot.slane %v3672, 4
        %v3674 = vmax.f32 %v3672, %v3673
        %v3675 = vrot.slane %v3674, 2
        %v3676 = vmax.f32 %v3674, %v3675
        %v3677 = vrot.slane %v3676, 1
        %v3678 = vmax.f32 %v3676, %v3677
        %v3679 = vsel %vm2859, %v2661, -inf
        %v3680 = vrot.slane %v3679, 4
        %v3681 = vmax.f32 %v3679, %v3680
        %v3682 = vrot.slane %v3681, 2
        %v3683 = vmax.f32 %v3681, %v3682
        %v3684 = vrot.slane %v3683, 1
        %v3685 = vmax.f32 %v3683, %v3684
        %v3686 = vsel %vm2859, %v2406, -inf
        %v3687 = vrot.slane %v3686, 4
        %v3688 = vmax.f32 %v3686, %v3687
        %v3689 = vrot.slane %v3688, 2
        %v3690 = vmax.f32 %v3688, %v3689
        %v3691 = vrot.slane %v3690, 1
        %v3692 = vmax.f32 %v3690, %v3691
        %v3693 = vsel %vm2859, %v2662, -inf
        %v3694 = vrot.slane %v3693, 4
        %v3695 = vmax.f32 %v3693, %v3694
        %v3696 = vrot.slane %v3695, 2
        %v3697 = vmax.f32 %v3695, %v3696
        %v3698 = vrot.slane %v3697, 1
        %v3699 = vmax.f32 %v3697, %v3698
        %v3700 = vsel %vm2859, %v2407, -inf
        %v3701 = vrot.slane %v3700, 4
        %v3702 = vmax.f32 %v3700, %v3701
        %v3703 = vrot.slane %v3702, 2
        %v3704 = vmax.f32 %v3702, %v3703
        %v3705 = vrot.slane %v3704, 1
        %v3706 = vmax.f32 %v3704, %v3705
        %v3707 = vsel %vm2859, %v2663, -inf
        %v3708 = vrot.slane %v3707, 4
        %v3709 = vmax.f32 %v3707, %v3708
        %v3710 = vrot.slane %v3709, 2
        %v3711 = vmax.f32 %v3709, %v3710
        %v3712 = vrot.slane %v3711, 1
        %v3713 = vmax.f32 %v3711, %v3712
        %v3714 = vsel %vm2859, %v2408, -inf
        %v3715 = vrot.slane %v3714, 4
        %v3716 = vmax.f32 %v3714, %v3715
        %v3717 = vrot.slane %v3716, 2
        %v3718 = vmax.f32 %v3716, %v3717
        %v3719 = vrot.slane %v3718, 1
        %v3720 = vmax.f32 %v3718, %v3719
        %v3721 = vsel %vm2859, %v2664, -inf
        %v3722 = vrot.slane %v3721, 4
        %v3723 = vmax.f32 %v3721, %v3722
        %v3724 = vrot.slane %v3723, 2
        %v3725 = vmax.f32 %v3723, %v3724
        %v3726 = vrot.slane %v3725, 1
        %v3727 = vmax.f32 %v3725, %v3726
        %v3728 = vsel %vm2859, %v2409, -inf
        %v3729 = vrot.slane %v3728, 4
        %v3730 = vmax.f32 %v3728, %v3729
        %v3731 = vrot.slane %v3730, 2
        %v3732 = vmax.f32 %v3730, %v3731
        %v3733 = vrot.slane %v3732, 1
        %v3734 = vmax.f32 %v3732, %v3733
        %v3735 = vsel %vm2859, %v2665, -inf
        %v3736 = vrot.slane %v3735, 4
        %v3737 = vmax.f32 %v3735, %v3736
        %v3738 = vrot.slane %v3737, 2
        %v3739 = vmax.f32 %v3737, %v3738
        %v3740 = vrot.slane %v3739, 1
        %v3741 = vmax.f32 %v3739, %v3740
        %v3742 = vsel %vm2859, %v2410, -inf
        %v3743 = vrot.slane %v3742, 4
        %v3744 = vmax.f32 %v3742, %v3743
        %v3745 = vrot.slane %v3744, 2
        %v3746 = vmax.f32 %v3744, %v3745
        %v3747 = vrot.slane %v3746, 1
        %v3748 = vmax.f32 %v3746, %v3747
        %v3749 = vsel %vm2859, %v2666, -inf
        %v3750 = vrot.slane %v3749, 4
        %v3751 = vmax.f32 %v3749, %v3750
        %v3752 = vrot.slane %v3751, 2
        %v3753 = vmax.f32 %v3751, %v3752
        %v3754 = vrot.slane %v3753, 1
        %v3755 = vmax.f32 %v3753, %v3754
        %v3756 = vsel %vm2859, %v2411, -inf
        %v3757 = vrot.slane %v3756, 4
        %v3758 = vmax.f32 %v3756, %v3757
        %v3759 = vrot.slane %v3758, 2
        %v3760 = vmax.f32 %v3758, %v3759
        %v3761 = vrot.slane %v3760, 1
        %v3762 = vmax.f32 %v3760, %v3761
        %v3763 = vsel %vm2859, %v2667, -inf
        %v3764 = vrot.slane %v3763, 4
        %v3765 = vmax.f32 %v3763, %v3764
        %v3766 = vrot.slane %v3765, 2
        %v3767 = vmax.f32 %v3765, %v3766
        %v3768 = vrot.slane %v3767, 1
        %v3769 = vmax.f32 %v3767, %v3768
        %v3770 = vsel %vm2859, %v2412, -inf
        %v3771 = vrot.slane %v3770, 4
        %v3772 = vmax.f32 %v3770, %v3771
        %v3773 = vrot.slane %v3772, 2
        %v3774 = vmax.f32 %v3772, %v3773
        %v3775 = vrot.slane %v3774, 1
        %v3776 = vmax.f32 %v3774, %v3775
        %v3777 = vsel %vm2859, %v2668, -inf
        %v3778 = vrot.slane %v3777, 4
        %v3779 = vmax.f32 %v3777, %v3778
        %v3780 = vrot.slane %v3779, 2
        %v3781 = vmax.f32 %v3779, %v3780
        %v3782 = vrot.slane %v3781, 1
        %v3783 = vmax.f32 %v3781, %v3782
        %v3784 = vsel %vm2859, %v2413, -inf
        %v3785 = vrot.slane %v3784, 4
        %v3786 = vmax.f32 %v3784, %v3785
        %v3787 = vrot.slane %v3786, 2
        %v3788 = vmax.f32 %v3786, %v3787
        %v3789 = vrot.slane %v3788, 1
        %v3790 = vmax.f32 %v3788, %v3789
        %v3791 = vsel %vm2859, %v2669, -inf
        %v3792 = vrot.slane %v3791, 4
        %v3793 = vmax.f32 %v3791, %v3792
        %v3794 = vrot.slane %v3793, 2
        %v3795 = vmax.f32 %v3793, %v3794
        %v3796 = vrot.slane %v3795, 1
        %v3797 = vmax.f32 %v3795, %v3796
        %v3798 = vsel %vm2859, %v2414, -inf
        %v3799 = vrot.slane %v3798, 4
        %v3800 = vmax.f32 %v3798, %v3799
        %v3801 = vrot.slane %v3800, 2
        %v3802 = vmax.f32 %v3800, %v3801
        %v3803 = vrot.slane %v3802, 1
        %v3804 = vmax.f32 %v3802, %v3803
        %v3805 = vsel %vm2859, %v2670, -inf
        %v3806 = vrot.slane %v3805, 4
        %v3807 = vmax.f32 %v3805, %v3806
        %v3808 = vrot.slane %v3807, 2
        %v3809 = vmax.f32 %v3807, %v3808
        %v3810 = vrot.slane %v3809, 1
        %v3811 = vmax.f32 %v3809, %v3810
        %v3812 = vsel %vm2859, %v2415, -inf
        %v3813 = vrot.slane %v3812, 4
        %v3814 = vmax.f32 %v3812, %v3813
        %v3815 = vrot.slane %v3814, 2
        %v3816 = vmax.f32 %v3814, %v3815
        %v3817 = vrot.slane %v3816, 1
        %v3818 = vmax.f32 %v3816, %v3817
        %v3819 = vsel %vm2859, %v2671, -inf
        %v3820 = vrot.slane %v3819, 4
        %v3821 = vmax.f32 %v3819, %v3820
        %v3822 = vrot.slane %v3821, 2
        %v3823 = vmax.f32 %v3821, %v3822
        %v3824 = vrot.slane %v3823, 1
        %v3825 = vmax.f32 %v3823, %v3824
        %v3826 = vsel %vm2859, %v2416, -inf
        %v3827 = vrot.slane %v3826, 4
        %v3828 = vmax.f32 %v3826, %v3827
        %v3829 = vrot.slane %v3828, 2
        %v3830 = vmax.f32 %v3828, %v3829
        %v3831 = vrot.slane %v3830, 1
        %v3832 = vmax.f32 %v3830, %v3831
        %v3833 = vsel %vm2859, %v2672, -inf
        %v3834 = vrot.slane %v3833, 4
        %v3835 = vmax.f32 %v3833, %v3834
        %v3836 = vrot.slane %v3835, 2
        %v3837 = vmax.f32 %v3835, %v3836
        %v3838 = vrot.slane %v3837, 1
        %v3839 = vmax.f32 %v3837, %v3838
        %v3840 = vsel %vm2859, %v2417, -inf
        %v3841 = vrot.slane %v3840, 4
        %v3842 = vmax.f32 %v3840, %v3841
        %v3843 = vrot.slane %v3842, 2
        %v3844 = vmax.f32 %v3842, %v3843
        %v3845 = vrot.slane %v3844, 1
        %v3846 = vmax.f32 %v3844, %v3845
        %v3847 = vsel %vm2859, %v2673, -inf
        %v3848 = vrot.slane %v3847, 4
        %v3849 = vmax.f32 %v3847, %v3848
        %v3850 = vrot.slane %v3849, 2
        %v3851 = vmax.f32 %v3849, %v3850
        %v3852 = vrot.slane %v3851, 1
        %v3853 = vmax.f32 %v3851, %v3852
        %v3854 = vsel %vm2859, %v2418, -inf
        %v3855 = vrot.slane %v3854, 4
        %v3856 = vmax.f32 %v3854, %v3855
        %v3857 = vrot.slane %v3856, 2
        %v3858 = vmax.f32 %v3856, %v3857
        %v3859 = vrot.slane %v3858, 1
        %v3860 = vmax.f32 %v3858, %v3859
        %v3861 = vsel %vm2859, %v2674, -inf
        %v3862 = vrot.slane %v3861, 4
        %v3863 = vmax.f32 %v3861, %v3862
        %v3864 = vrot.slane %v3863, 2
        %v3865 = vmax.f32 %v3863, %v3864
        %v3866 = vrot.slane %v3865, 1
        %v3867 = vmax.f32 %v3865, %v3866
        %v3868 = vsel %vm2859, %v2419, -inf
        %v3869 = vrot.slane %v3868, 4
        %v3870 = vmax.f32 %v3868, %v3869
        %v3871 = vrot.slane %v3870, 2
        %v3872 = vmax.f32 %v3870, %v3871
        %v3873 = vrot.slane %v3872, 1
        %v3874 = vmax.f32 %v3872, %v3873
        %v3875 = vsel %vm2859, %v2675, -inf
        %v3876 = vrot.slane %v3875, 4
        %v3877 = vmax.f32 %v3875, %v3876
        %v3878 = vrot.slane %v3877, 2
        %v3879 = vmax.f32 %v3877, %v3878
        %v3880 = vrot.slane %v3879, 1
        %v3881 = vmax.f32 %v3879, %v3880
        %v3882 = vsel %vm2859, %v2420, -inf
        %v3883 = vrot.slane %v3882, 4
        %v3884 = vmax.f32 %v3882, %v3883
        %v3885 = vrot.slane %v3884, 2
        %v3886 = vmax.f32 %v3884, %v3885
        %v3887 = vrot.slane %v3886, 1
        %v3888 = vmax.f32 %v3886, %v3887
        %v3889 = vsel %vm2859, %v2676, -inf
        %v3890 = vrot.slane %v3889, 4
        %v3891 = vmax.f32 %v3889, %v3890
        %v3892 = vrot.slane %v3891, 2
        %v3893 = vmax.f32 %v3891, %v3892
        %v3894 = vrot.slane %v3893, 1
        %v3895 = vmax.f32 %v3893, %v3894
        %v3896 = vsel %vm2859, %v2421, -inf
        %v3897 = vrot.slane %v3896, 4
        %v3898 = vmax.f32 %v3896, %v3897
        %v3899 = vrot.slane %v3898, 2
        %v3900 = vmax.f32 %v3898, %v3899
        %v3901 = vrot.slane %v3900, 1
        %v3902 = vmax.f32 %v3900, %v3901
        %v3903 = vsel %vm2859, %v2677, -inf
        %v3904 = vrot.slane %v3903, 4
        %v3905 = vmax.f32 %v3903, %v3904
        %v3906 = vrot.slane %v3905, 2
        %v3907 = vmax.f32 %v3905, %v3906
        %v3908 = vrot.slane %v3907, 1
        %v3909 = vmax.f32 %v3907, %v3908
        %v3910 = vsel %vm2859, %v2422, -inf
        %v3911 = vrot.slane %v3910, 4
        %v3912 = vmax.f32 %v3910, %v3911
        %v3913 = vrot.slane %v3912, 2
        %v3914 = vmax.f32 %v3912, %v3913
        %v3915 = vrot.slane %v3914, 1
        %v3916 = vmax.f32 %v3914, %v3915
        %v3917 = vsel %vm2859, %v2678, -inf
        %v3918 = vrot.slane %v3917, 4
        %v3919 = vmax.f32 %v3917, %v3918
        %v3920 = vrot.slane %v3919, 2
        %v3921 = vmax.f32 %v3919, %v3920
        %v3922 = vrot.slane %v3921, 1
        %v3923 = vmax.f32 %v3921, %v3922
        %v3924 = vsel %vm2859, %v2423, -inf
        %v3925 = vrot.slane %v3924, 4
        %v3926 = vmax.f32 %v3924, %v3925
        %v3927 = vrot.slane %v3926, 2
        %v3928 = vmax.f32 %v3926, %v3927
        %v3929 = vrot.slane %v3928, 1
        %v3930 = vmax.f32 %v3928, %v3929
        %v3931 = vsel %vm2859, %v2679, -inf
        %v3932 = vrot.slane %v3931, 4
        %v3933 = vmax.f32 %v3931, %v3932
        %v3934 = vrot.slane %v3933, 2
        %v3935 = vmax.f32 %v3933, %v3934
        %v3936 = vrot.slane %v3935, 1
        %v3937 = vmax.f32 %v3935, %v3936
        %v3938 = vsel %vm2859, %v2424, -inf
        %v3939 = vrot.slane %v3938, 4
        %v3940 = vmax.f32 %v3938, %v3939
        %v3941 = vrot.slane %v3940, 2
        %v3942 = vmax.f32 %v3940, %v3941
        %v3943 = vrot.slane %v3942, 1
        %v3944 = vmax.f32 %v3942, %v3943
        %v3945 = vsel %vm2859, %v2680, -inf
        %v3946 = vrot.slane %v3945, 4
        %v3947 = vmax.f32 %v3945, %v3946
        %v3948 = vrot.slane %v3947, 2
        %v3949 = vmax.f32 %v3947, %v3948
        %v3950 = vrot.slane %v3949, 1
        %v3951 = vmax.f32 %v3949, %v3950
        %v3952 = vsel %vm2859, %v2425, -inf
        %v3953 = vrot.slane %v3952, 4
        %v3954 = vmax.f32 %v3952, %v3953
        %v3955 = vrot.slane %v3954, 2
        %v3956 = vmax.f32 %v3954, %v3955
        %v3957 = vrot.slane %v3956, 1
        %v3958 = vmax.f32 %v3956, %v3957
        %v3959 = vsel %vm2859, %v2681, -inf
        %v3960 = vrot.slane %v3959, 4
        %v3961 = vmax.f32 %v3959, %v3960
        %v3962 = vrot.slane %v3961, 2
        %v3963 = vmax.f32 %v3961, %v3962
        %v3964 = vrot.slane %v3963, 1
        %v3965 = vmax.f32 %v3963, %v3964
        %v3966 = vsel %vm2859, %v2426, -inf
        %v3967 = vrot.slane %v3966, 4
        %v3968 = vmax.f32 %v3966, %v3967
        %v3969 = vrot.slane %v3968, 2
        %v3970 = vmax.f32 %v3968, %v3969
        %v3971 = vrot.slane %v3970, 1
        %v3972 = vmax.f32 %v3970, %v3971
        %v3973 = vsel %vm2859, %v2682, -inf
        %v3974 = vrot.slane %v3973, 4
        %v3975 = vmax.f32 %v3973, %v3974
        %v3976 = vrot.slane %v3975, 2
        %v3977 = vmax.f32 %v3975, %v3976
        %v3978 = vrot.slane %v3977, 1
        %v3979 = vmax.f32 %v3977, %v3978
        %v3980 = vsel %vm2859, %v2427, -inf
        %v3981 = vrot.slane %v3980, 4
        %v3982 = vmax.f32 %v3980, %v3981
        %v3983 = vrot.slane %v3982, 2
        %v3984 = vmax.f32 %v3982, %v3983
        %v3985 = vrot.slane %v3984, 1
        %v3986 = vmax.f32 %v3984, %v3985
        %v3987 = vsel %vm2859, %v2683, -inf
        %v3988 = vrot.slane %v3987, 4
        %v3989 = vmax.f32 %v3987, %v3988
        %v3990 = vrot.slane %v3989, 2
        %v3991 = vmax.f32 %v3989, %v3990
        %v3992 = vrot.slane %v3991, 1
        %v3993 = vmax.f32 %v3991, %v3992
        %v3994 = vsel %vm2859, %v2428, -inf
        %v3995 = vrot.slane %v3994, 4
        %v3996 = vmax.f32 %v3994, %v3995
        %v3997 = vrot.slane %v3996, 2
        %v3998 = vmax.f32 %v3996, %v3997
        %v3999 = vrot.slane %v3998, 1
        %v4000 = vmax.f32 %v3998, %v3999
        %v4001 = vsel %vm2859, %v2684, -inf
        %v4002 = vrot.slane %v4001, 4
        %v4003 = vmax.f32 %v4001, %v4002
        %v4004 = vrot.slane %v4003, 2
        %v4005 = vmax.f32 %v4003, %v4004
        %v4006 = vrot.slane %v4005, 1
        %v4007 = vmax.f32 %v4005, %v4006
        %v4008 = vsel %vm2859, %v2429, -inf
        %v4009 = vrot.slane %v4008, 4
        %v4010 = vmax.f32 %v4008, %v4009
        %v4011 = vrot.slane %v4010, 2
        %v4012 = vmax.f32 %v4010, %v4011
        %v4013 = vrot.slane %v4012, 1
        %v4014 = vmax.f32 %v4012, %v4013
        %v4015 = vsel %vm2859, %v2685, -inf
        %v4016 = vrot.slane %v4015, 4
        %v4017 = vmax.f32 %v4015, %v4016
        %v4018 = vrot.slane %v4017, 2
        %v4019 = vmax.f32 %v4017, %v4018
        %v4020 = vrot.slane %v4019, 1
        %v4021 = vmax.f32 %v4019, %v4020
        %v4022 = vsel %vm2859, %v2430, -inf
        %v4023 = vrot.slane %v4022, 4
        %v4024 = vmax.f32 %v4022, %v4023
        %v4025 = vrot.slane %v4024, 2
        %v4026 = vmax.f32 %v4024, %v4025
        %v4027 = vrot.slane %v4026, 1
        %v4028 = vmax.f32 %v4026, %v4027
        %v4029 = vsel %vm2859, %v2686, -inf
        %v4030 = vrot.slane %v4029, 4
        %v4031 = vmax.f32 %v4029, %v4030
        %v4032 = vrot.slane %v4031, 2
        %v4033 = vmax.f32 %v4031, %v4032
        %v4034 = vrot.slane %v4033, 1
        %v4035 = vmax.f32 %v4033, %v4034
        %v4036 = vsel %vm2859, %v2431, -inf
        %v4037 = vrot.slane %v4036, 4
        %v4038 = vmax.f32 %v4036, %v4037
        %v4039 = vrot.slane %v4038, 2
        %v4040 = vmax.f32 %v4038, %v4039
        %v4041 = vrot.slane %v4040, 1
        %v4042 = vmax.f32 %v4040, %v4041
        %v4043 = vsel %vm2859, %v2687, -inf
        %v4044 = vrot.slane %v4043, 4
        %v4045 = vmax.f32 %v4043, %v4044
        %v4046 = vrot.slane %v4045, 2
        %v4047 = vmax.f32 %v4045, %v4046
        %v4048 = vrot.slane %v4047, 1
        %v4049 = vmax.f32 %v4047, %v4048
        %v4050 = vsel %vm2859, %v2432, -inf
        %v4051 = vrot.slane %v4050, 4
        %v4052 = vmax.f32 %v4050, %v4051
        %v4053 = vrot.slane %v4052, 2
        %v4054 = vmax.f32 %v4052, %v4053
        %v4055 = vrot.slane %v4054, 1
        %v4056 = vmax.f32 %v4054, %v4055
        %v4057 = vsel %vm2859, %v2688, -inf
        %v4058 = vrot.slane %v4057, 4
        %v4059 = vmax.f32 %v4057, %v4058
        %v4060 = vrot.slane %v4059, 2
        %v4061 = vmax.f32 %v4059, %v4060
        %v4062 = vrot.slane %v4061, 1
        %v4063 = vmax.f32 %v4061, %v4062
        %v4064 = vsel %vm2859, %v2433, -inf
        %v4065 = vrot.slane %v4064, 4
        %v4066 = vmax.f32 %v4064, %v4065
        %v4067 = vrot.slane %v4066, 2
        %v4068 = vmax.f32 %v4066, %v4067
        %v4069 = vrot.slane %v4068, 1
        %v4070 = vmax.f32 %v4068, %v4069
        %v4071 = vsel %vm2859, %v2689, -inf
        %v4072 = vrot.slane %v4071, 4
        %v4073 = vmax.f32 %v4071, %v4072
        %v4074 = vrot.slane %v4073, 2
        %v4075 = vmax.f32 %v4073, %v4074
        %v4076 = vrot.slane %v4075, 1
        %v4077 = vmax.f32 %v4075, %v4076
        %v4078 = vsel %vm2859, %v2434, -inf
        %v4079 = vrot.slane %v4078, 4
        %v4080 = vmax.f32 %v4078, %v4079
        %v4081 = vrot.slane %v4080, 2
        %v4082 = vmax.f32 %v4080, %v4081
        %v4083 = vrot.slane %v4082, 1
        %v4084 = vmax.f32 %v4082, %v4083
        %v4085 = vsel %vm2859, %v2690, -inf
        %v4086 = vrot.slane %v4085, 4
        %v4087 = vmax.f32 %v4085, %v4086
        %v4088 = vrot.slane %v4087, 2
        %v4089 = vmax.f32 %v4087, %v4088
        %v4090 = vrot.slane %v4089, 1
        %v4091 = vmax.f32 %v4089, %v4090
        %v4092 = vsel %vm2859, %v2435, -inf
        %v4093 = vrot.slane %v4092, 4
        %v4094 = vmax.f32 %v4092, %v4093
        %v4095 = vrot.slane %v4094, 2
        %v4096 = vmax.f32 %v4094, %v4095
        %v4097 = vrot.slane %v4096, 1
        %v4098 = vmax.f32 %v4096, %v4097
        %v4099 = vsel %vm2859, %v2691, -inf
        %v4100 = vrot.slane %v4099, 4
        %v4101 = vmax.f32 %v4099, %v4100
        %v4102 = vrot.slane %v4101, 2
        %v4103 = vmax.f32 %v4101, %v4102
        %v4104 = vrot.slane %v4103, 1
        %v4105 = vmax.f32 %v4103, %v4104
        %v4106 = vsel %vm2859, %v2436, -inf
        %v4107 = vrot.slane %v4106, 4
        %v4108 = vmax.f32 %v4106, %v4107
        %v4109 = vrot.slane %v4108, 2
        %v4110 = vmax.f32 %v4108, %v4109
        %v4111 = vrot.slane %v4110, 1
        %v4112 = vmax.f32 %v4110, %v4111
        %v4113 = vsel %vm2859, %v2692, -inf
        %v4114 = vrot.slane %v4113, 4
        %v4115 = vmax.f32 %v4113, %v4114
        %v4116 = vrot.slane %v4115, 2
        %v4117 = vmax.f32 %v4115, %v4116
        %v4118 = vrot.slane %v4117, 1
        %v4119 = vmax.f32 %v4117, %v4118
        %v4120 = vsel %vm2859, %v2437, -inf
        %v4121 = vrot.slane %v4120, 4
        %v4122 = vmax.f32 %v4120, %v4121
        %v4123 = vrot.slane %v4122, 2
        %v4124 = vmax.f32 %v4122, %v4123
        %v4125 = vrot.slane %v4124, 1
        %v4126 = vmax.f32 %v4124, %v4125
        %v4127 = vsel %vm2859, %v2693, -inf
        %v4128 = vrot.slane %v4127, 4
        %v4129 = vmax.f32 %v4127, %v4128
        %v4130 = vrot.slane %v4129, 2
        %v4131 = vmax.f32 %v4129, %v4130
        %v4132 = vrot.slane %v4131, 1
        %v4133 = vmax.f32 %v4131, %v4132
        %v4134 = vsel %vm2859, %v2438, -inf
        %v4135 = vrot.slane %v4134, 4
        %v4136 = vmax.f32 %v4134, %v4135
        %v4137 = vrot.slane %v4136, 2
        %v4138 = vmax.f32 %v4136, %v4137
        %v4139 = vrot.slane %v4138, 1
        %v4140 = vmax.f32 %v4138, %v4139
        %v4141 = vsel %vm2859, %v2694, -inf
        %v4142 = vrot.slane %v4141, 4
        %v4143 = vmax.f32 %v4141, %v4142
        %v4144 = vrot.slane %v4143, 2
        %v4145 = vmax.f32 %v4143, %v4144
        %v4146 = vrot.slane %v4145, 1
        %v4147 = vmax.f32 %v4145, %v4146
        %v4148 = vsel %vm2859, %v2439, -inf
        %v4149 = vrot.slane %v4148, 4
        %v4150 = vmax.f32 %v4148, %v4149
        %v4151 = vrot.slane %v4150, 2
        %v4152 = vmax.f32 %v4150, %v4151
        %v4153 = vrot.slane %v4152, 1
        %v4154 = vmax.f32 %v4152, %v4153
        %v4155 = vsel %vm2859, %v2695, -inf
        %v4156 = vrot.slane %v4155, 4
        %v4157 = vmax.f32 %v4155, %v4156
        %v4158 = vrot.slane %v4157, 2
        %v4159 = vmax.f32 %v4157, %v4158
        %v4160 = vrot.slane %v4159, 1
        %v4161 = vmax.f32 %v4159, %v4160
        %v4162 = vsel %vm2859, %v2440, -inf
        %v4163 = vrot.slane %v4162, 4
        %v4164 = vmax.f32 %v4162, %v4163
        %v4165 = vrot.slane %v4164, 2
        %v4166 = vmax.f32 %v4164, %v4165
        %v4167 = vrot.slane %v4166, 1
        %v4168 = vmax.f32 %v4166, %v4167
        %v4169 = vsel %vm2859, %v2696, -inf
        %v4170 = vrot.slane %v4169, 4
        %v4171 = vmax.f32 %v4169, %v4170
        %v4172 = vrot.slane %v4171, 2
        %v4173 = vmax.f32 %v4171, %v4172
        %v4174 = vrot.slane %v4173, 1
        %v4175 = vmax.f32 %v4173, %v4174
        %v4176 = vsel %vm2859, %v2441, -inf
        %v4177 = vrot.slane %v4176, 4
        %v4178 = vmax.f32 %v4176, %v4177
        %v4179 = vrot.slane %v4178, 2
        %v4180 = vmax.f32 %v4178, %v4179
        %v4181 = vrot.slane %v4180, 1
        %v4182 = vmax.f32 %v4180, %v4181
        %v4183 = vsel %vm2859, %v2697, -inf
        %v4184 = vrot.slane %v4183, 4
        %v4185 = vmax.f32 %v4183, %v4184
        %v4186 = vrot.slane %v4185, 2
        %v4187 = vmax.f32 %v4185, %v4186
        %v4188 = vrot.slane %v4187, 1
        %v4189 = vmax.f32 %v4187, %v4188
        %v4190 = vsel %vm2859, %v2442, -inf
        %v4191 = vrot.slane %v4190, 4
        %v4192 = vmax.f32 %v4190, %v4191
        %v4193 = vrot.slane %v4192, 2
        %v4194 = vmax.f32 %v4192, %v4193
        %v4195 = vrot.slane %v4194, 1
        %v4196 = vmax.f32 %v4194, %v4195
        %v4197 = vsel %vm2859, %v2698, -inf
        %v4198 = vrot.slane %v4197, 4
        %v4199 = vmax.f32 %v4197, %v4198
        %v4200 = vrot.slane %v4199, 2
        %v4201 = vmax.f32 %v4199, %v4200
        %v4202 = vrot.slane %v4201, 1
        %v4203 = vmax.f32 %v4201, %v4202
        %v4204 = vsel %vm2859, %v2443, -inf
        %v4205 = vrot.slane %v4204, 4
        %v4206 = vmax.f32 %v4204, %v4205
        %v4207 = vrot.slane %v4206, 2
        %v4208 = vmax.f32 %v4206, %v4207
        %v4209 = vrot.slane %v4208, 1
        %v4210 = vmax.f32 %v4208, %v4209
        %v4211 = vsel %vm2859, %v2699, -inf
        %v4212 = vrot.slane %v4211, 4
        %v4213 = vmax.f32 %v4211, %v4212
        %v4214 = vrot.slane %v4213, 2
        %v4215 = vmax.f32 %v4213, %v4214
        %v4216 = vrot.slane %v4215, 1
        %v4217 = vmax.f32 %v4215, %v4216
        %v4218 = vsel %vm2859, %v2444, -inf
        %v4219 = vrot.slane %v4218, 4
        %v4220 = vmax.f32 %v4218, %v4219
        %v4221 = vrot.slane %v4220, 2
        %v4222 = vmax.f32 %v4220, %v4221
        %v4223 = vrot.slane %v4222, 1
        %v4224 = vmax.f32 %v4222, %v4223
        %v4225 = vsel %vm2859, %v2700, -inf
        %v4226 = vrot.slane %v4225, 4
        %v4227 = vmax.f32 %v4225, %v4226
        %v4228 = vrot.slane %v4227, 2
        %v4229 = vmax.f32 %v4227, %v4228
        %v4230 = vrot.slane %v4229, 1
        %v4231 = vmax.f32 %v4229, %v4230
        %v4232 = vsel %vm2859, %v2445, -inf
        %v4233 = vrot.slane %v4232, 4
        %v4234 = vmax.f32 %v4232, %v4233
        %v4235 = vrot.slane %v4234, 2
        %v4236 = vmax.f32 %v4234, %v4235
        %v4237 = vrot.slane %v4236, 1
        %v4238 = vmax.f32 %v4236, %v4237
        %v4239 = vsel %vm2859, %v2701, -inf
        %v4240 = vrot.slane %v4239, 4
        %v4241 = vmax.f32 %v4239, %v4240
        %v4242 = vrot.slane %v4241, 2
        %v4243 = vmax.f32 %v4241, %v4242
        %v4244 = vrot.slane %v4243, 1
        %v4245 = vmax.f32 %v4243, %v4244
        %v4246 = vsel %vm2859, %v2446, -inf
        %v4247 = vrot.slane %v4246, 4
        %v4248 = vmax.f32 %v4246, %v4247
        %v4249 = vrot.slane %v4248, 2
        %v4250 = vmax.f32 %v4248, %v4249
        %v4251 = vrot.slane %v4250, 1
        %v4252 = vmax.f32 %v4250, %v4251
        %v4253 = vsel %vm2859, %v2702, -inf
        %v4254 = vrot.slane %v4253, 4
        %v4255 = vmax.f32 %v4253, %v4254
        %v4256 = vrot.slane %v4255, 2
        %v4257 = vmax.f32 %v4255, %v4256
        %v4258 = vrot.slane %v4257, 1
        %v4259 = vmax.f32 %v4257, %v4258
        %v4260 = vsel %vm2859, %v2447, -inf
        %v4261 = vrot.slane %v4260, 4
        %v4262 = vmax.f32 %v4260, %v4261
        %v4263 = vrot.slane %v4262, 2
        %v4264 = vmax.f32 %v4262, %v4263
        %v4265 = vrot.slane %v4264, 1
        %v4266 = vmax.f32 %v4264, %v4265
        %v4267 = vsel %vm2859, %v2703, -inf
        %v4268 = vrot.slane %v4267, 4
        %v4269 = vmax.f32 %v4267, %v4268
        %v4270 = vrot.slane %v4269, 2
        %v4271 = vmax.f32 %v4269, %v4270
        %v4272 = vrot.slane %v4271, 1
        %v4273 = vmax.f32 %v4271, %v4272
        %v4274 = vsel %vm2859, %v2448, -inf
        %v4275 = vrot.slane %v4274, 4
        %v4276 = vmax.f32 %v4274, %v4275
        %v4277 = vrot.slane %v4276, 2
        %v4278 = vmax.f32 %v4276, %v4277
        %v4279 = vrot.slane %v4278, 1
        %v4280 = vmax.f32 %v4278, %v4279
        %v4281 = vsel %vm2859, %v2704, -inf
        %v4282 = vrot.slane %v4281, 4
        %v4283 = vmax.f32 %v4281, %v4282
        %v4284 = vrot.slane %v4283, 2
        %v4285 = vmax.f32 %v4283, %v4284
        %v4286 = vrot.slane %v4285, 1
        %v4287 = vmax.f32 %v4285, %v4286
        %v4288 = vsel %vm2859, %v2449, -inf
        %v4289 = vrot.slane %v4288, 4
        %v4290 = vmax.f32 %v4288, %v4289
        %v4291 = vrot.slane %v4290, 2
        %v4292 = vmax.f32 %v4290, %v4291
        %v4293 = vrot.slane %v4292, 1
        %v4294 = vmax.f32 %v4292, %v4293
        %v4295 = vsel %vm2859, %v2705, -inf
        %v4296 = vrot.slane %v4295, 4
        %v4297 = vmax.f32 %v4295, %v4296
        %v4298 = vrot.slane %v4297, 2
        %v4299 = vmax.f32 %v4297, %v4298
        %v4300 = vrot.slane %v4299, 1
        %v4301 = vmax.f32 %v4299, %v4300
        %v4302 = vsel %vm2859, %v2450, -inf
        %v4303 = vrot.slane %v4302, 4
        %v4304 = vmax.f32 %v4302, %v4303
        %v4305 = vrot.slane %v4304, 2
        %v4306 = vmax.f32 %v4304, %v4305
        %v4307 = vrot.slane %v4306, 1
        %v4308 = vmax.f32 %v4306, %v4307
        %v4309 = vsel %vm2859, %v2706, -inf
        %v4310 = vrot.slane %v4309, 4
        %v4311 = vmax.f32 %v4309, %v4310
        %v4312 = vrot.slane %v4311, 2
        %v4313 = vmax.f32 %v4311, %v4312
        %v4314 = vrot.slane %v4313, 1
        %v4315 = vmax.f32 %v4313, %v4314
        %v4316 = vsel %vm2859, %v2451, -inf
        %v4317 = vrot.slane %v4316, 4
        %v4318 = vmax.f32 %v4316, %v4317
        %v4319 = vrot.slane %v4318, 2
        %v4320 = vmax.f32 %v4318, %v4319
        %v4321 = vrot.slane %v4320, 1
        %v4322 = vmax.f32 %v4320, %v4321
        %v4323 = vsel %vm2859, %v2707, -inf
        %v4324 = vrot.slane %v4323, 4
        %v4325 = vmax.f32 %v4323, %v4324
        %v4326 = vrot.slane %v4325, 2
        %v4327 = vmax.f32 %v4325, %v4326
        %v4328 = vrot.slane %v4327, 1
        %v4329 = vmax.f32 %v4327, %v4328
        %v4330 = vsel %vm2859, %v2452, -inf
        %v4331 = vrot.slane %v4330, 4
        %v4332 = vmax.f32 %v4330, %v4331
        %v4333 = vrot.slane %v4332, 2
        %v4334 = vmax.f32 %v4332, %v4333
        %v4335 = vrot.slane %v4334, 1
        %v4336 = vmax.f32 %v4334, %v4335
        %v4337 = vsel %vm2859, %v2708, -inf
        %v4338 = vrot.slane %v4337, 4
        %v4339 = vmax.f32 %v4337, %v4338
        %v4340 = vrot.slane %v4339, 2
        %v4341 = vmax.f32 %v4339, %v4340
        %v4342 = vrot.slane %v4341, 1
        %v4343 = vmax.f32 %v4341, %v4342
        %v4344 = vsel %vm2859, %v2453, -inf
        %v4345 = vrot.slane %v4344, 4
        %v4346 = vmax.f32 %v4344, %v4345
        %v4347 = vrot.slane %v4346, 2
        %v4348 = vmax.f32 %v4346, %v4347
        %v4349 = vrot.slane %v4348, 1
        %v4350 = vmax.f32 %v4348, %v4349
        %v4351 = vsel %vm2859, %v2709, -inf
        %v4352 = vrot.slane %v4351, 4
        %v4353 = vmax.f32 %v4351, %v4352
        %v4354 = vrot.slane %v4353, 2
        %v4355 = vmax.f32 %v4353, %v4354
        %v4356 = vrot.slane %v4355, 1
        %v4357 = vmax.f32 %v4355, %v4356
        %v4358 = vsel %vm2859, %v2454, -inf
        %v4359 = vrot.slane %v4358, 4
        %v4360 = vmax.f32 %v4358, %v4359
        %v4361 = vrot.slane %v4360, 2
        %v4362 = vmax.f32 %v4360, %v4361
        %v4363 = vrot.slane %v4362, 1
        %v4364 = vmax.f32 %v4362, %v4363
        %v4365 = vsel %vm2859, %v2710, -inf
        %v4366 = vrot.slane %v4365, 4
        %v4367 = vmax.f32 %v4365, %v4366
        %v4368 = vrot.slane %v4367, 2
        %v4369 = vmax.f32 %v4367, %v4368
        %v4370 = vrot.slane %v4369, 1
        %v4371 = vmax.f32 %v4369, %v4370
        %v4372 = vsel %vm2859, %v2455, -inf
        %v4373 = vrot.slane %v4372, 4
        %v4374 = vmax.f32 %v4372, %v4373
        %v4375 = vrot.slane %v4374, 2
        %v4376 = vmax.f32 %v4374, %v4375
        %v4377 = vrot.slane %v4376, 1
        %v4378 = vmax.f32 %v4376, %v4377
        %v4379 = vsel %vm2859, %v2711, -inf
        %v4380 = vrot.slane %v4379, 4
        %v4381 = vmax.f32 %v4379, %v4380
        %v4382 = vrot.slane %v4381, 2
        %v4383 = vmax.f32 %v4381, %v4382
        %v4384 = vrot.slane %v4383, 1
        %v4385 = vmax.f32 %v4383, %v4384
        %v4386 = vsel %vm2859, %v2456, -inf
        %v4387 = vrot.slane %v4386, 4
        %v4388 = vmax.f32 %v4386, %v4387
        %v4389 = vrot.slane %v4388, 2
        %v4390 = vmax.f32 %v4388, %v4389
        %v4391 = vrot.slane %v4390, 1
        %v4392 = vmax.f32 %v4390, %v4391
        %v4393 = vsel %vm2859, %v2712, -inf
        %v4394 = vrot.slane %v4393, 4
        %v4395 = vmax.f32 %v4393, %v4394
        %v4396 = vrot.slane %v4395, 2
        %v4397 = vmax.f32 %v4395, %v4396
        %v4398 = vrot.slane %v4397, 1
        %v4399 = vmax.f32 %v4397, %v4398
        %v4400 = vsel %vm2859, %v2457, -inf
        %v4401 = vrot.slane %v4400, 4
        %v4402 = vmax.f32 %v4400, %v4401
        %v4403 = vrot.slane %v4402, 2
        %v4404 = vmax.f32 %v4402, %v4403
        %v4405 = vrot.slane %v4404, 1
        %v4406 = vmax.f32 %v4404, %v4405
        %v4407 = vsel %vm2859, %v2713, -inf
        %v4408 = vrot.slane %v4407, 4
        %v4409 = vmax.f32 %v4407, %v4408
        %v4410 = vrot.slane %v4409, 2
        %v4411 = vmax.f32 %v4409, %v4410
        %v4412 = vrot.slane %v4411, 1
        %v4413 = vmax.f32 %v4411, %v4412
        %v4414 = vsel %vm2859, %v2458, -inf
        %v4415 = vrot.slane %v4414, 4
        %v4416 = vmax.f32 %v4414, %v4415
        %v4417 = vrot.slane %v4416, 2
        %v4418 = vmax.f32 %v4416, %v4417
        %v4419 = vrot.slane %v4418, 1
        %v4420 = vmax.f32 %v4418, %v4419
        %v4421 = vsel %vm2859, %v2714, -inf
        %v4422 = vrot.slane %v4421, 4
        %v4423 = vmax.f32 %v4421, %v4422
        %v4424 = vrot.slane %v4423, 2
        %v4425 = vmax.f32 %v4423, %v4424
        %v4426 = vrot.slane %v4425, 1
        %v4427 = vmax.f32 %v4425, %v4426
        %v4428 = vsel %vm2859, %v2459, -inf
        %v4429 = vrot.slane %v4428, 4
        %v4430 = vmax.f32 %v4428, %v4429
        %v4431 = vrot.slane %v4430, 2
        %v4432 = vmax.f32 %v4430, %v4431
        %v4433 = vrot.slane %v4432, 1
        %v4434 = vmax.f32 %v4432, %v4433
        %v4435 = vsel %vm2859, %v2715, -inf
        %v4436 = vrot.slane %v4435, 4
        %v4437 = vmax.f32 %v4435, %v4436
        %v4438 = vrot.slane %v4437, 2
        %v4439 = vmax.f32 %v4437, %v4438
        %v4440 = vrot.slane %v4439, 1
        %v4441 = vmax.f32 %v4439, %v4440
        %v4442 = vsel %vm2859, %v2460, -inf
        %v4443 = vrot.slane %v4442, 4
        %v4444 = vmax.f32 %v4442, %v4443
        %v4445 = vrot.slane %v4444, 2
        %v4446 = vmax.f32 %v4444, %v4445
        %v4447 = vrot.slane %v4446, 1
        %v4448 = vmax.f32 %v4446, %v4447
        %v4449 = vsel %vm2859, %v2716, -inf
        %v4450 = vrot.slane %v4449, 4
        %v4451 = vmax.f32 %v4449, %v4450
        %v4452 = vrot.slane %v4451, 2
        %v4453 = vmax.f32 %v4451, %v4452
        %v4454 = vrot.slane %v4453, 1
        %v4455 = vmax.f32 %v4453, %v4454
        %v4456 = vsel %vm2859, %v2461, -inf
        %v4457 = vrot.slane %v4456, 4
        %v4458 = vmax.f32 %v4456, %v4457
        %v4459 = vrot.slane %v4458, 2
        %v4460 = vmax.f32 %v4458, %v4459
        %v4461 = vrot.slane %v4460, 1
        %v4462 = vmax.f32 %v4460, %v4461
        %v4463 = vsel %vm2859, %v2717, -inf
        %v4464 = vrot.slane %v4463, 4
        %v4465 = vmax.f32 %v4463, %v4464
        %v4466 = vrot.slane %v4465, 2
        %v4467 = vmax.f32 %v4465, %v4466
        %v4468 = vrot.slane %v4467, 1
        %v4469 = vmax.f32 %v4467, %v4468
        %v4470 = vsel %vm2859, %v2462, -inf
        %v4471 = vrot.slane %v4470, 4
        %v4472 = vmax.f32 %v4470, %v4471
        %v4473 = vrot.slane %v4472, 2
        %v4474 = vmax.f32 %v4472, %v4473
        %v4475 = vrot.slane %v4474, 1
        %v4476 = vmax.f32 %v4474, %v4475
        %v4477 = vsel %vm2859, %v2718, -inf
        %v4478 = vrot.slane %v4477, 4
        %v4479 = vmax.f32 %v4477, %v4478
        %v4480 = vrot.slane %v4479, 2
        %v4481 = vmax.f32 %v4479, %v4480
        %v4482 = vrot.slane %v4481, 1
        %v4483 = vmax.f32 %v4481, %v4482
        %v4484 = vsel %vm2859, %v2463, -inf
        %v4485 = vrot.slane %v4484, 4
        %v4486 = vmax.f32 %v4484, %v4485
        %v4487 = vrot.slane %v4486, 2
        %v4488 = vmax.f32 %v4486, %v4487
        %v4489 = vrot.slane %v4488, 1
        %v4490 = vmax.f32 %v4488, %v4489
        %v4491 = vsel %vm2859, %v2719, -inf
        %v4492 = vrot.slane %v4491, 4
        %v4493 = vmax.f32 %v4491, %v4492
        %v4494 = vrot.slane %v4493, 2
        %v4495 = vmax.f32 %v4493, %v4494
        %v4496 = vrot.slane %v4495, 1
        %v4497 = vmax.f32 %v4495, %v4496
        %v4498 = vsel %vm2859, %v2464, -inf
        %v4499 = vrot.slane %v4498, 4
        %v4500 = vmax.f32 %v4498, %v4499
        %v4501 = vrot.slane %v4500, 2
        %v4502 = vmax.f32 %v4500, %v4501
        %v4503 = vrot.slane %v4502, 1
        %v4504 = vmax.f32 %v4502, %v4503
        %v4505 = vsel %vm2859, %v2720, -inf
        %v4506 = vrot.slane %v4505, 4
        %v4507 = vmax.f32 %v4505, %v4506
        %v4508 = vrot.slane %v4507, 2
        %v4509 = vmax.f32 %v4507, %v4508
        %v4510 = vrot.slane %v4509, 1
        %v4511 = vmax.f32 %v4509, %v4510
        %v4512 = vsel %vm2859, %v2465, -inf
        %v4513 = vrot.slane %v4512, 4
        %v4514 = vmax.f32 %v4512, %v4513
        %v4515 = vrot.slane %v4514, 2
        %v4516 = vmax.f32 %v4514, %v4515
        %v4517 = vrot.slane %v4516, 1
        %v4518 = vmax.f32 %v4516, %v4517
        %v4519 = vsel %vm2859, %v2721, -inf
        %v4520 = vrot.slane %v4519, 4
        %v4521 = vmax.f32 %v4519, %v4520
        %v4522 = vrot.slane %v4521, 2
        %v4523 = vmax.f32 %v4521, %v4522
        %v4524 = vrot.slane %v4523, 1
        %v4525 = vmax.f32 %v4523, %v4524
        %v4526 = vsel %vm2859, %v2466, -inf
        %v4527 = vrot.slane %v4526, 4
        %v4528 = vmax.f32 %v4526, %v4527
        %v4529 = vrot.slane %v4528, 2
        %v4530 = vmax.f32 %v4528, %v4529
        %v4531 = vrot.slane %v4530, 1
        %v4532 = vmax.f32 %v4530, %v4531
        %v4533 = vsel %vm2859, %v2722, -inf
        %v4534 = vrot.slane %v4533, 4
        %v4535 = vmax.f32 %v4533, %v4534
        %v4536 = vrot.slane %v4535, 2
        %v4537 = vmax.f32 %v4535, %v4536
        %v4538 = vrot.slane %v4537, 1
        %v4539 = vmax.f32 %v4537, %v4538
        %v4540 = vsel %vm2859, %v2467, -inf
        %v4541 = vrot.slane %v4540, 4
        %v4542 = vmax.f32 %v4540, %v4541
        %v4543 = vrot.slane %v4542, 2
        %v4544 = vmax.f32 %v4542, %v4543
        %v4545 = vrot.slane %v4544, 1
        %v4546 = vmax.f32 %v4544, %v4545
        %v4547 = vsel %vm2859, %v2723, -inf
        %v4548 = vrot.slane %v4547, 4
        %v4549 = vmax.f32 %v4547, %v4548
        %v4550 = vrot.slane %v4549, 2
        %v4551 = vmax.f32 %v4549, %v4550
        %v4552 = vrot.slane %v4551, 1
        %v4553 = vmax.f32 %v4551, %v4552
        %v4554 = vsel %vm2859, %v2468, -inf
        %v4555 = vrot.slane %v4554, 4
        %v4556 = vmax.f32 %v4554, %v4555
        %v4557 = vrot.slane %v4556, 2
        %v4558 = vmax.f32 %v4556, %v4557
        %v4559 = vrot.slane %v4558, 1
        %v4560 = vmax.f32 %v4558, %v4559
        %v4561 = vsel %vm2859, %v2724, -inf
        %v4562 = vrot.slane %v4561, 4
        %v4563 = vmax.f32 %v4561, %v4562
        %v4564 = vrot.slane %v4563, 2
        %v4565 = vmax.f32 %v4563, %v4564
        %v4566 = vrot.slane %v4565, 1
        %v4567 = vmax.f32 %v4565, %v4566
        %v4568 = vsel %vm2859, %v2469, -inf
        %v4569 = vrot.slane %v4568, 4
        %v4570 = vmax.f32 %v4568, %v4569
        %v4571 = vrot.slane %v4570, 2
        %v4572 = vmax.f32 %v4570, %v4571
        %v4573 = vrot.slane %v4572, 1
        %v4574 = vmax.f32 %v4572, %v4573
        %v4575 = vsel %vm2859, %v2725, -inf
        %v4576 = vrot.slane %v4575, 4
        %v4577 = vmax.f32 %v4575, %v4576
        %v4578 = vrot.slane %v4577, 2
        %v4579 = vmax.f32 %v4577, %v4578
        %v4580 = vrot.slane %v4579, 1
        %v4581 = vmax.f32 %v4579, %v4580
        %v4582 = vsel %vm2859, %v2470, -inf
        %v4583 = vrot.slane %v4582, 4
        %v4584 = vmax.f32 %v4582, %v4583
        %v4585 = vrot.slane %v4584, 2
        %v4586 = vmax.f32 %v4584, %v4585
        %v4587 = vrot.slane %v4586, 1
        %v4588 = vmax.f32 %v4586, %v4587
        %v4589 = vsel %vm2859, %v2726, -inf
        %v4590 = vrot.slane %v4589, 4
        %v4591 = vmax.f32 %v4589, %v4590
        %v4592 = vrot.slane %v4591, 2
        %v4593 = vmax.f32 %v4591, %v4592
        %v4594 = vrot.slane %v4593, 1
        %v4595 = vmax.f32 %v4593, %v4594
        %v4596 = vsel %vm2859, %v2471, -inf
        %v4597 = vrot.slane %v4596, 4
        %v4598 = vmax.f32 %v4596, %v4597
        %v4599 = vrot.slane %v4598, 2
        %v4600 = vmax.f32 %v4598, %v4599
        %v4601 = vrot.slane %v4600, 1
        %v4602 = vmax.f32 %v4600, %v4601
        %v4603 = vsel %vm2859, %v2727, -inf
        %v4604 = vrot.slane %v4603, 4
        %v4605 = vmax.f32 %v4603, %v4604
        %v4606 = vrot.slane %v4605, 2
        %v4607 = vmax.f32 %v4605, %v4606
        %v4608 = vrot.slane %v4607, 1
        %v4609 = vmax.f32 %v4607, %v4608
        %v4610 = vsel %vm2859, %v2472, -inf
        %v4611 = vrot.slane %v4610, 4
        %v4612 = vmax.f32 %v4610, %v4611
        %v4613 = vrot.slane %v4612, 2
        %v4614 = vmax.f32 %v4612, %v4613
        %v4615 = vrot.slane %v4614, 1
        %v4616 = vmax.f32 %v4614, %v4615
        %v4617 = vsel %vm2859, %v2728, -inf
        %v4618 = vrot.slane %v4617, 4
        %v4619 = vmax.f32 %v4617, %v4618
        %v4620 = vrot.slane %v4619, 2
        %v4621 = vmax.f32 %v4619, %v4620
        %v4622 = vrot.slane %v4621, 1
        %v4623 = vmax.f32 %v4621, %v4622
        %v4624 = vsel %vm2859, %v2473, -inf
        %v4625 = vrot.slane %v4624, 4
        %v4626 = vmax.f32 %v4624, %v4625
        %v4627 = vrot.slane %v4626, 2
        %v4628 = vmax.f32 %v4626, %v4627
        %v4629 = vrot.slane %v4628, 1
        %v4630 = vmax.f32 %v4628, %v4629
        %v4631 = vsel %vm2859, %v2729, -inf
        %v4632 = vrot.slane %v4631, 4
        %v4633 = vmax.f32 %v4631, %v4632
        %v4634 = vrot.slane %v4633, 2
        %v4635 = vmax.f32 %v4633, %v4634
        %v4636 = vrot.slane %v4635, 1
        %v4637 = vmax.f32 %v4635, %v4636
        %v4638 = vsel %vm2859, %v2474, -inf
        %v4639 = vrot.slane %v4638, 4
        %v4640 = vmax.f32 %v4638, %v4639
        %v4641 = vrot.slane %v4640, 2
        %v4642 = vmax.f32 %v4640, %v4641
        %v4643 = vrot.slane %v4642, 1
        %v4644 = vmax.f32 %v4642, %v4643
        %v4645 = vsel %vm2859, %v2730, -inf
        %v4646 = vrot.slane %v4645, 4
        %v4647 = vmax.f32 %v4645, %v4646
        %v4648 = vrot.slane %v4647, 2
        %v4649 = vmax.f32 %v4647, %v4648
        %v4650 = vrot.slane %v4649, 1
        %v4651 = vmax.f32 %v4649, %v4650
        %vm4908 = vcmask 1041409
        %v4909 = vsel %vm4908, %v2873, %v2866
        %vm4910 = vcmask 1042434
        %v4911 = vsel %vm4910, %v2880, %v4909
        %vm4912 = vcmask 1043459
        %v4913 = vsel %vm4912, %v2887, %v4911
        %vm4914 = vcmask 1044484
        %v4915 = vsel %vm4914, %v2894, %v4913
        %vm4916 = vcmask 1045509
        %v4917 = vsel %vm4916, %v2901, %v4915
        %vm4918 = vcmask 1046534
        %v4919 = vsel %vm4918, %v2908, %v4917
        %vm4920 = vcmask 1047559
        %v4921 = vsel %vm4920, %v2915, %v4919
        %v4922 = vsel %vm4908, %v2929, %v2922
        %v4923 = vsel %vm4910, %v2936, %v4922
        %v4924 = vsel %vm4912, %v2943, %v4923
        %v4925 = vsel %vm4914, %v2950, %v4924
        %v4926 = vsel %vm4916, %v2957, %v4925
        %v4927 = vsel %vm4918, %v2964, %v4926
        %v4928 = vsel %vm4920, %v2971, %v4927
        %v4929 = vsel %vm4908, %v2985, %v2978
        %v4930 = vsel %vm4910, %v2992, %v4929
        %v4931 = vsel %vm4912, %v2999, %v4930
        %v4932 = vsel %vm4914, %v3006, %v4931
        %v4933 = vsel %vm4916, %v3013, %v4932
        %v4934 = vsel %vm4918, %v3020, %v4933
        %v4935 = vsel %vm4920, %v3027, %v4934
        %v4936 = vsel %vm4908, %v3041, %v3034
        %v4937 = vsel %vm4910, %v3048, %v4936
        %v4938 = vsel %vm4912, %v3055, %v4937
        %v4939 = vsel %vm4914, %v3062, %v4938
        %v4940 = vsel %vm4916, %v3069, %v4939
        %v4941 = vsel %vm4918, %v3076, %v4940
        %v4942 = vsel %vm4920, %v3083, %v4941
        %v4943 = vsel %vm4908, %v3097, %v3090
        %v4944 = vsel %vm4910, %v3104, %v4943
        %v4945 = vsel %vm4912, %v3111, %v4944
        %v4946 = vsel %vm4914, %v3118, %v4945
        %v4947 = vsel %vm4916, %v3125, %v4946
        %v4948 = vsel %vm4918, %v3132, %v4947
        %v4949 = vsel %vm4920, %v3139, %v4948
        %v4950 = vsel %vm4908, %v3153, %v3146
        %v4951 = vsel %vm4910, %v3160, %v4950
        %v4952 = vsel %vm4912, %v3167, %v4951
        %v4953 = vsel %vm4914, %v3174, %v4952
        %v4954 = vsel %vm4916, %v3181, %v4953
        %v4955 = vsel %vm4918, %v3188, %v4954
        %v4956 = vsel %vm4920, %v3195, %v4955
        %v4957 = vsel %vm4908, %v3209, %v3202
        %v4958 = vsel %vm4910, %v3216, %v4957
        %v4959 = vsel %vm4912, %v3223, %v4958
        %v4960 = vsel %vm4914, %v3230, %v4959
        %v4961 = vsel %vm4916, %v3237, %v4960
        %v4962 = vsel %vm4918, %v3244, %v4961
        %v4963 = vsel %vm4920, %v3251, %v4962
        %v4964 = vsel %vm4908, %v3265, %v3258
        %v4965 = vsel %vm4910, %v3272, %v4964
        %v4966 = vsel %vm4912, %v3279, %v4965
        %v4967 = vsel %vm4914, %v3286, %v4966
        %v4968 = vsel %vm4916, %v3293, %v4967
        %v4969 = vsel %vm4918, %v3300, %v4968
        %v4970 = vsel %vm4920, %v3307, %v4969
        %v4971 = vsel %vm4908, %v3321, %v3314
        %v4972 = vsel %vm4910, %v3328, %v4971
        %v4973 = vsel %vm4912, %v3335, %v4972
        %v4974 = vsel %vm4914, %v3342, %v4973
        %v4975 = vsel %vm4916, %v3349, %v4974
        %v4976 = vsel %vm4918, %v3356, %v4975
        %v4977 = vsel %vm4920, %v3363, %v4976
        %v4978 = vsel %vm4908, %v3377, %v3370
        %v4979 = vsel %vm4910, %v3384, %v4978
        %v4980 = vsel %vm4912, %v3391, %v4979
        %v4981 = vsel %vm4914, %v3398, %v4980
        %v4982 = vsel %vm4916, %v3405, %v4981
        %v4983 = vsel %vm4918, %v3412, %v4982
        %v4984 = vsel %vm4920, %v3419, %v4983
        %v4985 = vsel %vm4908, %v3433, %v3426
        %v4986 = vsel %vm4910, %v3440, %v4985
        %v4987 = vsel %vm4912, %v3447, %v4986
        %v4988 = vsel %vm4914, %v3454, %v4987
        %v4989 = vsel %vm4916, %v3461, %v4988
        %v4990 = vsel %vm4918, %v3468, %v4989
        %v4991 = vsel %vm4920, %v3475, %v4990
        %v4992 = vsel %vm4908, %v3489, %v3482
        %v4993 = vsel %vm4910, %v3496, %v4992
        %v4994 = vsel %vm4912, %v3503, %v4993
        %v4995 = vsel %vm4914, %v3510, %v4994
        %v4996 = vsel %vm4916, %v3517, %v4995
        %v4997 = vsel %vm4918, %v3524, %v4996
        %v4998 = vsel %vm4920, %v3531, %v4997
        %v4999 = vsel %vm4908, %v3545, %v3538
        %v5000 = vsel %vm4910, %v3552, %v4999
        %v5001 = vsel %vm4912, %v3559, %v5000
        %v5002 = vsel %vm4914, %v3566, %v5001
        %v5003 = vsel %vm4916, %v3573, %v5002
        %v5004 = vsel %vm4918, %v3580, %v5003
        %v5005 = vsel %vm4920, %v3587, %v5004
        %v5006 = vsel %vm4908, %v3601, %v3594
        %v5007 = vsel %vm4910, %v3608, %v5006
        %v5008 = vsel %vm4912, %v3615, %v5007
        %v5009 = vsel %vm4914, %v3622, %v5008
        %v5010 = vsel %vm4916, %v3629, %v5009
        %v5011 = vsel %vm4918, %v3636, %v5010
        %v5012 = vsel %vm4920, %v3643, %v5011
        %v5013 = vsel %vm4908, %v3657, %v3650
        %v5014 = vsel %vm4910, %v3664, %v5013
        %v5015 = vsel %vm4912, %v3671, %v5014
        %v5016 = vsel %vm4914, %v3678, %v5015
        %v5017 = vsel %vm4916, %v3685, %v5016
        %v5018 = vsel %vm4918, %v3692, %v5017
        %v5019 = vsel %vm4920, %v3699, %v5018
        %v5020 = vsel %vm4908, %v3713, %v3706
        %v5021 = vsel %vm4910, %v3720, %v5020
        %v5022 = vsel %vm4912, %v3727, %v5021
        %v5023 = vsel %vm4914, %v3734, %v5022
        %v5024 = vsel %vm4916, %v3741, %v5023
        %v5025 = vsel %vm4918, %v3748, %v5024
        %v5026 = vsel %vm4920, %v3755, %v5025
        %v5027 = vsel %vm4908, %v3769, %v3762
        %v5028 = vsel %vm4910, %v3776, %v5027
        %v5029 = vsel %vm4912, %v3783, %v5028
        %v5030 = vsel %vm4914, %v3790, %v5029
        %v5031 = vsel %vm4916, %v3797, %v5030
        %v5032 = vsel %vm4918, %v3804, %v5031
        %v5033 = vsel %vm4920, %v3811, %v5032
        %v5034 = vsel %vm4908, %v3825, %v3818
        %v5035 = vsel %vm4910, %v3832, %v5034
        %v5036 = vsel %vm4912, %v3839, %v5035
        %v5037 = vsel %vm4914, %v3846, %v5036
        %v5038 = vsel %vm4916, %v3853, %v5037
        %v5039 = vsel %vm4918, %v3860, %v5038
        %v5040 = vsel %vm4920, %v3867, %v5039
        %v5041 = vsel %vm4908, %v3881, %v3874
        %v5042 = vsel %vm4910, %v3888, %v5041
        %v5043 = vsel %vm4912, %v3895, %v5042
        %v5044 = vsel %vm4914, %v3902, %v5043
        %v5045 = vsel %vm4916, %v3909, %v5044
        %v5046 = vsel %vm4918, %v3916, %v5045
        %v5047 = vsel %vm4920, %v3923, %v5046
        %v5048 = vsel %vm4908, %v3937, %v3930
        %v5049 = vsel %vm4910, %v3944, %v5048
        %v5050 = vsel %vm4912, %v3951, %v5049
        %v5051 = vsel %vm4914, %v3958, %v5050
        %v5052 = vsel %vm4916, %v3965, %v5051
        %v5053 = vsel %vm4918, %v3972, %v5052
        %v5054 = vsel %vm4920, %v3979, %v5053
        %v5055 = vsel %vm4908, %v3993, %v3986
        %v5056 = vsel %vm4910, %v4000, %v5055
        %v5057 = vsel %vm4912, %v4007, %v5056
        %v5058 = vsel %vm4914, %v4014, %v5057
        %v5059 = vsel %vm4916, %v4021, %v5058
        %v5060 = vsel %vm4918, %v4028, %v5059
        %v5061 = vsel %vm4920, %v4035, %v5060
        %v5062 = vsel %vm4908, %v4049, %v4042
        %v5063 = vsel %vm4910, %v4056, %v5062
        %v5064 = vsel %vm4912, %v4063, %v5063
        %v5065 = vsel %vm4914, %v4070, %v5064
        %v5066 = vsel %vm4916, %v4077, %v5065
        %v5067 = vsel %vm4918, %v4084, %v5066
        %v5068 = vsel %vm4920, %v4091, %v5067
        %v5069 = vsel %vm4908, %v4105, %v4098
        %v5070 = vsel %vm4910, %v4112, %v5069
        %v5071 = vsel %vm4912, %v4119, %v5070
        %v5072 = vsel %vm4914, %v4126, %v5071
        %v5073 = vsel %vm4916, %v4133, %v5072
        %v5074 = vsel %vm4918, %v4140, %v5073
        %v5075 = vsel %vm4920, %v4147, %v5074
        %v5076 = vsel %vm4908, %v4161, %v4154
        %v5077 = vsel %vm4910, %v4168, %v5076
        %v5078 = vsel %vm4912, %v4175, %v5077
        %v5079 = vsel %vm4914, %v4182, %v5078
        %v5080 = vsel %vm4916, %v4189, %v5079
        %v5081 = vsel %vm4918, %v4196, %v5080
        %v5082 = vsel %vm4920, %v4203, %v5081
        %v5083 = vsel %vm4908, %v4217, %v4210
        %v5084 = vsel %vm4910, %v4224, %v5083
        %v5085 = vsel %vm4912, %v4231, %v5084
        %v5086 = vsel %vm4914, %v4238, %v5085
        %v5087 = vsel %vm4916, %v4245, %v5086
        %v5088 = vsel %vm4918, %v4252, %v5087
        %v5089 = vsel %vm4920, %v4259, %v5088
        %v5090 = vsel %vm4908, %v4273, %v4266
        %v5091 = vsel %vm4910, %v4280, %v5090
        %v5092 = vsel %vm4912, %v4287, %v5091
        %v5093 = vsel %vm4914, %v4294, %v5092
        %v5094 = vsel %vm4916, %v4301, %v5093
        %v5095 = vsel %vm4918, %v4308, %v5094
        %v5096 = vsel %vm4920, %v4315, %v5095
        %v5097 = vsel %vm4908, %v4329, %v4322
        %v5098 = vsel %vm4910, %v4336, %v5097
        %v5099 = vsel %vm4912, %v4343, %v5098
        %v5100 = vsel %vm4914, %v4350, %v5099
        %v5101 = vsel %vm4916, %v4357, %v5100
        %v5102 = vsel %vm4918, %v4364, %v5101
        %v5103 = vsel %vm4920, %v4371, %v5102
        %v5104 = vsel %vm4908, %v4385, %v4378
        %v5105 = vsel %vm4910, %v4392, %v5104
        %v5106 = vsel %vm4912, %v4399, %v5105
        %v5107 = vsel %vm4914, %v4406, %v5106
        %v5108 = vsel %vm4916, %v4413, %v5107
        %v5109 = vsel %vm4918, %v4420, %v5108
        %v5110 = vsel %vm4920, %v4427, %v5109
        %v5111 = vsel %vm4908, %v4441, %v4434
        %v5112 = vsel %vm4910, %v4448, %v5111
        %v5113 = vsel %vm4912, %v4455, %v5112
        %v5114 = vsel %vm4914, %v4462, %v5113
        %v5115 = vsel %vm4916, %v4469, %v5114
        %v5116 = vsel %vm4918, %v4476, %v5115
        %v5117 = vsel %vm4920, %v4483, %v5116
        %v5118 = vsel %vm4908, %v4497, %v4490
        %v5119 = vsel %vm4910, %v4504, %v5118
        %v5120 = vsel %vm4912, %v4511, %v5119
        %v5121 = vsel %vm4914, %v4518, %v5120
        %v5122 = vsel %vm4916, %v4525, %v5121
        %v5123 = vsel %vm4918, %v4532, %v5122
        %v5124 = vsel %vm4920, %v4539, %v5123
        %v5125 = vsel %vm4908, %v4553, %v4546
        %v5126 = vsel %vm4910, %v4560, %v5125
        %v5127 = vsel %vm4912, %v4567, %v5126
        %v5128 = vsel %vm4914, %v4574, %v5127
        %v5129 = vsel %vm4916, %v4581, %v5128
        %v5130 = vsel %vm4918, %v4588, %v5129
        %v5131 = vsel %vm4920, %v4595, %v5130
        %v5132 = vsel %vm4908, %v4609, %v4602
        %v5133 = vsel %vm4910, %v4616, %v5132
        %v5134 = vsel %vm4912, %v4623, %v5133
        %v5135 = vsel %vm4914, %v4630, %v5134
        %v5136 = vsel %vm4916, %v4637, %v5135
        %v5137 = vsel %vm4918, %v4644, %v5136
        %v5138 = vsel %vm4920, %v4651, %v5137
        %5171 = vst.msk [vmem:[#allocation2 + $0x8] sm:$0xff] %vm696, %v4921
        %5172 = vst.msk [vmem:[#allocation2 + $0x10] sm:$0xff] %vm696, %v4928
        %5173 = vst.msk [vmem:[#allocation2 + $0x18] sm:$0xff] %vm696, %v4935
        %5174 = vst.msk [vmem:[#allocation2 + $0x20] sm:$0xff] %vm696, %v4942
        %5175 = vst.msk [vmem:[#allocation2 + $0x28] sm:$0xff] %vm696, %v4949
        %5176 = vst.msk [vmem:[#allocation2 + $0x30] sm:$0xff] %vm696, %v4956
        %5177 = vst.msk [vmem:[#allocation2 + $0x38] sm:$0xff] %vm696, %v4963
        %5178 = vst.msk [vmem:[#allocation2 + $0x40] sm:$0xff] %vm696, %v4970
        %5179 = vst.msk [vmem:[#allocation2 + $0x48] sm:$0xff] %vm696, %v4977
        %5180 = vst.msk [vmem:[#allocation2 + $0x50] sm:$0xff] %vm696, %v4984
        %5181 = vst.msk [vmem:[#allocation2 + $0x58] sm:$0xff] %vm696, %v4991
        %5182 = vst.msk [vmem:[#allocation2 + $0x60] sm:$0xff] %vm696, %v4998
        %5183 = vst.msk [vmem:[#allocation2 + $0x68] sm:$0xff] %vm696, %v5005
        %5184 = vst.msk [vmem:[#allocation2 + $0x70] sm:$0xff] %vm696, %v5012
        %5185 = vst.msk [vmem:[#allocation2 + $0x78] sm:$0xff] %vm696, %v5019
        %5186 = vst.msk [vmem:[#allocation2 + $0x80] sm:$0xff] %vm696, %v5026
        %5187 = vst.msk [vmem:[#allocation2 + $0x88] sm:$0xff] %vm696, %v5033
        %5188 = vst.msk [vmem:[#allocation2 + $0x90] sm:$0xff] %vm696, %v5040
        %5189 = vst.msk [vmem:[#allocation2 + $0x98] sm:$0xff] %vm696, %v5047
        %5190 = vst.msk [vmem:[#allocation2 + $0xa0] sm:$0xff] %vm696, %v5054
        %5191 = vst.msk [vmem:[#allocation2 + $0xa8] sm:$0xff] %vm696, %v5061
        %5192 = vst.msk [vmem:[#allocation2 + $0xb0] sm:$0xff] %vm696, %v5068
        %5193 = vst.msk [vmem:[#allocation2 + $0xb8] sm:$0xff] %vm696, %v5075
        %5194 = vst.msk [vmem:[#allocation2 + $0xc0] sm:$0xff] %vm696, %v5082
        %5195 = vst.msk [vmem:[#allocation2 + $0xc8] sm:$0xff] %vm696, %v5089
        %5196 = vst.msk [vmem:[#allocation2 + $0xd0] sm:$0xff] %vm696, %v5096
        %5197 = vst.msk [vmem:[#allocation2 + $0xd8] sm:$0xff] %vm696, %v5103
        %5198 = vst.msk [vmem:[#allocation2 + $0xe0] sm:$0xff] %vm696, %v5110
        %5199 = vst.msk [vmem:[#allocation2 + $0xe8] sm:$0xff] %vm696, %v5117
        %5200 = vst.msk [vmem:[#allocation2 + $0xf0] sm:$0xff] %vm696, %v5124
        %5201 = vst.msk [vmem:[#allocation2 + $0xf8] sm:$0xff] %vm696, %v5131
        %5202 = vst.msk [vmem:[#allocation2 + $0x100] sm:$0xff] %vm696, %v5138
        %v5203 = vld [vmem:[#allocation2 + $0x8] sm:$0xff]
        %v5204 = vld [vmem:[#allocation2 + $0x10] sm:$0xff]
        %v5205 = vld [vmem:[#allocation2 + $0x18] sm:$0xff]
        %v5206 = vld [vmem:[#allocation2 + $0x20] sm:$0xff]
        %v5207 = vld [vmem:[#allocation2 + $0x28] sm:$0xff]
        %v5208 = vld [vmem:[#allocation2 + $0x30] sm:$0xff]
        %v5209 = vld [vmem:[#allocation2 + $0x38] sm:$0xff]
        %v5210 = vld [vmem:[#allocation2 + $0x40] sm:$0xff]
        %v5211 = vld [vmem:[#allocation2 + $0x48] sm:$0xff]
        %v5212 = vld [vmem:[#allocation2 + $0x50] sm:$0xff]
        %v5213 = vld [vmem:[#allocation2 + $0x58] sm:$0xff]
        %v5214 = vld [vmem:[#allocation2 + $0x60] sm:$0xff]
        %v5215 = vld [vmem:[#allocation2 + $0x68] sm:$0xff]
        %v5216 = vld [vmem:[#allocation2 + $0x70] sm:$0xff]
        %v5217 = vld [vmem:[#allocation2 + $0x78] sm:$0xff]
        %v5218 = vld [vmem:[#allocation2 + $0x80] sm:$0xff]
        %v5219 = vld [vmem:[#allocation2 + $0x88] sm:$0xff]
        %v5220 = vld [vmem:[#allocation2 + $0x90] sm:$0xff]
        %v5221 = vld [vmem:[#allocation2 + $0x98] sm:$0xff]
        %v5222 = vld [vmem:[#allocation2 + $0xa0] sm:$0xff]
        %v5223 = vld [vmem:[#allocation2 + $0xa8] sm:$0xff]
        %v5224 = vld [vmem:[#allocation2 + $0xb0] sm:$0xff]
        %v5225 = vld [vmem:[#allocation2 + $0xb8] sm:$0xff]
        %v5226 = vld [vmem:[#allocation2 + $0xc0] sm:$0xff]
        %v5227 = vld [vmem:[#allocation2 + $0xc8] sm:$0xff]
        %v5228 = vld [vmem:[#allocation2 + $0xd0] sm:$0xff]
        %v5229 = vld [vmem:[#allocation2 + $0xd8] sm:$0xff]
        %v5230 = vld [vmem:[#allocation2 + $0xe0] sm:$0xff]
        %v5231 = vld [vmem:[#allocation2 + $0xe8] sm:$0xff]
        %v5232 = vld [vmem:[#allocation2 + $0xf0] sm:$0xff]
        %v5233 = vld [vmem:[#allocation2 + $0xf8] sm:$0xff]
        %v5234 = vld [vmem:[#allocation2 + $0x100] sm:$0xff]
        %v5235 = vpack.c.bf16 %v5203, %v5203
        %v5236 = vpack.c.bf16 %v5204, %v5204
        %v5237 = vpack.c.bf16 %v5205, %v5205
        %v5238 = vpack.c.bf16 %v5206, %v5206
        %v5239 = vpack.c.bf16 %v5207, %v5207
        %v5240 = vpack.c.bf16 %v5208, %v5208
        %v5241 = vpack.c.bf16 %v5209, %v5209
        %v5242 = vpack.c.bf16 %v5210, %v5210
        %v5243 = vpack.c.bf16 %v5211, %v5211
        %v5244 = vpack.c.bf16 %v5212, %v5212
        %v5245 = vpack.c.bf16 %v5213, %v5213
        %v5246 = vpack.c.bf16 %v5214, %v5214
        %v5247 = vpack.c.bf16 %v5215, %v5215
        %v5248 = vpack.c.bf16 %v5216, %v5216
        %v5249 = vpack.c.bf16 %v5217, %v5217
        %v5250 = vpack.c.bf16 %v5218, %v5218
        %v5251 = vpack.c.bf16 %v5219, %v5219
        %v5252 = vpack.c.bf16 %v5220, %v5220
        %v5253 = vpack.c.bf16 %v5221, %v5221
        %v5254 = vpack.c.bf16 %v5222, %v5222
        %v5255 = vpack.c.bf16 %v5223, %v5223
        %v5256 = vpack.c.bf16 %v5224, %v5224
        %v5257 = vpack.c.bf16 %v5225, %v5225
        %v5258 = vpack.c.bf16 %v5226, %v5226
        %v5259 = vpack.c.bf16 %v5227, %v5227
        %v5260 = vpack.c.bf16 %v5228, %v5228
        %v5261 = vpack.c.bf16 %v5229, %v5229
        %v5262 = vpack.c.bf16 %v5230, %v5230
        %v5263 = vpack.c.bf16 %v5231, %v5231
        %v5264 = vpack.c.bf16 %v5232, %v5232
        %v5265 = vpack.c.bf16 %v5233, %v5233
        %v5266 = vpack.c.bf16 %v5234, %v5234
        %5267 = vst.msk [vmem:[#allocation6] sm:$0xf] %vm2859, %v5235
        %5268 = vst.msk [vmem:[#allocation6 + $0x8] sm:$0xf] %vm2859, %v5236
        %5269 = vst.msk [vmem:[#allocation6 + $0x10] sm:$0xf] %vm2859, %v5237
        %5270 = vst.msk [vmem:[#allocation6 + $0x18] sm:$0xf] %vm2859, %v5238
        %5271 = vst.msk [vmem:[#allocation6 + $0x20] sm:$0xf] %vm2859, %v5239
        %5272 = vst.msk [vmem:[#allocation6 + $0x28] sm:$0xf] %vm2859, %v5240
        %5273 = vst.msk [vmem:[#allocation6 + $0x30] sm:$0xf] %vm2859, %v5241
        %5274 = vst.msk [vmem:[#allocation6 + $0x38] sm:$0xf] %vm2859, %v5242
        %5275 = vst.msk [vmem:[#allocation6 + $0x40] sm:$0xf] %vm2859, %v5243
        %5276 = vst.msk [vmem:[#allocation6 + $0x48] sm:$0xf] %vm2859, %v5244
        %5277 = vst.msk [vmem:[#allocation6 + $0x50] sm:$0xf] %vm2859, %v5245
        %5278 = vst.msk [vmem:[#allocation6 + $0x58] sm:$0xf] %vm2859, %v5246
        %5279 = vst.msk [vmem:[#allocation6 + $0x60] sm:$0xf] %vm2859, %v5247
        %5280 = vst.msk [vmem:[#allocation6 + $0x68] sm:$0xf] %vm2859, %v5248
        %5281 = vst.msk [vmem:[#allocation6 + $0x70] sm:$0xf] %vm2859, %v5249
        %5282 = vst.msk [vmem:[#allocation6 + $0x78] sm:$0xf] %vm2859, %v5250
        %5283 = vst.msk [vmem:[#allocation6 + $0x80] sm:$0xf] %vm2859, %v5251
        %5284 = vst.msk [vmem:[#allocation6 + $0x88] sm:$0xf] %vm2859, %v5252
        %5285 = vst.msk [vmem:[#allocation6 + $0x90] sm:$0xf] %vm2859, %v5253
        %5286 = vst.msk [vmem:[#allocation6 + $0x98] sm:$0xf] %vm2859, %v5254
        %5287 = vst.msk [vmem:[#allocation6 + $0xa0] sm:$0xf] %vm2859, %v5255
        %5288 = vst.msk [vmem:[#allocation6 + $0xa8] sm:$0xf] %vm2859, %v5256
        %5289 = vst.msk [vmem:[#allocation6 + $0xb0] sm:$0xf] %vm2859, %v5257
        %5290 = vst.msk [vmem:[#allocation6 + $0xb8] sm:$0xf] %vm2859, %v5258
        %5291 = vst.msk [vmem:[#allocation6 + $0xc0] sm:$0xf] %vm2859, %v5259
        %5292 = vst.msk [vmem:[#allocation6 + $0xc8] sm:$0xf] %vm2859, %v5260
        %5293 = vst.msk [vmem:[#allocation6 + $0xd0] sm:$0xf] %vm2859, %v5261
        %5294 = vst.msk [vmem:[#allocation6 + $0xd8] sm:$0xf] %vm2859, %v5262
        %5295 = vst.msk [vmem:[#allocation6 + $0xe0] sm:$0xf] %vm2859, %v5263
        %5296 = vst.msk [vmem:[#allocation6 + $0xe8] sm:$0xf] %vm2859, %v5264
        %5297 = vst.msk [vmem:[#allocation6 + $0xf0] sm:$0xf] %vm2859, %v5265
        %5298 = vst.msk [vmem:[#allocation6 + $0xf8] sm:$0xf] %vm2859, %v5266
        %v5299 = vld [vmem:[#allocation2 + $0x7] sm:$0xff]
        %v5300 = vld [vmem:[#allocation2 + $0xf] sm:$0xff]
        %v5301 = vld [vmem:[#allocation2 + $0x17] sm:$0xff]
        %v5302 = vld [vmem:[#allocation2 + $0x1f] sm:$0xff]
        %v5303 = vld [vmem:[#allocation2 + $0x27] sm:$0xff]
        %v5304 = vld [vmem:[#allocation2 + $0x2f] sm:$0xff]
        %v5305 = vld [vmem:[#allocation2 + $0x37] sm:$0xff]
        %v5306 = vld [vmem:[#allocation2 + $0x3f] sm:$0xff]
        %v5307 = vld [vmem:[#allocation2 + $0x47] sm:$0xff]
        %v5308 = vld [vmem:[#allocation2 + $0x4f] sm:$0xff]
        %v5309 = vld [vmem:[#allocation2 + $0x57] sm:$0xff]
        %v5310 = vld [vmem:[#allocation2 + $0x5f] sm:$0xff]
        %v5311 = vld [vmem:[#allocation2 + $0x67] sm:$0xff]
        %v5312 = vld [vmem:[#allocation2 + $0x6f] sm:$0xff]
        %v5313 = vld [vmem:[#allocation2 + $0x77] sm:$0xff]
        %v5314 = vld [vmem:[#allocation2 + $0x7f] sm:$0xff]
        %v5315 = vld [vmem:[#allocation2 + $0x87] sm:$0xff]
        %v5316 = vld [vmem:[#allocation2 + $0x8f] sm:$0xff]
        %v5317 = vld [vmem:[#allocation2 + $0x97] sm:$0xff]
        %v5318 = vld [vmem:[#allocation2 + $0x9f] sm:$0xff]
        %v5319 = vld [vmem:[#allocation2 + $0xa7] sm:$0xff]
        %v5320 = vld [vmem:[#allocation2 + $0xaf] sm:$0xff]
        %v5321 = vld [vmem:[#allocation2 + $0xb7] sm:$0xff]
        %v5322 = vld [vmem:[#allocation2 + $0xbf] sm:$0xff]
        %v5323 = vld [vmem:[#allocation2 + $0xc7] sm:$0xff]
        %v5324 = vld [vmem:[#allocation2 + $0xcf] sm:$0xff]
        %v5325 = vld [vmem:[#allocation2 + $0xd7] sm:$0xff]
        %v5326 = vld [vmem:[#allocation2 + $0xdf] sm:$0xff]
        %v5327 = vld [vmem:[#allocation2 + $0xe7] sm:$0xff]
        %v5328 = vld [vmem:[#allocation2 + $0xef] sm:$0xff]
        %v5329 = vld [vmem:[#allocation2 + $0xf7] sm:$0xff]
        %v5330 = vld [vmem:[#allocation2 + $0xff] sm:$0xff]
        %v5331 = vpack.c.bf16 %v5299, %v5299
        %v5332 = vpack.c.bf16 %v5300, %v5300
        %v5333 = vpack.c.bf16 %v5301, %v5301
        %v5334 = vpack.c.bf16 %v5302, %v5302
        %v5335 = vpack.c.bf16 %v5303, %v5303
        %v5336 = vpack.c.bf16 %v5304, %v5304
        %v5337 = vpack.c.bf16 %v5305, %v5305
        %v5338 = vpack.c.bf16 %v5306, %v5306
        %v5339 = vpack.c.bf16 %v5307, %v5307
        %v5340 = vpack.c.bf16 %v5308, %v5308
        %v5341 = vpack.c.bf16 %v5309, %v5309
        %v5342 = vpack.c.bf16 %v5310, %v5310
        %v5343 = vpack.c.bf16 %v5311, %v5311
        %v5344 = vpack.c.bf16 %v5312, %v5312
        %v5345 = vpack.c.bf16 %v5313, %v5313
        %v5346 = vpack.c.bf16 %v5314, %v5314
        %v5347 = vpack.c.bf16 %v5315, %v5315
        %v5348 = vpack.c.bf16 %v5316, %v5316
        %v5349 = vpack.c.bf16 %v5317, %v5317
        %v5350 = vpack.c.bf16 %v5318, %v5318
        %v5351 = vpack.c.bf16 %v5319, %v5319
        %v5352 = vpack.c.bf16 %v5320, %v5320
        %v5353 = vpack.c.bf16 %v5321, %v5321
        %v5354 = vpack.c.bf16 %v5322, %v5322
        %v5355 = vpack.c.bf16 %v5323, %v5323
        %v5356 = vpack.c.bf16 %v5324, %v5324
        %v5357 = vpack.c.bf16 %v5325, %v5325
        %v5358 = vpack.c.bf16 %v5326, %v5326
        %v5359 = vpack.c.bf16 %v5327, %v5327
        %v5360 = vpack.c.bf16 %v5328, %v5328
        %v5361 = vpack.c.bf16 %v5329, %v5329
        %v5362 = vpack.c.bf16 %v5330, %v5330
        %5395 = vrot.lane.b32.xlu0 %v5331, 16
        %v5396 = vpop.permute.xlu0 %5395
        %5397 = vrot.lane.b32.xlu0 %v5332, 16
        %v5398 = vpop.permute.xlu0 %5397
        %5399 = vrot.lane.b32.xlu0 %v5333, 16
        %v5400 = vpop.permute.xlu0 %5399
        %5401 = vrot.lane.b32.xlu0 %v5334, 16
        %v5402 = vpop.permute.xlu0 %5401
        %5403 = vrot.lane.b32.xlu0 %v5335, 16
        %v5404 = vpop.permute.xlu0 %5403
        %5405 = vrot.lane.b32.xlu0 %v5336, 16
        %v5406 = vpop.permute.xlu0 %5405
        %5407 = vrot.lane.b32.xlu0 %v5337, 16
        %v5408 = vpop.permute.xlu0 %5407
        %5409 = vrot.lane.b32.xlu0 %v5338, 16
        %v5410 = vpop.permute.xlu0 %5409
        %5411 = vrot.lane.b32.xlu0 %v5339, 16
        %v5412 = vpop.permute.xlu0 %5411
        %5413 = vrot.lane.b32.xlu0 %v5340, 16
        %v5414 = vpop.permute.xlu0 %5413
        %5415 = vrot.lane.b32.xlu0 %v5341, 16
        %v5416 = vpop.permute.xlu0 %5415
        %5417 = vrot.lane.b32.xlu0 %v5342, 16
        %v5418 = vpop.permute.xlu0 %5417
        %5419 = vrot.lane.b32.xlu0 %v5343, 16
        %v5420 = vpop.permute.xlu0 %5419
        %5421 = vrot.lane.b32.xlu0 %v5344, 16
        %v5422 = vpop.permute.xlu0 %5421
        %5423 = vrot.lane.b32.xlu0 %v5345, 16
        %v5424 = vpop.permute.xlu0 %5423
        %5425 = vrot.lane.b32.xlu0 %v5346, 16
        %v5426 = vpop.permute.xlu0 %5425
        %5427 = vrot.lane.b32.xlu0 %v5347, 16
        %v5428 = vpop.permute.xlu0 %5427
        %5429 = vrot.lane.b32.xlu0 %v5348, 16
        %v5430 = vpop.permute.xlu0 %5429
        %5431 = vrot.lane.b32.xlu0 %v5349, 16
        %v5432 = vpop.permute.xlu0 %5431
        %5433 = vrot.lane.b32.xlu0 %v5350, 16
        %v5434 = vpop.permute.xlu0 %5433
        %5435 = vrot.lane.b32.xlu0 %v5351, 16
        %v5436 = vpop.permute.xlu0 %5435
        %5437 = vrot.lane.b32.xlu0 %v5352, 16
        %v5438 = vpop.permute.xlu0 %5437
        %5439 = vrot.lane.b32.xlu0 %v5353, 16
        %v5440 = vpop.permute.xlu0 %5439
        %5441 = vrot.lane.b32.xlu0 %v5354, 16
        %v5442 = vpop.permute.xlu0 %5441
        %5443 = vrot.lane.b32.xlu0 %v5355, 16
        %v5444 = vpop.permute.xlu0 %5443
        %5445 = vrot.lane.b32.xlu0 %v5356, 16
        %v5446 = vpop.permute.xlu0 %5445
        %5447 = vrot.lane.b32.xlu0 %v5357, 16
        %v5448 = vpop.permute.xlu0 %5447
        %5449 = vrot.lane.b32.xlu0 %v5358, 16
        %v5450 = vpop.permute.xlu0 %5449
        %5451 = vrot.lane.b32.xlu0 %v5359, 16
        %v5452 = vpop.permute.xlu0 %5451
        %5453 = vrot.lane.b32.xlu0 %v5360, 16
        %v5454 = vpop.permute.xlu0 %5453
        %5455 = vrot.lane.b32.xlu0 %v5361, 16
        %v5456 = vpop.permute.xlu0 %5455
        %5457 = vrot.lane.b32.xlu0 %v5362, 16
        %v5458 = vpop.permute.xlu0 %5457
        %vm5491 = vcmask 257152
        %5492 = vst.msk [vmem:[#allocation6] sm:$0xf] %vm5491, %v5396
        %5493 = vst.msk [vmem:[#allocation6 + $0x8] sm:$0xf] %vm5491, %v5398
        %5494 = vst.msk [vmem:[#allocation6 + $0x10] sm:$0xf] %vm5491, %v5400
        %5495 = vst.msk [vmem:[#allocation6 + $0x18] sm:$0xf] %vm5491, %v5402
        %5496 = vst.msk [vmem:[#allocation6 + $0x20] sm:$0xf] %vm5491, %v5404
        %5497 = vst.msk [vmem:[#allocation6 + $0x28] sm:$0xf] %vm5491, %v5406
        %5498 = vst.msk [vmem:[#allocation6 + $0x30] sm:$0xf] %vm5491, %v5408
        %5499 = vst.msk [vmem:[#allocation6 + $0x38] sm:$0xf] %vm5491, %v5410
        %5500 = vst.msk [vmem:[#allocation6 + $0x40] sm:$0xf] %vm5491, %v5412
        %5501 = vst.msk [vmem:[#allocation6 + $0x48] sm:$0xf] %vm5491, %v5414
        %5502 = vst.msk [vmem:[#allocation6 + $0x50] sm:$0xf] %vm5491, %v5416
        %5503 = vst.msk [vmem:[#allocation6 + $0x58] sm:$0xf] %vm5491, %v5418
        %5504 = vst.msk [vmem:[#allocation6 + $0x60] sm:$0xf] %vm5491, %v5420
        %5505 = vst.msk [vmem:[#allocation6 + $0x68] sm:$0xf] %vm5491, %v5422
        %5506 = vst.msk [vmem:[#allocation6 + $0x70] sm:$0xf] %vm5491, %v5424
        %5507 = vst.msk [vmem:[#allocation6 + $0x78] sm:$0xf] %vm5491, %v5426
        %5508 = vst.msk [vmem:[#allocation6 + $0x80] sm:$0xf] %vm5491, %v5428
        %5509 = vst.msk [vmem:[#allocation6 + $0x88] sm:$0xf] %vm5491, %v5430
        %5510 = vst.msk [vmem:[#allocation6 + $0x90] sm:$0xf] %vm5491, %v5432
        %5511 = vst.msk [vmem:[#allocation6 + $0x98] sm:$0xf] %vm5491, %v5434
        %5512 = vst.msk [vmem:[#allocation6 + $0xa0] sm:$0xf] %vm5491, %v5436
        %5513 = vst.msk [vmem:[#allocation6 + $0xa8] sm:$0xf] %vm5491, %v5438
        %5514 = vst.msk [vmem:[#allocation6 + $0xb0] sm:$0xf] %vm5491, %v5440
        %5515 = vst.msk [vmem:[#allocation6 + $0xb8] sm:$0xf] %vm5491, %v5442
        %5516 = vst.msk [vmem:[#allocation6 + $0xc0] sm:$0xf] %vm5491, %v5444
        %5517 = vst.msk [vmem:[#allocation6 + $0xc8] sm:$0xf] %vm5491, %v5446
        %5518 = vst.msk [vmem:[#allocation6 + $0xd0] sm:$0xf] %vm5491, %v5448
        %5519 = vst.msk [vmem:[#allocation6 + $0xd8] sm:$0xf] %vm5491, %v5450
        %5520 = vst.msk [vmem:[#allocation6 + $0xe0] sm:$0xf] %vm5491, %v5452
        %5521 = vst.msk [vmem:[#allocation6 + $0xe8] sm:$0xf] %vm5491, %v5454
        %5522 = vst.msk [vmem:[#allocation6 + $0xf0] sm:$0xf] %vm5491, %v5456
        %5523 = vst.msk [vmem:[#allocation6 + $0xf8] sm:$0xf] %vm5491, %v5458
        %v5524 = vld [vmem:[#allocation2 + $0x9] sm:$0xff]
        %v5525 = vld [vmem:[#allocation2 + $0x11] sm:$0xff]
        %v5526 = vld [vmem:[#allocation2 + $0x19] sm:$0xff]
        %v5527 = vld [vmem:[#allocation2 + $0x21] sm:$0xff]
        %v5528 = vld [vmem:[#allocation2 + $0x29] sm:$0xff]
        %v5529 = vld [vmem:[#allocation2 + $0x31] sm:$0xff]
        %v5530 = vld [vmem:[#allocation2 + $0x39] sm:$0xff]
        %v5531 = vld [vmem:[#allocation2 + $0x41] sm:$0xff]
        %v5532 = vld [vmem:[#allocation2 + $0x49] sm:$0xff]
        %v5533 = vld [vmem:[#allocation2 + $0x51] sm:$0xff]
        %v5534 = vld [vmem:[#allocation2 + $0x59] sm:$0xff]
        %v5535 = vld [vmem:[#allocation2 + $0x61] sm:$0xff]
        %v5536 = vld [vmem:[#allocation2 + $0x69] sm:$0xff]
        %v5537 = vld [vmem:[#allocation2 + $0x71] sm:$0xff]
        %v5538 = vld [vmem:[#allocation2 + $0x79] sm:$0xff]
        %v5539 = vld [vmem:[#allocation2 + $0x81] sm:$0xff]
        %v5540 = vld [vmem:[#allocation2 + $0x89] sm:$0xff]
        %v5541 = vld [vmem:[#allocation2 + $0x91] sm:$0xff]
        %v5542 = vld [vmem:[#allocation2 + $0x99] sm:$0xff]
        %v5543 = vld [vmem:[#allocation2 + $0xa1] sm:$0xff]
        %v5544 = vld [vmem:[#allocation2 + $0xa9] sm:$0xff]
        %v5545 = vld [vmem:[#allocation2 + $0xb1] sm:$0xff]
        %v5546 = vld [vmem:[#allocation2 + $0xb9] sm:$0xff]
        %v5547 = vld [vmem:[#allocation2 + $0xc1] sm:$0xff]
        %v5548 = vld [vmem:[#allocation2 + $0xc9] sm:$0xff]
        %v5549 = vld [vmem:[#allocation2 + $0xd1] sm:$0xff]
        %v5550 = vld [vmem:[#allocation2 + $0xd9] sm:$0xff]
        %v5551 = vld [vmem:[#allocation2 + $0xe1] sm:$0xff]
        %v5552 = vld [vmem:[#allocation2 + $0xe9] sm:$0xff]
        %v5553 = vld [vmem:[#allocation2 + $0xf1] sm:$0xff]
        %v5554 = vld [vmem:[#allocation2 + $0xf9] sm:$0xff]
        %v5555 = vld [vmem:[#allocation2 + $0x101] sm:$0xff]
        %v5556 = vpack.c.bf16 %v5524, %v5524
        %v5557 = vpack.c.bf16 %v5525, %v5525
        %v5558 = vpack.c.bf16 %v5526, %v5526
        %v5559 = vpack.c.bf16 %v5527, %v5527
        %v5560 = vpack.c.bf16 %v5528, %v5528
        %v5561 = vpack.c.bf16 %v5529, %v5529
        %v5562 = vpack.c.bf16 %v5530, %v5530
        %v5563 = vpack.c.bf16 %v5531, %v5531
        %v5564 = vpack.c.bf16 %v5532, %v5532
        %v5565 = vpack.c.bf16 %v5533, %v5533
        %v5566 = vpack.c.bf16 %v5534, %v5534
        %v5567 = vpack.c.bf16 %v5535, %v5535
        %v5568 = vpack.c.bf16 %v5536, %v5536
        %v5569 = vpack.c.bf16 %v5537, %v5537
        %v5570 = vpack.c.bf16 %v5538, %v5538
        %v5571 = vpack.c.bf16 %v5539, %v5539
        %v5572 = vpack.c.bf16 %v5540, %v5540
        %v5573 = vpack.c.bf16 %v5541, %v5541
        %v5574 = vpack.c.bf16 %v5542, %v5542
        %v5575 = vpack.c.bf16 %v5543, %v5543
        %v5576 = vpack.c.bf16 %v5544, %v5544
        %v5577 = vpack.c.bf16 %v5545, %v5545
        %v5578 = vpack.c.bf16 %v5546, %v5546
        %v5579 = vpack.c.bf16 %v5547, %v5547
        %v5580 = vpack.c.bf16 %v5548, %v5548
        %v5581 = vpack.c.bf16 %v5549, %v5549
        %v5582 = vpack.c.bf16 %v5550, %v5550
        %v5583 = vpack.c.bf16 %v5551, %v5551
        %v5584 = vpack.c.bf16 %v5552, %v5552
        %v5585 = vpack.c.bf16 %v5553, %v5553
        %v5586 = vpack.c.bf16 %v5554, %v5554
        %v5587 = vpack.c.bf16 %v5555, %v5555
        %5620 = vrot.lane.b32.xlu0 %v5556, 32
        %v5621 = vpop.permute.xlu0 %5620
        %5622 = vrot.lane.b32.xlu0 %v5557, 32
        %v5623 = vpop.permute.xlu0 %5622
        %5624 = vrot.lane.b32.xlu0 %v5558, 32
        %v5625 = vpop.permute.xlu0 %5624
        %5626 = vrot.lane.b32.xlu0 %v5559, 32
        %v5627 = vpop.permute.xlu0 %5626
        %5628 = vrot.lane.b32.xlu0 %v5560, 32
        %v5629 = vpop.permute.xlu0 %5628
        %5630 = vrot.lane.b32.xlu0 %v5561, 32
        %v5631 = vpop.permute.xlu0 %5630
        %5632 = vrot.lane.b32.xlu0 %v5562, 32
        %v5633 = vpop.permute.xlu0 %5632
        %5634 = vrot.lane.b32.xlu0 %v5563, 32
        %v5635 = vpop.permute.xlu0 %5634
        %5636 = vrot.lane.b32.xlu0 %v5564, 32
        %v5637 = vpop.permute.xlu0 %5636
        %5638 = vrot.lane.b32.xlu0 %v5565, 32
        %v5639 = vpop.permute.xlu0 %5638
        %5640 = vrot.lane.b32.xlu0 %v5566, 32
        %v5641 = vpop.permute.xlu0 %5640
        %5642 = vrot.lane.b32.xlu0 %v5567, 32
        %v5643 = vpop.permute.xlu0 %5642
        %5644 = vrot.lane.b32.xlu0 %v5568, 32
        %v5645 = vpop.permute.xlu0 %5644
        %5646 = vrot.lane.b32.xlu0 %v5569, 32
        %v5647 = vpop.permute.xlu0 %5646
        %5648 = vrot.lane.b32.xlu0 %v5570, 32
        %v5649 = vpop.permute.xlu0 %5648
        %5650 = vrot.lane.b32.xlu0 %v5571, 32
        %v5651 = vpop.permute.xlu0 %5650
        %5652 = vrot.lane.b32.xlu0 %v5572, 32
        %v5653 = vpop.permute.xlu0 %5652
        %5654 = vrot.lane.b32.xlu0 %v5573, 32
        %v5655 = vpop.permute.xlu0 %5654
        %5656 = vrot.lane.b32.xlu0 %v5574, 32
        %v5657 = vpop.permute.xlu0 %5656
        %5658 = vrot.lane.b32.xlu0 %v5575, 32
        %v5659 = vpop.permute.xlu0 %5658
        %5660 = vrot.lane.b32.xlu0 %v5576, 32
        %v5661 = vpop.permute.xlu0 %5660
        %5662 = vrot.lane.b32.xlu0 %v5577, 32
        %v5663 = vpop.permute.xlu0 %5662
        %5664 = vrot.lane.b32.xlu0 %v5578, 32
        %v5665 = vpop.permute.xlu0 %5664
        %5666 = vrot.lane.b32.xlu0 %v5579, 32
        %v5667 = vpop.permute.xlu0 %5666
        %5668 = vrot.lane.b32.xlu0 %v5580, 32
        %v5669 = vpop.permute.xlu0 %5668
        %5670 = vrot.lane.b32.xlu0 %v5581, 32
        %v5671 = vpop.permute.xlu0 %5670
        %5672 = vrot.lane.b32.xlu0 %v5582, 32
        %v5673 = vpop.permute.xlu0 %5672
        %5674 = vrot.lane.b32.xlu0 %v5583, 32
        %v5675 = vpop.permute.xlu0 %5674
        %5676 = vrot.lane.b32.xlu0 %v5584, 32
        %v5677 = vpop.permute.xlu0 %5676
        %5678 = vrot.lane.b32.xlu0 %v5585, 32
        %v5679 = vpop.permute.xlu0 %5678
        %5680 = vrot.lane.b32.xlu0 %v5586, 32
        %v5681 = vpop.permute.xlu0 %5680
        %5682 = vrot.lane.b32.xlu0 %v5587, 32
        %v5683 = vpop.permute.xlu0 %5682
        %vm5716 = vcmask 388352
        %5717 = vst.msk [vmem:[#allocation6] sm:$0xf] %vm5716, %v5621
        %5718 = vst.msk [vmem:[#allocation6 + $0x8] sm:$0xf] %vm5716, %v5623
        %5719 = vst.msk [vmem:[#allocation6 + $0x10] sm:$0xf] %vm5716, %v5625
        %5720 = vst.msk [vmem:[#allocation6 + $0x18] sm:$0xf] %vm5716, %v5627
        %5721 = vst.msk [vmem:[#allocation6 + $0x20] sm:$0xf] %vm5716, %v5629
        %5722 = vst.msk [vmem:[#allocation6 + $0x28] sm:$0xf] %vm5716, %v5631
        %5723 = vst.msk [vmem:[#allocation6 + $0x30] sm:$0xf] %vm5716, %v5633
        %5724 = vst.msk [vmem:[#allocation6 + $0x38] sm:$0xf] %vm5716, %v5635
        %5725 = vst.msk [vmem:[#allocation6 + $0x40] sm:$0xf] %vm5716, %v5637
        %5726 = vst.msk [vmem:[#allocation6 + $0x48] sm:$0xf] %vm5716, %v5639
        %5727 = vst.msk [vmem:[#allocation6 + $0x50] sm:$0xf] %vm5716, %v5641
        %5728 = vst.msk [vmem:[#allocation6 + $0x58] sm:$0xf] %vm5716, %v5643
        %5729 = vst.msk [vmem:[#allocation6 + $0x60] sm:$0xf] %vm5716, %v5645
        %5730 = vst.msk [vmem:[#allocation6 + $0x68] sm:$0xf] %vm5716, %v5647
        %5731 = vst.msk [vmem:[#allocation6 + $0x70] sm:$0xf] %vm5716, %v5649
        %5732 = vst.msk [vmem:[#allocation6 + $0x78] sm:$0xf] %vm5716, %v5651
        %5733 = vst.msk [vmem:[#allocation6 + $0x80] sm:$0xf] %vm5716, %v5653
        %5734 = vst.msk [vmem:[#allocation6 + $0x88] sm:$0xf] %vm5716, %v5655
        %5735 = vst.msk [vmem:[#allocation6 + $0x90] sm:$0xf] %vm5716, %v5657
        %5736 = vst.msk [vmem:[#allocation6 + $0x98] sm:$0xf] %vm5716, %v5659
        %5737 = vst.msk [vmem:[#allocation6 + $0xa0] sm:$0xf] %vm5716, %v5661
        %5738 = vst.msk [vmem:[#allocation6 + $0xa8] sm:$0xf] %vm5716, %v5663
        %5739 = vst.msk [vmem:[#allocation6 + $0xb0] sm:$0xf] %vm5716, %v5665
        %5740 = vst.msk [vmem:[#allocation6 + $0xb8] sm:$0xf] %vm5716, %v5667
        %5741 = vst.msk [vmem:[#allocation6 + $0xc0] sm:$0xf] %vm5716, %v5669
        %5742 = vst.msk [vmem:[#allocation6 + $0xc8] sm:$0xf] %vm5716, %v5671
        %5743 = vst.msk [vmem:[#allocation6 + $0xd0] sm:$0xf] %vm5716, %v5673
        %5744 = vst.msk [vmem:[#allocation6 + $0xd8] sm:$0xf] %vm5716, %v5675
        %5745 = vst.msk [vmem:[#allocation6 + $0xe0] sm:$0xf] %vm5716, %v5677
        %5746 = vst.msk [vmem:[#allocation6 + $0xe8] sm:$0xf] %vm5716, %v5679
        %5747 = vst.msk [vmem:[#allocation6 + $0xf0] sm:$0xf] %vm5716, %v5681
        %5748 = vst.msk [vmem:[#allocation6 + $0xf8] sm:$0xf] %vm5716, %v5683
        %v5749 = vld [vmem:[#allocation2 + $0x6] sm:$0xff]
        %v5750 = vld [vmem:[#allocation2 + $0xe] sm:$0xff]
        %v5751 = vld [vmem:[#allocation2 + $0x16] sm:$0xff]
        %v5752 = vld [vmem:[#allocation2 + $0x1e] sm:$0xff]
        %v5753 = vld [vmem:[#allocation2 + $0x26] sm:$0xff]
        %v5754 = vld [vmem:[#allocation2 + $0x2e] sm:$0xff]
        %v5755 = vld [vmem:[#allocation2 + $0x36] sm:$0xff]
        %v5756 = vld [vmem:[#allocation2 + $0x3e] sm:$0xff]
        %v5757 = vld [vmem:[#allocation2 + $0x46] sm:$0xff]
        %v5758 = vld [vmem:[#allocation2 + $0x4e] sm:$0xff]
        %v5759 = vld [vmem:[#allocation2 + $0x56] sm:$0xff]
        %v5760 = vld [vmem:[#allocation2 + $0x5e] sm:$0xff]
        %v5761 = vld [vmem:[#allocation2 + $0x66] sm:$0xff]
        %v5762 = vld [vmem:[#allocation2 + $0x6e] sm:$0xff]
        %v5763 = vld [vmem:[#allocation2 + $0x76] sm:$0xff]
        %v5764 = vld [vmem:[#allocation2 + $0x7e] sm:$0xff]
        %v5765 = vld [vmem:[#allocation2 + $0x86] sm:$0xff]
        %v5766 = vld [vmem:[#allocation2 + $0x8e] sm:$0xff]
        %v5767 = vld [vmem:[#allocation2 + $0x96] sm:$0xff]
        %v5768 = vld [vmem:[#allocation2 + $0x9e] sm:$0xff]
        %v5769 = vld [vmem:[#allocation2 + $0xa6] sm:$0xff]
        %v5770 = vld [vmem:[#allocation2 + $0xae] sm:$0xff]
        %v5771 = vld [vmem:[#allocation2 + $0xb6] sm:$0xff]
        %v5772 = vld [vmem:[#allocation2 + $0xbe] sm:$0xff]
        %v5773 = vld [vmem:[#allocation2 + $0xc6] sm:$0xff]
        %v5774 = vld [vmem:[#allocation2 + $0xce] sm:$0xff]
        %v5775 = vld [vmem:[#allocation2 + $0xd6] sm:$0xff]
        %v5776 = vld [vmem:[#allocation2 + $0xde] sm:$0xff]
        %v5777 = vld [vmem:[#allocation2 + $0xe6] sm:$0xff]
        %v5778 = vld [vmem:[#allocation2 + $0xee] sm:$0xff]
        %v5779 = vld [vmem:[#allocation2 + $0xf6] sm:$0xff]
        %v5780 = vld [vmem:[#allocation2 + $0xfe] sm:$0xff]
        %v5781 = vpack.c.bf16 %v5749, %v5749
        %v5782 = vpack.c.bf16 %v5750, %v5750
        %v5783 = vpack.c.bf16 %v5751, %v5751
        %v5784 = vpack.c.bf16 %v5752, %v5752
        %v5785 = vpack.c.bf16 %v5753, %v5753
        %v5786 = vpack.c.bf16 %v5754, %v5754
        %v5787 = vpack.c.bf16 %v5755, %v5755
        %v5788 = vpack.c.bf16 %v5756, %v5756
        %v5789 = vpack.c.bf16 %v5757, %v5757
        %v5790 = vpack.c.bf16 %v5758, %v5758
        %v5791 = vpack.c.bf16 %v5759, %v5759
        %v5792 = vpack.c.bf16 %v5760, %v5760
        %v5793 = vpack.c.bf16 %v5761, %v5761
        %v5794 = vpack.c.bf16 %v5762, %v5762
        %v5795 = vpack.c.bf16 %v5763, %v5763
        %v5796 = vpack.c.bf16 %v5764, %v5764
        %v5797 = vpack.c.bf16 %v5765, %v5765
        %v5798 = vpack.c.bf16 %v5766, %v5766
        %v5799 = vpack.c.bf16 %v5767, %v5767
        %v5800 = vpack.c.bf16 %v5768, %v5768
        %v5801 = vpack.c.bf16 %v5769, %v5769
        %v5802 = vpack.c.bf16 %v5770, %v5770
        %v5803 = vpack.c.bf16 %v5771, %v5771
        %v5804 = vpack.c.bf16 %v5772, %v5772
        %v5805 = vpack.c.bf16 %v5773, %v5773
        %v5806 = vpack.c.bf16 %v5774, %v5774
        %v5807 = vpack.c.bf16 %v5775, %v5775
        %v5808 = vpack.c.bf16 %v5776, %v5776
        %v5809 = vpack.c.bf16 %v5777, %v5777
        %v5810 = vpack.c.bf16 %v5778, %v5778
        %v5811 = vpack.c.bf16 %v5779, %v5779
        %v5812 = vpack.c.bf16 %v5780, %v5780
        %5845 = vrot.lane.b32.xlu0 %v5781, 48
        %v5846 = vpop.permute.xlu0 %5845
        %5847 = vrot.lane.b32.xlu0 %v5782, 48
        %v5848 = vpop.permute.xlu0 %5847
        %5849 = vrot.lane.b32.xlu0 %v5783, 48
        %v5850 = vpop.permute.xlu0 %5849
        %5851 = vrot.lane.b32.xlu0 %v5784, 48
        %v5852 = vpop.permute.xlu0 %5851
        %5853 = vrot.lane.b32.xlu0 %v5785, 48
        %v5854 = vpop.permute.xlu0 %5853
        %5855 = vrot.lane.b32.xlu0 %v5786, 48
        %v5856 = vpop.permute.xlu0 %5855
        %5857 = vrot.lane.b32.xlu0 %v5787, 48
        %v5858 = vpop.permute.xlu0 %5857
        %5859 = vrot.lane.b32.xlu0 %v5788, 48
        %v5860 = vpop.permute.xlu0 %5859
        %5861 = vrot.lane.b32.xlu0 %v5789, 48
        %v5862 = vpop.permute.xlu0 %5861
        %5863 = vrot.lane.b32.xlu0 %v5790, 48
        %v5864 = vpop.permute.xlu0 %5863
        %5865 = vrot.lane.b32.xlu0 %v5791, 48
        %v5866 = vpop.permute.xlu0 %5865
        %5867 = vrot.lane.b32.xlu0 %v5792, 48
        %v5868 = vpop.permute.xlu0 %5867
        %5869 = vrot.lane.b32.xlu0 %v5793, 48
        %v5870 = vpop.permute.xlu0 %5869
        %5871 = vrot.lane.b32.xlu0 %v5794, 48
        %v5872 = vpop.permute.xlu0 %5871
        %5873 = vrot.lane.b32.xlu0 %v5795, 48
        %v5874 = vpop.permute.xlu0 %5873
        %5875 = vrot.lane.b32.xlu0 %v5796, 48
        %v5876 = vpop.permute.xlu0 %5875
        %5877 = vrot.lane.b32.xlu0 %v5797, 48
        %v5878 = vpop.permute.xlu0 %5877
        %5879 = vrot.lane.b32.xlu0 %v5798, 48
        %v5880 = vpop.permute.xlu0 %5879
        %5881 = vrot.lane.b32.xlu0 %v5799, 48
        %v5882 = vpop.permute.xlu0 %5881
        %5883 = vrot.lane.b32.xlu0 %v5800, 48
        %v5884 = vpop.permute.xlu0 %5883
        %5885 = vrot.lane.b32.xlu0 %v5801, 48
        %v5886 = vpop.permute.xlu0 %5885
        %5887 = vrot.lane.b32.xlu0 %v5802, 48
        %v5888 = vpop.permute.xlu0 %5887
        %5889 = vrot.lane.b32.xlu0 %v5803, 48
        %v5890 = vpop.permute.xlu0 %5889
        %5891 = vrot.lane.b32.xlu0 %v5804, 48
        %v5892 = vpop.permute.xlu0 %5891
        %5893 = vrot.lane.b32.xlu0 %v5805, 48
        %v5894 = vpop.permute.xlu0 %5893
        %5895 = vrot.lane.b32.xlu0 %v5806, 48
        %v5896 = vpop.permute.xlu0 %5895
        %5897 = vrot.lane.b32.xlu0 %v5807, 48
        %v5898 = vpop.permute.xlu0 %5897
        %5899 = vrot.lane.b32.xlu0 %v5808, 48
        %v5900 = vpop.permute.xlu0 %5899
        %5901 = vrot.lane.b32.xlu0 %v5809, 48
        %v5902 = vpop.permute.xlu0 %5901
        %5903 = vrot.lane.b32.xlu0 %v5810, 48
        %v5904 = vpop.permute.xlu0 %5903
        %5905 = vrot.lane.b32.xlu0 %v5811, 48
        %v5906 = vpop.permute.xlu0 %5905
        %5907 = vrot.lane.b32.xlu0 %v5812, 48
        %v5908 = vpop.permute.xlu0 %5907
        %vm5941 = vcmask 519552
        %5942 = vst.msk [vmem:[#allocation6] sm:$0xf] %vm5941, %v5846
        %5943 = vst.msk [vmem:[#allocation6 + $0x8] sm:$0xf] %vm5941, %v5848
        %5944 = vst.msk [vmem:[#allocation6 + $0x10] sm:$0xf] %vm5941, %v5850
        %5945 = vst.msk [vmem:[#allocation6 + $0x18] sm:$0xf] %vm5941, %v5852
        %5946 = vst.msk [vmem:[#allocation6 + $0x20] sm:$0xf] %vm5941, %v5854
        %5947 = vst.msk [vmem:[#allocation6 + $0x28] sm:$0xf] %vm5941, %v5856
        %5948 = vst.msk [vmem:[#allocation6 + $0x30] sm:$0xf] %vm5941, %v5858
        %5949 = vst.msk [vmem:[#allocation6 + $0x38] sm:$0xf] %vm5941, %v5860
        %5950 = vst.msk [vmem:[#allocation6 + $0x40] sm:$0xf] %vm5941, %v5862
        %5951 = vst.msk [vmem:[#allocation6 + $0x48] sm:$0xf] %vm5941, %v5864
        %5952 = vst.msk [vmem:[#allocation6 + $0x50] sm:$0xf] %vm5941, %v5866
        %5953 = vst.msk [vmem:[#allocation6 + $0x58] sm:$0xf] %vm5941, %v5868
        %5954 = vst.msk [vmem:[#allocation6 + $0x60] sm:$0xf] %vm5941, %v5870
        %5955 = vst.msk [vmem:[#allocation6 + $0x68] sm:$0xf] %vm5941, %v5872
        %5956 = vst.msk [vmem:[#allocation6 + $0x70] sm:$0xf] %vm5941, %v5874
        %5957 = vst.msk [vmem:[#allocation6 + $0x78] sm:$0xf] %vm5941, %v5876
        %5958 = vst.msk [vmem:[#allocation6 + $0x80] sm:$0xf] %vm5941, %v5878
        %5959 = vst.msk [vmem:[#allocation6 + $0x88] sm:$0xf] %vm5941, %v5880
        %5960 = vst.msk [vmem:[#allocation6 + $0x90] sm:$0xf] %vm5941, %v5882
        %5961 = vst.msk [vmem:[#allocation6 + $0x98] sm:$0xf] %vm5941, %v5884
        %5962 = vst.msk [vmem:[#allocation6 + $0xa0] sm:$0xf] %vm5941, %v5886
        %5963 = vst.msk [vmem:[#allocation6 + $0xa8] sm:$0xf] %vm5941, %v5888
        %5964 = vst.msk [vmem:[#allocation6 + $0xb0] sm:$0xf] %vm5941, %v5890
        %5965 = vst.msk [vmem:[#allocation6 + $0xb8] sm:$0xf] %vm5941, %v5892
        %5966 = vst.msk [vmem:[#allocation6 + $0xc0] sm:$0xf] %vm5941, %v5894
        %5967 = vst.msk [vmem:[#allocation6 + $0xc8] sm:$0xf] %vm5941, %v5896
        %5968 = vst.msk [vmem:[#allocation6 + $0xd0] sm:$0xf] %vm5941, %v5898
        %5969 = vst.msk [vmem:[#allocation6 + $0xd8] sm:$0xf] %vm5941, %v5900
        %5970 = vst.msk [vmem:[#allocation6 + $0xe0] sm:$0xf] %vm5941, %v5902
        %5971 = vst.msk [vmem:[#allocation6 + $0xe8] sm:$0xf] %vm5941, %v5904
        %5972 = vst.msk [vmem:[#allocation6 + $0xf0] sm:$0xf] %vm5941, %v5906
        %5973 = vst.msk [vmem:[#allocation6 + $0xf8] sm:$0xf] %vm5941, %v5908
        %v5974 = vld [vmem:[#allocation2 + $0xa] sm:$0xff]
        %v5975 = vld [vmem:[#allocation2 + $0x12] sm:$0xff]
        %v5976 = vld [vmem:[#allocation2 + $0x1a] sm:$0xff]
        %v5977 = vld [vmem:[#allocation2 + $0x22] sm:$0xff]
        %v5978 = vld [vmem:[#allocation2 + $0x2a] sm:$0xff]
        %v5979 = vld [vmem:[#allocation2 + $0x32] sm:$0xff]
        %v5980 = vld [vmem:[#allocation2 + $0x3a] sm:$0xff]
        %v5981 = vld [vmem:[#allocation2 + $0x42] sm:$0xff]
        %v5982 = vld [vmem:[#allocation2 + $0x4a] sm:$0xff]
        %v5983 = vld [vmem:[#allocation2 + $0x52] sm:$0xff]
        %v5984 = vld [vmem:[#allocation2 + $0x5a] sm:$0xff]
        %v5985 = vld [vmem:[#allocation2 + $0x62] sm:$0xff]
        %v5986 = vld [vmem:[#allocation2 + $0x6a] sm:$0xff]
        %v5987 = vld [vmem:[#allocation2 + $0x72] sm:$0xff]
        %v5988 = vld [vmem:[#allocation2 + $0x7a] sm:$0xff]
        %v5989 = vld [vmem:[#allocation2 + $0x82] sm:$0xff]
        %v5990 = vld [vmem:[#allocation2 + $0x8a] sm:$0xff]
        %v5991 = vld [vmem:[#allocation2 + $0x92] sm:$0xff]
        %v5992 = vld [vmem:[#allocation2 + $0x9a] sm:$0xff]
        %v5993 = vld [vmem:[#allocation2 + $0xa2] sm:$0xff]
        %v5994 = vld [vmem:[#allocation2 + $0xaa] sm:$0xff]
        %v5995 = vld [vmem:[#allocation2 + $0xb2] sm:$0xff]
        %v5996 = vld [vmem:[#allocation2 + $0xba] sm:$0xff]
        %v5997 = vld [vmem:[#allocation2 + $0xc2] sm:$0xff]
        %v5998 = vld [vmem:[#allocation2 + $0xca] sm:$0xff]
        %v5999 = vld [vmem:[#allocation2 + $0xd2] sm:$0xff]
        %v6000 = vld [vmem:[#allocation2 + $0xda] sm:$0xff]
        %v6001 = vld [vmem:[#allocation2 + $0xe2] sm:$0xff]
        %v6002 = vld [vmem:[#allocation2 + $0xea] sm:$0xff]
        %v6003 = vld [vmem:[#allocation2 + $0xf2] sm:$0xff]
        %v6004 = vld [vmem:[#allocation2 + $0xfa] sm:$0xff]
        %v6005 = vld [vmem:[#allocation2 + $0x102] sm:$0xff]
        %v6006 = vpack.c.bf16 %v5974, %v5974
        %v6007 = vpack.c.bf16 %v5975, %v5975
        %v6008 = vpack.c.bf16 %v5976, %v5976
        %v6009 = vpack.c.bf16 %v5977, %v5977
        %v6010 = vpack.c.bf16 %v5978, %v5978
        %v6011 = vpack.c.bf16 %v5979, %v5979
        %v6012 = vpack.c.bf16 %v5980, %v5980
        %v6013 = vpack.c.bf16 %v5981, %v5981
        %v6014 = vpack.c.bf16 %v5982, %v5982
        %v6015 = vpack.c.bf16 %v5983, %v5983
        %v6016 = vpack.c.bf16 %v5984, %v5984
        %v6017 = vpack.c.bf16 %v5985, %v5985
        %v6018 = vpack.c.bf16 %v5986, %v5986
        %v6019 = vpack.c.bf16 %v5987, %v5987
        %v6020 = vpack.c.bf16 %v5988, %v5988
        %v6021 = vpack.c.bf16 %v5989, %v5989
        %v6022 = vpack.c.bf16 %v5990, %v5990
        %v6023 = vpack.c.bf16 %v5991, %v5991
        %v6024 = vpack.c.bf16 %v5992, %v5992
        %v6025 = vpack.c.bf16 %v5993, %v5993
        %v6026 = vpack.c.bf16 %v5994, %v5994
        %v6027 = vpack.c.bf16 %v5995, %v5995
        %v6028 = vpack.c.bf16 %v5996, %v5996
        %v6029 = vpack.c.bf16 %v5997, %v5997
        %v6030 = vpack.c.bf16 %v5998, %v5998
        %v6031 = vpack.c.bf16 %v5999, %v5999
        %v6032 = vpack.c.bf16 %v6000, %v6000
        %v6033 = vpack.c.bf16 %v6001, %v6001
        %v6034 = vpack.c.bf16 %v6002, %v6002
        %v6035 = vpack.c.bf16 %v6003, %v6003
        %v6036 = vpack.c.bf16 %v6004, %v6004
        %v6037 = vpack.c.bf16 %v6005, %v6005
        %6070 = vrot.lane.b32.xlu0 %v6006, 64
        %v6071 = vpop.permute.xlu0 %6070
        %6072 = vrot.lane.b32.xlu0 %v6007, 64
        %v6073 = vpop.permute.xlu0 %6072
        %6074 = vrot.lane.b32.xlu0 %v6008, 64
        %v6075 = vpop.permute.xlu0 %6074
        %6076 = vrot.lane.b32.xlu0 %v6009, 64
        %v6077 = vpop.permute.xlu0 %6076
        %6078 = vrot.lane.b32.xlu0 %v6010, 64
        %v6079 = vpop.permute.xlu0 %6078
        %6080 = vrot.lane.b32.xlu0 %v6011, 64
        %v6081 = vpop.permute.xlu0 %6080
        %6082 = vrot.lane.b32.xlu0 %v6012, 64
        %v6083 = vpop.permute.xlu0 %6082
        %6084 = vrot.lane.b32.xlu0 %v6013, 64
        %v6085 = vpop.permute.xlu0 %6084
        %6086 = vrot.lane.b32.xlu0 %v6014, 64
        %v6087 = vpop.permute.xlu0 %6086
        %6088 = vrot.lane.b32.xlu0 %v6015, 64
        %v6089 = vpop.permute.xlu0 %6088
        %6090 = vrot.lane.b32.xlu0 %v6016, 64
        %v6091 = vpop.permute.xlu0 %6090
        %6092 = vrot.lane.b32.xlu0 %v6017, 64
        %v6093 = vpop.permute.xlu0 %6092
        %6094 = vrot.lane.b32.xlu0 %v6018, 64
        %v6095 = vpop.permute.xlu0 %6094
        %6096 = vrot.lane.b32.xlu0 %v6019, 64
        %v6097 = vpop.permute.xlu0 %6096
        %6098 = vrot.lane.b32.xlu0 %v6020, 64
        %v6099 = vpop.permute.xlu0 %6098
        %6100 = vrot.lane.b32.xlu0 %v6021, 64
        %v6101 = vpop.permute.xlu0 %6100
        %6102 = vrot.lane.b32.xlu0 %v6022, 64
        %v6103 = vpop.permute.xlu0 %6102
        %6104 = vrot.lane.b32.xlu0 %v6023, 64
        %v6105 = vpop.permute.xlu0 %6104
        %6106 = vrot.lane.b32.xlu0 %v6024, 64
        %v6107 = vpop.permute.xlu0 %6106
        %6108 = vrot.lane.b32.xlu0 %v6025, 64
        %v6109 = vpop.permute.xlu0 %6108
        %6110 = vrot.lane.b32.xlu0 %v6026, 64
        %v6111 = vpop.permute.xlu0 %6110
        %6112 = vrot.lane.b32.xlu0 %v6027, 64
        %v6113 = vpop.permute.xlu0 %6112
        %6114 = vrot.lane.b32.xlu0 %v6028, 64
        %v6115 = vpop.permute.xlu0 %6114
        %6116 = vrot.lane.b32.xlu0 %v6029, 64
        %v6117 = vpop.permute.xlu0 %6116
        %6118 = vrot.lane.b32.xlu0 %v6030, 64
        %v6119 = vpop.permute.xlu0 %6118
        %6120 = vrot.lane.b32.xlu0 %v6031, 64
        %v6121 = vpop.permute.xlu0 %6120
        %6122 = vrot.lane.b32.xlu0 %v6032, 64
        %v6123 = vpop.permute.xlu0 %6122
        %6124 = vrot.lane.b32.xlu0 %v6033, 64
        %v6125 = vpop.permute.xlu0 %6124
        %6126 = vrot.lane.b32.xlu0 %v6034, 64
        %v6127 = vpop.permute.xlu0 %6126
        %6128 = vrot.lane.b32.xlu0 %v6035, 64
        %v6129 = vpop.permute.xlu0 %6128
        %6130 = vrot.lane.b32.xlu0 %v6036, 64
        %v6131 = vpop.permute.xlu0 %6130
        %6132 = vrot.lane.b32.xlu0 %v6037, 64
        %v6133 = vpop.permute.xlu0 %6132
        %vm6166 = vcmask 650752
        %6167 = vst.msk [vmem:[#allocation6] sm:$0xf] %vm6166, %v6071
        %6168 = vst.msk [vmem:[#allocation6 + $0x8] sm:$0xf] %vm6166, %v6073
        %6169 = vst.msk [vmem:[#allocation6 + $0x10] sm:$0xf] %vm6166, %v6075
        %6170 = vst.msk [vmem:[#allocation6 + $0x18] sm:$0xf] %vm6166, %v6077
        %6171 = vst.msk [vmem:[#allocation6 + $0x20] sm:$0xf] %vm6166, %v6079
        %6172 = vst.msk [vmem:[#allocation6 + $0x28] sm:$0xf] %vm6166, %v6081
        %6173 = vst.msk [vmem:[#allocation6 + $0x30] sm:$0xf] %vm6166, %v6083
        %6174 = vst.msk [vmem:[#allocation6 + $0x38] sm:$0xf] %vm6166, %v6085
        %6175 = vst.msk [vmem:[#allocation6 + $0x40] sm:$0xf] %vm6166, %v6087
        %6176 = vst.msk [vmem:[#allocation6 + $0x48] sm:$0xf] %vm6166, %v6089
        %6177 = vst.msk [vmem:[#allocation6 + $0x50] sm:$0xf] %vm6166, %v6091
        %6178 = vst.msk [vmem:[#allocation6 + $0x58] sm:$0xf] %vm6166, %v6093
        %6179 = vst.msk [vmem:[#allocation6 + $0x60] sm:$0xf] %vm6166, %v6095
        %6180 = vst.msk [vmem:[#allocation6 + $0x68] sm:$0xf] %vm6166, %v6097
        %6181 = vst.msk [vmem:[#allocation6 + $0x70] sm:$0xf] %vm6166, %v6099
        %6182 = vst.msk [vmem:[#allocation6 + $0x78] sm:$0xf] %vm6166, %v6101
        %6183 = vst.msk [vmem:[#allocation6 + $0x80] sm:$0xf] %vm6166, %v6103
        %6184 = vst.msk [vmem:[#allocation6 + $0x88] sm:$0xf] %vm6166, %v6105
        %6185 = vst.msk [vmem:[#allocation6 + $0x90] sm:$0xf] %vm6166, %v6107
        %6186 = vst.msk [vmem:[#allocation6 + $0x98] sm:$0xf] %vm6166, %v6109
        %6187 = vst.msk [vmem:[#allocation6 + $0xa0] sm:$0xf] %vm6166, %v6111
        %6188 = vst.msk [vmem:[#allocation6 + $0xa8] sm:$0xf] %vm6166, %v6113
        %6189 = vst.msk [vmem:[#allocation6 + $0xb0] sm:$0xf] %vm6166, %v6115
        %6190 = vst.msk [vmem:[#allocation6 + $0xb8] sm:$0xf] %vm6166, %v6117
        %6191 = vst.msk [vmem:[#allocation6 + $0xc0] sm:$0xf] %vm6166, %v6119
        %6192 = vst.msk [vmem:[#allocation6 + $0xc8] sm:$0xf] %vm6166, %v6121
        %6193 = vst.msk [vmem:[#allocation6 + $0xd0] sm:$0xf] %vm6166, %v6123
        %6194 = vst.msk [vmem:[#allocation6 + $0xd8] sm:$0xf] %vm6166, %v6125
        %6195 = vst.msk [vmem:[#allocation6 + $0xe0] sm:$0xf] %vm6166, %v6127
        %6196 = vst.msk [vmem:[#allocation6 + $0xe8] sm:$0xf] %vm6166, %v6129
        %6197 = vst.msk [vmem:[#allocation6 + $0xf0] sm:$0xf] %vm6166, %v6131
        %6198 = vst.msk [vmem:[#allocation6 + $0xf8] sm:$0xf] %vm6166, %v6133
        %v6199 = vld [vmem:[#allocation2 + $0x4] sm:$0xff]
        %v6200 = vld [vmem:[#allocation2 + $0xc] sm:$0xff]
        %v6201 = vld [vmem:[#allocation2 + $0x14] sm:$0xff]
        %v6202 = vld [vmem:[#allocation2 + $0x1c] sm:$0xff]
        %v6203 = vld [vmem:[#allocation2 + $0x24] sm:$0xff]
        %v6204 = vld [vmem:[#allocation2 + $0x2c] sm:$0xff]
        %v6205 = vld [vmem:[#allocation2 + $0x34] sm:$0xff]
        %v6206 = vld [vmem:[#allocation2 + $0x3c] sm:$0xff]
        %v6207 = vld [vmem:[#allocation2 + $0x44] sm:$0xff]
        %v6208 = vld [vmem:[#allocation2 + $0x4c] sm:$0xff]
        %v6209 = vld [vmem:[#allocation2 + $0x54] sm:$0xff]
        %v6210 = vld [vmem:[#allocation2 + $0x5c] sm:$0xff]
        %v6211 = vld [vmem:[#allocation2 + $0x64] sm:$0xff]
        %v6212 = vld [vmem:[#allocation2 + $0x6c] sm:$0xff]
        %v6213 = vld [vmem:[#allocation2 + $0x74] sm:$0xff]
        %v6214 = vld [vmem:[#allocation2 + $0x7c] sm:$0xff]
        %v6215 = vld [vmem:[#allocation2 + $0x84] sm:$0xff]
        %v6216 = vld [vmem:[#allocation2 + $0x8c] sm:$0xff]
        %v6217 = vld [vmem:[#allocation2 + $0x94] sm:$0xff]
        %v6218 = vld [vmem:[#allocation2 + $0x9c] sm:$0xff]
        %v6219 = vld [vmem:[#allocation2 + $0xa4] sm:$0xff]
        %v6220 = vld [vmem:[#allocation2 + $0xac] sm:$0xff]
        %v6221 = vld [vmem:[#allocation2 + $0xb4] sm:$0xff]
        %v6222 = vld [vmem:[#allocation2 + $0xbc] sm:$0xff]
        %v6223 = vld [vmem:[#allocation2 + $0xc4] sm:$0xff]
        %v6224 = vld [vmem:[#allocation2 + $0xcc] sm:$0xff]
        %v6225 = vld [vmem:[#allocation2 + $0xd4] sm:$0xff]
        %v6226 = vld [vmem:[#allocation2 + $0xdc] sm:$0xff]
        %v6227 = vld [vmem:[#allocation2 + $0xe4] sm:$0xff]
        %v6228 = vld [vmem:[#allocation2 + $0xec] sm:$0xff]
        %v6229 = vld [vmem:[#allocation2 + $0xf4] sm:$0xff]
        %v6230 = vld [vmem:[#allocation2 + $0xfc] sm:$0xff]
        %v6231 = vpack.c.bf16 %v6199, %v6199
        %v6232 = vpack.c.bf16 %v6200, %v6200
        %v6233 = vpack.c.bf16 %v6201, %v6201
        %v6234 = vpack.c.bf16 %v6202, %v6202
        %v6235 = vpack.c.bf16 %v6203, %v6203
        %v6236 = vpack.c.bf16 %v6204, %v6204
        %v6237 = vpack.c.bf16 %v6205, %v6205
        %v6238 = vpack.c.bf16 %v6206, %v6206
        %v6239 = vpack.c.bf16 %v6207, %v6207
        %v6240 = vpack.c.bf16 %v6208, %v6208
        %v6241 = vpack.c.bf16 %v6209, %v6209
        %v6242 = vpack.c.bf16 %v6210, %v6210
        %v6243 = vpack.c.bf16 %v6211, %v6211
        %v6244 = vpack.c.bf16 %v6212, %v6212
        %v6245 = vpack.c.bf16 %v6213, %v6213
        %v6246 = vpack.c.bf16 %v6214, %v6214
        %v6247 = vpack.c.bf16 %v6215, %v6215
        %v6248 = vpack.c.bf16 %v6216, %v6216
        %v6249 = vpack.c.bf16 %v6217, %v6217
        %v6250 = vpack.c.bf16 %v6218, %v6218
        %v6251 = vpack.c.bf16 %v6219, %v6219
        %v6252 = vpack.c.bf16 %v6220, %v6220
        %v6253 = vpack.c.bf16 %v6221, %v6221
        %v6254 = vpack.c.bf16 %v6222, %v6222
        %v6255 = vpack.c.bf16 %v6223, %v6223
        %v6256 = vpack.c.bf16 %v6224, %v6224
        %v6257 = vpack.c.bf16 %v6225, %v6225
        %v6258 = vpack.c.bf16 %v6226, %v6226
        %v6259 = vpack.c.bf16 %v6227, %v6227
        %v6260 = vpack.c.bf16 %v6228, %v6228
        %v6261 = vpack.c.bf16 %v6229, %v6229
        %v6262 = vpack.c.bf16 %v6230, %v6230
        %6295 = vrot.lane.b32.xlu0 %v6231, 80
        %v6296 = vpop.permute.xlu0 %6295
        %6297 = vrot.lane.b32.xlu0 %v6232, 80
        %v6298 = vpop.permute.xlu0 %6297
        %6299 = vrot.lane.b32.xlu0 %v6233, 80
        %v6300 = vpop.permute.xlu0 %6299
        %6301 = vrot.lane.b32.xlu0 %v6234, 80
        %v6302 = vpop.permute.xlu0 %6301
        %6303 = vrot.lane.b32.xlu0 %v6235, 80
        %v6304 = vpop.permute.xlu0 %6303
        %6305 = vrot.lane.b32.xlu0 %v6236, 80
        %v6306 = vpop.permute.xlu0 %6305
        %6307 = vrot.lane.b32.xlu0 %v6237, 80
        %v6308 = vpop.permute.xlu0 %6307
        %6309 = vrot.lane.b32.xlu0 %v6238, 80
        %v6310 = vpop.permute.xlu0 %6309
        %6311 = vrot.lane.b32.xlu0 %v6239, 80
        %v6312 = vpop.permute.xlu0 %6311
        %6313 = vrot.lane.b32.xlu0 %v6240, 80
        %v6314 = vpop.permute.xlu0 %6313
        %6315 = vrot.lane.b32.xlu0 %v6241, 80
        %v6316 = vpop.permute.xlu0 %6315
        %6317 = vrot.lane.b32.xlu0 %v6242, 80
        %v6318 = vpop.permute.xlu0 %6317
        %6319 = vrot.lane.b32.xlu0 %v6243, 80
        %v6320 = vpop.permute.xlu0 %6319
        %6321 = vrot.lane.b32.xlu0 %v6244, 80
        %v6322 = vpop.permute.xlu0 %6321
        %6323 = vrot.lane.b32.xlu0 %v6245, 80
        %v6324 = vpop.permute.xlu0 %6323
        %6325 = vrot.lane.b32.xlu0 %v6246, 80
        %v6326 = vpop.permute.xlu0 %6325
        %6327 = vrot.lane.b32.xlu0 %v6247, 80
        %v6328 = vpop.permute.xlu0 %6327
        %6329 = vrot.lane.b32.xlu0 %v6248, 80
        %v6330 = vpop.permute.xlu0 %6329
        %6331 = vrot.lane.b32.xlu0 %v6249, 80
        %v6332 = vpop.permute.xlu0 %6331
        %6333 = vrot.lane.b32.xlu0 %v6250, 80
        %v6334 = vpop.permute.xlu0 %6333
        %6335 = vrot.lane.b32.xlu0 %v6251, 80
        %v6336 = vpop.permute.xlu0 %6335
        %6337 = vrot.lane.b32.xlu0 %v6252, 80
        %v6338 = vpop.permute.xlu0 %6337
        %6339 = vrot.lane.b32.xlu0 %v6253, 80
        %v6340 = vpop.permute.xlu0 %6339
        %6341 = vrot.lane.b32.xlu0 %v6254, 80
        %v6342 = vpop.permute.xlu0 %6341
        %6343 = vrot.lane.b32.xlu0 %v6255, 80
        %v6344 = vpop.permute.xlu0 %6343
        %6345 = vrot.lane.b32.xlu0 %v6256, 80
        %v6346 = vpop.permute.xlu0 %6345
        %6347 = vrot.lane.b32.xlu0 %v6257, 80
        %v6348 = vpop.permute.xlu0 %6347
        %6349 = vrot.lane.b32.xlu0 %v6258, 80
        %v6350 = vpop.permute.xlu0 %6349
        %6351 = vrot.lane.b32.xlu0 %v6259, 80
        %v6352 = vpop.permute.xlu0 %6351
        %6353 = vrot.lane.b32.xlu0 %v6260, 80
        %v6354 = vpop.permute.xlu0 %6353
        %6355 = vrot.lane.b32.xlu0 %v6261, 80
        %v6356 = vpop.permute.xlu0 %6355
        %6357 = vrot.lane.b32.xlu0 %v6262, 80
        %v6358 = vpop.permute.xlu0 %6357
        %vm6391 = vcmask 781952
        %6392 = vst.msk [vmem:[#allocation6] sm:$0xf] %vm6391, %v6296
        %6393 = vst.msk [vmem:[#allocation6 + $0x8] sm:$0xf] %vm6391, %v6298
        %6394 = vst.msk [vmem:[#allocation6 + $0x10] sm:$0xf] %vm6391, %v6300
        %6395 = vst.msk [vmem:[#allocation6 + $0x18] sm:$0xf] %vm6391, %v6302
        %6396 = vst.msk [vmem:[#allocation6 + $0x20] sm:$0xf] %vm6391, %v6304
        %6397 = vst.msk [vmem:[#allocation6 + $0x28] sm:$0xf] %vm6391, %v6306
        %6398 = vst.msk [vmem:[#allocation6 + $0x30] sm:$0xf] %vm6391, %v6308
        %6399 = vst.msk [vmem:[#allocation6 + $0x38] sm:$0xf] %vm6391, %v6310
        %6400 = vst.msk [vmem:[#allocation6 + $0x40] sm:$0xf] %vm6391, %v6312
        %6401 = vst.msk [vmem:[#allocation6 + $0x48] sm:$0xf] %vm6391, %v6314
        %6402 = vst.msk [vmem:[#allocation6 + $0x50] sm:$0xf] %vm6391, %v6316
        %6403 = vst.msk [vmem:[#allocation6 + $0x58] sm:$0xf] %vm6391, %v6318
        %6404 = vst.msk [vmem:[#allocation6 + $0x60] sm:$0xf] %vm6391, %v6320
        %6405 = vst.msk [vmem:[#allocation6 + $0x68] sm:$0xf] %vm6391, %v6322
        %6406 = vst.msk [vmem:[#allocation6 + $0x70] sm:$0xf] %vm6391, %v6324
        %6407 = vst.msk [vmem:[#allocation6 + $0x78] sm:$0xf] %vm6391, %v6326
        %6408 = vst.msk [vmem:[#allocation6 + $0x80] sm:$0xf] %vm6391, %v6328
        %6409 = vst.msk [vmem:[#allocation6 + $0x88] sm:$0xf] %vm6391, %v6330
        %6410 = vst.msk [vmem:[#allocation6 + $0x90] sm:$0xf] %vm6391, %v6332
        %6411 = vst.msk [vmem:[#allocation6 + $0x98] sm:$0xf] %vm6391, %v6334
        %6412 = vst.msk [vmem:[#allocation6 + $0xa0] sm:$0xf] %vm6391, %v6336
        %6413 = vst.msk [vmem:[#allocation6 + $0xa8] sm:$0xf] %vm6391, %v6338
        %6414 = vst.msk [vmem:[#allocation6 + $0xb0] sm:$0xf] %vm6391, %v6340
        %6415 = vst.msk [vmem:[#allocation6 + $0xb8] sm:$0xf] %vm6391, %v6342
        %6416 = vst.msk [vmem:[#allocation6 + $0xc0] sm:$0xf] %vm6391, %v6344
        %6417 = vst.msk [vmem:[#allocation6 + $0xc8] sm:$0xf] %vm6391, %v6346
        %6418 = vst.msk [vmem:[#allocation6 + $0xd0] sm:$0xf] %vm6391, %v6348
        %6419 = vst.msk [vmem:[#allocation6 + $0xd8] sm:$0xf] %vm6391, %v6350
        %6420 = vst.msk [vmem:[#allocation6 + $0xe0] sm:$0xf] %vm6391, %v6352
        %6421 = vst.msk [vmem:[#allocation6 + $0xe8] sm:$0xf] %vm6391, %v6354
        %6422 = vst.msk [vmem:[#allocation6 + $0xf0] sm:$0xf] %vm6391, %v6356
        %6423 = vst.msk [vmem:[#allocation6 + $0xf8] sm:$0xf] %vm6391, %v6358
        %v6424 = vld [vmem:[#allocation2 + $0xc] sm:$0xff]
        %v6425 = vld [vmem:[#allocation2 + $0x14] sm:$0xff]
        %v6426 = vld [vmem:[#allocation2 + $0x1c] sm:$0xff]
        %v6427 = vld [vmem:[#allocation2 + $0x24] sm:$0xff]
        %v6428 = vld [vmem:[#allocation2 + $0x2c] sm:$0xff]
        %v6429 = vld [vmem:[#allocation2 + $0x34] sm:$0xff]
        %v6430 = vld [vmem:[#allocation2 + $0x3c] sm:$0xff]
        %v6431 = vld [vmem:[#allocation2 + $0x44] sm:$0xff]
        %v6432 = vld [vmem:[#allocation2 + $0x4c] sm:$0xff]
        %v6433 = vld [vmem:[#allocation2 + $0x54] sm:$0xff]
        %v6434 = vld [vmem:[#allocation2 + $0x5c] sm:$0xff]
        %v6435 = vld [vmem:[#allocation2 + $0x64] sm:$0xff]
        %v6436 = vld [vmem:[#allocation2 + $0x6c] sm:$0xff]
        %v6437 = vld [vmem:[#allocation2 + $0x74] sm:$0xff]
        %v6438 = vld [vmem:[#allocation2 + $0x7c] sm:$0xff]
        %v6439 = vld [vmem:[#allocation2 + $0x84] sm:$0xff]
        %v6440 = vld [vmem:[#allocation2 + $0x8c] sm:$0xff]
        %v6441 = vld [vmem:[#allocation2 + $0x94] sm:$0xff]
        %v6442 = vld [vmem:[#allocation2 + $0x9c] sm:$0xff]
        %v6443 = vld [vmem:[#allocation2 + $0xa4] sm:$0xff]
        %v6444 = vld [vmem:[#allocation2 + $0xac] sm:$0xff]
        %v6445 = vld [vmem:[#allocation2 + $0xb4] sm:$0xff]
        %v6446 = vld [vmem:[#allocation2 + $0xbc] sm:$0xff]
        %v6447 = vld [vmem:[#allocation2 + $0xc4] sm:$0xff]
        %v6448 = vld [vmem:[#allocation2 + $0xcc] sm:$0xff]
        %v6449 = vld [vmem:[#allocation2 + $0xd4] sm:$0xff]
        %v6450 = vld [vmem:[#allocation2 + $0xdc] sm:$0xff]
        %v6451 = vld [vmem:[#allocation2 + $0xe4] sm:$0xff]
        %v6452 = vld [vmem:[#allocation2 + $0xec] sm:$0xff]
        %v6453 = vld [vmem:[#allocation2 + $0xf4] sm:$0xff]
        %v6454 = vld [vmem:[#allocation2 + $0xfc] sm:$0xff]
        %v6455 = vld [vmem:[#allocation2 + $0x104] sm:$0xff]
        %v6456 = vpack.c.bf16 %v6424, %v6424
        %v6457 = vpack.c.bf16 %v6425, %v6425
        %v6458 = vpack.c.bf16 %v6426, %v6426
        %v6459 = vpack.c.bf16 %v6427, %v6427
        %v6460 = vpack.c.bf16 %v6428, %v6428
        %v6461 = vpack.c.bf16 %v6429, %v6429
        %v6462 = vpack.c.bf16 %v6430, %v6430
        %v6463 = vpack.c.bf16 %v6431, %v6431
        %v6464 = vpack.c.bf16 %v6432, %v6432
        %v6465 = vpack.c.bf16 %v6433, %v6433
        %v6466 = vpack.c.bf16 %v6434, %v6434
        %v6467 = vpack.c.bf16 %v6435, %v6435
        %v6468 = vpack.c.bf16 %v6436, %v6436
        %v6469 = vpack.c.bf16 %v6437, %v6437
        %v6470 = vpack.c.bf16 %v6438, %v6438
        %v6471 = vpack.c.bf16 %v6439, %v6439
        %v6472 = vpack.c.bf16 %v6440, %v6440
        %v6473 = vpack.c.bf16 %v6441, %v6441
        %v6474 = vpack.c.bf16 %v6442, %v6442
        %v6475 = vpack.c.bf16 %v6443, %v6443
        %v6476 = vpack.c.bf16 %v6444, %v6444
        %v6477 = vpack.c.bf16 %v6445, %v6445
        %v6478 = vpack.c.bf16 %v6446, %v6446
        %v6479 = vpack.c.bf16 %v6447, %v6447
        %v6480 = vpack.c.bf16 %v6448, %v6448
        %v6481 = vpack.c.bf16 %v6449, %v6449
        %v6482 = vpack.c.bf16 %v6450, %v6450
        %v6483 = vpack.c.bf16 %v6451, %v6451
        %v6484 = vpack.c.bf16 %v6452, %v6452
        %v6485 = vpack.c.bf16 %v6453, %v6453
        %v6486 = vpack.c.bf16 %v6454, %v6454
        %v6487 = vpack.c.bf16 %v6455, %v6455
        %6520 = vrot.lane.b32.xlu0 %v6456, 96
        %v6521 = vpop.permute.xlu0 %6520
        %6522 = vrot.lane.b32.xlu0 %v6457, 96
        %v6523 = vpop.permute.xlu0 %6522
        %6524 = vrot.lane.b32.xlu0 %v6458, 96
        %v6525 = vpop.permute.xlu0 %6524
        %6526 = vrot.lane.b32.xlu0 %v6459, 96
        %v6527 = vpop.permute.xlu0 %6526
        %6528 = vrot.lane.b32.xlu0 %v6460, 96
        %v6529 = vpop.permute.xlu0 %6528
        %6530 = vrot.lane.b32.xlu0 %v6461, 96
        %v6531 = vpop.permute.xlu0 %6530
        %6532 = vrot.lane.b32.xlu0 %v6462, 96
        %v6533 = vpop.permute.xlu0 %6532
        %6534 = vrot.lane.b32.xlu0 %v6463, 96
        %v6535 = vpop.permute.xlu0 %6534
        %6536 = vrot.lane.b32.xlu0 %v6464, 96
        %v6537 = vpop.permute.xlu0 %6536
        %6538 = vrot.lane.b32.xlu0 %v6465, 96
        %v6539 = vpop.permute.xlu0 %6538
        %6540 = vrot.lane.b32.xlu0 %v6466, 96
        %v6541 = vpop.permute.xlu0 %6540
        %6542 = vrot.lane.b32.xlu0 %v6467, 96
        %v6543 = vpop.permute.xlu0 %6542
        %6544 = vrot.lane.b32.xlu0 %v6468, 96
        %v6545 = vpop.permute.xlu0 %6544
        %6546 = vrot.lane.b32.xlu0 %v6469, 96
        %v6547 = vpop.permute.xlu0 %6546
        %6548 = vrot.lane.b32.xlu0 %v6470, 96
        %v6549 = vpop.permute.xlu0 %6548
        %6550 = vrot.lane.b32.xlu0 %v6471, 96
        %v6551 = vpop.permute.xlu0 %6550
        %6552 = vrot.lane.b32.xlu0 %v6472, 96
        %v6553 = vpop.permute.xlu0 %6552
        %6554 = vrot.lane.b32.xlu0 %v6473, 96
        %v6555 = vpop.permute.xlu0 %6554
        %6556 = vrot.lane.b32.xlu0 %v6474, 96
        %v6557 = vpop.permute.xlu0 %6556
        %6558 = vrot.lane.b32.xlu0 %v6475, 96
        %v6559 = vpop.permute.xlu0 %6558
        %6560 = vrot.lane.b32.xlu0 %v6476, 96
        %v6561 = vpop.permute.xlu0 %6560
        %6562 = vrot.lane.b32.xlu0 %v6477, 96
        %v6563 = vpop.permute.xlu0 %6562
        %6564 = vrot.lane.b32.xlu0 %v6478, 96
        %v6565 = vpop.permute.xlu0 %6564
        %6566 = vrot.lane.b32.xlu0 %v6479, 96
        %v6567 = vpop.permute.xlu0 %6566
        %6568 = vrot.lane.b32.xlu0 %v6480, 96
        %v6569 = vpop.permute.xlu0 %6568
        %6570 = vrot.lane.b32.xlu0 %v6481, 96
        %v6571 = vpop.permute.xlu0 %6570
        %6572 = vrot.lane.b32.xlu0 %v6482, 96
        %v6573 = vpop.permute.xlu0 %6572
        %6574 = vrot.lane.b32.xlu0 %v6483, 96
        %v6575 = vpop.permute.xlu0 %6574
        %6576 = vrot.lane.b32.xlu0 %v6484, 96
        %v6577 = vpop.permute.xlu0 %6576
        %6578 = vrot.lane.b32.xlu0 %v6485, 96
        %v6579 = vpop.permute.xlu0 %6578
        %6580 = vrot.lane.b32.xlu0 %v6486, 96
        %v6581 = vpop.permute.xlu0 %6580
        %6582 = vrot.lane.b32.xlu0 %v6487, 96
        %v6583 = vpop.permute.xlu0 %6582
        %vm6616 = vcmask 913152
        %6617 = vst.msk [vmem:[#allocation6] sm:$0xf] %vm6616, %v6521
        %6618 = vst.msk [vmem:[#allocation6 + $0x8] sm:$0xf] %vm6616, %v6523
        %6619 = vst.msk [vmem:[#allocation6 + $0x10] sm:$0xf] %vm6616, %v6525
        %6620 = vst.msk [vmem:[#allocation6 + $0x18] sm:$0xf] %vm6616, %v6527
        %6621 = vst.msk [vmem:[#allocation6 + $0x20] sm:$0xf] %vm6616, %v6529
        %6622 = vst.msk [vmem:[#allocation6 + $0x28] sm:$0xf] %vm6616, %v6531
        %6623 = vst.msk [vmem:[#allocation6 + $0x30] sm:$0xf] %vm6616, %v6533
        %6624 = vst.msk [vmem:[#allocation6 + $0x38] sm:$0xf] %vm6616, %v6535
        %6625 = vst.msk [vmem:[#allocation6 + $0x40] sm:$0xf] %vm6616, %v6537
        %6626 = vst.msk [vmem:[#allocation6 + $0x48] sm:$0xf] %vm6616, %v6539
        %6627 = vst.msk [vmem:[#allocation6 + $0x50] sm:$0xf] %vm6616, %v6541
        %6628 = vst.msk [vmem:[#allocation6 + $0x58] sm:$0xf] %vm6616, %v6543
        %6629 = vst.msk [vmem:[#allocation6 + $0x60] sm:$0xf] %vm6616, %v6545
        %6630 = vst.msk [vmem:[#allocation6 + $0x68] sm:$0xf] %vm6616, %v6547
        %6631 = vst.msk [vmem:[#allocation6 + $0x70] sm:$0xf] %vm6616, %v6549
        %6632 = vst.msk [vmem:[#allocation6 + $0x78] sm:$0xf] %vm6616, %v6551
        %6633 = vst.msk [vmem:[#allocation6 + $0x80] sm:$0xf] %vm6616, %v6553
        %6634 = vst.msk [vmem:[#allocation6 + $0x88] sm:$0xf] %vm6616, %v6555
        %6635 = vst.msk [vmem:[#allocation6 + $0x90] sm:$0xf] %vm6616, %v6557
        %6636 = vst.msk [vmem:[#allocation6 + $0x98] sm:$0xf] %vm6616, %v6559
        %6637 = vst.msk [vmem:[#allocation6 + $0xa0] sm:$0xf] %vm6616, %v6561
        %6638 = vst.msk [vmem:[#allocation6 + $0xa8] sm:$0xf] %vm6616, %v6563
        %6639 = vst.msk [vmem:[#allocation6 + $0xb0] sm:$0xf] %vm6616, %v6565
        %6640 = vst.msk [vmem:[#allocation6 + $0xb8] sm:$0xf] %vm6616, %v6567
        %6641 = vst.msk [vmem:[#allocation6 + $0xc0] sm:$0xf] %vm6616, %v6569
        %6642 = vst.msk [vmem:[#allocation6 + $0xc8] sm:$0xf] %vm6616, %v6571
        %6643 = vst.msk [vmem:[#allocation6 + $0xd0] sm:$0xf] %vm6616, %v6573
        %6644 = vst.msk [vmem:[#allocation6 + $0xd8] sm:$0xf] %vm6616, %v6575
        %6645 = vst.msk [vmem:[#allocation6 + $0xe0] sm:$0xf] %vm6616, %v6577
        %6646 = vst.msk [vmem:[#allocation6 + $0xe8] sm:$0xf] %vm6616, %v6579
        %6647 = vst.msk [vmem:[#allocation6 + $0xf0] sm:$0xf] %vm6616, %v6581
        %6648 = vst.msk [vmem:[#allocation6 + $0xf8] sm:$0xf] %vm6616, %v6583
        %v6649 = vld [vmem:[#allocation2] sm:$0xff]
        %v6650 = vld [vmem:[#allocation2 + $0x8] sm:$0xff]
        %v6651 = vld [vmem:[#allocation2 + $0x10] sm:$0xff]
        %v6652 = vld [vmem:[#allocation2 + $0x18] sm:$0xff]
        %v6653 = vld [vmem:[#allocation2 + $0x20] sm:$0xff]
        %v6654 = vld [vmem:[#allocation2 + $0x28] sm:$0xff]
        %v6655 = vld [vmem:[#allocation2 + $0x30] sm:$0xff]
        %v6656 = vld [vmem:[#allocation2 + $0x38] sm:$0xff]
        %v6657 = vld [vmem:[#allocation2 + $0x40] sm:$0xff]
        %v6658 = vld [vmem:[#allocation2 + $0x48] sm:$0xff]
        %v6659 = vld [vmem:[#allocation2 + $0x50] sm:$0xff]
        %v6660 = vld [vmem:[#allocation2 + $0x58] sm:$0xff]
        %v6661 = vld [vmem:[#allocation2 + $0x60] sm:$0xff]
        %v6662 = vld [vmem:[#allocation2 + $0x68] sm:$0xff]
        %v6663 = vld [vmem:[#allocation2 + $0x70] sm:$0xff]
        %v6664 = vld [vmem:[#allocation2 + $0x78] sm:$0xff]
        %v6665 = vld [vmem:[#allocation2 + $0x80] sm:$0xff]
        %v6666 = vld [vmem:[#allocation2 + $0x88] sm:$0xff]
        %v6667 = vld [vmem:[#allocation2 + $0x90] sm:$0xff]
        %v6668 = vld [vmem:[#allocation2 + $0x98] sm:$0xff]
        %v6669 = vld [vmem:[#allocation2 + $0xa0] sm:$0xff]
        %v6670 = vld [vmem:[#allocation2 + $0xa8] sm:$0xff]
        %v6671 = vld [vmem:[#allocation2 + $0xb0] sm:$0xff]
        %v6672 = vld [vmem:[#allocation2 + $0xb8] sm:$0xff]
        %v6673 = vld [vmem:[#allocation2 + $0xc0] sm:$0xff]
        %v6674 = vld [vmem:[#allocation2 + $0xc8] sm:$0xff]
        %v6675 = vld [vmem:[#allocation2 + $0xd0] sm:$0xff]
        %v6676 = vld [vmem:[#allocation2 + $0xd8] sm:$0xff]
        %v6677 = vld [vmem:[#allocation2 + $0xe0] sm:$0xff]
        %v6678 = vld [vmem:[#allocation2 + $0xe8] sm:$0xff]
        %v6679 = vld [vmem:[#allocation2 + $0xf0] sm:$0xff]
        %v6680 = vld [vmem:[#allocation2 + $0xf8] sm:$0xff]
        %v6681 = vpack.c.bf16 %v6649, %v6649
        %v6682 = vpack.c.bf16 %v6650, %v6650
        %v6683 = vpack.c.bf16 %v6651, %v6651
        %v6684 = vpack.c.bf16 %v6652, %v6652
        %v6685 = vpack.c.bf16 %v6653, %v6653
        %v6686 = vpack.c.bf16 %v6654, %v6654
        %v6687 = vpack.c.bf16 %v6655, %v6655
        %v6688 = vpack.c.bf16 %v6656, %v6656
        %v6689 = vpack.c.bf16 %v6657, %v6657
        %v6690 = vpack.c.bf16 %v6658, %v6658
        %v6691 = vpack.c.bf16 %v6659, %v6659
        %v6692 = vpack.c.bf16 %v6660, %v6660
        %v6693 = vpack.c.bf16 %v6661, %v6661
        %v6694 = vpack.c.bf16 %v6662, %v6662
        %v6695 = vpack.c.bf16 %v6663, %v6663
        %v6696 = vpack.c.bf16 %v6664, %v6664
        %v6697 = vpack.c.bf16 %v6665, %v6665
        %v6698 = vpack.c.bf16 %v6666, %v6666
        %v6699 = vpack.c.bf16 %v6667, %v6667
        %v6700 = vpack.c.bf16 %v6668, %v6668
        %v6701 = vpack.c.bf16 %v6669, %v6669
        %v6702 = vpack.c.bf16 %v6670, %v6670
        %v6703 = vpack.c.bf16 %v6671, %v6671
        %v6704 = vpack.c.bf16 %v6672, %v6672
        %v6705 = vpack.c.bf16 %v6673, %v6673
        %v6706 = vpack.c.bf16 %v6674, %v6674
        %v6707 = vpack.c.bf16 %v6675, %v6675
        %v6708 = vpack.c.bf16 %v6676, %v6676
        %v6709 = vpack.c.bf16 %v6677, %v6677
        %v6710 = vpack.c.bf16 %v6678, %v6678
        %v6711 = vpack.c.bf16 %v6679, %v6679
        %v6712 = vpack.c.bf16 %v6680, %v6680
        %6745 = vrot.lane.b32.xlu0 %v6681, 112
        %v6746 = vpop.permute.xlu0 %6745
        %6747 = vrot.lane.b32.xlu0 %v6682, 112
        %v6748 = vpop.permute.xlu0 %6747
        %6749 = vrot.lane.b32.xlu0 %v6683, 112
        %v6750 = vpop.permute.xlu0 %6749
        %6751 = vrot.lane.b32.xlu0 %v6684, 112
        %v6752 = vpop.permute.xlu0 %6751
        %6753 = vrot.lane.b32.xlu0 %v6685, 112
        %v6754 = vpop.permute.xlu0 %6753
        %6755 = vrot.lane.b32.xlu0 %v6686, 112
        %v6756 = vpop.permute.xlu0 %6755
        %6757 = vrot.lane.b32.xlu0 %v6687, 112
        %v6758 = vpop.permute.xlu0 %6757
        %6759 = vrot.lane.b32.xlu0 %v6688, 112
        %v6760 = vpop.permute.xlu0 %6759
        %6761 = vrot.lane.b32.xlu0 %v6689, 112
        %v6762 = vpop.permute.xlu0 %6761
        %6763 = vrot.lane.b32.xlu0 %v6690, 112
        %v6764 = vpop.permute.xlu0 %6763
        %6765 = vrot.lane.b32.xlu0 %v6691, 112
        %v6766 = vpop.permute.xlu0 %6765
        %6767 = vrot.lane.b32.xlu0 %v6692, 112
        %v6768 = vpop.permute.xlu0 %6767
        %6769 = vrot.lane.b32.xlu0 %v6693, 112
        %v6770 = vpop.permute.xlu0 %6769
        %6771 = vrot.lane.b32.xlu0 %v6694, 112
        %v6772 = vpop.permute.xlu0 %6771
        %6773 = vrot.lane.b32.xlu0 %v6695, 112
        %v6774 = vpop.permute.xlu0 %6773
        %6775 = vrot.lane.b32.xlu0 %v6696, 112
        %v6776 = vpop.permute.xlu0 %6775
        %6777 = vrot.lane.b32.xlu0 %v6697, 112
        %v6778 = vpop.permute.xlu0 %6777
        %6779 = vrot.lane.b32.xlu0 %v6698, 112
        %v6780 = vpop.permute.xlu0 %6779
        %6781 = vrot.lane.b32.xlu0 %v6699, 112
        %v6782 = vpop.permute.xlu0 %6781
        %6783 = vrot.lane.b32.xlu0 %v6700, 112
        %v6784 = vpop.permute.xlu0 %6783
        %6785 = vrot.lane.b32.xlu0 %v6701, 112
        %v6786 = vpop.permute.xlu0 %6785
        %6787 = vrot.lane.b32.xlu0 %v6702, 112
        %v6788 = vpop.permute.xlu0 %6787
        %6789 = vrot.lane.b32.xlu0 %v6703, 112
        %v6790 = vpop.permute.xlu0 %6789
        %6791 = vrot.lane.b32.xlu0 %v6704, 112
        %v6792 = vpop.permute.xlu0 %6791
        %6793 = vrot.lane.b32.xlu0 %v6705, 112
        %v6794 = vpop.permute.xlu0 %6793
        %6795 = vrot.lane.b32.xlu0 %v6706, 112
        %v6796 = vpop.permute.xlu0 %6795
        %6797 = vrot.lane.b32.xlu0 %v6707, 112
        %v6798 = vpop.permute.xlu0 %6797
        %6799 = vrot.lane.b32.xlu0 %v6708, 112
        %v6800 = vpop.permute.xlu0 %6799
        %6801 = vrot.lane.b32.xlu0 %v6709, 112
        %v6802 = vpop.permute.xlu0 %6801
        %6803 = vrot.lane.b32.xlu0 %v6710, 112
        %v6804 = vpop.permute.xlu0 %6803
        %6805 = vrot.lane.b32.xlu0 %v6711, 112
        %v6806 = vpop.permute.xlu0 %6805
        %6807 = vrot.lane.b32.xlu0 %v6712, 112
        %v6808 = vpop.permute.xlu0 %6807
        %vm6841 = vcmask 1044352
        %6842 = vst.msk [vmem:[#allocation6] sm:$0xf] %vm6841, %v6746
        %6843 = vst.msk [vmem:[#allocation6 + $0x8] sm:$0xf] %vm6841, %v6748
        %6844 = vst.msk [vmem:[#allocation6 + $0x10] sm:$0xf] %vm6841, %v6750
        %6845 = vst.msk [vmem:[#allocation6 + $0x18] sm:$0xf] %vm6841, %v6752
        %6846 = vst.msk [vmem:[#allocation6 + $0x20] sm:$0xf] %vm6841, %v6754
        %6847 = vst.msk [vmem:[#allocation6 + $0x28] sm:$0xf] %vm6841, %v6756
        %6848 = vst.msk [vmem:[#allocation6 + $0x30] sm:$0xf] %vm6841, %v6758
        %6849 = vst.msk [vmem:[#allocation6 + $0x38] sm:$0xf] %vm6841, %v6760
        %6850 = vst.msk [vmem:[#allocation6 + $0x40] sm:$0xf] %vm6841, %v6762
        %6851 = vst.msk [vmem:[#allocation6 + $0x48] sm:$0xf] %vm6841, %v6764
        %6852 = vst.msk [vmem:[#allocation6 + $0x50] sm:$0xf] %vm6841, %v6766
        %6853 = vst.msk [vmem:[#allocation6 + $0x58] sm:$0xf] %vm6841, %v6768
        %6854 = vst.msk [vmem:[#allocation6 + $0x60] sm:$0xf] %vm6841, %v6770
        %6855 = vst.msk [vmem:[#allocation6 + $0x68] sm:$0xf] %vm6841, %v6772
        %6856 = vst.msk [vmem:[#allocation6 + $0x70] sm:$0xf] %vm6841, %v6774
        %6857 = vst.msk [vmem:[#allocation6 + $0x78] sm:$0xf] %vm6841, %v6776
        %6858 = vst.msk [vmem:[#allocation6 + $0x80] sm:$0xf] %vm6841, %v6778
        %6859 = vst.msk [vmem:[#allocation6 + $0x88] sm:$0xf] %vm6841, %v6780
        %6860 = vst.msk [vmem:[#allocation6 + $0x90] sm:$0xf] %vm6841, %v6782
        %6861 = vst.msk [vmem:[#allocation6 + $0x98] sm:$0xf] %vm6841, %v6784
        %6862 = vst.msk [vmem:[#allocation6 + $0xa0] sm:$0xf] %vm6841, %v6786
        %6863 = vst.msk [vmem:[#allocation6 + $0xa8] sm:$0xf] %vm6841, %v6788
        %6864 = vst.msk [vmem:[#allocation6 + $0xb0] sm:$0xf] %vm6841, %v6790
        %6865 = vst.msk [vmem:[#allocation6 + $0xb8] sm:$0xf] %vm6841, %v6792
        %6866 = vst.msk [vmem:[#allocation6 + $0xc0] sm:$0xf] %vm6841, %v6794
        %6867 = vst.msk [vmem:[#allocation6 + $0xc8] sm:$0xf] %vm6841, %v6796
        %6868 = vst.msk [vmem:[#allocation6 + $0xd0] sm:$0xf] %vm6841, %v6798
        %6869 = vst.msk [vmem:[#allocation6 + $0xd8] sm:$0xf] %vm6841, %v6800
        %6870 = vst.msk [vmem:[#allocation6 + $0xe0] sm:$0xf] %vm6841, %v6802
        %6871 = vst.msk [vmem:[#allocation6 + $0xe8] sm:$0xf] %vm6841, %v6804
        %6872 = vst.msk [vmem:[#allocation6 + $0xf0] sm:$0xf] %vm6841, %v6806
        %6873 = vst.msk [vmem:[#allocation6 + $0xf8] sm:$0xf] %vm6841, %v6808
        %v6874 = vld [vmem:[#allocation2 + $0x10] sm:$0xff]
        %v6875 = vld [vmem:[#allocation2 + $0x18] sm:$0xff]
        %v6876 = vld [vmem:[#allocation2 + $0x20] sm:$0xff]
        %v6877 = vld [vmem:[#allocation2 + $0x28] sm:$0xff]
        %v6878 = vld [vmem:[#allocation2 + $0x30] sm:$0xff]
        %v6879 = vld [vmem:[#allocation2 + $0x38] sm:$0xff]
        %v6880 = vld [vmem:[#allocation2 + $0x40] sm:$0xff]
        %v6881 = vld [vmem:[#allocation2 + $0x48] sm:$0xff]
        %v6882 = vld [vmem:[#allocation2 + $0x50] sm:$0xff]
        %v6883 = vld [vmem:[#allocation2 + $0x58] sm:$0xff]
        %v6884 = vld [vmem:[#allocation2 + $0x60] sm:$0xff]
        %v6885 = vld [vmem:[#allocation2 + $0x68] sm:$0xff]
        %v6886 = vld [vmem:[#allocation2 + $0x70] sm:$0xff]
        %v6887 = vld [vmem:[#allocation2 + $0x78] sm:$0xff]
        %v6888 = vld [vmem:[#allocation2 + $0x80] sm:$0xff]
        %v6889 = vld [vmem:[#allocation2 + $0x88] sm:$0xff]
        %v6890 = vld [vmem:[#allocation2 + $0x90] sm:$0xff]
        %v6891 = vld [vmem:[#allocation2 + $0x98] sm:$0xff]
        %v6892 = vld [vmem:[#allocation2 + $0xa0] sm:$0xff]
        %v6893 = vld [vmem:[#allocation2 + $0xa8] sm:$0xff]
        %v6894 = vld [vmem:[#allocation2 + $0xb0] sm:$0xff]
        %v6895 = vld [vmem:[#allocation2 + $0xb8] sm:$0xff]
        %v6896 = vld [vmem:[#allocation2 + $0xc0] sm:$0xff]
        %v6897 = vld [vmem:[#allocation2 + $0xc8] sm:$0xff]
        %v6898 = vld [vmem:[#allocation2 + $0xd0] sm:$0xff]
        %v6899 = vld [vmem:[#allocation2 + $0xd8] sm:$0xff]
        %v6900 = vld [vmem:[#allocation2 + $0xe0] sm:$0xff]
        %v6901 = vld [vmem:[#allocation2 + $0xe8] sm:$0xff]
        %v6902 = vld [vmem:[#allocation2 + $0xf0] sm:$0xff]
        %v6903 = vld [vmem:[#allocation2 + $0xf8] sm:$0xff]
        %v6904 = vld [vmem:[#allocation2 + $0x100] sm:$0xff]
        %v6905 = vld [vmem:[#allocation2 + $0x108] sm:$0xff]
        %v6906 = vpack.c.bf16 %v6874, %v6874
        %v6907 = vpack.c.bf16 %v6875, %v6875
        %v6908 = vpack.c.bf16 %v6876, %v6876
        %v6909 = vpack.c.bf16 %v6877, %v6877
        %v6910 = vpack.c.bf16 %v6878, %v6878
        %v6911 = vpack.c.bf16 %v6879, %v6879
        %v6912 = vpack.c.bf16 %v6880, %v6880
        %v6913 = vpack.c.bf16 %v6881, %v6881
        %v6914 = vpack.c.bf16 %v6882, %v6882
        %v6915 = vpack.c.bf16 %v6883, %v6883
        %v6916 = vpack.c.bf16 %v6884, %v6884
        %v6917 = vpack.c.bf16 %v6885, %v6885
        %v6918 = vpack.c.bf16 %v6886, %v6886
        %v6919 = vpack.c.bf16 %v6887, %v6887
        %v6920 = vpack.c.bf16 %v6888, %v6888
        %v6921 = vpack.c.bf16 %v6889, %v6889
        %v6922 = vpack.c.bf16 %v6890, %v6890
        %v6923 = vpack.c.bf16 %v6891, %v6891
        %v6924 = vpack.c.bf16 %v6892, %v6892
        %v6925 = vpack.c.bf16 %v6893, %v6893
        %v6926 = vpack.c.bf16 %v6894, %v6894
        %v6927 = vpack.c.bf16 %v6895, %v6895
        %v6928 = vpack.c.bf16 %v6896, %v6896
        %v6929 = vpack.c.bf16 %v6897, %v6897
        %v6930 = vpack.c.bf16 %v6898, %v6898
        %v6931 = vpack.c.bf16 %v6899, %v6899
        %v6932 = vpack.c.bf16 %v6900, %v6900
        %v6933 = vpack.c.bf16 %v6901, %v6901
        %v6934 = vpack.c.bf16 %v6902, %v6902
        %v6935 = vpack.c.bf16 %v6903, %v6903
        %v6936 = vpack.c.bf16 %v6904, %v6904
        %v6937 = vpack.c.bf16 %v6905, %v6905
        %6938 = vst.msk [vmem:[#allocation6 + $0x4] sm:$0xf] %vm2859, %v6906
        %6939 = vst.msk [vmem:[#allocation6 + $0xc] sm:$0xf] %vm2859, %v6907
        %6940 = vst.msk [vmem:[#allocation6 + $0x14] sm:$0xf] %vm2859, %v6908
        %6941 = vst.msk [vmem:[#allocation6 + $0x1c] sm:$0xf] %vm2859, %v6909
        %6942 = vst.msk [vmem:[#allocation6 + $0x24] sm:$0xf] %vm2859, %v6910
        %6943 = vst.msk [vmem:[#allocation6 + $0x2c] sm:$0xf] %vm2859, %v6911
        %6944 = vst.msk [vmem:[#allocation6 + $0x34] sm:$0xf] %vm2859, %v6912
        %6945 = vst.msk [vmem:[#allocation6 + $0x3c] sm:$0xf] %vm2859, %v6913
        %6946 = vst.msk [vmem:[#allocation6 + $0x44] sm:$0xf] %vm2859, %v6914
        %6947 = vst.msk [vmem:[#allocation6 + $0x4c] sm:$0xf] %vm2859, %v6915
        %6948 = vst.msk [vmem:[#allocation6 + $0x54] sm:$0xf] %vm2859, %v6916
        %6949 = vst.msk [vmem:[#allocation6 + $0x5c] sm:$0xf] %vm2859, %v6917
        %6950 = vst.msk [vmem:[#allocation6 + $0x64] sm:$0xf] %vm2859, %v6918
        %6951 = vst.msk [vmem:[#allocation6 + $0x6c] sm:$0xf] %vm2859, %v6919
        %6952 = vst.msk [vmem:[#allocation6 + $0x74] sm:$0xf] %vm2859, %v6920
        %6953 = vst.msk [vmem:[#allocation6 + $0x7c] sm:$0xf] %vm2859, %v6921
        %6954 = vst.msk [vmem:[#allocation6 + $0x84] sm:$0xf] %vm2859, %v6922
        %6955 = vst.msk [vmem:[#allocation6 + $0x8c] sm:$0xf] %vm2859, %v6923
        %6956 = vst.msk [vmem:[#allocation6 + $0x94] sm:$0xf] %vm2859, %v6924
        %6957 = vst.msk [vmem:[#allocation6 + $0x9c] sm:$0xf] %vm2859, %v6925
        %6958 = vst.msk [vmem:[#allocation6 + $0xa4] sm:$0xf] %vm2859, %v6926
        %6959 = vst.msk [vmem:[#allocation6 + $0xac] sm:$0xf] %vm2859, %v6927
        %6960 = vst.msk [vmem:[#allocation6 + $0xb4] sm:$0xf] %vm2859, %v6928
        %6961 = vst.msk [vmem:[#allocation6 + $0xbc] sm:$0xf] %vm2859, %v6929
        %6962 = vst.msk [vmem:[#allocation6 + $0xc4] sm:$0xf] %vm2859, %v6930
        %6963 = vst.msk [vmem:[#allocation6 + $0xcc] sm:$0xf] %vm2859, %v6931
        %6964 = vst.msk [vmem:[#allocation6 + $0xd4] sm:$0xf] %vm2859, %v6932
        %6965 = vst.msk [vmem:[#allocation6 + $0xdc] sm:$0xf] %vm2859, %v6933
        %6966 = vst.msk [vmem:[#allocation6 + $0xe4] sm:$0xf] %vm2859, %v6934
        %6967 = vst.msk [vmem:[#allocation6 + $0xec] sm:$0xf] %vm2859, %v6935
        %6968 = vst.msk [vmem:[#allocation6 + $0xf4] sm:$0xf] %vm2859, %v6936
        %6969 = vst.msk [vmem:[#allocation6 + $0xfc] sm:$0xf] %vm2859, %v6937
        %v6970 = vld [vmem:[#allocation6] sm:$0xff]
        %v6971 = vld [vmem:[#allocation6 + $0x8] sm:$0xff]
        %v6972 = vld [vmem:[#allocation6 + $0x10] sm:$0xff]
        %v6973 = vld [vmem:[#allocation6 + $0x18] sm:$0xff]
        %v6974 = vld [vmem:[#allocation6 + $0x20] sm:$0xff]
        %v6975 = vld [vmem:[#allocation6 + $0x28] sm:$0xff]
        %v6976 = vld [vmem:[#allocation6 + $0x30] sm:$0xff]
        %v6977 = vld [vmem:[#allocation6 + $0x38] sm:$0xff]
        %v6978 = vld [vmem:[#allocation6 + $0x40] sm:$0xff]
        %v6979 = vld [vmem:[#allocation6 + $0x48] sm:$0xff]
        %v6980 = vld [vmem:[#allocation6 + $0x50] sm:$0xff]
        %v6981 = vld [vmem:[#allocation6 + $0x58] sm:$0xff]
        %v6982 = vld [vmem:[#allocation6 + $0x60] sm:$0xff]
        %v6983 = vld [vmem:[#allocation6 + $0x68] sm:$0xff]
        %v6984 = vld [vmem:[#allocation6 + $0x70] sm:$0xff]
        %v6985 = vld [vmem:[#allocation6 + $0x78] sm:$0xff]
        %v6986 = vld [vmem:[#allocation6 + $0x80] sm:$0xff]
        %v6987 = vld [vmem:[#allocation6 + $0x88] sm:$0xff]
        %v6988 = vld [vmem:[#allocation6 + $0x90] sm:$0xff]
        %v6989 = vld [vmem:[#allocation6 + $0x98] sm:$0xff]
        %v6990 = vld [vmem:[#allocation6 + $0xa0] sm:$0xff]
        %v6991 = vld [vmem:[#allocation6 + $0xa8] sm:$0xff]
        %v6992 = vld [vmem:[#allocation6 + $0xb0] sm:$0xff]
        %v6993 = vld [vmem:[#allocation6 + $0xb8] sm:$0xff]
        %v6994 = vld [vmem:[#allocation6 + $0xc0] sm:$0xff]
        %v6995 = vld [vmem:[#allocation6 + $0xc8] sm:$0xff]
        %v6996 = vld [vmem:[#allocation6 + $0xd0] sm:$0xff]
        %v6997 = vld [vmem:[#allocation6 + $0xd8] sm:$0xff]
        %v6998 = vld [vmem:[#allocation6 + $0xe0] sm:$0xff]
        %v6999 = vld [vmem:[#allocation6 + $0xe8] sm:$0xff]
        %v7000 = vld [vmem:[#allocation6 + $0xf0] sm:$0xff]
        %v7001 = vld [vmem:[#allocation6 + $0xf8] sm:$0xff]
        %v7002 = vld [vmem:[%s4] sm:$0xf]
        %v7003 = vld [vmem:[%s4 + $0x4] sm:$0xf]
        %v7004 = vld [vmem:[%s4 + $0x8] sm:$0xf]
        %v7005 = vld [vmem:[%s4 + $0xc] sm:$0xf]
        %v7006 = vld [vmem:[%s4 + $0x10] sm:$0xf]
        %v7007 = vld [vmem:[%s4 + $0x14] sm:$0xf]
        %v7008 = vld [vmem:[%s4 + $0x18] sm:$0xf]
        %v7009 = vld [vmem:[%s4 + $0x1c] sm:$0xf]
        %v7010 = vld [vmem:[%s4 + $0x20] sm:$0xf]
        %v7011 = vld [vmem:[%s4 + $0x24] sm:$0xf]
        %v7012 = vld [vmem:[%s4 + $0x28] sm:$0xf]
        %v7013 = vld [vmem:[%s4 + $0x2c] sm:$0xf]
        %v7014 = vld [vmem:[%s4 + $0x30] sm:$0xf]
        %v7015 = vld [vmem:[%s4 + $0x34] sm:$0xf]
        %v7016 = vld [vmem:[%s4 + $0x38] sm:$0xf]
        %v7017 = vld [vmem:[%s4 + $0x3c] sm:$0xf]
        %v7018 = vld [vmem:[%s4 + $0x40] sm:$0xf]
        %v7019 = vld [vmem:[%s4 + $0x44] sm:$0xf]
        %v7052 = vunpack.c.l.b16 %v6970
        %v7053 = vunpack.c.h.b16 %v6970
        %v7054 = vunpack.c.l.b16 %v6971
        %v7055 = vunpack.c.h.b16 %v6971
        %v7056 = vunpack.c.l.b16 %v6972
        %v7057 = vunpack.c.h.b16 %v6972
        %v7058 = vunpack.c.l.b16 %v6973
        %v7059 = vunpack.c.h.b16 %v6973
        %v7060 = vunpack.c.l.b16 %v6974
        %v7061 = vunpack.c.h.b16 %v6974
        %v7062 = vunpack.c.l.b16 %v6975
        %v7063 = vunpack.c.h.b16 %v6975
        %v7064 = vunpack.c.l.b16 %v6976
        %v7065 = vunpack.c.h.b16 %v6976
        %v7066 = vunpack.c.l.b16 %v6977
        %v7067 = vunpack.c.h.b16 %v6977
        %v7068 = vunpack.c.l.b16 %v6978
        %v7069 = vunpack.c.h.b16 %v6978
        %v7070 = vunpack.c.l.b16 %v6979
        %v7071 = vunpack.c.h.b16 %v6979
        %v7072 = vunpack.c.l.b16 %v6980
        %v7073 = vunpack.c.h.b16 %v6980
        %v7074 = vunpack.c.l.b16 %v6981
        %v7075 = vunpack.c.h.b16 %v6981
        %v7076 = vunpack.c.l.b16 %v6982
        %v7077 = vunpack.c.h.b16 %v6982
        %v7078 = vunpack.c.l.b16 %v6983
        %v7079 = vunpack.c.h.b16 %v6983
        %v7080 = vunpack.c.l.b16 %v6984
        %v7081 = vunpack.c.h.b16 %v6984
        %v7082 = vunpack.c.l.b16 %v6985
        %v7083 = vunpack.c.h.b16 %v6985
        %v7084 = vunpack.c.l.b16 %v6986
        %v7085 = vunpack.c.h.b16 %v6986
        %v7086 = vunpack.c.l.b16 %v6987
        %v7087 = vunpack.c.h.b16 %v6987
        %v7088 = vunpack.c.l.b16 %v6988
        %v7089 = vunpack.c.h.b16 %v6988
        %v7090 = vunpack.c.l.b16 %v6989
        %v7091 = vunpack.c.h.b16 %v6989
        %v7092 = vunpack.c.l.b16 %v6990
        %v7093 = vunpack.c.h.b16 %v6990
        %v7094 = vunpack.c.l.b16 %v6991
        %v7095 = vunpack.c.h.b16 %v6991
        %v7096 = vunpack.c.l.b16 %v6992
        %v7097 = vunpack.c.h.b16 %v6992
        %v7098 = vunpack.c.l.b16 %v6993
        %v7099 = vunpack.c.h.b16 %v6993
        %v7100 = vunpack.c.l.b16 %v6994
        %v7101 = vunpack.c.h.b16 %v6994
        %v7102 = vunpack.c.l.b16 %v6995
        %v7103 = vunpack.c.h.b16 %v6995
        %v7104 = vunpack.c.l.b16 %v6996
        %v7105 = vunpack.c.h.b16 %v6996
        %v7106 = vunpack.c.l.b16 %v6997
        %v7107 = vunpack.c.h.b16 %v6997
        %v7108 = vunpack.c.l.b16 %v6998
        %v7109 = vunpack.c.h.b16 %v6998
        %v7110 = vunpack.c.l.b16 %v6999
        %v7111 = vunpack.c.h.b16 %v6999
        %v7112 = vunpack.c.l.b16 %v7000
        %v7113 = vunpack.c.h.b16 %v7000
        %v7114 = vunpack.c.l.b16 %v7001
        %v7115 = vunpack.c.h.b16 %v7001
        %v7116 = vpack.c.b16 %v7054, %v7052
        %v7117 = vpack.c.b16 %v7055, %v7053
        %v7118 = vpack.c.b16 %v7058, %v7056
        %v7119 = vpack.c.b16 %v7059, %v7057
        %v7120 = vpack.c.b16 %v7062, %v7060
        %v7121 = vpack.c.b16 %v7063, %v7061
        %v7122 = vpack.c.b16 %v7066, %v7064
        %v7123 = vpack.c.b16 %v7067, %v7065
        %v7124 = vpack.c.b16 %v7070, %v7068
        %v7125 = vpack.c.b16 %v7071, %v7069
        %v7126 = vpack.c.b16 %v7074, %v7072
        %v7127 = vpack.c.b16 %v7075, %v7073
        %v7128 = vpack.c.b16 %v7078, %v7076
        %v7129 = vpack.c.b16 %v7079, %v7077
        %v7130 = vpack.c.b16 %v7082, %v7080
        %v7131 = vpack.c.b16 %v7083, %v7081
        %v7132 = vpack.c.b16 %v7086, %v7084
        %v7133 = vpack.c.b16 %v7087, %v7085
        %v7134 = vpack.c.b16 %v7090, %v7088
        %v7135 = vpack.c.b16 %v7091, %v7089
        %v7136 = vpack.c.b16 %v7094, %v7092
        %v7137 = vpack.c.b16 %v7095, %v7093
        %v7138 = vpack.c.b16 %v7098, %v7096
        %v7139 = vpack.c.b16 %v7099, %v7097
        %v7140 = vpack.c.b16 %v7102, %v7100
        %v7141 = vpack.c.b16 %v7103, %v7101
        %v7142 = vpack.c.b16 %v7106, %v7104
        %v7143 = vpack.c.b16 %v7107, %v7105
        %v7144 = vpack.c.b16 %v7110, %v7108
        %v7145 = vpack.c.b16 %v7111, %v7109
        %v7146 = vpack.c.b16 %v7114, %v7112
        %v7147 = vpack.c.b16 %v7115, %v7113
        %v7182 = vunpack.c.l.b16 %v7002
        %v7183 = vunpack.c.l.b16 %v7003
        %v7184 = vunpack.c.l.b16 %v7004
        %v7185 = vunpack.c.l.b16 %v7005
        %v7186 = vunpack.c.l.b16 %v7006
        %v7187 = vunpack.c.l.b16 %v7007
        %v7188 = vunpack.c.l.b16 %v7008
        %v7189 = vunpack.c.l.b16 %v7009
        %v7190 = vunpack.c.l.b16 %v7010
        %v7191 = vunpack.c.l.b16 %v7011
        %v7192 = vunpack.c.l.b16 %v7012
        %v7193 = vunpack.c.l.b16 %v7013
        %v7194 = vunpack.c.l.b16 %v7014
        %v7195 = vunpack.c.l.b16 %v7015
        %v7196 = vunpack.c.l.b16 %v7016
        %v7197 = vunpack.c.l.b16 %v7017
        %v7198 = vunpack.c.l.b16 %v7018
        %v7199 = vunpack.c.l.b16 %v7019
        %v7200 = vpack.c.b16 %v7183, %v7182
        %v7201 = vpack.c.b16 %v7185, %v7184
        %v7202 = vpack.c.b16 %v7187, %v7186
        %v7203 = vpack.c.b16 %v7189, %v7188
        %v7204 = vpack.c.b16 %v7191, %v7190
        %v7205 = vpack.c.b16 %v7193, %v7192
        %v7206 = vpack.c.b16 %v7195, %v7194
        %v7207 = vpack.c.b16 %v7197, %v7196
        %v7208 = vpack.c.b16 %v7199, %v7198
        %v7219 = vsel %vm696, %v7117, 0
        %v7222 = vsel %vm696, %v7119, 0
        %v7225 = vsel %vm696, %v7121, 0
        %v7228 = vsel %vm696, %v7123, 0
        %v7231 = vsel %vm696, %v7125, 0
        %v7234 = vsel %vm696, %v7127, 0
        %v7237 = vsel %vm696, %v7129, 0
        %v7240 = vsel %vm696, %v7131, 0
        %v7243 = vsel %vm696, %v7133, 0
        %v7246 = vsel %vm696, %v7135, 0
        %v7249 = vsel %vm696, %v7137, 0
        %v7252 = vsel %vm696, %v7139, 0
        %v7255 = vsel %vm696, %v7141, 0
        %v7258 = vsel %vm696, %v7143, 0
        %v7261 = vsel %vm696, %v7145, 0
        %v7264 = vsel %vm696, %v7147, 0
        %7266 = vmatpush.bf16.msra.mxu0 %v7207
        %7267 = vmatpush.bf16.msra.mxu0 %v7206
        %7268 = vmatpush.bf16.msra.mxu0 %v7205
        %7269 = vmatpush.bf16.msra.mxu0 %v7204
        %7270 = vmatpush.bf16.msra.mxu0 %v7203
        %7271 = vmatpush.bf16.msra.mxu0 %v7202
        %7272 = vmatpush.bf16.msra.mxu0 %v7201
        %7273 = vmatpush.bf16.msra.mxu0 %v7200
        %7274 = vmatmul.bf16.gmra.mxu0 %v7116
        %v7275 = vpop.f32.mrf.mxu0
        %v7276 = vadd.f32 0.0, %v7275
        %v7277 = vpop.f32.mrf.mxu0
        %v7278 = vadd.f32 0.0, %v7277
        %7279 = vmatmul.bf16.gmra.mxu0 %v7118
        %v7280 = vpop.f32.mrf.mxu0
        %v7281 = vadd.f32 0.0, %v7280
        %v7282 = vpop.f32.mrf.mxu0
        %v7283 = vadd.f32 0.0, %v7282
        %7284 = vmatmul.bf16.gmra.mxu0 %v7120
        %v7285 = vpop.f32.mrf.mxu0
        %v7286 = vadd.f32 0.0, %v7285
        %v7287 = vpop.f32.mrf.mxu0
        %v7288 = vadd.f32 0.0, %v7287
        %7289 = vmatmul.bf16.gmra.mxu0 %v7122
        %v7290 = vpop.f32.mrf.mxu0
        %v7291 = vadd.f32 0.0, %v7290
        %v7292 = vpop.f32.mrf.mxu0
        %v7293 = vadd.f32 0.0, %v7292
        %7294 = vmatmul.bf16.gmra.mxu0 %v7124
        %v7295 = vpop.f32.mrf.mxu0
        %v7296 = vadd.f32 0.0, %v7295
        %v7297 = vpop.f32.mrf.mxu0
        %v7298 = vadd.f32 0.0, %v7297
        %7299 = vmatmul.bf16.gmra.mxu0 %v7126
        %v7300 = vpop.f32.mrf.mxu0
        %v7301 = vadd.f32 0.0, %v7300
        %v7302 = vpop.f32.mrf.mxu0
        %v7303 = vadd.f32 0.0, %v7302
        %7304 = vmatmul.bf16.gmra.mxu0 %v7128
        %v7305 = vpop.f32.mrf.mxu0
        %v7306 = vadd.f32 0.0, %v7305
        %v7307 = vpop.f32.mrf.mxu0
        %v7308 = vadd.f32 0.0, %v7307
        %7309 = vmatmul.bf16.gmra.mxu0 %v7130
        %v7310 = vpop.f32.mrf.mxu0
        %v7311 = vadd.f32 0.0, %v7310
        %v7312 = vpop.f32.mrf.mxu0
        %v7313 = vadd.f32 0.0, %v7312
        %7314 = vmatmul.bf16.gmra.mxu0 %v7132
        %v7315 = vpop.f32.mrf.mxu0
        %v7316 = vadd.f32 0.0, %v7315
        %v7317 = vpop.f32.mrf.mxu0
        %v7318 = vadd.f32 0.0, %v7317
        %7319 = vmatmul.bf16.gmra.mxu0 %v7134
        %v7320 = vpop.f32.mrf.mxu0
        %v7321 = vadd.f32 0.0, %v7320
        %v7322 = vpop.f32.mrf.mxu0
        %v7323 = vadd.f32 0.0, %v7322
        %7324 = vmatmul.bf16.gmra.mxu0 %v7136
        %v7325 = vpop.f32.mrf.mxu0
        %v7326 = vadd.f32 0.0, %v7325
        %v7327 = vpop.f32.mrf.mxu0
        %v7328 = vadd.f32 0.0, %v7327
        %7329 = vmatmul.bf16.gmra.mxu0 %v7138
        %v7330 = vpop.f32.mrf.mxu0
        %v7331 = vadd.f32 0.0, %v7330
        %v7332 = vpop.f32.mrf.mxu0
        %v7333 = vadd.f32 0.0, %v7332
        %7334 = vmatmul.bf16.gmra.mxu0 %v7140
        %v7335 = vpop.f32.mrf.mxu0
        %v7336 = vadd.f32 0.0, %v7335
        %v7337 = vpop.f32.mrf.mxu0
        %v7338 = vadd.f32 0.0, %v7337
        %7339 = vmatmul.bf16.gmra.mxu0 %v7142
        %v7340 = vpop.f32.mrf.mxu0
        %v7341 = vadd.f32 0.0, %v7340
        %v7342 = vpop.f32.mrf.mxu0
        %v7343 = vadd.f32 0.0, %v7342
        %7344 = vmatmul.bf16.gmra.mxu0 %v7144
        %v7345 = vpop.f32.mrf.mxu0
        %v7346 = vadd.f32 0.0, %v7345
        %v7347 = vpop.f32.mrf.mxu0
        %v7348 = vadd.f32 0.0, %v7347
        %7349 = vmatmul.bf16.gmra.mxu0 %v7146
        %v7350 = vpop.f32.mrf.mxu0
        %v7351 = vadd.f32 0.0, %v7350
        %v7352 = vpop.f32.mrf.mxu0
        %v7353 = vadd.f32 0.0, %v7352
        %7354 = vdwg.mxu0
        %7355 = vmatpush.bf16.msra.mxu0 0
        %7356 = vmatpush.bf16.msra.mxu0 0
        %7357 = vmatpush.bf16.msra.mxu0 0
        %7358 = vmatpush.bf16.msra.mxu0 0
        %7359 = vmatpush.bf16.msra.mxu0 0
        %7360 = vmatpush.bf16.msra.mxu0 0
        %7361 = vmatpush.bf16.msra.mxu0 0
        %7362 = vmatpush.bf16.msra.mxu0 %v7208
        %7363 = vmatmul.bf16.gmra.mxu0 %v7219
        %v7364 = vpop.f32.mrf.mxu0
        %v7365 = vadd.f32 %v7276, %v7364
        %v7366 = vpop.f32.mrf.mxu0
        %v7367 = vadd.f32 %v7278, %v7366
        %7368 = vmatmul.bf16.gmra.mxu0 %v7222
        %v7369 = vpop.f32.mrf.mxu0
        %v7370 = vadd.f32 %v7281, %v7369
        %v7371 = vpop.f32.mrf.mxu0
        %v7372 = vadd.f32 %v7283, %v7371
        %7373 = vmatmul.bf16.gmra.mxu0 %v7225
        %v7374 = vpop.f32.mrf.mxu0
        %v7375 = vadd.f32 %v7286, %v7374
        %v7376 = vpop.f32.mrf.mxu0
        %v7377 = vadd.f32 %v7288, %v7376
        %7378 = vmatmul.bf16.gmra.mxu0 %v7228
        %v7379 = vpop.f32.mrf.mxu0
        %v7380 = vadd.f32 %v7291, %v7379
        %v7381 = vpop.f32.mrf.mxu0
        %v7382 = vadd.f32 %v7293, %v7381
        %7383 = vmatmul.bf16.gmra.mxu0 %v7231
        %v7384 = vpop.f32.mrf.mxu0
        %v7385 = vadd.f32 %v7296, %v7384
        %v7386 = vpop.f32.mrf.mxu0
        %v7387 = vadd.f32 %v7298, %v7386
        %7388 = vmatmul.bf16.gmra.mxu0 %v7234
        %v7389 = vpop.f32.mrf.mxu0
        %v7390 = vadd.f32 %v7301, %v7389
        %v7391 = vpop.f32.mrf.mxu0
        %v7392 = vadd.f32 %v7303, %v7391
        %7393 = vmatmul.bf16.gmra.mxu0 %v7237
        %v7394 = vpop.f32.mrf.mxu0
        %v7395 = vadd.f32 %v7306, %v7394
        %v7396 = vpop.f32.mrf.mxu0
        %v7397 = vadd.f32 %v7308, %v7396
        %7398 = vmatmul.bf16.gmra.mxu0 %v7240
        %v7399 = vpop.f32.mrf.mxu0
        %v7400 = vadd.f32 %v7311, %v7399
        %v7401 = vpop.f32.mrf.mxu0
        %v7402 = vadd.f32 %v7313, %v7401
        %7403 = vmatmul.bf16.gmra.mxu0 %v7243
        %v7404 = vpop.f32.mrf.mxu0
        %v7405 = vadd.f32 %v7316, %v7404
        %v7406 = vpop.f32.mrf.mxu0
        %v7407 = vadd.f32 %v7318, %v7406
        %7408 = vmatmul.bf16.gmra.mxu0 %v7246
        %v7409 = vpop.f32.mrf.mxu0
        %v7410 = vadd.f32 %v7321, %v7409
        %v7411 = vpop.f32.mrf.mxu0
        %v7412 = vadd.f32 %v7323, %v7411
        %7413 = vmatmul.bf16.gmra.mxu0 %v7249
        %v7414 = vpop.f32.mrf.mxu0
        %v7415 = vadd.f32 %v7326, %v7414
        %v7416 = vpop.f32.mrf.mxu0
        %v7417 = vadd.f32 %v7328, %v7416
        %7418 = vmatmul.bf16.gmra.mxu0 %v7252
        %v7419 = vpop.f32.mrf.mxu0
        %v7420 = vadd.f32 %v7331, %v7419
        %v7421 = vpop.f32.mrf.mxu0
        %v7422 = vadd.f32 %v7333, %v7421
        %7423 = vmatmul.bf16.gmra.mxu0 %v7255
        %v7424 = vpop.f32.mrf.mxu0
        %v7425 = vadd.f32 %v7336, %v7424
        %v7426 = vpop.f32.mrf.mxu0
        %v7427 = vadd.f32 %v7338, %v7426
        %7428 = vmatmul.bf16.gmra.mxu0 %v7258
        %v7429 = vpop.f32.mrf.mxu0
        %v7430 = vadd.f32 %v7341, %v7429
        %v7431 = vpop.f32.mrf.mxu0
        %v7432 = vadd.f32 %v7343, %v7431
        %7433 = vmatmul.bf16.gmra.mxu0 %v7261
        %v7434 = vpop.f32.mrf.mxu0
        %v7435 = vadd.f32 %v7346, %v7434
        %v7436 = vpop.f32.mrf.mxu0
        %v7437 = vadd.f32 %v7348, %v7436
        %7438 = vmatmul.bf16.gmra.mxu0 %v7264
        %v7439 = vpop.f32.mrf.mxu0
        %v7440 = vadd.f32 %v7351, %v7439
        %v7441 = vpop.f32.mrf.mxu0
        %v7442 = vadd.f32 %v7353, %v7441
        %7443 = vdwg.mxu0
        %v7444 = vld [vmem:[%s5] sm:$0x1]
        %v7446 = vperm.slane %v7444, 0
        %v7448 = vmul.f32 %v7365, %v7446
        %v7449 = vmul.f32 %v7367, %v7446
        %v7450 = vmul.f32 %v7370, %v7446
        %v7451 = vmul.f32 %v7372, %v7446
        %v7452 = vmul.f32 %v7375, %v7446
        %v7453 = vmul.f32 %v7377, %v7446
        %v7454 = vmul.f32 %v7380, %v7446
        %v7455 = vmul.f32 %v7382, %v7446
        %v7456 = vmul.f32 %v7385, %v7446
        %v7457 = vmul.f32 %v7387, %v7446
        %v7458 = vmul.f32 %v7390, %v7446
        %v7459 = vmul.f32 %v7392, %v7446
        %v7460 = vmul.f32 %v7395, %v7446
        %v7461 = vmul.f32 %v7397, %v7446
        %v7462 = vmul.f32 %v7400, %v7446
        %v7463 = vmul.f32 %v7402, %v7446
        %v7464 = vmul.f32 %v7405, %v7446
        %v7465 = vmul.f32 %v7407, %v7446
        %v7466 = vmul.f32 %v7410, %v7446
        %v7467 = vmul.f32 %v7412, %v7446
        %v7468 = vmul.f32 %v7415, %v7446
        %v7469 = vmul.f32 %v7417, %v7446
        %v7470 = vmul.f32 %v7420, %v7446
        %v7471 = vmul.f32 %v7422, %v7446
        %v7472 = vmul.f32 %v7425, %v7446
        %v7473 = vmul.f32 %v7427, %v7446
        %v7474 = vmul.f32 %v7430, %v7446
        %v7475 = vmul.f32 %v7432, %v7446
        %v7476 = vmul.f32 %v7435, %v7446
        %v7477 = vmul.f32 %v7437, %v7446
        %v7478 = vmul.f32 %v7440, %v7446
        %v7479 = vmul.f32 %v7442, %v7446
        %v7480 = vld [vmem:[%s6] sm:$0x1]
        %v7482 = vperm.slane %v7480, 0
        %v7484 = vadd.f32 %v7448, %v7482
        %v7485 = vadd.f32 %v7449, %v7482
        %v7486 = vadd.f32 %v7450, %v7482
        %v7487 = vadd.f32 %v7451, %v7482
        %v7488 = vadd.f32 %v7452, %v7482
        %v7489 = vadd.f32 %v7453, %v7482
        %v7490 = vadd.f32 %v7454, %v7482
        %v7491 = vadd.f32 %v7455, %v7482
        %v7492 = vadd.f32 %v7456, %v7482
        %v7493 = vadd.f32 %v7457, %v7482
        %v7494 = vadd.f32 %v7458, %v7482
        %v7495 = vadd.f32 %v7459, %v7482
        %v7496 = vadd.f32 %v7460, %v7482
        %v7497 = vadd.f32 %v7461, %v7482
        %v7498 = vadd.f32 %v7462, %v7482
        %v7499 = vadd.f32 %v7463, %v7482
        %v7500 = vadd.f32 %v7464, %v7482
        %v7501 = vadd.f32 %v7465, %v7482
        %v7502 = vadd.f32 %v7466, %v7482
        %v7503 = vadd.f32 %v7467, %v7482
        %v7504 = vadd.f32 %v7468, %v7482
        %v7505 = vadd.f32 %v7469, %v7482
        %v7506 = vadd.f32 %v7470, %v7482
        %v7507 = vadd.f32 %v7471, %v7482
        %v7508 = vadd.f32 %v7472, %v7482
        %v7509 = vadd.f32 %v7473, %v7482
        %v7510 = vadd.f32 %v7474, %v7482
        %v7511 = vadd.f32 %v7475, %v7482
        %v7512 = vadd.f32 %v7476, %v7482
        %v7513 = vadd.f32 %v7477, %v7482
        %v7514 = vadd.f32 %v7478, %v7482
        %v7515 = vadd.f32 %v7479, %v7482
        %v7516 = vmax.f32 %v7484, 0.0
        %v7517 = vmax.f32 %v7485, 0.0
        %v7518 = vmax.f32 %v7486, 0.0
        %v7519 = vmax.f32 %v7487, 0.0
        %v7520 = vmax.f32 %v7488, 0.0
        %v7521 = vmax.f32 %v7489, 0.0
        %v7522 = vmax.f32 %v7490, 0.0
        %v7523 = vmax.f32 %v7491, 0.0
        %v7524 = vmax.f32 %v7492, 0.0
        %v7525 = vmax.f32 %v7493, 0.0
        %v7526 = vmax.f32 %v7494, 0.0
        %v7527 = vmax.f32 %v7495, 0.0
        %v7528 = vmax.f32 %v7496, 0.0
        %v7529 = vmax.f32 %v7497, 0.0
        %v7530 = vmax.f32 %v7498, 0.0
        %v7531 = vmax.f32 %v7499, 0.0
        %v7532 = vmax.f32 %v7500, 0.0
        %v7533 = vmax.f32 %v7501, 0.0
        %v7534 = vmax.f32 %v7502, 0.0
        %v7535 = vmax.f32 %v7503, 0.0
        %v7536 = vmax.f32 %v7504, 0.0
        %v7537 = vmax.f32 %v7505, 0.0
        %v7538 = vmax.f32 %v7506, 0.0
        %v7539 = vmax.f32 %v7507, 0.0
        %v7540 = vmax.f32 %v7508, 0.0
        %v7541 = vmax.f32 %v7509, 0.0
        %v7542 = vmax.f32 %v7510, 0.0
        %v7543 = vmax.f32 %v7511, 0.0
        %v7544 = vmax.f32 %v7512, 0.0
        %v7545 = vmax.f32 %v7513, 0.0
        %v7546 = vmax.f32 %v7514, 0.0
        %v7547 = vmax.f32 %v7515, 0.0
        %v7580 = vrot.slane %v7516, 4
        %v7581 = vrot.slane %v7517, 4
        %v7582 = vrot.slane %v7518, 4
        %v7583 = vrot.slane %v7519, 4
        %v7584 = vrot.slane %v7520, 4
        %v7585 = vrot.slane %v7521, 4
        %v7586 = vrot.slane %v7522, 4
        %v7587 = vrot.slane %v7523, 4
        %v7588 = vrot.slane %v7524, 4
        %v7589 = vrot.slane %v7525, 4
        %v7590 = vrot.slane %v7526, 4
        %v7591 = vrot.slane %v7527, 4
        %v7592 = vrot.slane %v7528, 4
        %v7593 = vrot.slane %v7529, 4
        %v7594 = vrot.slane %v7530, 4
        %v7595 = vrot.slane %v7531, 4
        %v7596 = vrot.slane %v7532, 4
        %v7597 = vrot.slane %v7533, 4
        %v7598 = vrot.slane %v7534, 4
        %v7599 = vrot.slane %v7535, 4
        %v7600 = vrot.slane %v7536, 4
        %v7601 = vrot.slane %v7537, 4
        %v7602 = vrot.slane %v7538, 4
        %v7603 = vrot.slane %v7539, 4
        %v7604 = vrot.slane %v7540, 4
        %v7605 = vrot.slane %v7541, 4
        %v7606 = vrot.slane %v7542, 4
        %v7607 = vrot.slane %v7543, 4
        %v7608 = vrot.slane %v7544, 4
        %v7609 = vrot.slane %v7545, 4
        %v7610 = vrot.slane %v7546, 4
        %v7611 = vrot.slane %v7547, 4
        %vm7644 = vcmask 257024
        %v7645 = vsel %vm7644, %v7516, -inf
        %v7646 = vrot.slane %v7645, 4
        %v7647 = vmax.f32 %v7645, %v7646
        %v7648 = vrot.slane %v7647, 2
        %v7649 = vmax.f32 %v7647, %v7648
        %v7650 = vrot.slane %v7649, 1
        %v7651 = vmax.f32 %v7649, %v7650
        %v7652 = vsel %vm7644, %v7580, -inf
        %v7653 = vrot.slane %v7652, 4
        %v7654 = vmax.f32 %v7652, %v7653
        %v7655 = vrot.slane %v7654, 2
        %v7656 = vmax.f32 %v7654, %v7655
        %v7657 = vrot.slane %v7656, 1
        %v7658 = vmax.f32 %v7656, %v7657
        %v7659 = vsel %vm7644, %v7517, -inf
        %v7660 = vrot.slane %v7659, 4
        %v7661 = vmax.f32 %v7659, %v7660
        %v7662 = vrot.slane %v7661, 2
        %v7663 = vmax.f32 %v7661, %v7662
        %v7664 = vrot.slane %v7663, 1
        %v7665 = vmax.f32 %v7663, %v7664
        %v7666 = vsel %vm7644, %v7581, -inf
        %v7667 = vrot.slane %v7666, 4
        %v7668 = vmax.f32 %v7666, %v7667
        %v7669 = vrot.slane %v7668, 2
        %v7670 = vmax.f32 %v7668, %v7669
        %v7671 = vrot.slane %v7670, 1
        %v7672 = vmax.f32 %v7670, %v7671
        %v7673 = vsel %vm7644, %v7518, -inf
        %v7674 = vrot.slane %v7673, 4
        %v7675 = vmax.f32 %v7673, %v7674
        %v7676 = vrot.slane %v7675, 2
        %v7677 = vmax.f32 %v7675, %v7676
        %v7678 = vrot.slane %v7677, 1
        %v7679 = vmax.f32 %v7677, %v7678
        %v7680 = vsel %vm7644, %v7582, -inf
        %v7681 = vrot.slane %v7680, 4
        %v7682 = vmax.f32 %v7680, %v7681
        %v7683 = vrot.slane %v7682, 2
        %v7684 = vmax.f32 %v7682, %v7683
        %v7685 = vrot.slane %v7684, 1
        %v7686 = vmax.f32 %v7684, %v7685
        %v7687 = vsel %vm7644, %v7519, -inf
        %v7688 = vrot.slane %v7687, 4
        %v7689 = vmax.f32 %v7687, %v7688
        %v7690 = vrot.slane %v7689, 2
        %v7691 = vmax.f32 %v7689, %v7690
        %v7692 = vrot.slane %v7691, 1
        %v7693 = vmax.f32 %v7691, %v7692
        %v7694 = vsel %vm7644, %v7583, -inf
        %v7695 = vrot.slane %v7694, 4
        %v7696 = vmax.f32 %v7694, %v7695
        %v7697 = vrot.slane %v7696, 2
        %v7698 = vmax.f32 %v7696, %v7697
        %v7699 = vrot.slane %v7698, 1
        %v7700 = vmax.f32 %v7698, %v7699
        %v7701 = vsel %vm7644, %v7520, -inf
        %v7702 = vrot.slane %v7701, 4
        %v7703 = vmax.f32 %v7701, %v7702
        %v7704 = vrot.slane %v7703, 2
        %v7705 = vmax.f32 %v7703, %v7704
        %v7706 = vrot.slane %v7705, 1
        %v7707 = vmax.f32 %v7705, %v7706
        %v7708 = vsel %vm7644, %v7584, -inf
        %v7709 = vrot.slane %v7708, 4
        %v7710 = vmax.f32 %v7708, %v7709
        %v7711 = vrot.slane %v7710, 2
        %v7712 = vmax.f32 %v7710, %v7711
        %v7713 = vrot.slane %v7712, 1
        %v7714 = vmax.f32 %v7712, %v7713
        %v7715 = vsel %vm7644, %v7521, -inf
        %v7716 = vrot.slane %v7715, 4
        %v7717 = vmax.f32 %v7715, %v7716
        %v7718 = vrot.slane %v7717, 2
        %v7719 = vmax.f32 %v7717, %v7718
        %v7720 = vrot.slane %v7719, 1
        %v7721 = vmax.f32 %v7719, %v7720
        %v7722 = vsel %vm7644, %v7585, -inf
        %v7723 = vrot.slane %v7722, 4
        %v7724 = vmax.f32 %v7722, %v7723
        %v7725 = vrot.slane %v7724, 2
        %v7726 = vmax.f32 %v7724, %v7725
        %v7727 = vrot.slane %v7726, 1
        %v7728 = vmax.f32 %v7726, %v7727
        %v7729 = vsel %vm7644, %v7522, -inf
        %v7730 = vrot.slane %v7729, 4
        %v7731 = vmax.f32 %v7729, %v7730
        %v7732 = vrot.slane %v7731, 2
        %v7733 = vmax.f32 %v7731, %v7732
        %v7734 = vrot.slane %v7733, 1
        %v7735 = vmax.f32 %v7733, %v7734
        %v7736 = vsel %vm7644, %v7586, -inf
        %v7737 = vrot.slane %v7736, 4
        %v7738 = vmax.f32 %v7736, %v7737
        %v7739 = vrot.slane %v7738, 2
        %v7740 = vmax.f32 %v7738, %v7739
        %v7741 = vrot.slane %v7740, 1
        %v7742 = vmax.f32 %v7740, %v7741
        %v7743 = vsel %vm7644, %v7523, -inf
        %v7744 = vrot.slane %v7743, 4
        %v7745 = vmax.f32 %v7743, %v7744
        %v7746 = vrot.slane %v7745, 2
        %v7747 = vmax.f32 %v7745, %v7746
        %v7748 = vrot.slane %v7747, 1
        %v7749 = vmax.f32 %v7747, %v7748
        %v7750 = vsel %vm7644, %v7587, -inf
        %v7751 = vrot.slane %v7750, 4
        %v7752 = vmax.f32 %v7750, %v7751
        %v7753 = vrot.slane %v7752, 2
        %v7754 = vmax.f32 %v7752, %v7753
        %v7755 = vrot.slane %v7754, 1
        %v7756 = vmax.f32 %v7754, %v7755
        %v7757 = vsel %vm7644, %v7524, -inf
        %v7758 = vrot.slane %v7757, 4
        %v7759 = vmax.f32 %v7757, %v7758
        %v7760 = vrot.slane %v7759, 2
        %v7761 = vmax.f32 %v7759, %v7760
        %v7762 = vrot.slane %v7761, 1
        %v7763 = vmax.f32 %v7761, %v7762
        %v7764 = vsel %vm7644, %v7588, -inf
        %v7765 = vrot.slane %v7764, 4
        %v7766 = vmax.f32 %v7764, %v7765
        %v7767 = vrot.slane %v7766, 2
        %v7768 = vmax.f32 %v7766, %v7767
        %v7769 = vrot.slane %v7768, 1
        %v7770 = vmax.f32 %v7768, %v7769
        %v7771 = vsel %vm7644, %v7525, -inf
        %v7772 = vrot.slane %v7771, 4
        %v7773 = vmax.f32 %v7771, %v7772
        %v7774 = vrot.slane %v7773, 2
        %v7775 = vmax.f32 %v7773, %v7774
        %v7776 = vrot.slane %v7775, 1
        %v7777 = vmax.f32 %v7775, %v7776
        %v7778 = vsel %vm7644, %v7589, -inf
        %v7779 = vrot.slane %v7778, 4
        %v7780 = vmax.f32 %v7778, %v7779
        %v7781 = vrot.slane %v7780, 2
        %v7782 = vmax.f32 %v7780, %v7781
        %v7783 = vrot.slane %v7782, 1
        %v7784 = vmax.f32 %v7782, %v7783
        %v7785 = vsel %vm7644, %v7526, -inf
        %v7786 = vrot.slane %v7785, 4
        %v7787 = vmax.f32 %v7785, %v7786
        %v7788 = vrot.slane %v7787, 2
        %v7789 = vmax.f32 %v7787, %v7788
        %v7790 = vrot.slane %v7789, 1
        %v7791 = vmax.f32 %v7789, %v7790
        %v7792 = vsel %vm7644, %v7590, -inf
        %v7793 = vrot.slane %v7792, 4
        %v7794 = vmax.f32 %v7792, %v7793
        %v7795 = vrot.slane %v7794, 2
        %v7796 = vmax.f32 %v7794, %v7795
        %v7797 = vrot.slane %v7796, 1
        %v7798 = vmax.f32 %v7796, %v7797
        %v7799 = vsel %vm7644, %v7527, -inf
        %v7800 = vrot.slane %v7799, 4
        %v7801 = vmax.f32 %v7799, %v7800
        %v7802 = vrot.slane %v7801, 2
        %v7803 = vmax.f32 %v7801, %v7802
        %v7804 = vrot.slane %v7803, 1
        %v7805 = vmax.f32 %v7803, %v7804
        %v7806 = vsel %vm7644, %v7591, -inf
        %v7807 = vrot.slane %v7806, 4
        %v7808 = vmax.f32 %v7806, %v7807
        %v7809 = vrot.slane %v7808, 2
        %v7810 = vmax.f32 %v7808, %v7809
        %v7811 = vrot.slane %v7810, 1
        %v7812 = vmax.f32 %v7810, %v7811
        %v7813 = vsel %vm7644, %v7528, -inf
        %v7814 = vrot.slane %v7813, 4
        %v7815 = vmax.f32 %v7813, %v7814
        %v7816 = vrot.slane %v7815, 2
        %v7817 = vmax.f32 %v7815, %v7816
        %v7818 = vrot.slane %v7817, 1
        %v7819 = vmax.f32 %v7817, %v7818
        %v7820 = vsel %vm7644, %v7592, -inf
        %v7821 = vrot.slane %v7820, 4
        %v7822 = vmax.f32 %v7820, %v7821
        %v7823 = vrot.slane %v7822, 2
        %v7824 = vmax.f32 %v7822, %v7823
        %v7825 = vrot.slane %v7824, 1
        %v7826 = vmax.f32 %v7824, %v7825
        %v7827 = vsel %vm7644, %v7529, -inf
        %v7828 = vrot.slane %v7827, 4
        %v7829 = vmax.f32 %v7827, %v7828
        %v7830 = vrot.slane %v7829, 2
        %v7831 = vmax.f32 %v7829, %v7830
        %v7832 = vrot.slane %v7831, 1
        %v7833 = vmax.f32 %v7831, %v7832
        %v7834 = vsel %vm7644, %v7593, -inf
        %v7835 = vrot.slane %v7834, 4
        %v7836 = vmax.f32 %v7834, %v7835
        %v7837 = vrot.slane %v7836, 2
        %v7838 = vmax.f32 %v7836, %v7837
        %v7839 = vrot.slane %v7838, 1
        %v7840 = vmax.f32 %v7838, %v7839
        %v7841 = vsel %vm7644, %v7530, -inf
        %v7842 = vrot.slane %v7841, 4
        %v7843 = vmax.f32 %v7841, %v7842
        %v7844 = vrot.slane %v7843, 2
        %v7845 = vmax.f32 %v7843, %v7844
        %v7846 = vrot.slane %v7845, 1
        %v7847 = vmax.f32 %v7845, %v7846
        %v7848 = vsel %vm7644, %v7594, -inf
        %v7849 = vrot.slane %v7848, 4
        %v7850 = vmax.f32 %v7848, %v7849
        %v7851 = vrot.slane %v7850, 2
        %v7852 = vmax.f32 %v7850, %v7851
        %v7853 = vrot.slane %v7852, 1
        %v7854 = vmax.f32 %v7852, %v7853
        %v7855 = vsel %vm7644, %v7531, -inf
        %v7856 = vrot.slane %v7855, 4
        %v7857 = vmax.f32 %v7855, %v7856
        %v7858 = vrot.slane %v7857, 2
        %v7859 = vmax.f32 %v7857, %v7858
        %v7860 = vrot.slane %v7859, 1
        %v7861 = vmax.f32 %v7859, %v7860
        %v7862 = vsel %vm7644, %v7595, -inf
        %v7863 = vrot.slane %v7862, 4
        %v7864 = vmax.f32 %v7862, %v7863
        %v7865 = vrot.slane %v7864, 2
        %v7866 = vmax.f32 %v7864, %v7865
        %v7867 = vrot.slane %v7866, 1
        %v7868 = vmax.f32 %v7866, %v7867
        %v7869 = vsel %vm7644, %v7532, -inf
        %v7870 = vrot.slane %v7869, 4
        %v7871 = vmax.f32 %v7869, %v7870
        %v7872 = vrot.slane %v7871, 2
        %v7873 = vmax.f32 %v7871, %v7872
        %v7874 = vrot.slane %v7873, 1
        %v7875 = vmax.f32 %v7873, %v7874
        %v7876 = vsel %vm7644, %v7596, -inf
        %v7877 = vrot.slane %v7876, 4
        %v7878 = vmax.f32 %v7876, %v7877
        %v7879 = vrot.slane %v7878, 2
        %v7880 = vmax.f32 %v7878, %v7879
        %v7881 = vrot.slane %v7880, 1
        %v7882 = vmax.f32 %v7880, %v7881
        %v7883 = vsel %vm7644, %v7533, -inf
        %v7884 = vrot.slane %v7883, 4
        %v7885 = vmax.f32 %v7883, %v7884
        %v7886 = vrot.slane %v7885, 2
        %v7887 = vmax.f32 %v7885, %v7886
        %v7888 = vrot.slane %v7887, 1
        %v7889 = vmax.f32 %v7887, %v7888
        %v7890 = vsel %vm7644, %v7597, -inf
        %v7891 = vrot.slane %v7890, 4
        %v7892 = vmax.f32 %v7890, %v7891
        %v7893 = vrot.slane %v7892, 2
        %v7894 = vmax.f32 %v7892, %v7893
        %v7895 = vrot.slane %v7894, 1
        %v7896 = vmax.f32 %v7894, %v7895
        %v7897 = vsel %vm7644, %v7534, -inf
        %v7898 = vrot.slane %v7897, 4
        %v7899 = vmax.f32 %v7897, %v7898
        %v7900 = vrot.slane %v7899, 2
        %v7901 = vmax.f32 %v7899, %v7900
        %v7902 = vrot.slane %v7901, 1
        %v7903 = vmax.f32 %v7901, %v7902
        %v7904 = vsel %vm7644, %v7598, -inf
        %v7905 = vrot.slane %v7904, 4
        %v7906 = vmax.f32 %v7904, %v7905
        %v7907 = vrot.slane %v7906, 2
        %v7908 = vmax.f32 %v7906, %v7907
        %v7909 = vrot.slane %v7908, 1
        %v7910 = vmax.f32 %v7908, %v7909
        %v7911 = vsel %vm7644, %v7535, -inf
        %v7912 = vrot.slane %v7911, 4
        %v7913 = vmax.f32 %v7911, %v7912
        %v7914 = vrot.slane %v7913, 2
        %v7915 = vmax.f32 %v7913, %v7914
        %v7916 = vrot.slane %v7915, 1
        %v7917 = vmax.f32 %v7915, %v7916
        %v7918 = vsel %vm7644, %v7599, -inf
        %v7919 = vrot.slane %v7918, 4
        %v7920 = vmax.f32 %v7918, %v7919
        %v7921 = vrot.slane %v7920, 2
        %v7922 = vmax.f32 %v7920, %v7921
        %v7923 = vrot.slane %v7922, 1
        %v7924 = vmax.f32 %v7922, %v7923
        %v7925 = vsel %vm7644, %v7536, -inf
        %v7926 = vrot.slane %v7925, 4
        %v7927 = vmax.f32 %v7925, %v7926
        %v7928 = vrot.slane %v7927, 2
        %v7929 = vmax.f32 %v7927, %v7928
        %v7930 = vrot.slane %v7929, 1
        %v7931 = vmax.f32 %v7929, %v7930
        %v7932 = vsel %vm7644, %v7600, -inf
        %v7933 = vrot.slane %v7932, 4
        %v7934 = vmax.f32 %v7932, %v7933
        %v7935 = vrot.slane %v7934, 2
        %v7936 = vmax.f32 %v7934, %v7935
        %v7937 = vrot.slane %v7936, 1
        %v7938 = vmax.f32 %v7936, %v7937
        %v7939 = vsel %vm7644, %v7537, -inf
        %v7940 = vrot.slane %v7939, 4
        %v7941 = vmax.f32 %v7939, %v7940
        %v7942 = vrot.slane %v7941, 2
        %v7943 = vmax.f32 %v7941, %v7942
        %v7944 = vrot.slane %v7943, 1
        %v7945 = vmax.f32 %v7943, %v7944
        %v7946 = vsel %vm7644, %v7601, -inf
        %v7947 = vrot.slane %v7946, 4
        %v7948 = vmax.f32 %v7946, %v7947
        %v7949 = vrot.slane %v7948, 2
        %v7950 = vmax.f32 %v7948, %v7949
        %v7951 = vrot.slane %v7950, 1
        %v7952 = vmax.f32 %v7950, %v7951
        %v7953 = vsel %vm7644, %v7538, -inf
        %v7954 = vrot.slane %v7953, 4
        %v7955 = vmax.f32 %v7953, %v7954
        %v7956 = vrot.slane %v7955, 2
        %v7957 = vmax.f32 %v7955, %v7956
        %v7958 = vrot.slane %v7957, 1
        %v7959 = vmax.f32 %v7957, %v7958
        %v7960 = vsel %vm7644, %v7602, -inf
        %v7961 = vrot.slane %v7960, 4
        %v7962 = vmax.f32 %v7960, %v7961
        %v7963 = vrot.slane %v7962, 2
        %v7964 = vmax.f32 %v7962, %v7963
        %v7965 = vrot.slane %v7964, 1
        %v7966 = vmax.f32 %v7964, %v7965
        %v7967 = vsel %vm7644, %v7539, -inf
        %v7968 = vrot.slane %v7967, 4
        %v7969 = vmax.f32 %v7967, %v7968
        %v7970 = vrot.slane %v7969, 2
        %v7971 = vmax.f32 %v7969, %v7970
        %v7972 = vrot.slane %v7971, 1
        %v7973 = vmax.f32 %v7971, %v7972
        %v7974 = vsel %vm7644, %v7603, -inf
        %v7975 = vrot.slane %v7974, 4
        %v7976 = vmax.f32 %v7974, %v7975
        %v7977 = vrot.slane %v7976, 2
        %v7978 = vmax.f32 %v7976, %v7977
        %v7979 = vrot.slane %v7978, 1
        %v7980 = vmax.f32 %v7978, %v7979
        %v7981 = vsel %vm7644, %v7540, -inf
        %v7982 = vrot.slane %v7981, 4
        %v7983 = vmax.f32 %v7981, %v7982
        %v7984 = vrot.slane %v7983, 2
        %v7985 = vmax.f32 %v7983, %v7984
        %v7986 = vrot.slane %v7985, 1
        %v7987 = vmax.f32 %v7985, %v7986
        %v7988 = vsel %vm7644, %v7604, -inf
        %v7989 = vrot.slane %v7988, 4
        %v7990 = vmax.f32 %v7988, %v7989
        %v7991 = vrot.slane %v7990, 2
        %v7992 = vmax.f32 %v7990, %v7991
        %v7993 = vrot.slane %v7992, 1
        %v7994 = vmax.f32 %v7992, %v7993
        %v7995 = vsel %vm7644, %v7541, -inf
        %v7996 = vrot.slane %v7995, 4
        %v7997 = vmax.f32 %v7995, %v7996
        %v7998 = vrot.slane %v7997, 2
        %v7999 = vmax.f32 %v7997, %v7998
        %v8000 = vrot.slane %v7999, 1
        %v8001 = vmax.f32 %v7999, %v8000
        %v8002 = vsel %vm7644, %v7605, -inf
        %v8003 = vrot.slane %v8002, 4
        %v8004 = vmax.f32 %v8002, %v8003
        %v8005 = vrot.slane %v8004, 2
        %v8006 = vmax.f32 %v8004, %v8005
        %v8007 = vrot.slane %v8006, 1
        %v8008 = vmax.f32 %v8006, %v8007
        %v8009 = vsel %vm7644, %v7542, -inf
        %v8010 = vrot.slane %v8009, 4
        %v8011 = vmax.f32 %v8009, %v8010
        %v8012 = vrot.slane %v8011, 2
        %v8013 = vmax.f32 %v8011, %v8012
        %v8014 = vrot.slane %v8013, 1
        %v8015 = vmax.f32 %v8013, %v8014
        %v8016 = vsel %vm7644, %v7606, -inf
        %v8017 = vrot.slane %v8016, 4
        %v8018 = vmax.f32 %v8016, %v8017
        %v8019 = vrot.slane %v8018, 2
        %v8020 = vmax.f32 %v8018, %v8019
        %v8021 = vrot.slane %v8020, 1
        %v8022 = vmax.f32 %v8020, %v8021
        %v8023 = vsel %vm7644, %v7543, -inf
        %v8024 = vrot.slane %v8023, 4
        %v8025 = vmax.f32 %v8023, %v8024
        %v8026 = vrot.slane %v8025, 2
        %v8027 = vmax.f32 %v8025, %v8026
        %v8028 = vrot.slane %v8027, 1
        %v8029 = vmax.f32 %v8027, %v8028
        %v8030 = vsel %vm7644, %v7607, -inf
        %v8031 = vrot.slane %v8030, 4
        %v8032 = vmax.f32 %v8030, %v8031
        %v8033 = vrot.slane %v8032, 2
        %v8034 = vmax.f32 %v8032, %v8033
        %v8035 = vrot.slane %v8034, 1
        %v8036 = vmax.f32 %v8034, %v8035
        %v8037 = vsel %vm7644, %v7544, -inf
        %v8038 = vrot.slane %v8037, 4
        %v8039 = vmax.f32 %v8037, %v8038
        %v8040 = vrot.slane %v8039, 2
        %v8041 = vmax.f32 %v8039, %v8040
        %v8042 = vrot.slane %v8041, 1
        %v8043 = vmax.f32 %v8041, %v8042
        %v8044 = vsel %vm7644, %v7608, -inf
        %v8045 = vrot.slane %v8044, 4
        %v8046 = vmax.f32 %v8044, %v8045
        %v8047 = vrot.slane %v8046, 2
        %v8048 = vmax.f32 %v8046, %v8047
        %v8049 = vrot.slane %v8048, 1
        %v8050 = vmax.f32 %v8048, %v8049
        %v8051 = vsel %vm7644, %v7545, -inf
        %v8052 = vrot.slane %v8051, 4
        %v8053 = vmax.f32 %v8051, %v8052
        %v8054 = vrot.slane %v8053, 2
        %v8055 = vmax.f32 %v8053, %v8054
        %v8056 = vrot.slane %v8055, 1
        %v8057 = vmax.f32 %v8055, %v8056
        %v8058 = vsel %vm7644, %v7609, -inf
        %v8059 = vrot.slane %v8058, 4
        %v8060 = vmax.f32 %v8058, %v8059
        %v8061 = vrot.slane %v8060, 2
        %v8062 = vmax.f32 %v8060, %v8061
        %v8063 = vrot.slane %v8062, 1
        %v8064 = vmax.f32 %v8062, %v8063
        %v8065 = vsel %vm7644, %v7546, -inf
        %v8066 = vrot.slane %v8065, 4
        %v8067 = vmax.f32 %v8065, %v8066
        %v8068 = vrot.slane %v8067, 2
        %v8069 = vmax.f32 %v8067, %v8068
        %v8070 = vrot.slane %v8069, 1
        %v8071 = vmax.f32 %v8069, %v8070
        %v8072 = vsel %vm7644, %v7610, -inf
        %v8073 = vrot.slane %v8072, 4
        %v8074 = vmax.f32 %v8072, %v8073
        %v8075 = vrot.slane %v8074, 2
        %v8076 = vmax.f32 %v8074, %v8075
        %v8077 = vrot.slane %v8076, 1
        %v8078 = vmax.f32 %v8076, %v8077
        %v8079 = vsel %vm7644, %v7547, -inf
        %v8080 = vrot.slane %v8079, 4
        %v8081 = vmax.f32 %v8079, %v8080
        %v8082 = vrot.slane %v8081, 2
        %v8083 = vmax.f32 %v8081, %v8082
        %v8084 = vrot.slane %v8083, 1
        %v8085 = vmax.f32 %v8083, %v8084
        %v8086 = vsel %vm7644, %v7611, -inf
        %v8087 = vrot.slane %v8086, 4
        %v8088 = vmax.f32 %v8086, %v8087
        %v8089 = vrot.slane %v8088, 2
        %v8090 = vmax.f32 %v8088, %v8089
        %v8091 = vrot.slane %v8090, 1
        %v8092 = vmax.f32 %v8090, %v8091
        %v8157 = vsel %vm4908, %v7658, %v7651
        %v8158 = vsel %vm4910, %v7665, %v8157
        %v8159 = vsel %vm4912, %v7672, %v8158
        %v8160 = vsel %vm4914, %v7679, %v8159
        %v8161 = vsel %vm4916, %v7686, %v8160
        %v8162 = vsel %vm4918, %v7693, %v8161
        %v8163 = vsel %vm4920, %v7700, %v8162
        %v8164 = vsel %vm4908, %v7714, %v7707
        %v8165 = vsel %vm4910, %v7721, %v8164
        %v8166 = vsel %vm4912, %v7728, %v8165
        %v8167 = vsel %vm4914, %v7735, %v8166
        %v8168 = vsel %vm4916, %v7742, %v8167
        %v8169 = vsel %vm4918, %v7749, %v8168
        %v8170 = vsel %vm4920, %v7756, %v8169
        %v8171 = vsel %vm4908, %v7770, %v7763
        %v8172 = vsel %vm4910, %v7777, %v8171
        %v8173 = vsel %vm4912, %v7784, %v8172
        %v8174 = vsel %vm4914, %v7791, %v8173
        %v8175 = vsel %vm4916, %v7798, %v8174
        %v8176 = vsel %vm4918, %v7805, %v8175
        %v8177 = vsel %vm4920, %v7812, %v8176
        %v8178 = vsel %vm4908, %v7826, %v7819
        %v8179 = vsel %vm4910, %v7833, %v8178
        %v8180 = vsel %vm4912, %v7840, %v8179
        %v8181 = vsel %vm4914, %v7847, %v8180
        %v8182 = vsel %vm4916, %v7854, %v8181
        %v8183 = vsel %vm4918, %v7861, %v8182
        %v8184 = vsel %vm4920, %v7868, %v8183
        %v8185 = vsel %vm4908, %v7882, %v7875
        %v8186 = vsel %vm4910, %v7889, %v8185
        %v8187 = vsel %vm4912, %v7896, %v8186
        %v8188 = vsel %vm4914, %v7903, %v8187
        %v8189 = vsel %vm4916, %v7910, %v8188
        %v8190 = vsel %vm4918, %v7917, %v8189
        %v8191 = vsel %vm4920, %v7924, %v8190
        %v8192 = vsel %vm4908, %v7938, %v7931
        %v8193 = vsel %vm4910, %v7945, %v8192
        %v8194 = vsel %vm4912, %v7952, %v8193
        %v8195 = vsel %vm4914, %v7959, %v8194
        %v8196 = vsel %vm4916, %v7966, %v8195
        %v8197 = vsel %vm4918, %v7973, %v8196
        %v8198 = vsel %vm4920, %v7980, %v8197
        %v8199 = vsel %vm4908, %v7994, %v7987
        %v8200 = vsel %vm4910, %v8001, %v8199
        %v8201 = vsel %vm4912, %v8008, %v8200
        %v8202 = vsel %vm4914, %v8015, %v8201
        %v8203 = vsel %vm4916, %v8022, %v8202
        %v8204 = vsel %vm4918, %v8029, %v8203
        %v8205 = vsel %vm4920, %v8036, %v8204
        %v8206 = vsel %vm4908, %v8050, %v8043
        %v8207 = vsel %vm4910, %v8057, %v8206
        %v8208 = vsel %vm4912, %v8064, %v8207
        %v8209 = vsel %vm4914, %v8071, %v8208
        %v8210 = vsel %vm4916, %v8078, %v8209
        %v8211 = vsel %vm4918, %v8085, %v8210
        %v8212 = vsel %vm4920, %v8092, %v8211
        %8221 = vst.msk [vmem:[#allocation3 + $0x8] sm:$0xff] %vm699, %v8163
        %8222 = vst.msk [vmem:[#allocation3 + $0x10] sm:$0xff] %vm699, %v8170
        %8223 = vst.msk [vmem:[#allocation3 + $0x18] sm:$0xff] %vm699, %v8177
        %8224 = vst.msk [vmem:[#allocation3 + $0x20] sm:$0xff] %vm699, %v8184
        %8225 = vst.msk [vmem:[#allocation3 + $0x28] sm:$0xff] %vm699, %v8191
        %8226 = vst.msk [vmem:[#allocation3 + $0x30] sm:$0xff] %vm699, %v8198
        %8227 = vst.msk [vmem:[#allocation3 + $0x38] sm:$0xff] %vm699, %v8205
        %8228 = vst.msk [vmem:[#allocation3 + $0x40] sm:$0xff] %vm699, %v8212
        %v8229 = vld [vmem:[#allocation3 + $0x8] sm:$0xff]
        %v8230 = vld [vmem:[#allocation3 + $0x10] sm:$0xff]
        %v8231 = vld [vmem:[#allocation3 + $0x18] sm:$0xff]
        %v8232 = vld [vmem:[#allocation3 + $0x20] sm:$0xff]
        %v8233 = vld [vmem:[#allocation3 + $0x28] sm:$0xff]
        %v8234 = vld [vmem:[#allocation3 + $0x30] sm:$0xff]
        %v8235 = vld [vmem:[#allocation3 + $0x38] sm:$0xff]
        %v8236 = vld [vmem:[#allocation3 + $0x40] sm:$0xff]
        %v8237 = vpack.c.bf16 %v8229, %v8229
        %v8238 = vpack.c.bf16 %v8230, %v8230
        %v8239 = vpack.c.bf16 %v8231, %v8231
        %v8240 = vpack.c.bf16 %v8232, %v8232
        %v8241 = vpack.c.bf16 %v8233, %v8233
        %v8242 = vpack.c.bf16 %v8234, %v8234
        %v8243 = vpack.c.bf16 %v8235, %v8235
        %v8244 = vpack.c.bf16 %v8236, %v8236
        %8245 = vst.msk [vmem:[#allocation7] sm:$0xf] %vm7644, %v8237
        %8246 = vst.msk [vmem:[#allocation7 + $0xc] sm:$0xf] %vm7644, %v8238
        %8247 = vst.msk [vmem:[#allocation7 + $0x18] sm:$0xf] %vm7644, %v8239
        %8248 = vst.msk [vmem:[#allocation7 + $0x24] sm:$0xf] %vm7644, %v8240
        %8249 = vst.msk [vmem:[#allocation7 + $0x30] sm:$0xf] %vm7644, %v8241
        %8250 = vst.msk [vmem:[#allocation7 + $0x3c] sm:$0xf] %vm7644, %v8242
        %8251 = vst.msk [vmem:[#allocation7 + $0x48] sm:$0xf] %vm7644, %v8243
        %8252 = vst.msk [vmem:[#allocation7 + $0x54] sm:$0xf] %vm7644, %v8244
        %v8253 = vld [vmem:[#allocation3 + $0x7] sm:$0xff]
        %v8254 = vld [vmem:[#allocation3 + $0xf] sm:$0xff]
        %v8255 = vld [vmem:[#allocation3 + $0x17] sm:$0xff]
        %v8256 = vld [vmem:[#allocation3 + $0x1f] sm:$0xff]
        %v8257 = vld [vmem:[#allocation3 + $0x27] sm:$0xff]
        %v8258 = vld [vmem:[#allocation3 + $0x2f] sm:$0xff]
        %v8259 = vld [vmem:[#allocation3 + $0x37] sm:$0xff]
        %v8260 = vld [vmem:[#allocation3 + $0x3f] sm:$0xff]
        %v8261 = vpack.c.bf16 %v8253, %v8253
        %v8262 = vpack.c.bf16 %v8254, %v8254
        %v8263 = vpack.c.bf16 %v8255, %v8255
        %v8264 = vpack.c.bf16 %v8256, %v8256
        %v8265 = vpack.c.bf16 %v8257, %v8257
        %v8266 = vpack.c.bf16 %v8258, %v8258
        %v8267 = vpack.c.bf16 %v8259, %v8259
        %v8268 = vpack.c.bf16 %v8260, %v8260
        %8277 = vrot.lane.b32.xlu0 %v8261, 32
        %v8278 = vpop.permute.xlu0 %8277
        %8279 = vrot.lane.b32.xlu0 %v8262, 32
        %v8280 = vpop.permute.xlu0 %8279
        %8281 = vrot.lane.b32.xlu0 %v8263, 32
        %v8282 = vpop.permute.xlu0 %8281
        %8283 = vrot.lane.b32.xlu0 %v8264, 32
        %v8284 = vpop.permute.xlu0 %8283
        %8285 = vrot.lane.b32.xlu0 %v8265, 32
        %v8286 = vpop.permute.xlu0 %8285
        %8287 = vrot.lane.b32.xlu0 %v8266, 32
        %v8288 = vpop.permute.xlu0 %8287
        %8289 = vrot.lane.b32.xlu0 %v8267, 32
        %v8290 = vpop.permute.xlu0 %8289
        %8291 = vrot.lane.b32.xlu0 %v8268, 32
        %v8292 = vpop.permute.xlu0 %8291
        %vm8301 = vcmask 519424
        %8302 = vst.msk [vmem:[#allocation7] sm:$0xf] %vm8301, %v8278
        %8303 = vst.msk [vmem:[#allocation7 + $0xc] sm:$0xf] %vm8301, %v8280
        %8304 = vst.msk [vmem:[#allocation7 + $0x18] sm:$0xf] %vm8301, %v8282
        %8305 = vst.msk [vmem:[#allocation7 + $0x24] sm:$0xf] %vm8301, %v8284
        %8306 = vst.msk [vmem:[#allocation7 + $0x30] sm:$0xf] %vm8301, %v8286
        %8307 = vst.msk [vmem:[#allocation7 + $0x3c] sm:$0xf] %vm8301, %v8288
        %8308 = vst.msk [vmem:[#allocation7 + $0x48] sm:$0xf] %vm8301, %v8290
        %8309 = vst.msk [vmem:[#allocation7 + $0x54] sm:$0xf] %vm8301, %v8292
        %v8310 = vld [vmem:[#allocation3 + $0x9] sm:$0xff]
        %v8311 = vld [vmem:[#allocation3 + $0x11] sm:$0xff]
        %v8312 = vld [vmem:[#allocation3 + $0x19] sm:$0xff]
        %v8313 = vld [vmem:[#allocation3 + $0x21] sm:$0xff]
        %v8314 = vld [vmem:[#allocation3 + $0x29] sm:$0xff]
        %v8315 = vld [vmem:[#allocation3 + $0x31] sm:$0xff]
        %v8316 = vld [vmem:[#allocation3 + $0x39] sm:$0xff]
        %v8317 = vld [vmem:[#allocation3 + $0x41] sm:$0xff]
        %v8318 = vpack.c.bf16 %v8310, %v8310
        %v8319 = vpack.c.bf16 %v8311, %v8311
        %v8320 = vpack.c.bf16 %v8312, %v8312
        %v8321 = vpack.c.bf16 %v8313, %v8313
        %v8322 = vpack.c.bf16 %v8314, %v8314
        %v8323 = vpack.c.bf16 %v8315, %v8315
        %v8324 = vpack.c.bf16 %v8316, %v8316
        %v8325 = vpack.c.bf16 %v8317, %v8317
        %8334 = vrot.lane.b32.xlu0 %v8318, 64
        %v8335 = vpop.permute.xlu0 %8334
        %8336 = vrot.lane.b32.xlu0 %v8319, 64
        %v8337 = vpop.permute.xlu0 %8336
        %8338 = vrot.lane.b32.xlu0 %v8320, 64
        %v8339 = vpop.permute.xlu0 %8338
        %8340 = vrot.lane.b32.xlu0 %v8321, 64
        %v8341 = vpop.permute.xlu0 %8340
        %8342 = vrot.lane.b32.xlu0 %v8322, 64
        %v8343 = vpop.permute.xlu0 %8342
        %8344 = vrot.lane.b32.xlu0 %v8323, 64
        %v8345 = vpop.permute.xlu0 %8344
        %8346 = vrot.lane.b32.xlu0 %v8324, 64
        %v8347 = vpop.permute.xlu0 %8346
        %8348 = vrot.lane.b32.xlu0 %v8325, 64
        %v8349 = vpop.permute.xlu0 %8348
        %vm8358 = vcmask 781824
        %8359 = vst.msk [vmem:[#allocation7] sm:$0xf] %vm8358, %v8335
        %8360 = vst.msk [vmem:[#allocation7 + $0xc] sm:$0xf] %vm8358, %v8337
        %8361 = vst.msk [vmem:[#allocation7 + $0x18] sm:$0xf] %vm8358, %v8339
        %8362 = vst.msk [vmem:[#allocation7 + $0x24] sm:$0xf] %vm8358, %v8341
        %8363 = vst.msk [vmem:[#allocation7 + $0x30] sm:$0xf] %vm8358, %v8343
        %8364 = vst.msk [vmem:[#allocation7 + $0x3c] sm:$0xf] %vm8358, %v8345
        %8365 = vst.msk [vmem:[#allocation7 + $0x48] sm:$0xf] %vm8358, %v8347
        %8366 = vst.msk [vmem:[#allocation7 + $0x54] sm:$0xf] %vm8358, %v8349
        %v8367 = vld [vmem:[#allocation3 + $0x6] sm:$0xff]
        %v8368 = vld [vmem:[#allocation3 + $0xe] sm:$0xff]
        %v8369 = vld [vmem:[#allocation3 + $0x16] sm:$0xff]
        %v8370 = vld [vmem:[#allocation3 + $0x1e] sm:$0xff]
        %v8371 = vld [vmem:[#allocation3 + $0x26] sm:$0xff]
        %v8372 = vld [vmem:[#allocation3 + $0x2e] sm:$0xff]
        %v8373 = vld [vmem:[#allocation3 + $0x36] sm:$0xff]
        %v8374 = vld [vmem:[#allocation3 + $0x3e] sm:$0xff]
        %v8375 = vpack.c.bf16 %v8367, %v8367
        %v8376 = vpack.c.bf16 %v8368, %v8368
        %v8377 = vpack.c.bf16 %v8369, %v8369
        %v8378 = vpack.c.bf16 %v8370, %v8370
        %v8379 = vpack.c.bf16 %v8371, %v8371
        %v8380 = vpack.c.bf16 %v8372, %v8372
        %v8381 = vpack.c.bf16 %v8373, %v8373
        %v8382 = vpack.c.bf16 %v8374, %v8374
        %8391 = vrot.lane.b32.xlu0 %v8375, 96
        %v8392 = vpop.permute.xlu0 %8391
        %8393 = vrot.lane.b32.xlu0 %v8376, 96
        %v8394 = vpop.permute.xlu0 %8393
        %8395 = vrot.lane.b32.xlu0 %v8377, 96
        %v8396 = vpop.permute.xlu0 %8395
        %8397 = vrot.lane.b32.xlu0 %v8378, 96
        %v8398 = vpop.permute.xlu0 %8397
        %8399 = vrot.lane.b32.xlu0 %v8379, 96
        %v8400 = vpop.permute.xlu0 %8399
        %8401 = vrot.lane.b32.xlu0 %v8380, 96
        %v8402 = vpop.permute.xlu0 %8401
        %8403 = vrot.lane.b32.xlu0 %v8381, 96
        %v8404 = vpop.permute.xlu0 %8403
        %8405 = vrot.lane.b32.xlu0 %v8382, 96
        %v8406 = vpop.permute.xlu0 %8405
        %vm8415 = vcmask 1044224
        %8416 = vst.msk [vmem:[#allocation7] sm:$0xf] %vm8415, %v8392
        %8417 = vst.msk [vmem:[#allocation7 + $0xc] sm:$0xf] %vm8415, %v8394
        %8418 = vst.msk [vmem:[#allocation7 + $0x18] sm:$0xf] %vm8415, %v8396
        %8419 = vst.msk [vmem:[#allocation7 + $0x24] sm:$0xf] %vm8415, %v8398
        %8420 = vst.msk [vmem:[#allocation7 + $0x30] sm:$0xf] %vm8415, %v8400
        %8421 = vst.msk [vmem:[#allocation7 + $0x3c] sm:$0xf] %vm8415, %v8402
        %8422 = vst.msk [vmem:[#allocation7 + $0x48] sm:$0xf] %vm8415, %v8404
        %8423 = vst.msk [vmem:[#allocation7 + $0x54] sm:$0xf] %vm8415, %v8406
        %v8424 = vld [vmem:[#allocation3 + $0xa] sm:$0xff]
        %v8425 = vld [vmem:[#allocation3 + $0x12] sm:$0xff]
        %v8426 = vld [vmem:[#allocation3 + $0x1a] sm:$0xff]
        %v8427 = vld [vmem:[#allocation3 + $0x22] sm:$0xff]
        %v8428 = vld [vmem:[#allocation3 + $0x2a] sm:$0xff]
        %v8429 = vld [vmem:[#allocation3 + $0x32] sm:$0xff]
        %v8430 = vld [vmem:[#allocation3 + $0x3a] sm:$0xff]
        %v8431 = vld [vmem:[#allocation3 + $0x42] sm:$0xff]
        %v8432 = vpack.c.bf16 %v8424, %v8424
        %v8433 = vpack.c.bf16 %v8425, %v8425
        %v8434 = vpack.c.bf16 %v8426, %v8426
        %v8435 = vpack.c.bf16 %v8427, %v8427
        %v8436 = vpack.c.bf16 %v8428, %v8428
        %v8437 = vpack.c.bf16 %v8429, %v8429
        %v8438 = vpack.c.bf16 %v8430, %v8430
        %v8439 = vpack.c.bf16 %v8431, %v8431
        %8440 = vst.msk [vmem:[#allocation7 + $0x4] sm:$0xf] %vm7644, %v8432
        %8441 = vst.msk [vmem:[#allocation7 + $0x10] sm:$0xf] %vm7644, %v8433
        %8442 = vst.msk [vmem:[#allocation7 + $0x1c] sm:$0xf] %vm7644, %v8434
        %8443 = vst.msk [vmem:[#allocation7 + $0x28] sm:$0xf] %vm7644, %v8435
        %8444 = vst.msk [vmem:[#allocation7 + $0x34] sm:$0xf] %vm7644, %v8436
        %8445 = vst.msk [vmem:[#allocation7 + $0x40] sm:$0xf] %vm7644, %v8437
        %8446 = vst.msk [vmem:[#allocation7 + $0x4c] sm:$0xf] %vm7644, %v8438
        %8447 = vst.msk [vmem:[#allocation7 + $0x58] sm:$0xf] %vm7644, %v8439
        %v8448 = vld [vmem:[#allocation3 + $0x4] sm:$0xff]
        %v8449 = vld [vmem:[#allocation3 + $0xc] sm:$0xff]
        %v8450 = vld [vmem:[#allocation3 + $0x14] sm:$0xff]
        %v8451 = vld [vmem:[#allocation3 + $0x1c] sm:$0xff]
        %v8452 = vld [vmem:[#allocation3 + $0x24] sm:$0xff]
        %v8453 = vld [vmem:[#allocation3 + $0x2c] sm:$0xff]
        %v8454 = vld [vmem:[#allocation3 + $0x34] sm:$0xff]
        %v8455 = vld [vmem:[#allocation3 + $0x3c] sm:$0xff]
        %v8456 = vpack.c.bf16 %v8448, %v8448
        %v8457 = vpack.c.bf16 %v8449, %v8449
        %v8458 = vpack.c.bf16 %v8450, %v8450
        %v8459 = vpack.c.bf16 %v8451, %v8451
        %v8460 = vpack.c.bf16 %v8452, %v8452
        %v8461 = vpack.c.bf16 %v8453, %v8453
        %v8462 = vpack.c.bf16 %v8454, %v8454
        %v8463 = vpack.c.bf16 %v8455, %v8455
        %8472 = vrot.lane.b32.xlu0 %v8456, 32
        %v8473 = vpop.permute.xlu0 %8472
        %8474 = vrot.lane.b32.xlu0 %v8457, 32
        %v8475 = vpop.permute.xlu0 %8474
        %8476 = vrot.lane.b32.xlu0 %v8458, 32
        %v8477 = vpop.permute.xlu0 %8476
        %8478 = vrot.lane.b32.xlu0 %v8459, 32
        %v8479 = vpop.permute.xlu0 %8478
        %8480 = vrot.lane.b32.xlu0 %v8460, 32
        %v8481 = vpop.permute.xlu0 %8480
        %8482 = vrot.lane.b32.xlu0 %v8461, 32
        %v8483 = vpop.permute.xlu0 %8482
        %8484 = vrot.lane.b32.xlu0 %v8462, 32
        %v8485 = vpop.permute.xlu0 %8484
        %8486 = vrot.lane.b32.xlu0 %v8463, 32
        %v8487 = vpop.permute.xlu0 %8486
        %8496 = vst.msk [vmem:[#allocation7 + $0x4] sm:$0xf] %vm8301, %v8473
        %8497 = vst.msk [vmem:[#allocation7 + $0x10] sm:$0xf] %vm8301, %v8475
        %8498 = vst.msk [vmem:[#allocation7 + $0x1c] sm:$0xf] %vm8301, %v8477
        %8499 = vst.msk [vmem:[#allocation7 + $0x28] sm:$0xf] %vm8301, %v8479
        %8500 = vst.msk [vmem:[#allocation7 + $0x34] sm:$0xf] %vm8301, %v8481
        %8501 = vst.msk [vmem:[#allocation7 + $0x40] sm:$0xf] %vm8301, %v8483
        %8502 = vst.msk [vmem:[#allocation7 + $0x4c] sm:$0xf] %vm8301, %v8485
        %8503 = vst.msk [vmem:[#allocation7 + $0x58] sm:$0xf] %vm8301, %v8487
        %v8504 = vld [vmem:[#allocation3 + $0xc] sm:$0xff]
        %v8505 = vld [vmem:[#allocation3 + $0x14] sm:$0xff]
        %v8506 = vld [vmem:[#allocation3 + $0x1c] sm:$0xff]
        %v8507 = vld [vmem:[#allocation3 + $0x24] sm:$0xff]
        %v8508 = vld [vmem:[#allocation3 + $0x2c] sm:$0xff]
        %v8509 = vld [vmem:[#allocation3 + $0x34] sm:$0xff]
        %v8510 = vld [vmem:[#allocation3 + $0x3c] sm:$0xff]
        %v8511 = vld [vmem:[#allocation3 + $0x44] sm:$0xff]
        %v8512 = vpack.c.bf16 %v8504, %v8504
        %v8513 = vpack.c.bf16 %v8505, %v8505
        %v8514 = vpack.c.bf16 %v8506, %v8506
        %v8515 = vpack.c.bf16 %v8507, %v8507
        %v8516 = vpack.c.bf16 %v8508, %v8508
        %v8517 = vpack.c.bf16 %v8509, %v8509
        %v8518 = vpack.c.bf16 %v8510, %v8510
        %v8519 = vpack.c.bf16 %v8511, %v8511
        %8528 = vrot.lane.b32.xlu0 %v8512, 64
        %v8529 = vpop.permute.xlu0 %8528
        %8530 = vrot.lane.b32.xlu0 %v8513, 64
        %v8531 = vpop.permute.xlu0 %8530
        %8532 = vrot.lane.b32.xlu0 %v8514, 64
        %v8533 = vpop.permute.xlu0 %8532
        %8534 = vrot.lane.b32.xlu0 %v8515, 64
        %v8535 = vpop.permute.xlu0 %8534
        %8536 = vrot.lane.b32.xlu0 %v8516, 64
        %v8537 = vpop.permute.xlu0 %8536
        %8538 = vrot.lane.b32.xlu0 %v8517, 64
        %v8539 = vpop.permute.xlu0 %8538
        %8540 = vrot.lane.b32.xlu0 %v8518, 64
        %v8541 = vpop.permute.xlu0 %8540
        %8542 = vrot.lane.b32.xlu0 %v8519, 64
        %v8543 = vpop.permute.xlu0 %8542
        %8552 = vst.msk [vmem:[#allocation7 + $0x4] sm:$0xf] %vm8358, %v8529
        %8553 = vst.msk [vmem:[#allocation7 + $0x10] sm:$0xf] %vm8358, %v8531
        %8554 = vst.msk [vmem:[#allocation7 + $0x1c] sm:$0xf] %vm8358, %v8533
        %8555 = vst.msk [vmem:[#allocation7 + $0x28] sm:$0xf] %vm8358, %v8535
        %8556 = vst.msk [vmem:[#allocation7 + $0x34] sm:$0xf] %vm8358, %v8537
        %8557 = vst.msk [vmem:[#allocation7 + $0x40] sm:$0xf] %vm8358, %v8539
        %8558 = vst.msk [vmem:[#allocation7 + $0x4c] sm:$0xf] %vm8358, %v8541
        %8559 = vst.msk [vmem:[#allocation7 + $0x58] sm:$0xf] %vm8358, %v8543
        %v8560 = vld [vmem:[#allocation3] sm:$0xff]
        %v8561 = vld [vmem:[#allocation3 + $0x8] sm:$0xff]
        %v8562 = vld [vmem:[#allocation3 + $0x10] sm:$0xff]
        %v8563 = vld [vmem:[#allocation3 + $0x18] sm:$0xff]
        %v8564 = vld [vmem:[#allocation3 + $0x20] sm:$0xff]
        %v8565 = vld [vmem:[#allocation3 + $0x28] sm:$0xff]
        %v8566 = vld [vmem:[#allocation3 + $0x30] sm:$0xff]
        %v8567 = vld [vmem:[#allocation3 + $0x38] sm:$0xff]
        %v8568 = vpack.c.bf16 %v8560, %v8560
        %v8569 = vpack.c.bf16 %v8561, %v8561
        %v8570 = vpack.c.bf16 %v8562, %v8562
        %v8571 = vpack.c.bf16 %v8563, %v8563
        %v8572 = vpack.c.bf16 %v8564, %v8564
        %v8573 = vpack.c.bf16 %v8565, %v8565
        %v8574 = vpack.c.bf16 %v8566, %v8566
        %v8575 = vpack.c.bf16 %v8567, %v8567
        %8584 = vrot.lane.b32.xlu0 %v8568, 96
        %v8585 = vpop.permute.xlu0 %8584
        %8586 = vrot.lane.b32.xlu0 %v8569, 96
        %v8587 = vpop.permute.xlu0 %8586
        %8588 = vrot.lane.b32.xlu0 %v8570, 96
        %v8589 = vpop.permute.xlu0 %8588
        %8590 = vrot.lane.b32.xlu0 %v8571, 96
        %v8591 = vpop.permute.xlu0 %8590
        %8592 = vrot.lane.b32.xlu0 %v8572, 96
        %v8593 = vpop.permute.xlu0 %8592
        %8594 = vrot.lane.b32.xlu0 %v8573, 96
        %v8595 = vpop.permute.xlu0 %8594
        %8596 = vrot.lane.b32.xlu0 %v8574, 96
        %v8597 = vpop.permute.xlu0 %8596
        %8598 = vrot.lane.b32.xlu0 %v8575, 96
        %v8599 = vpop.permute.xlu0 %8598
        %8608 = vst.msk [vmem:[#allocation7 + $0x4] sm:$0xf] %vm8415, %v8585
        %8609 = vst.msk [vmem:[#allocation7 + $0x10] sm:$0xf] %vm8415, %v8587
        %8610 = vst.msk [vmem:[#allocation7 + $0x1c] sm:$0xf] %vm8415, %v8589
        %8611 = vst.msk [vmem:[#allocation7 + $0x28] sm:$0xf] %vm8415, %v8591
        %8612 = vst.msk [vmem:[#allocation7 + $0x34] sm:$0xf] %vm8415, %v8593
        %8613 = vst.msk [vmem:[#allocation7 + $0x40] sm:$0xf] %vm8415, %v8595
        %8614 = vst.msk [vmem:[#allocation7 + $0x4c] sm:$0xf] %vm8415, %v8597
        %8615 = vst.msk [vmem:[#allocation7 + $0x58] sm:$0xf] %vm8415, %v8599
        %v8616 = vld [vmem:[#allocation3 + $0x10] sm:$0xff]
        %v8617 = vld [vmem:[#allocation3 + $0x18] sm:$0xff]
        %v8618 = vld [vmem:[#allocation3 + $0x20] sm:$0xff]
        %v8619 = vld [vmem:[#allocation3 + $0x28] sm:$0xff]
        %v8620 = vld [vmem:[#allocation3 + $0x30] sm:$0xff]
        %v8621 = vld [vmem:[#allocation3 + $0x38] sm:$0xff]
        %v8622 = vld [vmem:[#allocation3 + $0x40] sm:$0xff]
        %v8623 = vld [vmem:[#allocation3 + $0x48] sm:$0xff]
        %v8624 = vpack.c.bf16 %v8616, %v8616
        %v8625 = vpack.c.bf16 %v8617, %v8617
        %v8626 = vpack.c.bf16 %v8618, %v8618
        %v8627 = vpack.c.bf16 %v8619, %v8619
        %v8628 = vpack.c.bf16 %v8620, %v8620
        %v8629 = vpack.c.bf16 %v8621, %v8621
        %v8630 = vpack.c.bf16 %v8622, %v8622
        %v8631 = vpack.c.bf16 %v8623, %v8623
        %8632 = vst.msk [vmem:[#allocation7 + $0x8] sm:$0xf] %vm7644, %v8624
        %8633 = vst.msk [vmem:[#allocation7 + $0x14] sm:$0xf] %vm7644, %v8625
        %8634 = vst.msk [vmem:[#allocation7 + $0x20] sm:$0xf] %vm7644, %v8626
        %8635 = vst.msk [vmem:[#allocation7 + $0x2c] sm:$0xf] %vm7644, %v8627
        %8636 = vst.msk [vmem:[#allocation7 + $0x38] sm:$0xf] %vm7644, %v8628
        %8637 = vst.msk [vmem:[#allocation7 + $0x44] sm:$0xf] %vm7644, %v8629
        %8638 = vst.msk [vmem:[#allocation7 + $0x50] sm:$0xf] %vm7644, %v8630
        %8639 = vst.msk [vmem:[#allocation7 + $0x5c] sm:$0xf] %vm7644, %v8631
        %v8640 = vld [vmem:[#allocation7] sm:$0xff]
        %v8641 = vld [vmem:[#allocation7 + $0x8] sm:$0xf]
        %v8642 = vld [vmem:[#allocation7 + $0xc] sm:$0xff]
        %v8643 = vld [vmem:[#allocation7 + $0x14] sm:$0xf]
        %v8644 = vld [vmem:[#allocation7 + $0x18] sm:$0xff]
        %v8645 = vld [vmem:[#allocation7 + $0x20] sm:$0xf]
        %v8646 = vld [vmem:[#allocation7 + $0x24] sm:$0xff]
        %v8647 = vld [vmem:[#allocation7 + $0x2c] sm:$0xf]
        %v8648 = vld [vmem:[#allocation7 + $0x30] sm:$0xff]
        %v8649 = vld [vmem:[#allocation7 + $0x38] sm:$0xf]
        %v8650 = vld [vmem:[#allocation7 + $0x3c] sm:$0xff]
        %v8651 = vld [vmem:[#allocation7 + $0x44] sm:$0xf]
        %v8652 = vld [vmem:[#allocation7 + $0x48] sm:$0xff]
        %v8653 = vld [vmem:[#allocation7 + $0x50] sm:$0xf]
        %v8654 = vld [vmem:[#allocation7 + $0x54] sm:$0xff]
        %v8655 = vld [vmem:[#allocation7 + $0x5c] sm:$0xf]
        %v8656 = vld [vmem:[%s7] sm:$0xf]
        %v8657 = vld [vmem:[%s7 + $0x4] sm:$0xf]
        %v8658 = vld [vmem:[%s7 + $0x8] sm:$0xf]
        %v8659 = vld [vmem:[%s7 + $0xc] sm:$0xf]
        %v8660 = vld [vmem:[%s7 + $0x10] sm:$0xf]
        %v8661 = vld [vmem:[%s7 + $0x14] sm:$0xf]
        %v8662 = vld [vmem:[%s7 + $0x18] sm:$0xf]
        %v8663 = vld [vmem:[%s7 + $0x1c] sm:$0xf]
        %v8664 = vld [vmem:[%s7 + $0x20] sm:$0xf]
        %v8665 = vld [vmem:[%s7 + $0x24] sm:$0xf]
        %v8666 = vld [vmem:[%s7 + $0x28] sm:$0xf]
        %v8667 = vld [vmem:[%s7 + $0x2c] sm:$0xf]
        %v8668 = vld [vmem:[%s7 + $0x30] sm:$0xf]
        %v8669 = vld [vmem:[%s7 + $0x34] sm:$0xf]
        %v8670 = vld [vmem:[%s7 + $0x38] sm:$0xf]
        %v8671 = vld [vmem:[%s7 + $0x3c] sm:$0xf]
        %v8672 = vld [vmem:[%s7 + $0x40] sm:$0xf]
        %v8673 = vld [vmem:[%s7 + $0x44] sm:$0xf]
        %v8674 = vld [vmem:[%s7 + $0x48] sm:$0xf]
        %v8675 = vld [vmem:[%s7 + $0x4c] sm:$0xf]
        %v8676 = vld [vmem:[%s7 + $0x50] sm:$0xf]
        %v8677 = vld [vmem:[%s7 + $0x54] sm:$0xf]
        %v8678 = vld [vmem:[%s7 + $0x58] sm:$0xf]
        %v8679 = vld [vmem:[%s7 + $0x5c] sm:$0xf]
        %v8680 = vld [vmem:[%s7 + $0x60] sm:$0xf]
        %v8681 = vld [vmem:[%s7 + $0x64] sm:$0xf]
        %v8682 = vld [vmem:[%s7 + $0x68] sm:$0xf]
        %v8683 = vld [vmem:[%s7 + $0x6c] sm:$0xf]
        %v8684 = vld [vmem:[%s7 + $0x70] sm:$0xf]
        %v8685 = vld [vmem:[%s7 + $0x74] sm:$0xf]
        %v8686 = vld [vmem:[%s7 + $0x78] sm:$0xf]
        %v8687 = vld [vmem:[%s7 + $0x7c] sm:$0xf]
        %v8688 = vld [vmem:[%s7 + $0x80] sm:$0xf]
        %v8689 = vld [vmem:[%s7 + $0x84] sm:$0xf]
        %v8690 = vld [vmem:[%s7 + $0x88] sm:$0xf]
        %v8691 = vld [vmem:[%s7 + $0x8c] sm:$0xf]
        %v8708 = vunpack.c.l.b16 %v8640
        %v8709 = vunpack.c.h.b16 %v8640
        %v8710 = vunpack.c.l.b16 %v8641
        %v8711 = vunpack.c.l.b16 %v8642
        %v8712 = vunpack.c.h.b16 %v8642
        %v8713 = vunpack.c.l.b16 %v8643
        %v8714 = vunpack.c.l.b16 %v8644
        %v8715 = vunpack.c.h.b16 %v8644
        %v8716 = vunpack.c.l.b16 %v8645
        %v8717 = vunpack.c.l.b16 %v8646
        %v8718 = vunpack.c.h.b16 %v8646
        %v8719 = vunpack.c.l.b16 %v8647
        %v8720 = vunpack.c.l.b16 %v8648
        %v8721 = vunpack.c.h.b16 %v8648
        %v8722 = vunpack.c.l.b16 %v8649
        %v8723 = vunpack.c.l.b16 %v8650
        %v8724 = vunpack.c.h.b16 %v8650
        %v8725 = vunpack.c.l.b16 %v8651
        %v8726 = vunpack.c.l.b16 %v8652
        %v8727 = vunpack.c.h.b16 %v8652
        %v8728 = vunpack.c.l.b16 %v8653
        %v8729 = vunpack.c.l.b16 %v8654
        %v8730 = vunpack.c.h.b16 %v8654
        %v8731 = vunpack.c.l.b16 %v8655
        %v8732 = vpack.c.b16 %v8711, %v8708
        %v8733 = vpack.c.b16 %v8712, %v8709
        %v8734 = vpack.c.b16 %v8713, %v8710
        %v8735 = vpack.c.b16 %v8717, %v8714
        %v8736 = vpack.c.b16 %v8718, %v8715
        %v8737 = vpack.c.b16 %v8719, %v8716
        %v8738 = vpack.c.b16 %v8723, %v8720
        %v8739 = vpack.c.b16 %v8724, %v8721
        %v8740 = vpack.c.b16 %v8725, %v8722
        %v8741 = vpack.c.b16 %v8729, %v8726
        %v8742 = vpack.c.b16 %v8730, %v8727
        %v8743 = vpack.c.b16 %v8731, %v8728
        %v8788 = vunpack.c.l.b16 %v8656
        %v8789 = vunpack.c.l.b16 %v8657
        %v8790 = vunpack.c.l.b16 %v8658
        %v8791 = vunpack.c.l.b16 %v8659
        %v8792 = vunpack.c.l.b16 %v8660
        %v8793 = vunpack.c.l.b16 %v8661
        %v8794 = vunpack.c.l.b16 %v8662
        %v8795 = vunpack.c.l.b16 %v8663
        %v8796 = vunpack.c.l.b16 %v8664
        %v8797 = vunpack.c.l.b16 %v8665
        %v8798 = vunpack.c.l.b16 %v8666
        %v8799 = vunpack.c.l.b16 %v8667
        %v8800 = vunpack.c.l.b16 %v8668
        %v8801 = vunpack.c.l.b16 %v8669
        %v8802 = vunpack.c.l.b16 %v8670
        %v8803 = vunpack.c.l.b16 %v8671
        %v8804 = vunpack.c.l.b16 %v8672
        %v8805 = vunpack.c.l.b16 %v8673
        %v8806 = vunpack.c.l.b16 %v8674
        %v8807 = vunpack.c.l.b16 %v8675
        %v8808 = vunpack.c.l.b16 %v8676
        %v8809 = vunpack.c.l.b16 %v8677
        %v8810 = vunpack.c.l.b16 %v8678
        %v8811 = vunpack.c.l.b16 %v8679
        %v8812 = vunpack.c.l.b16 %v8680
        %v8813 = vunpack.c.l.b16 %v8681
        %v8814 = vunpack.c.l.b16 %v8682
        %v8815 = vunpack.c.l.b16 %v8683
        %v8816 = vunpack.c.l.b16 %v8684
        %v8817 = vunpack.c.l.b16 %v8685
        %v8818 = vunpack.c.l.b16 %v8686
        %v8819 = vunpack.c.l.b16 %v8687
        %v8820 = vunpack.c.l.b16 %v8688
        %v8821 = vunpack.c.l.b16 %v8689
        %v8822 = vunpack.c.l.b16 %v8690
        %v8823 = vunpack.c.l.b16 %v8691
        %v8824 = vpack.c.b16 %v8789, %v8788
        %v8825 = vpack.c.b16 %v8791, %v8790
        %v8826 = vpack.c.b16 %v8793, %v8792
        %v8827 = vpack.c.b16 %v8795, %v8794
        %v8828 = vpack.c.b16 %v8797, %v8796
        %v8829 = vpack.c.b16 %v8799, %v8798
        %v8830 = vpack.c.b16 %v8801, %v8800
        %v8831 = vpack.c.b16 %v8803, %v8802
        %v8832 = vpack.c.b16 %v8805, %v8804
        %v8833 = vpack.c.b16 %v8807, %v8806
        %v8834 = vpack.c.b16 %v8809, %v8808
        %v8835 = vpack.c.b16 %v8811, %v8810
        %v8836 = vpack.c.b16 %v8813, %v8812
        %v8837 = vpack.c.b16 %v8815, %v8814
        %v8838 = vpack.c.b16 %v8817, %v8816
        %v8839 = vpack.c.b16 %v8819, %v8818
        %v8840 = vpack.c.b16 %v8821, %v8820
        %v8841 = vpack.c.b16 %v8823, %v8822
        %v8861 = vsel %vm699, %v8734, 0
        %v8864 = vsel %vm699, %v8737, 0
        %v8867 = vsel %vm699, %v8740, 0
        %v8870 = vsel %vm699, %v8743, 0
        %8872 = vmatpush.bf16.msra.mxu0 %v8831
        %8873 = vmatpush.bf16.msra.mxu0 %v8830
        %8874 = vmatpush.bf16.msra.mxu0 %v8829
        %8875 = vmatpush.bf16.msra.mxu0 %v8828
        %8876 = vmatpush.bf16.msra.mxu0 %v8827
        %8877 = vmatpush.bf16.msra.mxu0 %v8826
        %8878 = vmatpush.bf16.msra.mxu0 %v8825
        %8879 = vmatpush.bf16.msra.mxu0 %v8824
        %8880 = vmatmul.bf16.gmra.mxu0 %v8732
        %v8881 = vpop.f32.mrf.mxu0
        %v8882 = vadd.f32 0.0, %v8881
        %v8883 = vpop.f32.mrf.mxu0
        %v8884 = vadd.f32 0.0, %v8883
        %8885 = vmatmul.bf16.gmra.mxu0 %v8735
        %v8886 = vpop.f32.mrf.mxu0
        %v8887 = vadd.f32 0.0, %v8886
        %v8888 = vpop.f32.mrf.mxu0
        %v8889 = vadd.f32 0.0, %v8888
        %8890 = vmatmul.bf16.gmra.mxu0 %v8738
        %v8891 = vpop.f32.mrf.mxu0
        %v8892 = vadd.f32 0.0, %v8891
        %v8893 = vpop.f32.mrf.mxu0
        %v8894 = vadd.f32 0.0, %v8893
        %8895 = vmatmul.bf16.gmra.mxu0 %v8741
        %v8896 = vpop.f32.mrf.mxu0
        %v8897 = vadd.f32 0.0, %v8896
        %v8898 = vpop.f32.mrf.mxu0
        %v8899 = vadd.f32 0.0, %v8898
        %8900 = vdwg.mxu0
        %8901 = vmatpush.bf16.msra.mxu0 %v8839
        %8902 = vmatpush.bf16.msra.mxu0 %v8838
        %8903 = vmatpush.bf16.msra.mxu0 %v8837
        %8904 = vmatpush.bf16.msra.mxu0 %v8836
        %8905 = vmatpush.bf16.msra.mxu0 %v8835
        %8906 = vmatpush.bf16.msra.mxu0 %v8834
        %8907 = vmatpush.bf16.msra.mxu0 %v8833
        %8908 = vmatpush.bf16.msra.mxu0 %v8832
        %8909 = vmatmul.bf16.gmra.mxu0 %v8733
        %v8910 = vpop.f32.mrf.mxu0
        %v8911 = vadd.f32 %v8882, %v8910
        %v8912 = vpop.f32.mrf.mxu0
        %v8913 = vadd.f32 %v8884, %v8912
        %8914 = vmatmul.bf16.gmra.mxu0 %v8736
        %v8915 = vpop.f32.mrf.mxu0
        %v8916 = vadd.f32 %v8887, %v8915
        %v8917 = vpop.f32.mrf.mxu0
        %v8918 = vadd.f32 %v8889, %v8917
        %8919 = vmatmul.bf16.gmra.mxu0 %v8739
        %v8920 = vpop.f32.mrf.mxu0
        %v8921 = vadd.f32 %v8892, %v8920
        %v8922 = vpop.f32.mrf.mxu0
        %v8923 = vadd.f32 %v8894, %v8922
        %8924 = vmatmul.bf16.gmra.mxu0 %v8742
        %v8925 = vpop.f32.mrf.mxu0
        %v8926 = vadd.f32 %v8897, %v8925
        %v8927 = vpop.f32.mrf.mxu0
        %v8928 = vadd.f32 %v8899, %v8927
        %8929 = vdwg.mxu0
        %8930 = vmatpush.bf16.msra.mxu0 0
        %8931 = vmatpush.bf16.msra.mxu0 0
        %8932 = vmatpush.bf16.msra.mxu0 0
        %8933 = vmatpush.bf16.msra.mxu0 0
        %8934 = vmatpush.bf16.msra.mxu0 0
        %8935 = vmatpush.bf16.msra.mxu0 0
        %8936 = vmatpush.bf16.msra.mxu0 %v8841
        %8937 = vmatpush.bf16.msra.mxu0 %v8840
        %8938 = vmatmul.bf16.gmra.mxu0 %v8861
        %v8939 = vpop.f32.mrf.mxu0
        %v8940 = vadd.f32 %v8911, %v8939
        %v8941 = vpop.f32.mrf.mxu0
        %v8942 = vadd.f32 %v8913, %v8941
        %8943 = vmatmul.bf16.gmra.mxu0 %v8864
        %v8944 = vpop.f32.mrf.mxu0
        %v8945 = vadd.f32 %v8916, %v8944
        %v8946 = vpop.f32.mrf.mxu0
        %v8947 = vadd.f32 %v8918, %v8946
        %8948 = vmatmul.bf16.gmra.mxu0 %v8867
        %v8949 = vpop.f32.mrf.mxu0
        %v8950 = vadd.f32 %v8921, %v8949
        %v8951 = vpop.f32.mrf.mxu0
        %v8952 = vadd.f32 %v8923, %v8951
        %8953 = vmatmul.bf16.gmra.mxu0 %v8870
        %v8954 = vpop.f32.mrf.mxu0
        %v8955 = vadd.f32 %v8926, %v8954
        %v8956 = vpop.f32.mrf.mxu0
        %v8957 = vadd.f32 %v8928, %v8956
        %8958 = vdwg.mxu0
        %v8959 = vld [vmem:[%s8] sm:$0x1]
        %v8961 = vperm.slane %v8959, 0
        %v8963 = vmul.f32 %v8940, %v8961
        %v8964 = vmul.f32 %v8942, %v8961
        %v8965 = vmul.f32 %v8945, %v8961
        %v8966 = vmul.f32 %v8947, %v8961
        %v8967 = vmul.f32 %v8950, %v8961
        %v8968 = vmul.f32 %v8952, %v8961
        %v8969 = vmul.f32 %v8955, %v8961
        %v8970 = vmul.f32 %v8957, %v8961
        %v8971 = vld [vmem:[%s9] sm:$0x1]
        %v8973 = vperm.slane %v8971, 0
        %v8975 = vadd.f32 %v8963, %v8973
        %v8976 = vadd.f32 %v8964, %v8973
        %v8977 = vadd.f32 %v8965, %v8973
        %v8978 = vadd.f32 %v8966, %v8973
        %v8979 = vadd.f32 %v8967, %v8973
        %v8980 = vadd.f32 %v8968, %v8973
        %v8981 = vadd.f32 %v8969, %v8973
        %v8982 = vadd.f32 %v8970, %v8973
        %v8983 = vmax.f32 %v8975, 0.0
        %v8984 = vmax.f32 %v8976, 0.0
        %v8985 = vmax.f32 %v8977, 0.0
        %v8986 = vmax.f32 %v8978, 0.0
        %v8987 = vmax.f32 %v8979, 0.0
        %v8988 = vmax.f32 %v8980, 0.0
        %v8989 = vmax.f32 %v8981, 0.0
        %v8990 = vmax.f32 %v8982, 0.0
        %v8999 = vrot.slane %v8983, 4
        %v9000 = vrot.slane %v8984, 4
        %v9001 = vrot.slane %v8985, 4
        %v9002 = vrot.slane %v8986, 4
        %v9003 = vrot.slane %v8987, 4
        %v9004 = vrot.slane %v8988, 4
        %v9005 = vrot.slane %v8989, 4
        %v9006 = vrot.slane %v8990, 4
        %vm9015 = vcmask 519168
        %v9016 = vsel %vm9015, %v8983, -inf
        %v9017 = vrot.slane %v9016, 4
        %v9018 = vmax.f32 %v9016, %v9017
        %v9019 = vrot.slane %v9018, 2
        %v9020 = vmax.f32 %v9018, %v9019
        %v9021 = vrot.slane %v9020, 1
        %v9022 = vmax.f32 %v9020, %v9021
        %v9023 = vsel %vm9015, %v8999, -inf
        %v9024 = vrot.slane %v9023, 4
        %v9025 = vmax.f32 %v9023, %v9024
        %v9026 = vrot.slane %v9025, 2
        %v9027 = vmax.f32 %v9025, %v9026
        %v9028 = vrot.slane %v9027, 1
        %v9029 = vmax.f32 %v9027, %v9028
        %v9030 = vsel %vm9015, %v8984, -inf
        %v9031 = vrot.slane %v9030, 4
        %v9032 = vmax.f32 %v9030, %v9031
        %v9033 = vrot.slane %v9032, 2
        %v9034 = vmax.f32 %v9032, %v9033
        %v9035 = vrot.slane %v9034, 1
        %v9036 = vmax.f32 %v9034, %v9035
        %v9037 = vsel %vm9015, %v9000, -inf
        %v9038 = vrot.slane %v9037, 4
        %v9039 = vmax.f32 %v9037, %v9038
        %v9040 = vrot.slane %v9039, 2
        %v9041 = vmax.f32 %v9039, %v9040
        %v9042 = vrot.slane %v9041, 1
        %v9043 = vmax.f32 %v9041, %v9042
        %v9044 = vsel %vm9015, %v8985, -inf
        %v9045 = vrot.slane %v9044, 4
        %v9046 = vmax.f32 %v9044, %v9045
        %v9047 = vrot.slane %v9046, 2
        %v9048 = vmax.f32 %v9046, %v9047
        %v9049 = vrot.slane %v9048, 1
        %v9050 = vmax.f32 %v9048, %v9049
        %v9051 = vsel %vm9015, %v9001, -inf
        %v9052 = vrot.slane %v9051, 4
        %v9053 = vmax.f32 %v9051, %v9052
        %v9054 = vrot.slane %v9053, 2
        %v9055 = vmax.f32 %v9053, %v9054
        %v9056 = vrot.slane %v9055, 1
        %v9057 = vmax.f32 %v9055, %v9056
        %v9058 = vsel %vm9015, %v8986, -inf
        %v9059 = vrot.slane %v9058, 4
        %v9060 = vmax.f32 %v9058, %v9059
        %v9061 = vrot.slane %v9060, 2
        %v9062 = vmax.f32 %v9060, %v9061
        %v9063 = vrot.slane %v9062, 1
        %v9064 = vmax.f32 %v9062, %v9063
        %v9065 = vsel %vm9015, %v9002, -inf
        %v9066 = vrot.slane %v9065, 4
        %v9067 = vmax.f32 %v9065, %v9066
        %v9068 = vrot.slane %v9067, 2
        %v9069 = vmax.f32 %v9067, %v9068
        %v9070 = vrot.slane %v9069, 1
        %v9071 = vmax.f32 %v9069, %v9070
        %v9072 = vsel %vm9015, %v8987, -inf
        %v9073 = vrot.slane %v9072, 4
        %v9074 = vmax.f32 %v9072, %v9073
        %v9075 = vrot.slane %v9074, 2
        %v9076 = vmax.f32 %v9074, %v9075
        %v9077 = vrot.slane %v9076, 1
        %v9078 = vmax.f32 %v9076, %v9077
        %v9079 = vsel %vm9015, %v9003, -inf
        %v9080 = vrot.slane %v9079, 4
        %v9081 = vmax.f32 %v9079, %v9080
        %v9082 = vrot.slane %v9081, 2
        %v9083 = vmax.f32 %v9081, %v9082
        %v9084 = vrot.slane %v9083, 1
        %v9085 = vmax.f32 %v9083, %v9084
        %v9086 = vsel %vm9015, %v8988, -inf
        %v9087 = vrot.slane %v9086, 4
        %v9088 = vmax.f32 %v9086, %v9087
        %v9089 = vrot.slane %v9088, 2
        %v9090 = vmax.f32 %v9088, %v9089
        %v9091 = vrot.slane %v9090, 1
        %v9092 = vmax.f32 %v9090, %v9091
        %v9093 = vsel %vm9015, %v9004, -inf
        %v9094 = vrot.slane %v9093, 4
        %v9095 = vmax.f32 %v9093, %v9094
        %v9096 = vrot.slane %v9095, 2
        %v9097 = vmax.f32 %v9095, %v9096
        %v9098 = vrot.slane %v9097, 1
        %v9099 = vmax.f32 %v9097, %v9098
        %v9100 = vsel %vm9015, %v8989, -inf
        %v9101 = vrot.slane %v9100, 4
        %v9102 = vmax.f32 %v9100, %v9101
        %v9103 = vrot.slane %v9102, 2
        %v9104 = vmax.f32 %v9102, %v9103
        %v9105 = vrot.slane %v9104, 1
        %v9106 = vmax.f32 %v9104, %v9105
        %v9107 = vsel %vm9015, %v9005, -inf
        %v9108 = vrot.slane %v9107, 4
        %v9109 = vmax.f32 %v9107, %v9108
        %v9110 = vrot.slane %v9109, 2
        %v9111 = vmax.f32 %v9109, %v9110
        %v9112 = vrot.slane %v9111, 1
        %v9113 = vmax.f32 %v9111, %v9112
        %v9114 = vsel %vm9015, %v8990, -inf
        %v9115 = vrot.slane %v9114, 4
        %v9116 = vmax.f32 %v9114, %v9115
        %v9117 = vrot.slane %v9116, 2
        %v9118 = vmax.f32 %v9116, %v9117
        %v9119 = vrot.slane %v9118, 1
        %v9120 = vmax.f32 %v9118, %v9119
        %v9121 = vsel %vm9015, %v9006, -inf
        %v9122 = vrot.slane %v9121, 4
        %v9123 = vmax.f32 %v9121, %v9122
        %v9124 = vrot.slane %v9123, 2
        %v9125 = vmax.f32 %v9123, %v9124
        %v9126 = vrot.slane %v9125, 1
        %v9127 = vmax.f32 %v9125, %v9126
        %v9144 = vsel %vm4908, %v9029, %v9022
        %v9145 = vsel %vm4910, %v9036, %v9144
        %v9146 = vsel %vm4912, %v9043, %v9145
        %v9147 = vsel %vm4914, %v9050, %v9146
        %v9148 = vsel %vm4916, %v9057, %v9147
        %v9149 = vsel %vm4918, %v9064, %v9148
        %v9150 = vsel %vm4920, %v9071, %v9149
        %v9151 = vsel %vm4908, %v9085, %v9078
        %v9152 = vsel %vm4910, %v9092, %v9151
        %v9153 = vsel %vm4912, %v9099, %v9152
        %v9154 = vsel %vm4914, %v9106, %v9153
        %v9155 = vsel %vm4916, %v9113, %v9154
        %v9156 = vsel %vm4918, %v9120, %v9155
        %v9157 = vsel %vm4920, %v9127, %v9156
        %9160 = vst.msk [vmem:[#allocation4 + $0x8] sm:$0xff] %vm702, %v9150
        %9161 = vst.msk [vmem:[#allocation4 + $0x10] sm:$0xff] %vm702, %v9157
        %v9162 = vld [vmem:[#allocation4 + $0x8] sm:$0xff]
        %v9163 = vld [vmem:[#allocation4 + $0x10] sm:$0xff]
        %v9164 = vpack.c.bf16 %v9162, %v9162
        %v9165 = vpack.c.bf16 %v9163, %v9163
        %9166 = vst.msk [vmem:[#allocation8] sm:$0xf] %vm9015, %v9164
        %9167 = vst.msk [vmem:[#allocation8 + $0x14] sm:$0xf] %vm9015, %v9165
        %v9168 = vld [vmem:[#allocation4 + $0x7] sm:$0xff]
        %v9169 = vld [vmem:[#allocation4 + $0xf] sm:$0xff]
        %v9170 = vpack.c.bf16 %v9168, %v9168
        %v9171 = vpack.c.bf16 %v9169, %v9169
        %9174 = vrot.lane.b32.xlu0 %v9170, 64
        %v9175 = vpop.permute.xlu0 %9174
        %9176 = vrot.lane.b32.xlu0 %v9171, 64
        %v9177 = vpop.permute.xlu0 %9176
        %vm9180 = vcmask 1043968
        %9181 = vst.msk [vmem:[#allocation8] sm:$0xf] %vm9180, %v9175
        %9182 = vst.msk [vmem:[#allocation8 + $0x14] sm:$0xf] %vm9180, %v9177
        %v9183 = vld [vmem:[#allocation4 + $0x9] sm:$0xff]
        %v9184 = vld [vmem:[#allocation4 + $0x11] sm:$0xff]
        %v9185 = vpack.c.bf16 %v9183, %v9183
        %v9186 = vpack.c.bf16 %v9184, %v9184
        %9187 = vst.msk [vmem:[#allocation8 + $0x4] sm:$0xf] %vm9015, %v9185
        %9188 = vst.msk [vmem:[#allocation8 + $0x18] sm:$0xf] %vm9015, %v9186
        %v9189 = vld [vmem:[#allocation4 + $0x6] sm:$0xff]
        %v9190 = vld [vmem:[#allocation4 + $0xe] sm:$0xff]
        %v9191 = vpack.c.bf16 %v9189, %v9189
        %v9192 = vpack.c.bf16 %v9190, %v9190
        %9195 = vrot.lane.b32.xlu0 %v9191, 64
        %v9196 = vpop.permute.xlu0 %9195
        %9197 = vrot.lane.b32.xlu0 %v9192, 64
        %v9198 = vpop.permute.xlu0 %9197
        %9201 = vst.msk [vmem:[#allocation8 + $0x4] sm:$0xf] %vm9180, %v9196
        %9202 = vst.msk [vmem:[#allocation8 + $0x18] sm:$0xf] %vm9180, %v9198
        %v9203 = vld [vmem:[#allocation4 + $0xa] sm:$0xff]
        %v9204 = vld [vmem:[#allocation4 + $0x12] sm:$0xff]
        %v9205 = vpack.c.bf16 %v9203, %v9203
        %v9206 = vpack.c.bf16 %v9204, %v9204
        %9207 = vst.msk [vmem:[#allocation8 + $0x8] sm:$0xf] %vm9015, %v9205
        %9208 = vst.msk [vmem:[#allocation8 + $0x1c] sm:$0xf] %vm9015, %v9206
        %v9209 = vld [vmem:[#allocation4 + $0x4] sm:$0xff]
        %v9210 = vld [vmem:[#allocation4 + $0xc] sm:$0xff]
        %v9211 = vpack.c.bf16 %v9209, %v9209
        %v9212 = vpack.c.bf16 %v9210, %v9210
        %9215 = vrot.lane.b32.xlu0 %v9211, 64
        %v9216 = vpop.permute.xlu0 %9215
        %9217 = vrot.lane.b32.xlu0 %v9212, 64
        %v9218 = vpop.permute.xlu0 %9217
        %9221 = vst.msk [vmem:[#allocation8 + $0x8] sm:$0xf] %vm9180, %v9216
        %9222 = vst.msk [vmem:[#allocation8 + $0x1c] sm:$0xf] %vm9180, %v9218
        %v9223 = vld [vmem:[#allocation4 + $0xc] sm:$0xff]
        %v9224 = vld [vmem:[#allocation4 + $0x14] sm:$0xff]
        %v9225 = vpack.c.bf16 %v9223, %v9223
        %v9226 = vpack.c.bf16 %v9224, %v9224
        %9227 = vst.msk [vmem:[#allocation8 + $0xc] sm:$0xf] %vm9015, %v9225
        %9228 = vst.msk [vmem:[#allocation8 + $0x20] sm:$0xf] %vm9015, %v9226
        %v9229 = vld [vmem:[#allocation4] sm:$0xff]
        %v9230 = vld [vmem:[#allocation4 + $0x8] sm:$0xff]
        %v9231 = vpack.c.bf16 %v9229, %v9229
        %v9232 = vpack.c.bf16 %v9230, %v9230
        %9235 = vrot.lane.b32.xlu0 %v9231, 64
        %v9236 = vpop.permute.xlu0 %9235
        %9237 = vrot.lane.b32.xlu0 %v9232, 64
        %v9238 = vpop.permute.xlu0 %9237
        %9241 = vst.msk [vmem:[#allocation8 + $0xc] sm:$0xf] %vm9180, %v9236
        %9242 = vst.msk [vmem:[#allocation8 + $0x20] sm:$0xf] %vm9180, %v9238
        %v9243 = vld [vmem:[#allocation4 + $0x10] sm:$0xff]
        %v9244 = vld [vmem:[#allocation4 + $0x18] sm:$0xff]
        %v9245 = vpack.c.bf16 %v9243, %v9243
        %v9246 = vpack.c.bf16 %v9244, %v9244
        %9247 = vst.msk [vmem:[#allocation8 + $0x10] sm:$0xf] %vm9015, %v9245
        %9248 = vst.msk [vmem:[#allocation8 + $0x24] sm:$0xf] %vm9015, %v9246
        %v9249 = vld [vmem:[#allocation8] sm:$0xff]
        %v9250 = vld [vmem:[#allocation8 + $0x8] sm:$0xff]
        %v9251 = vld [vmem:[#allocation8 + $0x10] sm:$0xf]
        %v9252 = vld [vmem:[#allocation8 + $0x14] sm:$0xff]
        %v9253 = vld [vmem:[#allocation8 + $0x1c] sm:$0xff]
        %v9254 = vld [vmem:[#allocation8 + $0x24] sm:$0xf]
        %v9255 = vld [vmem:[%s10] sm:$0xf]
        %v9256 = vld [vmem:[%s10 + $0x4] sm:$0xf]
        %v9257 = vld [vmem:[%s10 + $0x8] sm:$0xf]
        %v9258 = vld [vmem:[%s10 + $0xc] sm:$0xf]
        %v9259 = vld [vmem:[%s10 + $0x10] sm:$0xf]
        %v9260 = vld [vmem:[%s10 + $0x14] sm:$0xf]
        %v9261 = vld [vmem:[%s10 + $0x18] sm:$0xf]
        %v9262 = vld [vmem:[%s10 + $0x1c] sm:$0xf]
        %v9263 = vld [vmem:[%s10 + $0x20] sm:$0xf]
        %v9264 = vld [vmem:[%s10 + $0x24] sm:$0xf]
        %v9265 = vld [vmem:[%s10 + $0x28] sm:$0xf]
        %v9266 = vld [vmem:[%s10 + $0x2c] sm:$0xf]
        %v9267 = vld [vmem:[%s10 + $0x30] sm:$0xf]
        %v9268 = vld [vmem:[%s10 + $0x34] sm:$0xf]
        %v9269 = vld [vmem:[%s10 + $0x38] sm:$0xf]
        %v9270 = vld [vmem:[%s10 + $0x3c] sm:$0xf]
        %v9271 = vld [vmem:[%s10 + $0x40] sm:$0xf]
        %v9272 = vld [vmem:[%s10 + $0x44] sm:$0xf]
        %v9273 = vld [vmem:[%s10 + $0x48] sm:$0xf]
        %v9274 = vld [vmem:[%s10 + $0x4c] sm:$0xf]
        %v9275 = vld [vmem:[%s10 + $0x50] sm:$0xf]
        %v9276 = vld [vmem:[%s10 + $0x54] sm:$0xf]
        %v9277 = vld [vmem:[%s10 + $0x58] sm:$0xf]
        %v9278 = vld [vmem:[%s10 + $0x5c] sm:$0xf]
        %v9279 = vld [vmem:[%s10 + $0x60] sm:$0xf]
        %v9280 = vld [vmem:[%s10 + $0x64] sm:$0xf]
        %v9281 = vld [vmem:[%s10 + $0x68] sm:$0xf]
        %v9282 = vld [vmem:[%s10 + $0x6c] sm:$0xf]
        %v9283 = vld [vmem:[%s10 + $0x70] sm:$0xf]
        %v9284 = vld [vmem:[%s10 + $0x74] sm:$0xf]
        %v9285 = vld [vmem:[%s10 + $0x78] sm:$0xf]
        %v9286 = vld [vmem:[%s10 + $0x7c] sm:$0xf]
        %v9287 = vld [vmem:[%s10 + $0x80] sm:$0xf]
        %v9288 = vld [vmem:[%s10 + $0x84] sm:$0xf]
        %v9289 = vld [vmem:[%s10 + $0x88] sm:$0xf]
        %v9290 = vld [vmem:[%s10 + $0x8c] sm:$0xf]
        %v9291 = vld [vmem:[%s10 + $0x90] sm:$0xf]
        %v9292 = vld [vmem:[%s10 + $0x94] sm:$0xf]
        %v9293 = vld [vmem:[%s10 + $0x98] sm:$0xf]
        %v9294 = vld [vmem:[%s10 + $0x9c] sm:$0xf]
        %v9295 = vld [vmem:[%s10 + $0xa0] sm:$0xf]
        %v9296 = vld [vmem:[%s10 + $0xa4] sm:$0xf]
        %v9297 = vld [vmem:[%s10 + $0xa8] sm:$0xf]
        %v9298 = vld [vmem:[%s10 + $0xac] sm:$0xf]
        %v9299 = vld [vmem:[%s10 + $0xb0] sm:$0xf]
        %v9300 = vld [vmem:[%s10 + $0xb4] sm:$0xf]
        %v9301 = vld [vmem:[%s10 + $0xb8] sm:$0xf]
        %v9302 = vld [vmem:[%s10 + $0xbc] sm:$0xf]
        %v9303 = vld [vmem:[%s10 + $0xc0] sm:$0xf]
        %v9304 = vld [vmem:[%s10 + $0xc4] sm:$0xf]
        %v9305 = vld [vmem:[%s10 + $0xc8] sm:$0xf]
        %v9306 = vld [vmem:[%s10 + $0xcc] sm:$0xf]
        %v9307 = vld [vmem:[%s10 + $0xd0] sm:$0xf]
        %v9308 = vld [vmem:[%s10 + $0xd4] sm:$0xf]
        %v9309 = vld [vmem:[%s10 + $0xd8] sm:$0xf]
        %v9310 = vld [vmem:[%s10 + $0xdc] sm:$0xf]
        %v9311 = vld [vmem:[%s10 + $0xe0] sm:$0xf]
        %v9312 = vld [vmem:[%s10 + $0xe4] sm:$0xf]
        %v9313 = vld [vmem:[%s10 + $0xe8] sm:$0xf]
        %v9314 = vld [vmem:[%s10 + $0xec] sm:$0xf]
        %v9315 = vld [vmem:[%s10 + $0xf0] sm:$0xf]
        %v9316 = vld [vmem:[%s10 + $0xf4] sm:$0xf]
        %v9317 = vld [vmem:[%s10 + $0xf8] sm:$0xf]
        %v9318 = vld [vmem:[%s10 + $0xfc] sm:$0xf]
        %v9319 = vld [vmem:[%s10 + $0x100] sm:$0xf]
        %v9320 = vld [vmem:[%s10 + $0x104] sm:$0xf]
        %v9321 = vld [vmem:[%s10 + $0x108] sm:$0xf]
        %v9322 = vld [vmem:[%s10 + $0x10c] sm:$0xf]
        %v9323 = vld [vmem:[%s10 + $0x110] sm:$0xf]
        %v9324 = vld [vmem:[%s10 + $0x114] sm:$0xf]
        %v9325 = vld [vmem:[%s10 + $0x118] sm:$0xf]
        %v9326 = vld [vmem:[%s10 + $0x11c] sm:$0xf]
        %v9333 = vunpack.c.l.b16 %v9249
        %v9334 = vunpack.c.h.b16 %v9249
        %v9335 = vunpack.c.l.b16 %v9250
        %v9336 = vunpack.c.h.b16 %v9250
        %v9337 = vunpack.c.l.b16 %v9251
        %v9338 = vunpack.c.l.b16 %v9252
        %v9339 = vunpack.c.h.b16 %v9252
        %v9340 = vunpack.c.l.b16 %v9253
        %v9341 = vunpack.c.h.b16 %v9253
        %v9342 = vunpack.c.l.b16 %v9254
        %v9343 = vpack.c.b16 %v9338, %v9333
        %v9344 = vpack.c.b16 %v9339, %v9334
        %v9345 = vpack.c.b16 %v9340, %v9335
        %v9346 = vpack.c.b16 %v9341, %v9336
        %v9347 = vpack.c.b16 %v9342, %v9337
        %v9424 = vunpack.c.l.b16 %v9255
        %v9425 = vunpack.c.l.b16 %v9256
        %v9426 = vunpack.c.l.b16 %v9257
        %v9427 = vunpack.c.l.b16 %v9258
        %v9428 = vunpack.c.l.b16 %v9259
        %v9429 = vunpack.c.l.b16 %v9260
        %v9430 = vunpack.c.l.b16 %v9261
        %v9431 = vunpack.c.l.b16 %v9262
        %v9432 = vunpack.c.l.b16 %v9263
        %v9433 = vunpack.c.l.b16 %v9264
        %v9434 = vunpack.c.l.b16 %v9265
        %v9435 = vunpack.c.l.b16 %v9266
        %v9436 = vunpack.c.l.b16 %v9267
        %v9437 = vunpack.c.l.b16 %v9268
        %v9438 = vunpack.c.l.b16 %v9269
        %v9439 = vunpack.c.l.b16 %v9270
        %v9440 = vunpack.c.l.b16 %v9271
        %v9441 = vunpack.c.l.b16 %v9272
        %v9442 = vunpack.c.l.b16 %v9273
        %v9443 = vunpack.c.l.b16 %v9274
        %v9444 = vunpack.c.l.b16 %v9275
        %v9445 = vunpack.c.l.b16 %v9276
        %v9446 = vunpack.c.l.b16 %v9277
        %v9447 = vunpack.c.l.b16 %v9278
        %v9448 = vunpack.c.l.b16 %v9279
        %v9449 = vunpack.c.l.b16 %v9280
        %v9450 = vunpack.c.l.b16 %v9281
        %v9451 = vunpack.c.l.b16 %v9282
        %v9452 = vunpack.c.l.b16 %v9283
        %v9453 = vunpack.c.l.b16 %v9284
        %v9454 = vunpack.c.l.b16 %v9285
        %v9455 = vunpack.c.l.b16 %v9286
        %v9456 = vunpack.c.l.b16 %v9287
        %v9457 = vunpack.c.l.b16 %v9288
        %v9458 = vunpack.c.l.b16 %v9289
        %v9459 = vunpack.c.l.b16 %v9290
        %v9460 = vunpack.c.l.b16 %v9291
        %v9461 = vunpack.c.l.b16 %v9292
        %v9462 = vunpack.c.l.b16 %v9293
        %v9463 = vunpack.c.l.b16 %v9294
        %v9464 = vunpack.c.l.b16 %v9295
        %v9465 = vunpack.c.l.b16 %v9296
        %v9466 = vunpack.c.l.b16 %v9297
        %v9467 = vunpack.c.l.b16 %v9298
        %v9468 = vunpack.c.l.b16 %v9299
        %v9469 = vunpack.c.l.b16 %v9300
        %v9470 = vunpack.c.l.b16 %v9301
        %v9471 = vunpack.c.l.b16 %v9302
        %v9472 = vunpack.c.l.b16 %v9303
        %v9473 = vunpack.c.l.b16 %v9304
        %v9474 = vunpack.c.l.b16 %v9305
        %v9475 = vunpack.c.l.b16 %v9306
        %v9476 = vunpack.c.l.b16 %v9307
        %v9477 = vunpack.c.l.b16 %v9308
        %v9478 = vunpack.c.l.b16 %v9309
        %v9479 = vunpack.c.l.b16 %v9310
        %v9480 = vunpack.c.l.b16 %v9311
        %v9481 = vunpack.c.l.b16 %v9312
        %v9482 = vunpack.c.l.b16 %v9313
        %v9483 = vunpack.c.l.b16 %v9314
        %v9484 = vunpack.c.l.b16 %v9315
        %v9485 = vunpack.c.l.b16 %v9316
        %v9486 = vunpack.c.l.b16 %v9317
        %v9487 = vunpack.c.l.b16 %v9318
        %v9488 = vunpack.c.l.b16 %v9319
        %v9489 = vunpack.c.l.b16 %v9320
        %v9490 = vunpack.c.l.b16 %v9321
        %v9491 = vunpack.c.l.b16 %v9322
        %v9492 = vunpack.c.l.b16 %v9323
        %v9493 = vunpack.c.l.b16 %v9324
        %v9494 = vunpack.c.l.b16 %v9325
        %v9495 = vunpack.c.l.b16 %v9326
        %v9496 = vpack.c.b16 %v9425, %v9424
        %v9497 = vpack.c.b16 %v9427, %v9426
        %v9498 = vpack.c.b16 %v9429, %v9428
        %v9499 = vpack.c.b16 %v9431, %v9430
        %v9500 = vpack.c.b16 %v9433, %v9432
        %v9501 = vpack.c.b16 %v9435, %v9434
        %v9502 = vpack.c.b16 %v9437, %v9436
        %v9503 = vpack.c.b16 %v9439, %v9438
        %v9504 = vpack.c.b16 %v9441, %v9440
        %v9505 = vpack.c.b16 %v9443, %v9442
        %v9506 = vpack.c.b16 %v9445, %v9444
        %v9507 = vpack.c.b16 %v9447, %v9446
        %v9508 = vpack.c.b16 %v9449, %v9448
        %v9509 = vpack.c.b16 %v9451, %v9450
        %v9510 = vpack.c.b16 %v9453, %v9452
        %v9511 = vpack.c.b16 %v9455, %v9454
        %v9512 = vpack.c.b16 %v9457, %v9456
        %v9513 = vpack.c.b16 %v9459, %v9458
        %v9514 = vpack.c.b16 %v9461, %v9460
        %v9515 = vpack.c.b16 %v9463, %v9462
        %v9516 = vpack.c.b16 %v9465, %v9464
        %v9517 = vpack.c.b16 %v9467, %v9466
        %v9518 = vpack.c.b16 %v9469, %v9468
        %v9519 = vpack.c.b16 %v9471, %v9470
        %v9520 = vpack.c.b16 %v9473, %v9472
        %v9521 = vpack.c.b16 %v9475, %v9474
        %v9522 = vpack.c.b16 %v9477, %v9476
        %v9523 = vpack.c.b16 %v9479, %v9478
        %v9524 = vpack.c.b16 %v9481, %v9480
        %v9525 = vpack.c.b16 %v9483, %v9482
        %v9526 = vpack.c.b16 %v9485, %v9484
        %v9527 = vpack.c.b16 %v9487, %v9486
        %v9528 = vpack.c.b16 %v9489, %v9488
        %v9529 = vpack.c.b16 %v9491, %v9490
        %v9530 = vpack.c.b16 %v9493, %v9492
        %v9531 = vpack.c.b16 %v9495, %v9494
        %v9569 = vsel %vm702, %v9347, 0
        %9571 = vmatpush.bf16.msra.mxu0 %v9503
        %9572 = vmatpush.bf16.msra.mxu0 %v9502
        %9573 = vmatpush.bf16.msra.mxu0 %v9501
        %9574 = vmatpush.bf16.msra.mxu0 %v9500
        %9575 = vmatpush.bf16.msra.mxu0 %v9499
        %9576 = vmatpush.bf16.msra.mxu0 %v9498
        %9577 = vmatpush.bf16.msra.mxu0 %v9497
        %9578 = vmatpush.bf16.msra.mxu0 %v9496
        %9579 = vmatmul.bf16.gmra.mxu0 %v9343
        %v9580 = vpop.f32.mrf.mxu0
        %v9581 = vadd.f32 0.0, %v9580
        %v9582 = vpop.f32.mrf.mxu0
        %v9583 = vadd.f32 0.0, %v9582
        %9584 = vdwg.mxu0
        %9585 = vmatpush.bf16.msra.mxu0 %v9511
        %9586 = vmatpush.bf16.msra.mxu0 %v9510
        %9587 = vmatpush.bf16.msra.mxu0 %v9509
        %9588 = vmatpush.bf16.msra.mxu0 %v9508
        %9589 = vmatpush.bf16.msra.mxu0 %v9507
        %9590 = vmatpush.bf16.msra.mxu0 %v9506
        %9591 = vmatpush.bf16.msra.mxu0 %v9505
        %9592 = vmatpush.bf16.msra.mxu0 %v9504
        %9593 = vmatmul.bf16.gmra.mxu0 %v9344
        %v9594 = vpop.f32.mrf.mxu0
        %v9595 = vadd.f32 %v9581, %v9594
        %v9596 = vpop.f32.mrf.mxu0
        %v9597 = vadd.f32 %v9583, %v9596
        %9598 = vdwg.mxu0
        %9599 = vmatpush.bf16.msra.mxu0 %v9519
        %9600 = vmatpush.bf16.msra.mxu0 %v9518
        %9601 = vmatpush.bf16.msra.mxu0 %v9517
        %9602 = vmatpush.bf16.msra.mxu0 %v9516
        %9603 = vmatpush.bf16.msra.mxu0 %v9515
        %9604 = vmatpush.bf16.msra.mxu0 %v9514
        %9605 = vmatpush.bf16.msra.mxu0 %v9513
        %9606 = vmatpush.bf16.msra.mxu0 %v9512
        %9607 = vmatmul.bf16.gmra.mxu0 %v9345
        %v9608 = vpop.f32.mrf.mxu0
        %v9609 = vadd.f32 %v9595, %v9608
        %v9610 = vpop.f32.mrf.mxu0
        %v9611 = vadd.f32 %v9597, %v9610
        %9612 = vdwg.mxu0
        %9613 = vmatpush.bf16.msra.mxu0 %v9527
        %9614 = vmatpush.bf16.msra.mxu0 %v9526
        %9615 = vmatpush.bf16.msra.mxu0 %v9525
        %9616 = vmatpush.bf16.msra.mxu0 %v9524
        %9617 = vmatpush.bf16.msra.mxu0 %v9523
        %9618 = vmatpush.bf16.msra.mxu0 %v9522
        %9619 = vmatpush.bf16.msra.mxu0 %v9521
        %9620 = vmatpush.bf16.msra.mxu0 %v9520
        %9621 = vmatmul.bf16.gmra.mxu0 %v9346
        %v9622 = vpop.f32.mrf.mxu0
        %v9623 = vadd.f32 %v9609, %v9622
        %v9624 = vpop.f32.mrf.mxu0
        %v9625 = vadd.f32 %v9611, %v9624
        %9626 = vdwg.mxu0
        %9627 = vmatpush.bf16.msra.mxu0 0
        %9628 = vmatpush.bf16.msra.mxu0 0
        %9629 = vmatpush.bf16.msra.mxu0 0
        %9630 = vmatpush.bf16.msra.mxu0 0
        %9631 = vmatpush.bf16.msra.mxu0 %v9531
        %9632 = vmatpush.bf16.msra.mxu0 %v9530
        %9633 = vmatpush.bf16.msra.mxu0 %v9529
        %9634 = vmatpush.bf16.msra.mxu0 %v9528
        %9635 = vmatmul.bf16.gmra.mxu0 %v9569
        %v9636 = vpop.f32.mrf.mxu0
        %v9637 = vadd.f32 %v9623, %v9636
        %v9638 = vpop.f32.mrf.mxu0
        %v9639 = vadd.f32 %v9625, %v9638
        %9640 = vdwg.mxu0
        %v9641 = vld [vmem:[%s11] sm:$0x1]
        %v9643 = vperm.slane %v9641, 0
        %v9645 = vmul.f32 %v9637, %v9643
        %v9646 = vmul.f32 %v9639, %v9643
        %v9647 = vld [vmem:[%s12] sm:$0x1]
        %v9649 = vperm.slane %v9647, 0
        %v9651 = vadd.f32 %v9645, %v9649
        %v9652 = vadd.f32 %v9646, %v9649
        %v9653 = vmax.f32 %v9651, 0.0
        %v9654 = vmax.f32 %v9652, 0.0
        %v9657 = vrot.slane %v9653, 4
        %v9658 = vrot.slane %v9654, 4
        %v9661 = vsel %vm1004, %v9653, -inf
        %v9662 = vrot.slane %v9661, 4
        %v9663 = vmax.f32 %v9661, %v9662
        %v9664 = vrot.slane %v9663, 2
        %v9665 = vmax.f32 %v9663, %v9664
        %v9666 = vrot.slane %v9665, 1
        %v9667 = vmax.f32 %v9665, %v9666
        %v9668 = vsel %vm1004, %v9657, -inf
        %v9669 = vrot.slane %v9668, 4
        %v9670 = vmax.f32 %v9668, %v9669
        %v9671 = vrot.slane %v9670, 2
        %v9672 = vmax.f32 %v9670, %v9671
        %v9673 = vrot.slane %v9672, 1
        %v9674 = vmax.f32 %v9672, %v9673
        %v9675 = vsel %vm1004, %v9654, -inf
        %v9676 = vrot.slane %v9675, 4
        %v9677 = vmax.f32 %v9675, %v9676
        %v9678 = vrot.slane %v9677, 2
        %v9679 = vmax.f32 %v9677, %v9678
        %v9680 = vrot.slane %v9679, 1
        %v9681 = vmax.f32 %v9679, %v9680
        %v9682 = vsel %vm1004, %v9658, -inf
        %v9683 = vrot.slane %v9682, 4
        %v9684 = vmax.f32 %v9682, %v9683
        %v9685 = vrot.slane %v9684, 2
        %v9686 = vmax.f32 %v9684, %v9685
        %v9687 = vrot.slane %v9686, 1
        %v9688 = vmax.f32 %v9686, %v9687
        %v9693 = vsel %vm4908, %v9674, %v9667
        %v9694 = vsel %vm4910, %v9681, %v9693
        %v9695 = vsel %vm4912, %v9688, %v9694
        %9697 = vst [vmem:[#allocation5 + $0x8] sm:$0xf] %v9695
        %v9698 = vld [vmem:[#allocation5 + $0x8] sm:$0xf]
        %v9699 = vpack.c.bf16 %v9698, %v9698
        %9700 = vst [vmem:[#allocation9] sm:$0x3] %v9699
        %v9701 = vld [vmem:[#allocation5 + $0x7] sm:$0xf]
        %v9702 = vpack.c.bf16 %v9701, %v9701
        %9703 = vst [vmem:[#allocation9 + $0x2] sm:$0x3] %v9702
        %v9704 = vld [vmem:[#allocation5 + $0x9] sm:$0xf]
        %v9705 = vpack.c.bf16 %v9704, %v9704
        %9706 = vst [vmem:[#allocation9 + $0x4] sm:$0x3] %v9705
        %v9707 = vld [vmem:[#allocation5 + $0x6] sm:$0xf]
        %v9708 = vpack.c.bf16 %v9707, %v9707
        %9709 = vst [vmem:[#allocation9 + $0x6] sm:$0x3] %v9708
        %v9710 = vld [vmem:[#allocation5 + $0xa] sm:$0xf]
        %v9711 = vpack.c.bf16 %v9710, %v9710
        %9712 = vst [vmem:[#allocation9 + $0x8] sm:$0x3] %v9711
        %v9713 = vld [vmem:[#allocation5 + $0x4] sm:$0xf]
        %v9714 = vpack.c.bf16 %v9713, %v9713
        %9715 = vst [vmem:[#allocation9 + $0xa] sm:$0x3] %v9714
        %v9716 = vld [vmem:[#allocation5 + $0xc] sm:$0xf]
        %v9717 = vpack.c.bf16 %v9716, %v9716
        %9718 = vst [vmem:[#allocation9 + $0xc] sm:$0x3] %v9717
        %v9719 = vld [vmem:[#allocation5] sm:$0xf]
        %v9720 = vpack.c.bf16 %v9719, %v9719
        %9721 = vst [vmem:[#allocation9 + $0xe] sm:$0x3] %v9720
        %v9722 = vld [vmem:[#allocation5 + $0x10] sm:$0xf]
        %v9723 = vpack.c.bf16 %v9722, %v9722
        %9724 = vst [vmem:[#allocation9 + $0x10] sm:$0x3] %v9723
        %v9725 = vld [vmem:[#allocation9] sm:$0xff]
        %v9726 = vld [vmem:[#allocation9 + $0x8] sm:$0xff]
        %v9727 = vld [vmem:[#allocation9 + $0x10] sm:$0x3]
        %v9728 = vld [vmem:[#allocation10] sm:$0xf]
        %v9729 = vld [vmem:[#allocation10 + $0x4] sm:$0xf]
        %v9730 = vld [vmem:[#allocation10 + $0x8] sm:$0xf]
        %v9731 = vld [vmem:[#allocation10 + $0xc] sm:$0xf]
        %v9732 = vld [vmem:[#allocation10 + $0x10] sm:$0xf]
        %v9733 = vld [vmem:[#allocation10 + $0x14] sm:$0xf]
        %v9734 = vld [vmem:[#allocation10 + $0x18] sm:$0xf]
        %v9735 = vld [vmem:[#allocation10 + $0x1c] sm:$0xf]
        %v9736 = vld [vmem:[#allocation10 + $0x20] sm:$0xf]
        %v9737 = vld [vmem:[#allocation10 + $0x24] sm:$0xf]
        %v9738 = vld [vmem:[#allocation10 + $0x28] sm:$0xf]
        %v9739 = vld [vmem:[#allocation10 + $0x2c] sm:$0xf]
        %v9740 = vld [vmem:[#allocation10 + $0x30] sm:$0xf]
        %v9741 = vld [vmem:[#allocation10 + $0x34] sm:$0xf]
        %v9742 = vld [vmem:[#allocation10 + $0x38] sm:$0xf]
        %v9743 = vld [vmem:[#allocation10 + $0x3c] sm:$0xf]
        %v9744 = vld [vmem:[#allocation10 + $0x40] sm:$0xf]
        %v9745 = vld [vmem:[#allocation10 + $0x44] sm:$0xf]
        %v9746 = vld [vmem:[#allocation10 + $0x48] sm:$0xf]
        %v9747 = vld [vmem:[#allocation10 + $0x4c] sm:$0xf]
        %v9748 = vld [vmem:[#allocation10 + $0x50] sm:$0xf]
        %v9749 = vld [vmem:[#allocation10 + $0x54] sm:$0xf]
        %v9750 = vld [vmem:[#allocation10 + $0x58] sm:$0xf]
        %v9751 = vld [vmem:[#allocation10 + $0x5c] sm:$0xf]
        %v9752 = vld [vmem:[#allocation10 + $0x60] sm:$0xf]
        %v9753 = vld [vmem:[#allocation10 + $0x64] sm:$0xf]
        %v9754 = vld [vmem:[#allocation10 + $0x68] sm:$0xf]
        %v9755 = vld [vmem:[#allocation10 + $0x6c] sm:$0xf]
        %v9756 = vld [vmem:[#allocation10 + $0x70] sm:$0xf]
        %v9757 = vld [vmem:[#allocation10 + $0x74] sm:$0xf]
        %v9758 = vld [vmem:[#allocation10 + $0x78] sm:$0xf]
        %v9759 = vld [vmem:[#allocation10 + $0x7c] sm:$0xf]
        %v9760 = vld [vmem:[#allocation10 + $0x80] sm:$0xf]
        %v9761 = vld [vmem:[#allocation10 + $0x84] sm:$0xf]
        %v9762 = vld [vmem:[#allocation10 + $0x88] sm:$0xf]
        %v9763 = vld [vmem:[#allocation10 + $0x8c] sm:$0xf]
        %v9764 = vld [vmem:[#allocation10 + $0x90] sm:$0xf]
        %v9765 = vld [vmem:[#allocation10 + $0x94] sm:$0xf]
        %v9766 = vld [vmem:[#allocation10 + $0x98] sm:$0xf]
        %v9767 = vld [vmem:[#allocation10 + $0x9c] sm:$0xf]
        %v9768 = vld [vmem:[#allocation10 + $0xa0] sm:$0xf]
        %v9769 = vld [vmem:[#allocation10 + $0xa4] sm:$0xf]
        %v9770 = vld [vmem:[#allocation10 + $0xa8] sm:$0xf]
        %v9771 = vld [vmem:[#allocation10 + $0xac] sm:$0xf]
        %v9772 = vld [vmem:[#allocation10 + $0xb0] sm:$0xf]
        %v9773 = vld [vmem:[#allocation10 + $0xb4] sm:$0xf]
        %v9774 = vld [vmem:[#allocation10 + $0xb8] sm:$0xf]
        %v9775 = vld [vmem:[#allocation10 + $0xbc] sm:$0xf]
        %v9776 = vld [vmem:[#allocation10 + $0xc0] sm:$0xf]
        %v9777 = vld [vmem:[#allocation10 + $0xc4] sm:$0xf]
        %v9778 = vld [vmem:[#allocation10 + $0xc8] sm:$0xf]
        %v9779 = vld [vmem:[#allocation10 + $0xcc] sm:$0xf]
        %v9780 = vld [vmem:[#allocation10 + $0xd0] sm:$0xf]
        %v9781 = vld [vmem:[#allocation10 + $0xd4] sm:$0xf]
        %v9782 = vld [vmem:[#allocation10 + $0xd8] sm:$0xf]
        %v9783 = vld [vmem:[#allocation10 + $0xdc] sm:$0xf]
        %v9784 = vld [vmem:[#allocation10 + $0xe0] sm:$0xf]
        %v9785 = vld [vmem:[#allocation10 + $0xe4] sm:$0xf]
        %v9786 = vld [vmem:[#allocation10 + $0xe8] sm:$0xf]
        %v9787 = vld [vmem:[#allocation10 + $0xec] sm:$0xf]
        %v9788 = vld [vmem:[#allocation10 + $0xf0] sm:$0xf]
        %v9789 = vld [vmem:[#allocation10 + $0xf4] sm:$0xf]
        %v9790 = vld [vmem:[#allocation10 + $0xf8] sm:$0xf]
        %v9791 = vld [vmem:[#allocation10 + $0xfc] sm:$0xf]
        %v9792 = vld [vmem:[#allocation10 + $0x100] sm:$0xf]
        %v9793 = vld [vmem:[#allocation10 + $0x104] sm:$0xf]
        %v9794 = vld [vmem:[#allocation10 + $0x108] sm:$0xf]
        %v9795 = vld [vmem:[#allocation10 + $0x10c] sm:$0xf]
        %v9796 = vld [vmem:[#allocation10 + $0x110] sm:$0xf]
        %v9797 = vld [vmem:[#allocation10 + $0x114] sm:$0xf]
        %v9798 = vld [vmem:[#allocation10 + $0x118] sm:$0xf]
        %v9799 = vld [vmem:[#allocation10 + $0x11c] sm:$0xf]
        %v9800 = vld [vmem:[#allocation10 + $0x120] sm:$0xf]
        %v9801 = vld [vmem:[#allocation10 + $0x124] sm:$0xf]
        %v9802 = vld [vmem:[#allocation10 + $0x128] sm:$0xf]
        %v9803 = vld [vmem:[#allocation10 + $0x12c] sm:$0xf]
        %v9804 = vld [vmem:[#allocation10 + $0x130] sm:$0xf]
        %v9805 = vld [vmem:[#allocation10 + $0x134] sm:$0xf]
        %v9806 = vld [vmem:[#allocation10 + $0x138] sm:$0xf]
        %v9807 = vld [vmem:[#allocation10 + $0x13c] sm:$0xf]
        %v9808 = vld [vmem:[#allocation10 + $0x140] sm:$0xf]
        %v9809 = vld [vmem:[#allocation10 + $0x144] sm:$0xf]
        %v9810 = vld [vmem:[#allocation10 + $0x148] sm:$0xf]
        %v9811 = vld [vmem:[#allocation10 + $0x14c] sm:$0xf]
        %v9812 = vld [vmem:[#allocation10 + $0x150] sm:$0xf]
        %v9813 = vld [vmem:[#allocation10 + $0x154] sm:$0xf]
        %v9814 = vld [vmem:[#allocation10 + $0x158] sm:$0xf]
        %v9815 = vld [vmem:[#allocation10 + $0x15c] sm:$0xf]
        %v9816 = vld [vmem:[#allocation10 + $0x160] sm:$0xf]
        %v9817 = vld [vmem:[#allocation10 + $0x164] sm:$0xf]
        %v9818 = vld [vmem:[#allocation10 + $0x168] sm:$0xf]
        %v9819 = vld [vmem:[#allocation10 + $0x16c] sm:$0xf]
        %v9820 = vld [vmem:[#allocation10 + $0x170] sm:$0xf]
        %v9821 = vld [vmem:[#allocation10 + $0x174] sm:$0xf]
        %v9822 = vld [vmem:[#allocation10 + $0x178] sm:$0xf]
        %v9823 = vld [vmem:[#allocation10 + $0x17c] sm:$0xf]
        %v9824 = vld [vmem:[#allocation10 + $0x180] sm:$0xf]
        %v9825 = vld [vmem:[#allocation10 + $0x184] sm:$0xf]
        %v9826 = vld [vmem:[#allocation10 + $0x188] sm:$0xf]
        %v9827 = vld [vmem:[#allocation10 + $0x18c] sm:$0xf]
        %v9828 = vld [vmem:[#allocation10 + $0x190] sm:$0xf]
        %v9829 = vld [vmem:[#allocation10 + $0x194] sm:$0xf]
        %v9830 = vld [vmem:[#allocation10 + $0x198] sm:$0xf]
        %v9831 = vld [vmem:[#allocation10 + $0x19c] sm:$0xf]
        %v9832 = vld [vmem:[#allocation10 + $0x1a0] sm:$0xf]
        %v9833 = vld [vmem:[#allocation10 + $0x1a4] sm:$0xf]
        %v9834 = vld [vmem:[#allocation10 + $0x1a8] sm:$0xf]
        %v9835 = vld [vmem:[#allocation10 + $0x1ac] sm:$0xf]
        %v9836 = vld [vmem:[#allocation10 + $0x1b0] sm:$0xf]
        %v9837 = vld [vmem:[#allocation10 + $0x1b4] sm:$0xf]
        %v9838 = vld [vmem:[#allocation10 + $0x1b8] sm:$0xf]
        %v9839 = vld [vmem:[#allocation10 + $0x1bc] sm:$0xf]
        %v9840 = vld [vmem:[#allocation10 + $0x1c0] sm:$0xf]
        %v9841 = vld [vmem:[#allocation10 + $0x1c4] sm:$0xf]
        %v9842 = vld [vmem:[#allocation10 + $0x1c8] sm:$0xf]
        %v9843 = vld [vmem:[#allocation10 + $0x1cc] sm:$0xf]
        %v9844 = vld [vmem:[#allocation10 + $0x1d0] sm:$0xf]
        %v9845 = vld [vmem:[#allocation10 + $0x1d4] sm:$0xf]
        %v9846 = vld [vmem:[#allocation10 + $0x1d8] sm:$0xf]
        %v9847 = vld [vmem:[#allocation10 + $0x1dc] sm:$0xf]
        %v9848 = vld [vmem:[#allocation10 + $0x1e0] sm:$0xf]
        %v9849 = vld [vmem:[#allocation10 + $0x1e4] sm:$0xf]
        %v9850 = vld [vmem:[#allocation10 + $0x1e8] sm:$0xf]
        %v9851 = vld [vmem:[#allocation10 + $0x1ec] sm:$0xf]
        %v9852 = vld [vmem:[#allocation10 + $0x1f0] sm:$0xf]
        %v9853 = vld [vmem:[#allocation10 + $0x1f4] sm:$0xf]
        %v9854 = vld [vmem:[#allocation10 + $0x1f8] sm:$0xf]
        %v9855 = vld [vmem:[#allocation10 + $0x1fc] sm:$0xf]
        %v9856 = vld [vmem:[#allocation10 + $0x200] sm:$0xf]
        %v9857 = vld [vmem:[#allocation10 + $0x204] sm:$0xf]
        %v9858 = vld [vmem:[#allocation10 + $0x208] sm:$0xf]
        %v9859 = vld [vmem:[#allocation10 + $0x20c] sm:$0xf]
        %v9860 = vld [vmem:[#allocation10 + $0x210] sm:$0xf]
        %v9861 = vld [vmem:[#allocation10 + $0x214] sm:$0xf]
        %v9862 = vld [vmem:[#allocation10 + $0x218] sm:$0xf]
        %v9863 = vld [vmem:[#allocation10 + $0x21c] sm:$0xf]
        %v9864 = vld [vmem:[#allocation10 + $0x220] sm:$0xf]
        %v9865 = vld [vmem:[#allocation10 + $0x224] sm:$0xf]
        %v9866 = vld [vmem:[#allocation10 + $0x228] sm:$0xf]
        %v9867 = vld [vmem:[#allocation10 + $0x22c] sm:$0xf]
        %v9868 = vld [vmem:[#allocation10 + $0x230] sm:$0xf]
        %v9869 = vld [vmem:[#allocation10 + $0x234] sm:$0xf]
        %v9870 = vld [vmem:[#allocation10 + $0x238] sm:$0xf]
        %v9871 = vld [vmem:[#allocation10 + $0x23c] sm:$0xf]
        %9873 = vst [vmem:[#allocation1] ss:$4 sm:$0xff] %v9725
        %s9875 = scalar_lea.vmem [#allocation1], 32
        %9876 = vst [vmem:[%s9875] ss:$4 sm:$0xff] %v9726
        %v9877 = vld.sshfl [vmem:[#allocation1] sm:$0xff pattern:$0x73625140]
        %v9878 = vld.sshfl [vmem:[#allocation1 + $0x8] sm:$0xff pattern:$0x73625140]
        %v9879 = vld.sshfl [vmem:[#allocation1 + $0x10] sm:$0xff pattern:$0x73625140]
        %v9880 = vld.sshfl [vmem:[#allocation1 + $0x18] sm:$0xff pattern:$0x73625140]
        %v9881 = vld.sshfl [vmem:[#allocation1 + $0x20] sm:$0xff pattern:$0x73625140]
        %v9882 = vld.sshfl [vmem:[#allocation1 + $0x28] sm:$0xff pattern:$0x73625140]
        %v9883 = vld.sshfl [vmem:[#allocation1 + $0x30] sm:$0xff pattern:$0x73625140]
        %v9884 = vld.sshfl [vmem:[#allocation1 + $0x38] sm:$0xff pattern:$0x73625140]
        %9886 = vst [vmem:[#allocation1] ss:$4 sm:$0xff] %v9727
        %v9887 = vld.sshfl [vmem:[#allocation1] sm:$0xff pattern:$0x73625140]
        %v10041 = vunpack.c.l.b16 %v9728
        %v10042 = vunpack.c.l.b16 %v9729
        %v10043 = vunpack.c.l.b16 %v9730
        %v10044 = vunpack.c.l.b16 %v9731
        %v10045 = vunpack.c.l.b16 %v9732
        %v10046 = vunpack.c.l.b16 %v9733
        %v10047 = vunpack.c.l.b16 %v9734
        %v10048 = vunpack.c.l.b16 %v9735
        %v10049 = vunpack.c.l.b16 %v9736
        %v10050 = vunpack.c.l.b16 %v9737
        %v10051 = vunpack.c.l.b16 %v9738
        %v10052 = vunpack.c.l.b16 %v9739
        %v10053 = vunpack.c.l.b16 %v9740
        %v10054 = vunpack.c.l.b16 %v9741
        %v10055 = vunpack.c.l.b16 %v9742
        %v10056 = vunpack.c.l.b16 %v9743
        %v10057 = vunpack.c.l.b16 %v9744
        %v10058 = vunpack.c.l.b16 %v9745
        %v10059 = vunpack.c.l.b16 %v9746
        %v10060 = vunpack.c.l.b16 %v9747
        %v10061 = vunpack.c.l.b16 %v9748
        %v10062 = vunpack.c.l.b16 %v9749
        %v10063 = vunpack.c.l.b16 %v9750
        %v10064 = vunpack.c.l.b16 %v9751
        %v10065 = vunpack.c.l.b16 %v9752
        %v10066 = vunpack.c.l.b16 %v9753
        %v10067 = vunpack.c.l.b16 %v9754
        %v10068 = vunpack.c.l.b16 %v9755
        %v10069 = vunpack.c.l.b16 %v9756
        %v10070 = vunpack.c.l.b16 %v9757
        %v10071 = vunpack.c.l.b16 %v9758
        %v10072 = vunpack.c.l.b16 %v9759
        %v10073 = vunpack.c.l.b16 %v9760
        %v10074 = vunpack.c.l.b16 %v9761
        %v10075 = vunpack.c.l.b16 %v9762
        %v10076 = vunpack.c.l.b16 %v9763
        %v10077 = vunpack.c.l.b16 %v9764
        %v10078 = vunpack.c.l.b16 %v9765
        %v10079 = vunpack.c.l.b16 %v9766
        %v10080 = vunpack.c.l.b16 %v9767
        %v10081 = vunpack.c.l.b16 %v9768
        %v10082 = vunpack.c.l.b16 %v9769
        %v10083 = vunpack.c.l.b16 %v9770
        %v10084 = vunpack.c.l.b16 %v9771
        %v10085 = vunpack.c.l.b16 %v9772
        %v10086 = vunpack.c.l.b16 %v9773
        %v10087 = vunpack.c.l.b16 %v9774
        %v10088 = vunpack.c.l.b16 %v9775
        %v10089 = vunpack.c.l.b16 %v9776
        %v10090 = vunpack.c.l.b16 %v9777
        %v10091 = vunpack.c.l.b16 %v9778
        %v10092 = vunpack.c.l.b16 %v9779
        %v10093 = vunpack.c.l.b16 %v9780
        %v10094 = vunpack.c.l.b16 %v9781
        %v10095 = vunpack.c.l.b16 %v9782
        %v10096 = vunpack.c.l.b16 %v9783
        %v10097 = vunpack.c.l.b16 %v9784
        %v10098 = vunpack.c.l.b16 %v9785
        %v10099 = vunpack.c.l.b16 %v9786
        %v10100 = vunpack.c.l.b16 %v9787
        %v10101 = vunpack.c.l.b16 %v9788
        %v10102 = vunpack.c.l.b16 %v9789
        %v10103 = vunpack.c.l.b16 %v9790
        %v10104 = vunpack.c.l.b16 %v9791
        %v10105 = vunpack.c.l.b16 %v9792
        %v10106 = vunpack.c.l.b16 %v9793
        %v10107 = vunpack.c.l.b16 %v9794
        %v10108 = vunpack.c.l.b16 %v9795
        %v10109 = vunpack.c.l.b16 %v9796
        %v10110 = vunpack.c.l.b16 %v9797
        %v10111 = vunpack.c.l.b16 %v9798
        %v10112 = vunpack.c.l.b16 %v9799
        %v10113 = vunpack.c.l.b16 %v9800
        %v10114 = vunpack.c.l.b16 %v9801
        %v10115 = vunpack.c.l.b16 %v9802
        %v10116 = vunpack.c.l.b16 %v9803
        %v10117 = vunpack.c.l.b16 %v9804
        %v10118 = vunpack.c.l.b16 %v9805
        %v10119 = vunpack.c.l.b16 %v9806
        %v10120 = vunpack.c.l.b16 %v9807
        %v10121 = vunpack.c.l.b16 %v9808
        %v10122 = vunpack.c.l.b16 %v9809
        %v10123 = vunpack.c.l.b16 %v9810
        %v10124 = vunpack.c.l.b16 %v9811
        %v10125 = vunpack.c.l.b16 %v9812
        %v10126 = vunpack.c.l.b16 %v9813
        %v10127 = vunpack.c.l.b16 %v9814
        %v10128 = vunpack.c.l.b16 %v9815
        %v10129 = vunpack.c.l.b16 %v9816
        %v10130 = vunpack.c.l.b16 %v9817
        %v10131 = vunpack.c.l.b16 %v9818
        %v10132 = vunpack.c.l.b16 %v9819
        %v10133 = vunpack.c.l.b16 %v9820
        %v10134 = vunpack.c.l.b16 %v9821
        %v10135 = vunpack.c.l.b16 %v9822
        %v10136 = vunpack.c.l.b16 %v9823
        %v10137 = vunpack.c.l.b16 %v9824
        %v10138 = vunpack.c.l.b16 %v9825
        %v10139 = vunpack.c.l.b16 %v9826
        %v10140 = vunpack.c.l.b16 %v9827
        %v10141 = vunpack.c.l.b16 %v9828
        %v10142 = vunpack.c.l.b16 %v9829
        %v10143 = vunpack.c.l.b16 %v9830
        %v10144 = vunpack.c.l.b16 %v9831
        %v10145 = vunpack.c.l.b16 %v9832
        %v10146 = vunpack.c.l.b16 %v9833
        %v10147 = vunpack.c.l.b16 %v9834
        %v10148 = vunpack.c.l.b16 %v9835
        %v10149 = vunpack.c.l.b16 %v9836
        %v10150 = vunpack.c.l.b16 %v9837
        %v10151 = vunpack.c.l.b16 %v9838
        %v10152 = vunpack.c.l.b16 %v9839
        %v10153 = vunpack.c.l.b16 %v9840
        %v10154 = vunpack.c.l.b16 %v9841
        %v10155 = vunpack.c.l.b16 %v9842
        %v10156 = vunpack.c.l.b16 %v9843
        %v10157 = vunpack.c.l.b16 %v9844
        %v10158 = vunpack.c.l.b16 %v9845
        %v10159 = vunpack.c.l.b16 %v9846
        %v10160 = vunpack.c.l.b16 %v9847
        %v10161 = vunpack.c.l.b16 %v9848
        %v10162 = vunpack.c.l.b16 %v9849
        %v10163 = vunpack.c.l.b16 %v9850
        %v10164 = vunpack.c.l.b16 %v9851
        %v10165 = vunpack.c.l.b16 %v9852
        %v10166 = vunpack.c.l.b16 %v9853
        %v10167 = vunpack.c.l.b16 %v9854
        %v10168 = vunpack.c.l.b16 %v9855
        %v10169 = vunpack.c.l.b16 %v9856
        %v10170 = vunpack.c.l.b16 %v9857
        %v10171 = vunpack.c.l.b16 %v9858
        %v10172 = vunpack.c.l.b16 %v9859
        %v10173 = vunpack.c.l.b16 %v9860
        %v10174 = vunpack.c.l.b16 %v9861
        %v10175 = vunpack.c.l.b16 %v9862
        %v10176 = vunpack.c.l.b16 %v9863
        %v10177 = vunpack.c.l.b16 %v9864
        %v10178 = vunpack.c.l.b16 %v9865
        %v10179 = vunpack.c.l.b16 %v9866
        %v10180 = vunpack.c.l.b16 %v9867
        %v10181 = vunpack.c.l.b16 %v9868
        %v10182 = vunpack.c.l.b16 %v9869
        %v10183 = vunpack.c.l.b16 %v9870
        %v10184 = vunpack.c.l.b16 %v9871
        %v10185 = vpack.c.b16 %v10042, %v10041
        %v10186 = vpack.c.b16 %v10044, %v10043
        %v10187 = vpack.c.b16 %v10046, %v10045
        %v10188 = vpack.c.b16 %v10048, %v10047
        %v10189 = vpack.c.b16 %v10050, %v10049
        %v10190 = vpack.c.b16 %v10052, %v10051
        %v10191 = vpack.c.b16 %v10054, %v10053
        %v10192 = vpack.c.b16 %v10056, %v10055
        %v10193 = vpack.c.b16 %v10058, %v10057
        %v10194 = vpack.c.b16 %v10060, %v10059
        %v10195 = vpack.c.b16 %v10062, %v10061
        %v10196 = vpack.c.b16 %v10064, %v10063
        %v10197 = vpack.c.b16 %v10066, %v10065
        %v10198 = vpack.c.b16 %v10068, %v10067
        %v10199 = vpack.c.b16 %v10070, %v10069
        %v10200 = vpack.c.b16 %v10072, %v10071
        %v10201 = vpack.c.b16 %v10074, %v10073
        %v10202 = vpack.c.b16 %v10076, %v10075
        %v10203 = vpack.c.b16 %v10078, %v10077
        %v10204 = vpack.c.b16 %v10080, %v10079
        %v10205 = vpack.c.b16 %v10082, %v10081
        %v10206 = vpack.c.b16 %v10084, %v10083
        %v10207 = vpack.c.b16 %v10086, %v10085
        %v10208 = vpack.c.b16 %v10088, %v10087
        %v10209 = vpack.c.b16 %v10090, %v10089
        %v10210 = vpack.c.b16 %v10092, %v10091
        %v10211 = vpack.c.b16 %v10094, %v10093
        %v10212 = vpack.c.b16 %v10096, %v10095
        %v10213 = vpack.c.b16 %v10098, %v10097
        %v10214 = vpack.c.b16 %v10100, %v10099
        %v10215 = vpack.c.b16 %v10102, %v10101
        %v10216 = vpack.c.b16 %v10104, %v10103
        %v10217 = vpack.c.b16 %v10106, %v10105
        %v10218 = vpack.c.b16 %v10108, %v10107
        %v10219 = vpack.c.b16 %v10110, %v10109
        %v10220 = vpack.c.b16 %v10112, %v10111
        %v10221 = vpack.c.b16 %v10114, %v10113
        %v10222 = vpack.c.b16 %v10116, %v10115
        %v10223 = vpack.c.b16 %v10118, %v10117
        %v10224 = vpack.c.b16 %v10120, %v10119
        %v10225 = vpack.c.b16 %v10122, %v10121
        %v10226 = vpack.c.b16 %v10124, %v10123
        %v10227 = vpack.c.b16 %v10126, %v10125
        %v10228 = vpack.c.b16 %v10128, %v10127
        %v10229 = vpack.c.b16 %v10130, %v10129
        %v10230 = vpack.c.b16 %v10132, %v10131
        %v10231 = vpack.c.b16 %v10134, %v10133
        %v10232 = vpack.c.b16 %v10136, %v10135
        %v10233 = vpack.c.b16 %v10138, %v10137
        %v10234 = vpack.c.b16 %v10140, %v10139
        %v10235 = vpack.c.b16 %v10142, %v10141
        %v10236 = vpack.c.b16 %v10144, %v10143
        %v10237 = vpack.c.b16 %v10146, %v10145
        %v10238 = vpack.c.b16 %v10148, %v10147
        %v10239 = vpack.c.b16 %v10150, %v10149
        %v10240 = vpack.c.b16 %v10152, %v10151
        %v10241 = vpack.c.b16 %v10154, %v10153
        %v10242 = vpack.c.b16 %v10156, %v10155
        %v10243 = vpack.c.b16 %v10158, %v10157
        %v10244 = vpack.c.b16 %v10160, %v10159
        %v10245 = vpack.c.b16 %v10162, %v10161
        %v10246 = vpack.c.b16 %v10164, %v10163
        %v10247 = vpack.c.b16 %v10166, %v10165
        %v10248 = vpack.c.b16 %v10168, %v10167
        %v10249 = vpack.c.b16 %v10170, %v10169
        %v10250 = vpack.c.b16 %v10172, %v10171
        %v10251 = vpack.c.b16 %v10174, %v10173
        %v10252 = vpack.c.b16 %v10176, %v10175
        %v10253 = vpack.c.b16 %v10178, %v10177
        %v10254 = vpack.c.b16 %v10180, %v10179
        %v10255 = vpack.c.b16 %v10182, %v10181
        %v10256 = vpack.c.b16 %v10184, %v10183
        %10329 = vmatpush.bf16.msra.mxu0 %v10192
        %10330 = vmatpush.bf16.msra.mxu0 %v10191
        %10331 = vmatpush.bf16.msra.mxu0 %v10190
        %10332 = vmatpush.bf16.msra.mxu0 %v10189
        %10333 = vmatpush.bf16.msra.mxu0 %v10188
        %10334 = vmatpush.bf16.msra.mxu0 %v10187
        %10335 = vmatpush.bf16.msra.mxu0 %v10186
        %10336 = vmatpush.bf16.msra.mxu0 %v10185
        %10337 = vmatmul.bf16.gmra.mxu0 %v9877
        %v10338 = vpop.f32.mrf.mxu0
        %v10339 = vadd.f32 0.0, %v10338
        %v10340 = vpop.f32.mrf.mxu0
        %10341 = vdwg.mxu0
        %10342 = vmatpush.bf16.msra.mxu0 %v10200
        %10343 = vmatpush.bf16.msra.mxu0 %v10199
        %10344 = vmatpush.bf16.msra.mxu0 %v10198
        %10345 = vmatpush.bf16.msra.mxu0 %v10197
        %10346 = vmatpush.bf16.msra.mxu0 %v10196
        %10347 = vmatpush.bf16.msra.mxu0 %v10195
        %10348 = vmatpush.bf16.msra.mxu0 %v10194
        %10349 = vmatpush.bf16.msra.mxu0 %v10193
        %10350 = vmatmul.bf16.gmra.mxu0 %v9878
        %v10351 = vpop.f32.mrf.mxu0
        %v10352 = vadd.f32 %v10339, %v10351
        %v10353 = vpop.f32.mrf.mxu0
        %10354 = vdwg.mxu0
        %10355 = vmatpush.bf16.msra.mxu0 %v10208
        %10356 = vmatpush.bf16.msra.mxu0 %v10207
        %10357 = vmatpush.bf16.msra.mxu0 %v10206
        %10358 = vmatpush.bf16.msra.mxu0 %v10205
        %10359 = vmatpush.bf16.msra.mxu0 %v10204
        %10360 = vmatpush.bf16.msra.mxu0 %v10203
        %10361 = vmatpush.bf16.msra.mxu0 %v10202
        %10362 = vmatpush.bf16.msra.mxu0 %v10201
        %10363 = vmatmul.bf16.gmra.mxu0 %v9879
        %v10364 = vpop.f32.mrf.mxu0
        %v10365 = vadd.f32 %v10352, %v10364
        %v10366 = vpop.f32.mrf.mxu0
        %10367 = vdwg.mxu0
        %10368 = vmatpush.bf16.msra.mxu0 %v10216
        %10369 = vmatpush.bf16.msra.mxu0 %v10215
        %10370 = vmatpush.bf16.msra.mxu0 %v10214
        %10371 = vmatpush.bf16.msra.mxu0 %v10213
        %10372 = vmatpush.bf16.msra.mxu0 %v10212
        %10373 = vmatpush.bf16.msra.mxu0 %v10211
        %10374 = vmatpush.bf16.msra.mxu0 %v10210
        %10375 = vmatpush.bf16.msra.mxu0 %v10209
        %10376 = vmatmul.bf16.gmra.mxu0 %v9880
        %v10377 = vpop.f32.mrf.mxu0
        %v10378 = vadd.f32 %v10365, %v10377
        %v10379 = vpop.f32.mrf.mxu0
        %10380 = vdwg.mxu0
        %10381 = vmatpush.bf16.msra.mxu0 %v10224
        %10382 = vmatpush.bf16.msra.mxu0 %v10223
        %10383 = vmatpush.bf16.msra.mxu0 %v10222
        %10384 = vmatpush.bf16.msra.mxu0 %v10221
        %10385 = vmatpush.bf16.msra.mxu0 %v10220
        %10386 = vmatpush.bf16.msra.mxu0 %v10219
        %10387 = vmatpush.bf16.msra.mxu0 %v10218
        %10388 = vmatpush.bf16.msra.mxu0 %v10217
        %10389 = vmatmul.bf16.gmra.mxu0 %v9881
        %v10390 = vpop.f32.mrf.mxu0
        %v10391 = vadd.f32 %v10378, %v10390
        %v10392 = vpop.f32.mrf.mxu0
        %10393 = vdwg.mxu0
        %10394 = vmatpush.bf16.msra.mxu0 %v10232
        %10395 = vmatpush.bf16.msra.mxu0 %v10231
        %10396 = vmatpush.bf16.msra.mxu0 %v10230
        %10397 = vmatpush.bf16.msra.mxu0 %v10229
        %10398 = vmatpush.bf16.msra.mxu0 %v10228
        %10399 = vmatpush.bf16.msra.mxu0 %v10227
        %10400 = vmatpush.bf16.msra.mxu0 %v10226
        %10401 = vmatpush.bf16.msra.mxu0 %v10225
        %10402 = vmatmul.bf16.gmra.mxu0 %v9882
        %v10403 = vpop.f32.mrf.mxu0
        %v10404 = vadd.f32 %v10391, %v10403
        %v10405 = vpop.f32.mrf.mxu0
        %10406 = vdwg.mxu0
        %10407 = vmatpush.bf16.msra.mxu0 %v10240
        %10408 = vmatpush.bf16.msra.mxu0 %v10239
        %10409 = vmatpush.bf16.msra.mxu0 %v10238
        %10410 = vmatpush.bf16.msra.mxu0 %v10237
        %10411 = vmatpush.bf16.msra.mxu0 %v10236
        %10412 = vmatpush.bf16.msra.mxu0 %v10235
        %10413 = vmatpush.bf16.msra.mxu0 %v10234
        %10414 = vmatpush.bf16.msra.mxu0 %v10233
        %10415 = vmatmul.bf16.gmra.mxu0 %v9883
        %v10416 = vpop.f32.mrf.mxu0
        %v10417 = vadd.f32 %v10404, %v10416
        %v10418 = vpop.f32.mrf.mxu0
        %10419 = vdwg.mxu0
        %10420 = vmatpush.bf16.msra.mxu0 %v10248
        %10421 = vmatpush.bf16.msra.mxu0 %v10247
        %10422 = vmatpush.bf16.msra.mxu0 %v10246
        %10423 = vmatpush.bf16.msra.mxu0 %v10245
        %10424 = vmatpush.bf16.msra.mxu0 %v10244
        %10425 = vmatpush.bf16.msra.mxu0 %v10243
        %10426 = vmatpush.bf16.msra.mxu0 %v10242
        %10427 = vmatpush.bf16.msra.mxu0 %v10241
        %10428 = vmatmul.bf16.gmra.mxu0 %v9884
        %v10429 = vpop.f32.mrf.mxu0
        %v10430 = vadd.f32 %v10417, %v10429
        %v10431 = vpop.f32.mrf.mxu0
        %10432 = vdwg.mxu0
        %10433 = vmatpush.bf16.msra.mxu0 %v10256
        %10434 = vmatpush.bf16.msra.mxu0 %v10255
        %10435 = vmatpush.bf16.msra.mxu0 %v10254
        %10436 = vmatpush.bf16.msra.mxu0 %v10253
        %10437 = vmatpush.bf16.msra.mxu0 %v10252
        %10438 = vmatpush.bf16.msra.mxu0 %v10251
        %10439 = vmatpush.bf16.msra.mxu0 %v10250
        %10440 = vmatpush.bf16.msra.mxu0 %v10249
        %10441 = vmatmul.bf16.gmra.mxu0 %v9887
        %v10442 = vpop.f32.mrf.mxu0
        %v10443 = vadd.f32 %v10430, %v10442
        %v10444 = vpop.f32.mrf.mxu0
        %10445 = vdwg.mxu0
        %v10446 = vld [vmem:[%s14] sm:$0x1]
        %v10448 = vperm.slane %v10446, 0
        %v10450 = vmul.f32 %v10443, %v10448
        %v10451 = vld [vmem:[%s15] sm:$0x1]
        %v10453 = vperm.slane %v10451, 0
        %v10455 = vadd.f32 %v10450, %v10453
        %v10456 = vmax.f32 %v10455, 0.0
        %v10457 = vsel %vm1004, %v10456, -inf
        %v10458 = vrot.slane %v10457, 4
        %v10459 = vmax.f32 %v10457, %v10458
        %v10460 = vrot.slane %v10459, 2
        %v10461 = vmax.f32 %v10459, %v10460
        %v10462 = vrot.slane %v10461, 1
        %v10463 = vmax.f32 %v10461, %v10462
        %v10464 = vld [vmem:[%s16] sm:$0xff]
        %v10465 = vld [vmem:[%s16 + $0x8] sm:$0xff]
        %v10466 = vld [vmem:[%s16 + $0x10] sm:$0xff]
        %v10467 = vld [vmem:[%s16 + $0x18] sm:$0xff]
        %v10468 = vld [vmem:[%s16 + $0x20] sm:$0xff]
        %v10469 = vld [vmem:[%s16 + $0x28] sm:$0xff]
        %v10470 = vld [vmem:[%s16 + $0x30] sm:$0xff]
        %v10471 = vld [vmem:[%s16 + $0x38] sm:$0xff]
        %v10472 = vld [vmem:[%s16 + $0x40] sm:$0xff]
        %v10473 = vld [vmem:[%s16 + $0x48] sm:$0xff]
        %v10474 = vld [vmem:[%s16 + $0x50] sm:$0xff]
        %v10475 = vld [vmem:[%s16 + $0x58] sm:$0xff]
        %v10476 = vld [vmem:[%s16 + $0x60] sm:$0xff]
        %v10477 = vld [vmem:[%s16 + $0x68] sm:$0xff]
        %v10478 = vld [vmem:[%s16 + $0x70] sm:$0xff]
        %v10479 = vld [vmem:[%s16 + $0x78] sm:$0xff]
        %v10480 = vld [vmem:[%s17] sm:$0x1]
        %10481 = vmatpush.msra.mxu0 %v10479
        %10482 = vmatpush.msra.mxu0 %v10478
        %10483 = vmatpush.msra.mxu0 %v10477
        %10484 = vmatpush.msra.mxu0 %v10476
        %10485 = vmatpush.msra.mxu0 %v10475
        %10486 = vmatpush.msra.mxu0 %v10474
        %10487 = vmatpush.msra.mxu0 %v10473
        %10488 = vmatpush.msra.mxu0 %v10472
        %10489 = vmatpush.msra.mxu0 %v10471
        %10490 = vmatpush.msra.mxu0 %v10470
        %10491 = vmatpush.msra.mxu0 %v10469
        %10492 = vmatpush.msra.mxu0 %v10468
        %10493 = vmatpush.msra.mxu0 %v10467
        %10494 = vmatpush.msra.mxu0 %v10466
        %10495 = vmatpush.msra.mxu0 %v10465
        %10496 = vmatpush.msra.mxu0 %v10464
        %10497 = vmatmul.f32.gmra.mxu0 %v10463
        %v10498 = vpop.f32.mrf.mxu0
        %v10499 = vadd.f32 %v10480, %v10498
        %10500 = vdwg.mxu0
        %v10501 = vmax.f32 %v10499, 0.0
        %v10502 = vld [vmem:[%s18] sm:$0xff]
        %v10503 = vld [vmem:[%s18 + $0x8] sm:$0xff]
        %v10504 = vld [vmem:[%s18 + $0x10] sm:$0xff]
        %v10505 = vld [vmem:[%s18 + $0x18] sm:$0xff]
        %v10506 = vld [vmem:[%s18 + $0x20] sm:$0xff]
        %v10507 = vld [vmem:[%s18 + $0x28] sm:$0xff]
        %v10508 = vld [vmem:[%s18 + $0x30] sm:$0xff]
        %v10509 = vld [vmem:[%s18 + $0x38] sm:$0xff]
        %v10510 = vld [vmem:[%s19] sm:$0x1]
        %v10512 = vsel %vm702, %v10501, 0
        %10514 = vmatpush.msra.mxu0 0.0
        %10515 = vmatpush.msra.mxu0 0.0
        %10516 = vmatpush.msra.mxu0 0.0
        %10517 = vmatpush.msra.mxu0 0.0
        %10518 = vmatpush.msra.mxu0 0.0
        %10519 = vmatpush.msra.mxu0 0.0
        %10520 = vmatpush.msra.mxu0 0.0
        %10521 = vmatpush.msra.mxu0 0.0
        %10522 = vmatpush.msra.mxu0 %v10509
        %10523 = vmatpush.msra.mxu0 %v10508
        %10524 = vmatpush.msra.mxu0 %v10507
        %10525 = vmatpush.msra.mxu0 %v10506
        %10526 = vmatpush.msra.mxu0 %v10505
        %10527 = vmatpush.msra.mxu0 %v10504
        %10528 = vmatpush.msra.mxu0 %v10503
        %10529 = vmatpush.msra.mxu0 %v10502
        %10530 = vmatmul.f32.gmra.mxu0 %v10512
        %v10531 = vpop.f32.mrf.mxu0
        %v10532 = vadd.f32 %v10510, %v10531
        %10533 = vdwg.mxu0
        %v10534 = vmax.f32 %v10532, 0.0
        %v10535 = vld [vmem:[%s20] sm:$0xff]
        %v10536 = vld [vmem:[%s20 + $0x8] sm:$0xff]
        %v10537 = vld [vmem:[%s20 + $0x10] sm:$0xff]
        %v10538 = vld [vmem:[%s20 + $0x18] sm:$0xff]
        %v10539 = vld [vmem:[%s21] sm:$0x1]
        %v10541 = vsel %vm699, %v10534, 0
        %10543 = vmatpush.msra.mxu0 0.0
        %10544 = vmatpush.msra.mxu0 0.0
        %10545 = vmatpush.msra.mxu0 0.0
        %10546 = vmatpush.msra.mxu0 0.0
        %10547 = vmatpush.msra.mxu0 0.0
        %10548 = vmatpush.msra.mxu0 0.0
        %10549 = vmatpush.msra.mxu0 0.0
        %10550 = vmatpush.msra.mxu0 0.0
        %10551 = vmatpush.msra.mxu0 0.0
        %10552 = vmatpush.msra.mxu0 0.0
        %10553 = vmatpush.msra.mxu0 0.0
        %10554 = vmatpush.msra.mxu0 0.0
        %10555 = vmatpush.msra.mxu0 %v10538
        %10556 = vmatpush.msra.mxu0 %v10537
        %10557 = vmatpush.msra.mxu0 %v10536
        %10558 = vmatpush.msra.mxu0 %v10535
        %10559 = vmatmul.f32.gmra.mxu0 %v10541
        %v10560 = vpop.f32.mrf.mxu0
        %v10561 = vadd.f32 %v10539, %v10560
        %10562 = vdwg.mxu0
        %vm10563 = vcmask 8192
        %10564 = vst.msk [vmem:[%s690] sm:$0x1] %vm10563, %v10561
        %s10565 = sand.u32 %s512, 1
        %s10566 = scalar_lea.sflag [#allocation12], %s10565
        %s10567 = sand.u32 %s512, 1
        %s10568 = scalar_lea.vmem [#allocation13], %s10567
        // Predicated region
        $region113: #{dilated_net_forward.1} parent=107 // pred_check
          %p10569 = pneg %p522
        $region114: #{dilated_net_forward.1} parent=107 // pred_check_branch
          %10571 = sbr.rel (%p10569) target = $region116
        $region115: #{dilated_net_forward.1} parent=107 // pred_region
          %10573 = vsyncadd %s10566, 0
          %s10574 = scalar_lea.hbm %s22, %s37
          %s10576 = sshll.u32 %s10568, 4
          %s10577 = int_to_ptr.vmem [resolvable:$true] %s10576
          %s10578 = sshll.u32 %s10574, 4
          %s10579 = int_to_ptr.hbm [resolvable:$true] %s10578
          %10581 = dma.vmem_to_hbm [thread:$0]  %s10577, 16, %s10579, %s10566
        $region116: #{dilated_net_forward.1} parent=107 // pred_fallthru
          _
      $region108: #{dilated_net_forward.1} parent=5 // pred_fallthru
        _
      %p10582 = scmp.le.s32.totalorder 2, %s32
      // Predicated region
      $region117: #{dilated_net_forward.1} parent=5 // pred_check
        %p10583 = pneg %p10582
      $region118: #{dilated_net_forward.1} parent=5 // pred_check_branch
        %10585 = sbr.rel (%p10583) target = $region120
      $region119: #{dilated_net_forward.1} parent=5 // pred_region
        %s10586 = ssub.s32 %s32, 2
        // Predicated region
        $region121: #{dilated_net_forward.1} parent=119 // pred_check
          %p10587 = pneg %p528
        $region122: #{dilated_net_forward.1} parent=119 // pred_check_branch
          %10589 = sbr.rel (%p10587) target = $region124
        $region123: #{dilated_net_forward.1} parent=119 // pred_region
          %s10590 = sand.u32 %s513, 1
          %s10591 = scalar_lea.sflag [#allocation12], %s10590
          %s10592 = sand.u32 %s513, 1
          %s10593 = scalar_lea.vmem [#allocation13], %s10592
          %10595 = dma.done %s10591, 16
        $region124: #{dilated_net_forward.1} parent=119 // pred_fallthru
          _
      $region120: #{dilated_net_forward.1} parent=5 // pred_fallthru
        _
    $region6: #{dilated_net_forward.1} parent=1 // loop_footer
      %s36 = sadd.s32 1, %s32
    $region7: #{dilated_net_forward.1} parent=1 // loop_footer_branch
      %31 = sbr.rel target = $region3
    $region8: #{dilated_net_forward.1} parent=1 // loop_exit
      _
    %10596 = vsyncpa [#allocation11], 1
    %s10597 = scalar_lea.sflag [#allocation11], 1
    %10598 = vsyncpa %s10597, 1
    %10599 = vsyncpa [#allocation12], 1
    %s10600 = scalar_lea.sflag [#allocation12], 1
    %10601 = vsyncpa %s10600, 1

</llo_original>
